<compile_context>
chip_gen: v7x
topology: tpu7x:2x2x1
jax: 0.10.0
libtpu: 0.0.40
codegen_flags: <defaults>
</compile_context>

<pallas_src>
import functools

import numpy as np
import jax
import jax.numpy as jnp
from jax.experimental import pallas as pl
from jax.experimental.pallas import tpu as pltpu


def _round_up(a, b):
    return (a + b - 1) // b * b


# ----------------------------------------------------------------------------
# Pallas kernel: per (frame-tile, bin-tile) spectral-convergence partial sums
# ----------------------------------------------------------------------------
def _sc_kernel(xf_ref, yf_ref, basis_ref, num_ref, den_ref, *, tk):
    xf = xf_ref[...]                      # (tn, F_pad) bf16 windowed frames
    yf = yf_ref[...]                      # (tn, F_pad) bf16
    b = basis_ref[...]                    # (F_pad, 2*tk) bf16: [cos_j | -sin_j]

    xz = jnp.dot(xf, b, preferred_element_type=jnp.float32)   # (tn, 2*tk) f32
    yz = jnp.dot(yf, b, preferred_element_type=jnp.float32)

    xr, xi = xz[:, :tk], xz[:, tk:]
    yr, yi = yz[:, :tk], yz[:, tk:]

    # torch: sqrt(clamp(|STFT|, min=1e-7))
    x_mag = jnp.sqrt(jnp.maximum(jnp.sqrt(xr * xr + xi * xi), 1e-7))
    y_mag = jnp.sqrt(jnp.maximum(jnp.sqrt(yr * yr + yi * yi), 1e-7))

    diff = jnp.abs(y_mag - x_mag)

    tn = diff.shape[0]
    # Layout-free reshape (splits the sublane-tile axis) then vreg-wise adds.
    num_ref[...] = diff.reshape(tn // 8, 8, tk).sum(axis=0)     # (8, tk)
    den_ref[...] = y_mag.reshape(tn // 8, 8, tk).sum(axis=0)    # (8, tk)


# ----------------------------------------------------------------------------
# Host-side constants (cached numpy) — matches torch.stft defaults
# ----------------------------------------------------------------------------
@functools.lru_cache(maxsize=None)
def _np_window(fft_size, win_length):
    # torch.hann_window(win_length) (periodic), centered zero-pad to fft_size
    n = np.arange(win_length, dtype=np.float64)
    w = 0.5 - 0.5 * np.cos(2.0 * np.pi * n / win_length)
    if win_length < fft_size:
        lpad = (fft_size - win_length) // 2
        w = np.pad(w, (lpad, fft_size - win_length - lpad))
    return w.astype(np.float32)


@functools.lru_cache(maxsize=None)
def _np_basis(fft_size, f_pad, tk, k_pad):
    """Onesided DFT basis, zero-padded and interleaved per bin tile:
    cols [j*2tk : j*2tk+tk] = cos of bins [j*tk,(j+1)*tk); next tk = -sin."""
    n_bins = fft_size // 2 + 1
    n = np.arange(fft_size, dtype=np.float64)[:, None]
    k = np.arange(n_bins, dtype=np.float64)[None, :]
    ang = 2.0 * np.pi * n * k / fft_size
    cos = np.pad(np.cos(ang), ((0, f_pad - fft_size), (0, k_pad - n_bins)))
    sin = np.pad(-np.sin(ang), ((0, f_pad - fft_size), (0, k_pad - n_bins)))
    n_j = k_pad // tk
    basis = np.concatenate(
        [cos.reshape(f_pad, n_j, tk), sin.reshape(f_pad, n_j, tk)], axis=2)
    return basis.reshape(f_pad, n_j * 2 * tk).astype(np.float32)


def _frame_signal(x, fft_size, hop_size):
    """x: (B, T) -> (B, n_frames, fft_size) with torch.stft center/reflect."""
    pad = fft_size // 2
    xp = jnp.pad(x, ((0, 0), (pad, pad)), mode='reflect')
    t_pad = xp.shape[1]
    n_frames = 1 + (t_pad - fft_size) // hop_size
    idx = (jnp.arange(n_frames)[:, None] * hop_size
           + jnp.arange(fft_size)[None, :])
    return xp[:, idx]


# ----------------------------------------------------------------------------
# Single-resolution spectral convergence via the Pallas kernel
# ----------------------------------------------------------------------------
def spectral_convergence(x_sig, y_sig, fft_size, hop_size, win_length):
    """x_sig, y_sig: (B, T). Returns scalar ||y_mag - x_mag||_1 / ||y_mag||_1."""
    B, _ = x_sig.shape
    K = fft_size // 2 + 1

    # Tiling policy: resident basis (single bin tile) for fft <= 1280,
    # 512-wide bin tiles otherwise; lane-pad the contraction dim to 128.
    k128 = _round_up(K, 128)
    tk = k128 if k128 <= 768 else 512
    k_pad = _round_up(K, tk)
    f_pad = _round_up(fft_size, 128)

    window = jnp.asarray(_np_window(fft_size, win_length))
    x_frames = _frame_signal(x_sig, fft_size, hop_size) * window
    y_frames = _frame_signal(y_sig, fft_size, hop_size) * window
    n_frames = x_frames.shape[1]
    N = B * n_frames

    tn_max = 512 if fft_size <= 512 else 256
    tn = min(tn_max, _round_up(N, 8))
    n_pad = _round_up(N, tn)
    n_i = n_pad // tn
    n_j = k_pad // tk

    def pack(frames):
        f = frames.reshape(N, fft_size).astype(jnp.float32)
        f = jnp.pad(f, ((0, n_pad - N), (0, f_pad - fft_size)))
        return f.astype(jnp.bfloat16)

    xf = pack(x_frames)
    yf = pack(y_frames)
    basis = jnp.asarray(_np_basis(fft_size, f_pad, tk, k_pad),
                        dtype=jnp.bfloat16)

    grid = (n_j, n_i)   # bins outer: basis streams once, frames refetched <= n_j times
    kernel = functools.partial(_sc_kernel, tk=tk)

    num_out, den_out = pl.pallas_call(
        kernel,
        out_shape=(jax.ShapeDtypeStruct((8 * n_i, k_pad), jnp.float32),
                   jax.ShapeDtypeStruct((8 * n_i, k_pad), jnp.float32)),
        grid_spec=pltpu.PrefetchScalarGridSpec(
            num_scalar_prefetch=0,
            grid=grid,
            in_specs=[
                pl.BlockSpec((tn, f_pad), lambda j, i: (i, 0)),      # x frames
                pl.BlockSpec((tn, f_pad), lambda j, i: (i, 0)),      # y frames
                pl.BlockSpec((f_pad, 2 * tk), lambda j, i: (0, j)),  # DFT basis
            ],
            out_specs=[
                pl.BlockSpec((8, tk), lambda j, i: (i, j)),
                pl.BlockSpec((8, tk), lambda j, i: (i, j)),
            ],
        ),
        compiler_params=pltpu.CompilerParams(
            dimension_semantics=("parallel", "parallel"),
            vmem_limit_bytes=48 * 1024 * 1024),
    )(xf, yf, basis)

    num = jnp.sum(num_out)
    # Padded frame rows / bin columns dot to exactly 0, so each padded cell
    # adds exactly sqrt(1e-7) to the denominator and 0 to the numerator.
    pad_cells = n_pad * k_pad - N * K
    den = jnp.sum(den_out) - jnp.float32(pad_cells) * jnp.sqrt(jnp.float32(1e-7))
    return num / den


def multi_resolution_spectral_convergence(
        x, y,
        fft_sizes=(2560, 1280, 640, 320, 160, 80),
        hop_sizes=(640, 320, 160, 80, 40, 20),
        win_lengths=(2560, 1280, 640, 320, 160, 80)):
    """x, y: (B, 1, T) float32. Returns scalar multi-resolution SC loss."""
    # TODO(synk): the six per-resolution pallas_calls could be merged into
    # fewer launches, but shapes differ per resolution; kept separate.
    x_sig = jnp.squeeze(x, axis=1)
    y_sig = jnp.squeeze(y, axis=1)
    sc_loss = 0.0
    for fs, hs, wl in zip(fft_sizes, hop_sizes, win_lengths):
        sc_loss = sc_loss + spectral_convergence(x_sig, y_sig, fs, hs, wl)
    return sc_loss / len(fft_sizes)


# ----------------------------------------------------------------------------
# Pure-JAX reference (rfft, f32) for a sanity check
# ----------------------------------------------------------------------------
def _reference_loss(x, y, fft_sizes, hop_sizes, win_lengths):
    x_sig = jnp.squeeze(x, axis=1)
    y_sig = jnp.squeeze(y, axis=1)

    def one(fs, hs, wl):
        window = jnp.asarray(_np_window(fs, wl))
        xf = _frame_signal(x_sig, fs, hs) * window
        yf = _frame_signal(y_sig, fs, hs) * window
        xm = jnp.sqrt(jnp.maximum(jnp.abs(jnp.fft.rfft(xf, axis=-1)), 1e-7))
        ym = jnp.sqrt(jnp.maximum(jnp.abs(jnp.fft.rfft(yf, axis=-1)), 1e-7))
        return jnp.sum(jnp.abs(ym - xm)) / jnp.sum(jnp.abs(ym))

    total = 0.0
    for fs, hs, wl in zip(fft_sizes, hop_sizes, win_lengths):
        total = total + one(fs, hs, wl)
    return total / len(fft_sizes)


if __name__ == "__main__":
    key = jax.random.PRNGKey(0)
    kx, ky = jax.random.split(key)
    B, T = 2, 4096  # T must exceed max(fft)/2 for reflect padding (torch.stft)
    x = jax.random.normal(kx, (B, 1, T), dtype=jnp.float32)
    y = jax.random.normal(ky, (B, 1, T), dtype=jnp.float32)

    fft_sizes = (2560, 1280, 640, 320, 160, 80)
    hop_sizes = (640, 320, 160, 80, 40, 20)
    win_lengths = (2560, 1280, 640, 320, 160, 80)

    loss = multi_resolution_spectral_convergence(
        x, y, fft_sizes, hop_sizes, win_lengths)
    loss = jax.block_until_ready(loss)

    ref = _reference_loss(x, y, fft_sizes, hop_sizes, win_lengths)
    ref = jax.block_until_ready(ref)

    assert jnp.isfinite(loss), "kernel produced non-finite loss"
    assert jnp.allclose(loss, ref, rtol=2e-2, atol=1e-3), (
        f"mismatch: kernel={float(loss)} ref={float(ref)}")

    print("KERNEL_OK")
</pallas_src>

<mosaic_0001>
module attributes {stable_mosaic.version = 11 : i64} {
  func.func @_sc_kernel(%arg0: i32, %arg1: i32, %arg2: memref<16x2560xbf16, #tpu.memory_space<vmem>>, %arg3: memref<16x2560xbf16, #tpu.memory_space<vmem>>, %arg4: memref<2560x1024xbf16, #tpu.memory_space<vmem>>, %arg5: memref<8x512xf32, #tpu.memory_space<vmem>>, %arg6: memref<8x512xf32, #tpu.memory_space<vmem>>) attributes {dimension_semantics = [#tpu.dimension_semantics<parallel>, #tpu.dimension_semantics<parallel>], iteration_bounds = array<i64: 3, 1>, scalar_prefetch = 0 : i64, scratch_operands = 0 : i64, tpu.core_type = #tpu.core_type<tc>, window_params = [{transform_indices = @transform_0, window_bounds = array<i64: 16, 2560>}, {transform_indices = @transform_1, window_bounds = array<i64: 16, 2560>}, {transform_indices = @transform_2, window_bounds = array<i64: 2560, 1024>}, {transform_indices = @transform_3, window_bounds = array<i64: 8, 512>}, {transform_indices = @transform_4, window_bounds = array<i64: 8, 512>}]} {
    %c0 = arith.constant 0 : index
    %c0_0 = arith.constant 0 : index
    %0 = vector.load %arg2[%c0, %c0_0] : memref<16x2560xbf16, #tpu.memory_space<vmem>>, vector<16x2560xbf16>
    %c0_1 = arith.constant 0 : index
    %c0_2 = arith.constant 0 : index
    %1 = vector.load %arg3[%c0_1, %c0_2] : memref<16x2560xbf16, #tpu.memory_space<vmem>>, vector<16x2560xbf16>
    %c0_3 = arith.constant 0 : index
    %c0_4 = arith.constant 0 : index
    %2 = vector.load %arg4[%c0_3, %c0_4] : memref<2560x1024xbf16, #tpu.memory_space<vmem>>, vector<2560x1024xbf16>
    %cst = arith.constant dense<0.000000e+00> : vector<16x1024xf32>
    %3 = tpu.matmul %0, %2, %cst {dimension_numbers = #tpu.dot_dimension_numbers<[1], [0], [0], [1], [0, 0, 1, 1], [], []>} : vector<16x2560xbf16>, vector<2560x1024xbf16>, vector<16x1024xf32> -> vector<16x1024xf32>
    %cst_5 = arith.constant dense<0.000000e+00> : vector<16x1024xf32>
    %4 = tpu.matmul %1, %2, %cst_5 {dimension_numbers = #tpu.dot_dimension_numbers<[1], [0], [0], [1], [0, 0, 1, 1], [], []>} : vector<16x2560xbf16>, vector<2560x1024xbf16>, vector<16x1024xf32> -> vector<16x1024xf32>
    %5 = vector.extract_strided_slice %3 {offsets = [0, 0], sizes = [16, 512], strides = [1, 1]} : vector<16x1024xf32> to vector<16x512xf32>
    %6 = vector.extract_strided_slice %3 {offsets = [0, 512], sizes = [16, 512], strides = [1, 1]} : vector<16x1024xf32> to vector<16x512xf32>
    %7 = vector.extract_strided_slice %4 {offsets = [0, 0], sizes = [16, 512], strides = [1, 1]} : vector<16x1024xf32> to vector<16x512xf32>
    %8 = vector.extract_strided_slice %4 {offsets = [0, 512], sizes = [16, 512], strides = [1, 1]} : vector<16x1024xf32> to vector<16x512xf32>
    %9 = arith.mulf %5, %5 : vector<16x512xf32>
    %10 = arith.mulf %6, %6 : vector<16x512xf32>
    %11 = arith.addf %9, %10 : vector<16x512xf32>
    %12 = math.sqrt %11 : vector<16x512xf32>
    %cst_6 = arith.constant 1.000000e-07 : f32
    %13 = vector.broadcast %cst_6 : f32 to vector<16x512xf32>
    %14 = arith.maximumf %12, %13 : vector<16x512xf32>
    %15 = math.sqrt %14 : vector<16x512xf32>
    %16 = arith.mulf %7, %7 : vector<16x512xf32>
    %17 = arith.mulf %8, %8 : vector<16x512xf32>
    %18 = arith.addf %16, %17 : vector<16x512xf32>
    %19 = math.sqrt %18 : vector<16x512xf32>
    %cst_7 = arith.constant 1.000000e-07 : f32
    %20 = vector.broadcast %cst_7 : f32 to vector<16x512xf32>
    %21 = arith.maximumf %19, %20 : vector<16x512xf32>
    %22 = math.sqrt %21 : vector<16x512xf32>
    %23 = arith.subf %22, %15 : vector<16x512xf32>
    %24 = math.absf %23 : vector<16x512xf32>
    %25 = vector.shape_cast %24 : vector<16x512xf32> to vector<2x8x512xf32>
    %cst_8 = arith.constant dense<0.000000e+00> : vector<8x512xf32>
    %26 = vector.multi_reduction <add>, %25, %cst_8 [0] : vector<2x8x512xf32> to vector<8x512xf32>
    %c0_9 = arith.constant 0 : index
    %c0_10 = arith.constant 0 : index
    %27 = vector.load %arg5[%c0_9, %c0_10] : memref<8x512xf32, #tpu.memory_space<vmem>>, vector<8x512xf32>
    tpu.vector_store %arg5[%c0_9, %c0_10], %26 {strides = array<i32>} : memref<8x512xf32, #tpu.memory_space<vmem>>, vector<8x512xf32>,
    %28 = vector.shape_cast %22 : vector<16x512xf32> to vector<2x8x512xf32>
    %cst_11 = arith.constant dense<0.000000e+00> : vector<8x512xf32>
    %29 = vector.multi_reduction <add>, %28, %cst_11 [0] : vector<2x8x512xf32> to vector<8x512xf32>
    %c0_12 = arith.constant 0 : index
    %c0_13 = arith.constant 0 : index
    %30 = vector.load %arg6[%c0_12, %c0_13] : memref<8x512xf32, #tpu.memory_space<vmem>>, vector<8x512xf32>
    tpu.vector_store %arg6[%c0_12, %c0_13], %29 {strides = array<i32>} : memref<8x512xf32, #tpu.memory_space<vmem>>, vector<8x512xf32>,
    return
  }
  func.func @transform_0(%arg0: i32, %arg1: i32) -> (i32, i32) {
    %c0_i32 = arith.constant 0 : i32
    %c0_i32_0 = arith.constant 0 : i32
    return %arg1, %c0_i32 : i32, i32
  }
  func.func @transform_1(%arg0: i32, %arg1: i32) -> (i32, i32) {
    %c0_i32 = arith.constant 0 : i32
    %c0_i32_0 = arith.constant 0 : i32
    return %arg1, %c0_i32 : i32, i32
  }
  func.func @transform_2(%arg0: i32, %arg1: i32) -> (i32, i32) {
    %c0_i32 = arith.constant 0 : i32
    %c0_i32_0 = arith.constant 0 : i32
    return %c0_i32, %arg0 : i32, i32
  }
  func.func @transform_3(%arg0: i32, %arg1: i32) -> (i32, i32) {
    %c0_i32 = arith.constant 0 : i32
    return %arg1, %arg0 : i32, i32
  }
  func.func @transform_4(%arg0: i32, %arg1: i32) -> (i32, i32) {
    %c0_i32 = arith.constant 0 : i32
    return %arg1, %arg0 : i32, i32
  }
}

</mosaic_0001>

<llo_original>
// kernel: tpu_custom_call.1
$region0: #{tpu_custom_call.1}
  #allocation0 [shape = 'u32[]', space=smem, size = 0x4, offset = 0x4, fixed_abs, tag = 'smem constant byte address 0x4 - core index']
  #allocation1 [shape = 'u32[144,128]{1,0:T(1,128)}', space=vmem, size = 0x12000, scoped, tag = 'internal scratch']
  %s0 = inlined_call_operand.hbm [shape: bf16[16,2560], index: 0, kind: input, shape index: {}]
  %s1 = inlined_call_operand.hbm [shape: bf16[16,2560], index: 1, kind: input, shape index: {}]
  %s2 = inlined_call_operand.hbm [shape: bf16[2560,3072], index: 2, kind: input, shape index: {}]
  %s3 = inlined_call_operand.hbm [shape: f32[8,1536], index: 3, kind: output, shape index: {0}]
  %s4 = inlined_call_operand.hbm [shape: f32[8,1536], index: 4, kind: output, shape index: {1}]
  %5 = xla_tuple %s3, %s4
  %s6 = sld [smem:[#allocation0]]
  $region65: #{tpu_custom_call.1} parent=0
    _
  %s8 = ssub.s32 1, %s6
  %s9 = scalar_select 0, %s8, %s6
  $region1: #{tpu_custom_call.1} parent=0
    #allocation2 [shape = 'u8[81920]{0}', space=vmem, size = 0x14000, scoped, tag = 'input window, operand 0, single buffered']
    #allocation3 [shape = 's32[2]{0}', space=sflag, size = 0x8, scoped, tag = 'scoped memory for tpu_custom_call.1']
    #allocation4 [shape = 's32[2]{0}', space=sflag, size = 0x8, scoped, tag = 'scoped memory for tpu_custom_call.1']
    #allocation5 [shape = 'u8[81920]{0}', space=vmem, size = 0x14000, scoped, tag = 'input window, operand 1, single buffered']
    #allocation6 [shape = 's32[1]{0}', space=sflag, size = 0x4, scoped, tag = 'scoped memory for tpu_custom_call.1']
    #allocation7 [shape = 'u8[10485760]{0}', space=vmem, size = 0xa00000, scoped, tag = 'input window, operand 2']
    #allocation8 [shape = 'u8[32768]{0}', space=vmem, size = 0x8000, scoped, tag = 'output window, operand 0']
    #allocation9 [shape = 'u8[32768]{0}', space=vmem, size = 0x8000, scoped, tag = 'output window, operand 1']
    #allocation10 [shape = 's32[2]{0}', space=sflag, size = 0x8, scoped, tag = 'scoped memory for tpu_custom_call.1']
    %10 = vsyncpa [#allocation3], 0
    %11 = vsyncpa [#allocation6], 0
    %12 = vsyncpa [#allocation4], 0
    %s13 = scalar_lea.sflag [#allocation4], 1
    %14 = vsyncpa %s13, 0
    %15 = vsyncpa [#allocation10], 0
    %s16 = scalar_lea.sflag [#allocation10], 1
    %17 = vsyncpa %s16, 0
    loop: start=0, step=1, limit=5
    $region2: #{tpu_custom_call.1} parent=1 // loop_pre_header
      _
    $region3: #{tpu_custom_call.1} parent=1 // loop_header
      %s19 = sphi 0, %s23
      %p20 = scmp.ge.s32.totalorder %s19, 5
      %s26 = sphi 0, %s38
      %s27 = sphi 0, %s34
      %s28 = sphi 0, %s26
      %s29 = sphi 0, %s27
      %s30 = sphi 0, %s28
      %s31 = sphi 0, %s29
      %s41 = sphi 0, %s43
      %s44 = sphi 0, %s41
      %s45 = sphi 0, %s44
      %s61 = sphi 0, %s45
      %s67 = sphi 0, %s69
      %s70 = sphi 0, %s67
      %s71 = sphi 0, %s70
      %s87 = sphi 0, %s71
      %s93 = sphi 0, %s95
      %s96 = sphi 0, %s93
      %s97 = sphi 0, %s96
      %s113 = sphi 0, %s97
      %s121 = sphi 0, %s123
      %s124 = sphi 0, %s121
      %s125 = sphi 0, %s124
      %s141 = sphi 0, %s125
      %s149 = sphi 0, %s151
      %s152 = sphi 0, %s149
      %s153 = sphi 0, %s152
      %s169 = sphi 0, %s153
    $region4: #{tpu_custom_call.1} parent=1 // loop_header_branch
      %22 = sbr.rel (%p20) target = $region8
    $region5: #{tpu_custom_call.1} parent=1 // loop_body
      %s24 = ssub.s32 %s19, 1
      %s25 = ssub.s32 %s19, 2
      %s32 = sadd.s32 1, %s27
      %p33 = scmp.ge.s32.totalorder %s32, 1
      %s34 = scalar_select %p33, 0, %s32
      %s35 = sadd.s32 1, %s26
      %s36 = scalar_select %p33, %s35, %s26
      %p37 = scmp.ge.s32.totalorder %s36, 3
      %s38 = scalar_select %p37, 0, %s36
      %s39 = ssub.s32 %s27, %s34
      %p40 = scmp.eq.s32.totalorder %s39, 0
      %s42 = sadd.s32 %s41, 1
      %s43 = scalar_select %p40, %s41, %s42
      %p46 = pneg %p40
      %p47 = scmp.eq.s32.totalorder %s19, 2
      %p48 = por %p46, %p47
      %p49 = scmp.ne.s32.totalorder %s41, %s44
      %p50 = scmp.eq.s32.totalorder %s19, 0
      %p51 = por %p49, %p50
      %p52 = scmp.ne.s32.totalorder %s41, %s44
      %p53 = scmp.eq.s32.totalorder %s24, 2
      %p54 = por %p52, %p53
      %p55 = scmp.ne.s32.totalorder %s44, %s45
      %p56 = scmp.eq.s32.totalorder %s24, 0
      %p57 = por %p55, %p56
      %p58 = scmp.ne.s32.totalorder %s44, %s45
      %p59 = scmp.eq.s32.totalorder %s25, 2
      %p60 = por %p58, %p59
      %p62 = scmp.ne.s32.totalorder %s45, %s61
      %p63 = scmp.eq.s32.totalorder %s25, 0
      %p64 = por %p62, %p63
      %s65 = ssub.s32 %s27, %s34
      %p66 = scmp.eq.s32.totalorder %s65, 0
      %s68 = sadd.s32 %s67, 1
      %s69 = scalar_select %p66, %s67, %s68
      %p72 = pneg %p66
      %p73 = scmp.eq.s32.totalorder %s19, 2
      %p74 = por %p72, %p73
      %p75 = scmp.ne.s32.totalorder %s67, %s70
      %p76 = scmp.eq.s32.totalorder %s19, 0
      %p77 = por %p75, %p76
      %p78 = scmp.ne.s32.totalorder %s67, %s70
      %p79 = scmp.eq.s32.totalorder %s24, 2
      %p80 = por %p78, %p79
      %p81 = scmp.ne.s32.totalorder %s70, %s71
      %p82 = scmp.eq.s32.totalorder %s24, 0
      %p83 = por %p81, %p82
      %p84 = scmp.ne.s32.totalorder %s70, %s71
      %p85 = scmp.eq.s32.totalorder %s25, 2
      %p86 = por %p84, %p85
      %p88 = scmp.ne.s32.totalorder %s71, %s87
      %p89 = scmp.eq.s32.totalorder %s25, 0
      %p90 = por %p88, %p89
      %s91 = ssub.s32 %s26, %s38
      %p92 = scmp.eq.s32.totalorder %s91, 0
      %s94 = sadd.s32 %s93, 1
      %s95 = scalar_select %p92, %s93, %s94
      %p98 = pneg %p92
      %p99 = scmp.eq.s32.totalorder %s19, 2
      %p100 = por %p98, %p99
      %p101 = scmp.ne.s32.totalorder %s93, %s96
      %p102 = scmp.eq.s32.totalorder %s19, 0
      %p103 = por %p101, %p102
      %p104 = scmp.ne.s32.totalorder %s93, %s96
      %p105 = scmp.eq.s32.totalorder %s24, 2
      %p106 = por %p104, %p105
      %p107 = scmp.ne.s32.totalorder %s96, %s97
      %p108 = scmp.eq.s32.totalorder %s24, 0
      %p109 = por %p107, %p108
      %p110 = scmp.ne.s32.totalorder %s96, %s97
      %p111 = scmp.eq.s32.totalorder %s25, 2
      %p112 = por %p110, %p111
      %p114 = scmp.ne.s32.totalorder %s97, %s113
      %p115 = scmp.eq.s32.totalorder %s25, 0
      %p116 = por %p114, %p115
      %s117 = ssub.s32 %s27, %s34
      %s118 = ssub.s32 %s26, %s38
      %s119 = sor.u32 %s117, %s118
      %p120 = scmp.eq.s32.totalorder %s119, 0
      %s122 = sadd.s32 %s121, 1
      %s123 = scalar_select %p120, %s121, %s122
      %p126 = pneg %p120
      %p127 = scmp.eq.s32.totalorder %s19, 2
      %p128 = por %p126, %p127
      %p129 = scmp.ne.s32.totalorder %s121, %s124
      %p130 = scmp.eq.s32.totalorder %s19, 0
      %p131 = por %p129, %p130
      %p132 = scmp.ne.s32.totalorder %s121, %s124
      %p133 = scmp.eq.s32.totalorder %s24, 2
      %p134 = por %p132, %p133
      %p135 = scmp.ne.s32.totalorder %s124, %s125
      %p136 = scmp.eq.s32.totalorder %s24, 0
      %p137 = por %p135, %p136
      %p138 = scmp.ne.s32.totalorder %s124, %s125
      %p139 = scmp.eq.s32.totalorder %s25, 2
      %p140 = por %p138, %p139
      %p142 = scmp.ne.s32.totalorder %s125, %s141
      %p143 = scmp.eq.s32.totalorder %s25, 0
      %p144 = por %p142, %p143
      %s145 = ssub.s32 %s27, %s34
      %s146 = ssub.s32 %s26, %s38
      %s147 = sor.u32 %s145, %s146
      %p148 = scmp.eq.s32.totalorder %s147, 0
      %s150 = sadd.s32 %s149, 1
      %s151 = scalar_select %p148, %s149, %s150
      %p154 = pneg %p148
      %p155 = scmp.eq.s32.totalorder %s19, 2
      %p156 = por %p154, %p155
      %p157 = scmp.ne.s32.totalorder %s149, %s152
      %p158 = scmp.eq.s32.totalorder %s19, 0
      %p159 = por %p157, %p158
      %p160 = scmp.ne.s32.totalorder %s149, %s152
      %p161 = scmp.eq.s32.totalorder %s24, 2
      %p162 = por %p160, %p161
      %p163 = scmp.ne.s32.totalorder %s152, %s153
      %p164 = scmp.eq.s32.totalorder %s24, 0
      %p165 = por %p163, %p164
      %p166 = scmp.ne.s32.totalorder %s152, %s153
      %p167 = scmp.eq.s32.totalorder %s25, 2
      %p168 = por %p166, %p167
      %p170 = scmp.ne.s32.totalorder %s153, %s169
      %p171 = scmp.eq.s32.totalorder %s25, 0
      %p172 = por %p170, %p171
      %p173 = scmp.le.s32.totalorder 1, %s19
      %p174 = scmp.lt.s32.totalorder %s19, 4
      %p175 = pnand %p173, %p174
      %p176 = pneg %p175
      // Predicated region
      $region9: #{tpu_custom_call.1} parent=5 // pred_check
        _
      $region10: #{tpu_custom_call.1} parent=5 // pred_check_branch
        %178 = sbr.rel (%p175) target = $region12
      $region11: #{tpu_custom_call.1} parent=5 // pred_region
        %s179 = ssub.s32 %s19, 1
        // Predicated region
        $region13: #{tpu_custom_call.1} parent=11 // pred_check
          %p180 = pneg %p57
        $region14: #{tpu_custom_call.1} parent=11 // pred_check_branch
          %182 = sbr.rel (%p180) target = $region16
        $region15: #{tpu_custom_call.1} parent=11 // pred_region
          %s183 = smul.u32 2, %s29
          %s185 = ssub.s32 2560, 2560
          %186 = vsyncadd [#allocation3], %s185
          %s187 = smul.addr %s183, 20
          %s188 = smul.addr %s187, 64
          %s189 = scalar_lea.hbm %s0, %s188
          %s190 = sshll.u32 [#allocation2], 4
          %s191 = int_to_ptr.vmem [resolvable:$true] %s190
          %196 = dma.hbm_to_vmem [thread:$0]  %s189, 2560, %s191, [#allocation3], 1280, 1280, 80
        $region16: #{tpu_custom_call.1} parent=11 // pred_fallthru
          _
        // Predicated region
        $region17: #{tpu_custom_call.1} parent=11 // pred_check
          %p197 = pneg %p83
        $region18: #{tpu_custom_call.1} parent=11 // pred_check_branch
          %199 = sbr.rel (%p197) target = $region20
        $region19: #{tpu_custom_call.1} parent=11 // pred_region
          %s200 = smul.u32 2, %s29
          %s202 = ssub.s32 2560, 2560
          %203 = vsyncadd [#allocation6], %s202
          %s204 = smul.addr %s200, 20
          %s205 = smul.addr %s204, 64
          %s206 = scalar_lea.hbm %s1, %s205
          %s207 = sshll.u32 [#allocation5], 4
          %s208 = int_to_ptr.vmem [resolvable:$true] %s207
          %213 = dma.hbm_to_vmem [thread:$0]  %s206, 2560, %s208, [#allocation6], 1280, 1280, 80
        $region20: #{tpu_custom_call.1} parent=11 // pred_fallthru
          _
      $region12: #{tpu_custom_call.1} parent=5 // pred_fallthru
        _
      %p214 = scmp.lt.s32.totalorder %s19, 3
      // Predicated region
      $region21: #{tpu_custom_call.1} parent=5 // pred_check
        %p215 = pneg %p214
      $region22: #{tpu_custom_call.1} parent=5 // pred_check_branch
        %217 = sbr.rel (%p215) target = $region24
      $region23: #{tpu_custom_call.1} parent=5 // pred_region
        // Predicated region
        $region25: #{tpu_custom_call.1} parent=23 // pred_check
          %p218 = pneg %p103
        $region26: #{tpu_custom_call.1} parent=23 // pred_check_branch
          %220 = sbr.rel (%p218) target = $region28
        $region27: #{tpu_custom_call.1} parent=23 // pred_region
          %s221 = sand.u32 %s19, 1
          %s222 = scalar_lea.sflag [#allocation3], %s221
          %s223 = sand.u32 %s93, 1
          %s224 = smul.addr %s223, 10240
          %s225 = scalar_lea.vmem [#allocation7], %s224
          %s226 = smul.u32 8, %s26
          %s228 = ssub.s32 163840, 163840
          %229 = vsyncadd %s222, %s228
          %s230 = smul.addr %s226, 64
          %s231 = scalar_lea.hbm %s2, %s230
          %s232 = sshll.u32 %s225, 4
          %s233 = int_to_ptr.vmem [resolvable:$true] %s232
          %238 = dma.hbm_to_vmem [thread:$0]  %s231, 163840, %s233, %s222, 1536, 512, 32
        $region28: #{tpu_custom_call.1} parent=23 // pred_fallthru
          _
      $region24: #{tpu_custom_call.1} parent=5 // pred_fallthru
        _
      %p239 = scmp.le.s32.totalorder 1, %s19
      %p240 = scmp.lt.s32.totalorder %s19, 4
      %p241 = pnand %p239, %p240
      %p242 = pneg %p241
      // Predicated region
      $region29: #{tpu_custom_call.1} parent=5 // pred_check
        _
      $region30: #{tpu_custom_call.1} parent=5 // pred_check_branch
        %244 = sbr.rel (%p241) target = $region32
      $region31: #{tpu_custom_call.1} parent=5 // pred_region
        %s245 = ssub.s32 %s19, 1
        // Predicated region
        $region33: #{tpu_custom_call.1} parent=31 // pred_check
          %p246 = pneg %p57
        $region34: #{tpu_custom_call.1} parent=31 // pred_check_branch
          %248 = sbr.rel (%p246) target = $region36
        $region35: #{tpu_custom_call.1} parent=31 // pred_region
          %249 = dma.done [#allocation3], 2560
        $region36: #{tpu_custom_call.1} parent=31 // pred_fallthru
          _
        // Predicated region
        $region37: #{tpu_custom_call.1} parent=31 // pred_check
          %p250 = pneg %p83
        $region38: #{tpu_custom_call.1} parent=31 // pred_check_branch
          %252 = sbr.rel (%p250) target = $region40
        $region39: #{tpu_custom_call.1} parent=31 // pred_region
          %253 = dma.done [#allocation6], 2560
        $region40: #{tpu_custom_call.1} parent=31 // pred_fallthru
          _
        %s254 = sand.u32 %s24, 1
        %s255 = scalar_lea.sflag [#allocation3], %s254
        %s256 = sand.u32 %s96, 1
        %s257 = smul.addr %s256, 10240
        %s258 = scalar_lea.vmem [#allocation7], %s257
        // Predicated region
        $region41: #{tpu_custom_call.1} parent=31 // pred_check
          %p259 = pneg %p109
        $region42: #{tpu_custom_call.1} parent=31 // pred_check_branch
          %261 = sbr.rel (%p259) target = $region44
        $region43: #{tpu_custom_call.1} parent=31 // pred_region
          %262 = dma.done %s255, 163840
        $region44: #{tpu_custom_call.1} parent=31 // pred_fallthru
          _
        %p263 = pneg %p57
        %p264 = pneg %p54
        %p265 = pneg %p83
        %p266 = pneg %p80
        %s267 = sand.u32 %s24, 1
        %s268 = scalar_lea.sflag [#allocation3], %s267
        %s269 = sand.u32 %s96, 1
        %s270 = smul.addr %s269, 10240
        %s271 = scalar_lea.vmem [#allocation7], %s270
        %p272 = pneg %p109
        %p273 = pneg %p106
        %p274 = pneg %p137
        %p275 = pneg %p134
        %s276 = sand.u32 %s124, 1
        %s277 = scalar_lea.sflag [#allocation4], %s276
        %s278 = sand.u32 %s124, 1
        %s279 = smul.addr %s278, 32
        %s280 = scalar_lea.vmem [#allocation8], %s279
        %p281 = pneg %p165
        %p282 = pneg %p162
        %s283 = sand.u32 %s152, 1
        %s284 = scalar_lea.sflag [#allocation10], %s283
        %s285 = sand.u32 %s152, 1
        %s286 = smul.addr %s285, 32
        %s287 = scalar_lea.vmem [#allocation9], %s286
        %s288 = smul.u32 2, %s29
        %s289 = smul.u32 2, %s29
        %s290 = smul.u32 8, %s28
        %s291 = smul.u32 4, %s28
        %s292 = smul.u32 4, %s28
        %v293 = vld [vmem:[#allocation2] sm:$0xff]
        %v294 = vld [vmem:[#allocation2 + $0x8] sm:$0xff]
        %v295 = vld [vmem:[#allocation2 + $0x10] sm:$0xff]
        %v296 = vld [vmem:[#allocation2 + $0x18] sm:$0xff]
        %v297 = vld [vmem:[#allocation2 + $0x20] sm:$0xff]
        %v298 = vld [vmem:[#allocation2 + $0x28] sm:$0xff]
        %v299 = vld [vmem:[#allocation2 + $0x30] sm:$0xff]
        %v300 = vld [vmem:[#allocation2 + $0x38] sm:$0xff]
        %v301 = vld [vmem:[#allocation2 + $0x40] sm:$0xff]
        %v302 = vld [vmem:[#allocation2 + $0x48] sm:$0xff]
        %v303 = vld [vmem:[#allocation2 + $0x50] sm:$0xff]
        %v304 = vld [vmem:[#allocation2 + $0x58] sm:$0xff]
        %v305 = vld [vmem:[#allocation2 + $0x60] sm:$0xff]
        %v306 = vld [vmem:[#allocation2 + $0x68] sm:$0xff]
        %v307 = vld [vmem:[#allocation2 + $0x70] sm:$0xff]
        %v308 = vld [vmem:[#allocation2 + $0x78] sm:$0xff]
        %v309 = vld [vmem:[#allocation2 + $0x80] sm:$0xff]
        %v310 = vld [vmem:[#allocation2 + $0x88] sm:$0xff]
        %v311 = vld [vmem:[#allocation2 + $0x90] sm:$0xff]
        %v312 = vld [vmem:[#allocation2 + $0x98] sm:$0xff]
        %v313 = vld [vmem:[#allocation5] sm:$0xff]
        %v314 = vld [vmem:[#allocation5 + $0x8] sm:$0xff]
        %v315 = vld [vmem:[#allocation5 + $0x10] sm:$0xff]
        %v316 = vld [vmem:[#allocation5 + $0x18] sm:$0xff]
        %v317 = vld [vmem:[#allocation5 + $0x20] sm:$0xff]
        %v318 = vld [vmem:[#allocation5 + $0x28] sm:$0xff]
        %v319 = vld [vmem:[#allocation5 + $0x30] sm:$0xff]
        %v320 = vld [vmem:[#allocation5 + $0x38] sm:$0xff]
        %v321 = vld [vmem:[#allocation5 + $0x40] sm:$0xff]
        %v322 = vld [vmem:[#allocation5 + $0x48] sm:$0xff]
        %v323 = vld [vmem:[#allocation5 + $0x50] sm:$0xff]
        %v324 = vld [vmem:[#allocation5 + $0x58] sm:$0xff]
        %v325 = vld [vmem:[#allocation5 + $0x60] sm:$0xff]
        %v326 = vld [vmem:[#allocation5 + $0x68] sm:$0xff]
        %v327 = vld [vmem:[#allocation5 + $0x70] sm:$0xff]
        %v328 = vld [vmem:[#allocation5 + $0x78] sm:$0xff]
        %v329 = vld [vmem:[#allocation5 + $0x80] sm:$0xff]
        %v330 = vld [vmem:[#allocation5 + $0x88] sm:$0xff]
        %v331 = vld [vmem:[#allocation5 + $0x90] sm:$0xff]
        %v332 = vld [vmem:[#allocation5 + $0x98] sm:$0xff]
        %v333 = vld [vmem:[%s258] sm:$0xff]
        %v334 = vld [vmem:[%s258 + $0x8] sm:$0xff]
        %v335 = vld [vmem:[%s258 + $0x10] sm:$0xff]
        %v336 = vld [vmem:[%s258 + $0x18] sm:$0xff]
        %v337 = vld [vmem:[%s258 + $0x20] sm:$0xff]
        %v338 = vld [vmem:[%s258 + $0x28] sm:$0xff]
        %v339 = vld [vmem:[%s258 + $0x30] sm:$0xff]
        %v340 = vld [vmem:[%s258 + $0x38] sm:$0xff]
        %v341 = vld [vmem:[%s258 + $0x40] sm:$0xff]
        %v342 = vld [vmem:[%s258 + $0x48] sm:$0xff]
        %v343 = vld [vmem:[%s258 + $0x50] sm:$0xff]
        %v344 = vld [vmem:[%s258 + $0x58] sm:$0xff]
        %v345 = vld [vmem:[%s258 + $0x60] sm:$0xff]
        %v346 = vld [vmem:[%s258 + $0x68] sm:$0xff]
        %v347 = vld [vmem:[%s258 + $0x70] sm:$0xff]
        %v348 = vld [vmem:[%s258 + $0x78] sm:$0xff]
        %v349 = vld [vmem:[%s258 + $0x80] sm:$0xff]
        %v350 = vld [vmem:[%s258 + $0x88] sm:$0xff]
        %v351 = vld [vmem:[%s258 + $0x90] sm:$0xff]
        %v352 = vld [vmem:[%s258 + $0x98] sm:$0xff]
        %v353 = vld [vmem:[%s258 + $0xa0] sm:$0xff]
        %v354 = vld [vmem:[%s258 + $0xa8] sm:$0xff]
        %v355 = vld [vmem:[%s258 + $0xb0] sm:$0xff]
        %v356 = vld [vmem:[%s258 + $0xb8] sm:$0xff]
        %v357 = vld [vmem:[%s258 + $0xc0] sm:$0xff]
        %v358 = vld [vmem:[%s258 + $0xc8] sm:$0xff]
        %v359 = vld [vmem:[%s258 + $0xd0] sm:$0xff]
        %v360 = vld [vmem:[%s258 + $0xd8] sm:$0xff]
        %v361 = vld [vmem:[%s258 + $0xe0] sm:$0xff]
        %v362 = vld [vmem:[%s258 + $0xe8] sm:$0xff]
        %v363 = vld [vmem:[%s258 + $0xf0] sm:$0xff]
        %v364 = vld [vmem:[%s258 + $0xf8] sm:$0xff]
        %v365 = vld [vmem:[%s258 + $0x100] sm:$0xff]
        %v366 = vld [vmem:[%s258 + $0x108] sm:$0xff]
        %v367 = vld [vmem:[%s258 + $0x110] sm:$0xff]
        %v368 = vld [vmem:[%s258 + $0x118] sm:$0xff]
        %v369 = vld [vmem:[%s258 + $0x120] sm:$0xff]
        %v370 = vld [vmem:[%s258 + $0x128] sm:$0xff]
        %v371 = vld [vmem:[%s258 + $0x130] sm:$0xff]
        %v372 = vld [vmem:[%s258 + $0x138] sm:$0xff]
        %v373 = vld [vmem:[%s258 + $0x140] sm:$0xff]
        %v374 = vld [vmem:[%s258 + $0x148] sm:$0xff]
        %v375 = vld [vmem:[%s258 + $0x150] sm:$0xff]
        %v376 = vld [vmem:[%s258 + $0x158] sm:$0xff]
        %v377 = vld [vmem:[%s258 + $0x160] sm:$0xff]
        %v378 = vld [vmem:[%s258 + $0x168] sm:$0xff]
        %v379 = vld [vmem:[%s258 + $0x170] sm:$0xff]
        %v380 = vld [vmem:[%s258 + $0x178] sm:$0xff]
        %v381 = vld [vmem:[%s258 + $0x180] sm:$0xff]
        %v382 = vld [vmem:[%s258 + $0x188] sm:$0xff]
        %v383 = vld [vmem:[%s258 + $0x190] sm:$0xff]
        %v384 = vld [vmem:[%s258 + $0x198] sm:$0xff]
        %v385 = vld [vmem:[%s258 + $0x1a0] sm:$0xff]
        %v386 = vld [vmem:[%s258 + $0x1a8] sm:$0xff]
        %v387 = vld [vmem:[%s258 + $0x1b0] sm:$0xff]
        %v388 = vld [vmem:[%s258 + $0x1b8] sm:$0xff]
        %v389 = vld [vmem:[%s258 + $0x1c0] sm:$0xff]
        %v390 = vld [vmem:[%s258 + $0x1c8] sm:$0xff]
        %v391 = vld [vmem:[%s258 + $0x1d0] sm:$0xff]
        %v392 = vld [vmem:[%s258 + $0x1d8] sm:$0xff]
        %v393 = vld [vmem:[%s258 + $0x1e0] sm:$0xff]
        %v394 = vld [vmem:[%s258 + $0x1e8] sm:$0xff]
        %v395 = vld [vmem:[%s258 + $0x1f0] sm:$0xff]
        %v396 = vld [vmem:[%s258 + $0x1f8] sm:$0xff]
        %v397 = vld [vmem:[%s258 + $0x200] sm:$0xff]
        %v398 = vld [vmem:[%s258 + $0x208] sm:$0xff]
        %v399 = vld [vmem:[%s258 + $0x210] sm:$0xff]
        %v400 = vld [vmem:[%s258 + $0x218] sm:$0xff]
        %v401 = vld [vmem:[%s258 + $0x220] sm:$0xff]
        %v402 = vld [vmem:[%s258 + $0x228] sm:$0xff]
        %v403 = vld [vmem:[%s258 + $0x230] sm:$0xff]
        %v404 = vld [vmem:[%s258 + $0x238] sm:$0xff]
        %v405 = vld [vmem:[%s258 + $0x240] sm:$0xff]
        %v406 = vld [vmem:[%s258 + $0x248] sm:$0xff]
        %v407 = vld [vmem:[%s258 + $0x250] sm:$0xff]
        %v408 = vld [vmem:[%s258 + $0x258] sm:$0xff]
        %v409 = vld [vmem:[%s258 + $0x260] sm:$0xff]
        %v410 = vld [vmem:[%s258 + $0x268] sm:$0xff]
        %v411 = vld [vmem:[%s258 + $0x270] sm:$0xff]
        %v412 = vld [vmem:[%s258 + $0x278] sm:$0xff]
        %v413 = vld [vmem:[%s258 + $0x280] sm:$0xff]
        %v414 = vld [vmem:[%s258 + $0x288] sm:$0xff]
        %v415 = vld [vmem:[%s258 + $0x290] sm:$0xff]
        %v416 = vld [vmem:[%s258 + $0x298] sm:$0xff]
        %v417 = vld [vmem:[%s258 + $0x2a0] sm:$0xff]
        %v418 = vld [vmem:[%s258 + $0x2a8] sm:$0xff]
        %v419 = vld [vmem:[%s258 + $0x2b0] sm:$0xff]
        %v420 = vld [vmem:[%s258 + $0x2b8] sm:$0xff]
        %v421 = vld [vmem:[%s258 + $0x2c0] sm:$0xff]
        %v422 = vld [vmem:[%s258 + $0x2c8] sm:$0xff]
        %v423 = vld [vmem:[%s258 + $0x2d0] sm:$0xff]
        %v424 = vld [vmem:[%s258 + $0x2d8] sm:$0xff]
        %v425 = vld [vmem:[%s258 + $0x2e0] sm:$0xff]
        %v426 = vld [vmem:[%s258 + $0x2e8] sm:$0xff]
        %v427 = vld [vmem:[%s258 + $0x2f0] sm:$0xff]
        %v428 = vld [vmem:[%s258 + $0x2f8] sm:$0xff]
        %v429 = vld [vmem:[%s258 + $0x300] sm:$0xff]
        %v430 = vld [vmem:[%s258 + $0x308] sm:$0xff]
        %v431 = vld [vmem:[%s258 + $0x310] sm:$0xff]
        %v432 = vld [vmem:[%s258 + $0x318] sm:$0xff]
        %v433 = vld [vmem:[%s258 + $0x320] sm:$0xff]
        %v434 = vld [vmem:[%s258 + $0x328] sm:$0xff]
        %v435 = vld [vmem:[%s258 + $0x330] sm:$0xff]
        %v436 = vld [vmem:[%s258 + $0x338] sm:$0xff]
        %v437 = vld [vmem:[%s258 + $0x340] sm:$0xff]
        %v438 = vld [vmem:[%s258 + $0x348] sm:$0xff]
        %v439 = vld [vmem:[%s258 + $0x350] sm:$0xff]
        %v440 = vld [vmem:[%s258 + $0x358] sm:$0xff]
        %v441 = vld [vmem:[%s258 + $0x360] sm:$0xff]
        %v442 = vld [vmem:[%s258 + $0x368] sm:$0xff]
        %v443 = vld [vmem:[%s258 + $0x370] sm:$0xff]
        %v444 = vld [vmem:[%s258 + $0x378] sm:$0xff]
        %v445 = vld [vmem:[%s258 + $0x380] sm:$0xff]
        %v446 = vld [vmem:[%s258 + $0x388] sm:$0xff]
        %v447 = vld [vmem:[%s258 + $0x390] sm:$0xff]
        %v448 = vld [vmem:[%s258 + $0x398] sm:$0xff]
        %v449 = vld [vmem:[%s258 + $0x3a0] sm:$0xff]
        %v450 = vld [vmem:[%s258 + $0x3a8] sm:$0xff]
        %v451 = vld [vmem:[%s258 + $0x3b0] sm:$0xff]
        %v452 = vld [vmem:[%s258 + $0x3b8] sm:$0xff]
        %v453 = vld [vmem:[%s258 + $0x3c0] sm:$0xff]
        %v454 = vld [vmem:[%s258 + $0x3c8] sm:$0xff]
        %v455 = vld [vmem:[%s258 + $0x3d0] sm:$0xff]
        %v456 = vld [vmem:[%s258 + $0x3d8] sm:$0xff]
        %v457 = vld [vmem:[%s258 + $0x3e0] sm:$0xff]
        %v458 = vld [vmem:[%s258 + $0x3e8] sm:$0xff]
        %v459 = vld [vmem:[%s258 + $0x3f0] sm:$0xff]
        %v460 = vld [vmem:[%s258 + $0x3f8] sm:$0xff]
        %v461 = vld [vmem:[%s258 + $0x400] sm:$0xff]
        %v462 = vld [vmem:[%s258 + $0x408] sm:$0xff]
        %v463 = vld [vmem:[%s258 + $0x410] sm:$0xff]
        %v464 = vld [vmem:[%s258 + $0x418] sm:$0xff]
        %v465 = vld [vmem:[%s258 + $0x420] sm:$0xff]
        %v466 = vld [vmem:[%s258 + $0x428] sm:$0xff]
        %v467 = vld [vmem:[%s258 + $0x430] sm:$0xff]
        %v468 = vld [vmem:[%s258 + $0x438] sm:$0xff]
        %v469 = vld [vmem:[%s258 + $0x440] sm:$0xff]
        %v470 = vld [vmem:[%s258 + $0x448] sm:$0xff]
        %v471 = vld [vmem:[%s258 + $0x450] sm:$0xff]
        %v472 = vld [vmem:[%s258 + $0x458] sm:$0xff]
        %v473 = vld [vmem:[%s258 + $0x460] sm:$0xff]
        %v474 = vld [vmem:[%s258 + $0x468] sm:$0xff]
        %v475 = vld [vmem:[%s258 + $0x470] sm:$0xff]
        %v476 = vld [vmem:[%s258 + $0x478] sm:$0xff]
        %v477 = vld [vmem:[%s258 + $0x480] sm:$0xff]
        %v478 = vld [vmem:[%s258 + $0x488] sm:$0xff]
        %v479 = vld [vmem:[%s258 + $0x490] sm:$0xff]
        %v480 = vld [vmem:[%s258 + $0x498] sm:$0xff]
        %v481 = vld [vmem:[%s258 + $0x4a0] sm:$0xff]
        %v482 = vld [vmem:[%s258 + $0x4a8] sm:$0xff]
        %v483 = vld [vmem:[%s258 + $0x4b0] sm:$0xff]
        %v484 = vld [vmem:[%s258 + $0x4b8] sm:$0xff]
        %v485 = vld [vmem:[%s258 + $0x4c0] sm:$0xff]
        %v486 = vld [vmem:[%s258 + $0x4c8] sm:$0xff]
        %v487 = vld [vmem:[%s258 + $0x4d0] sm:$0xff]
        %v488 = vld [vmem:[%s258 + $0x4d8] sm:$0xff]
        %v489 = vld [vmem:[%s258 + $0x4e0] sm:$0xff]
        %v490 = vld [vmem:[%s258 + $0x4e8] sm:$0xff]
        %v491 = vld [vmem:[%s258 + $0x4f0] sm:$0xff]
        %v492 = vld [vmem:[%s258 + $0x4f8] sm:$0xff]
        %v493 = vld [vmem:[%s258 + $0x500] sm:$0xff]
        %v494 = vld [vmem:[%s258 + $0x508] sm:$0xff]
        %v495 = vld [vmem:[%s258 + $0x510] sm:$0xff]
        %v496 = vld [vmem:[%s258 + $0x518] sm:$0xff]
        %v497 = vld [vmem:[%s258 + $0x520] sm:$0xff]
        %v498 = vld [vmem:[%s258 + $0x528] sm:$0xff]
        %v499 = vld [vmem:[%s258 + $0x530] sm:$0xff]
        %v500 = vld [vmem:[%s258 + $0x538] sm:$0xff]
        %v501 = vld [vmem:[%s258 + $0x540] sm:$0xff]
        %v502 = vld [vmem:[%s258 + $0x548] sm:$0xff]
        %v503 = vld [vmem:[%s258 + $0x550] sm:$0xff]
        %v504 = vld [vmem:[%s258 + $0x558] sm:$0xff]
        %v505 = vld [vmem:[%s258 + $0x560] sm:$0xff]
        %v506 = vld [vmem:[%s258 + $0x568] sm:$0xff]
        %v507 = vld [vmem:[%s258 + $0x570] sm:$0xff]
        %v508 = vld [vmem:[%s258 + $0x578] sm:$0xff]
        %v509 = vld [vmem:[%s258 + $0x580] sm:$0xff]
        %v510 = vld [vmem:[%s258 + $0x588] sm:$0xff]
        %v511 = vld [vmem:[%s258 + $0x590] sm:$0xff]
        %v512 = vld [vmem:[%s258 + $0x598] sm:$0xff]
        %v513 = vld [vmem:[%s258 + $0x5a0] sm:$0xff]
        %v514 = vld [vmem:[%s258 + $0x5a8] sm:$0xff]
        %v515 = vld [vmem:[%s258 + $0x5b0] sm:$0xff]
        %v516 = vld [vmem:[%s258 + $0x5b8] sm:$0xff]
        %v517 = vld [vmem:[%s258 + $0x5c0] sm:$0xff]
        %v518 = vld [vmem:[%s258 + $0x5c8] sm:$0xff]
        %v519 = vld [vmem:[%s258 + $0x5d0] sm:$0xff]
        %v520 = vld [vmem:[%s258 + $0x5d8] sm:$0xff]
        %v521 = vld [vmem:[%s258 + $0x5e0] sm:$0xff]
        %v522 = vld [vmem:[%s258 + $0x5e8] sm:$0xff]
        %v523 = vld [vmem:[%s258 + $0x5f0] sm:$0xff]
        %v524 = vld [vmem:[%s258 + $0x5f8] sm:$0xff]
        %v525 = vld [vmem:[%s258 + $0x600] sm:$0xff]
        %v526 = vld [vmem:[%s258 + $0x608] sm:$0xff]
        %v527 = vld [vmem:[%s258 + $0x610] sm:$0xff]
        %v528 = vld [vmem:[%s258 + $0x618] sm:$0xff]
        %v529 = vld [vmem:[%s258 + $0x620] sm:$0xff]
        %v530 = vld [vmem:[%s258 + $0x628] sm:$0xff]
        %v531 = vld [vmem:[%s258 + $0x630] sm:$0xff]
        %v532 = vld [vmem:[%s258 + $0x638] sm:$0xff]
        %v533 = vld [vmem:[%s258 + $0x640] sm:$0xff]
        %v534 = vld [vmem:[%s258 + $0x648] sm:$0xff]
        %v535 = vld [vmem:[%s258 + $0x650] sm:$0xff]
        %v536 = vld [vmem:[%s258 + $0x658] sm:$0xff]
        %v537 = vld [vmem:[%s258 + $0x660] sm:$0xff]
        %v538 = vld [vmem:[%s258 + $0x668] sm:$0xff]
        %v539 = vld [vmem:[%s258 + $0x670] sm:$0xff]
        %v540 = vld [vmem:[%s258 + $0x678] sm:$0xff]
        %v541 = vld [vmem:[%s258 + $0x680] sm:$0xff]
        %v542 = vld [vmem:[%s258 + $0x688] sm:$0xff]
        %v543 = vld [vmem:[%s258 + $0x690] sm:$0xff]
        %v544 = vld [vmem:[%s258 + $0x698] sm:$0xff]
        %v545 = vld [vmem:[%s258 + $0x6a0] sm:$0xff]
        %v546 = vld [vmem:[%s258 + $0x6a8] sm:$0xff]
        %v547 = vld [vmem:[%s258 + $0x6b0] sm:$0xff]
        %v548 = vld [vmem:[%s258 + $0x6b8] sm:$0xff]
        %v549 = vld [vmem:[%s258 + $0x6c0] sm:$0xff]
        %v550 = vld [vmem:[%s258 + $0x6c8] sm:$0xff]
        %v551 = vld [vmem:[%s258 + $0x6d0] sm:$0xff]
        %v552 = vld [vmem:[%s258 + $0x6d8] sm:$0xff]
        %v553 = vld [vmem:[%s258 + $0x6e0] sm:$0xff]
        %v554 = vld [vmem:[%s258 + $0x6e8] sm:$0xff]
        %v555 = vld [vmem:[%s258 + $0x6f0] sm:$0xff]
        %v556 = vld [vmem:[%s258 + $0x6f8] sm:$0xff]
        %v557 = vld [vmem:[%s258 + $0x700] sm:$0xff]
        %v558 = vld [vmem:[%s258 + $0x708] sm:$0xff]
        %v559 = vld [vmem:[%s258 + $0x710] sm:$0xff]
        %v560 = vld [vmem:[%s258 + $0x718] sm:$0xff]
        %v561 = vld [vmem:[%s258 + $0x720] sm:$0xff]
        %v562 = vld [vmem:[%s258 + $0x728] sm:$0xff]
        %v563 = vld [vmem:[%s258 + $0x730] sm:$0xff]
        %v564 = vld [vmem:[%s258 + $0x738] sm:$0xff]
        %v565 = vld [vmem:[%s258 + $0x740] sm:$0xff]
        %v566 = vld [vmem:[%s258 + $0x748] sm:$0xff]
        %v567 = vld [vmem:[%s258 + $0x750] sm:$0xff]
        %v568 = vld [vmem:[%s258 + $0x758] sm:$0xff]
        %v569 = vld [vmem:[%s258 + $0x760] sm:$0xff]
        %v570 = vld [vmem:[%s258 + $0x768] sm:$0xff]
        %v571 = vld [vmem:[%s258 + $0x770] sm:$0xff]
        %v572 = vld [vmem:[%s258 + $0x778] sm:$0xff]
        %v573 = vld [vmem:[%s258 + $0x780] sm:$0xff]
        %v574 = vld [vmem:[%s258 + $0x788] sm:$0xff]
        %v575 = vld [vmem:[%s258 + $0x790] sm:$0xff]
        %v576 = vld [vmem:[%s258 + $0x798] sm:$0xff]
        %v577 = vld [vmem:[%s258 + $0x7a0] sm:$0xff]
        %v578 = vld [vmem:[%s258 + $0x7a8] sm:$0xff]
        %v579 = vld [vmem:[%s258 + $0x7b0] sm:$0xff]
        %v580 = vld [vmem:[%s258 + $0x7b8] sm:$0xff]
        %v581 = vld [vmem:[%s258 + $0x7c0] sm:$0xff]
        %v582 = vld [vmem:[%s258 + $0x7c8] sm:$0xff]
        %v583 = vld [vmem:[%s258 + $0x7d0] sm:$0xff]
        %v584 = vld [vmem:[%s258 + $0x7d8] sm:$0xff]
        %v585 = vld [vmem:[%s258 + $0x7e0] sm:$0xff]
        %v586 = vld [vmem:[%s258 + $0x7e8] sm:$0xff]
        %v587 = vld [vmem:[%s258 + $0x7f0] sm:$0xff]
        %v588 = vld [vmem:[%s258 + $0x7f8] sm:$0xff]
        %v589 = vld [vmem:[%s258 + $0x800] sm:$0xff]
        %v590 = vld [vmem:[%s258 + $0x808] sm:$0xff]
        %v591 = vld [vmem:[%s258 + $0x810] sm:$0xff]
        %v592 = vld [vmem:[%s258 + $0x818] sm:$0xff]
        %v593 = vld [vmem:[%s258 + $0x820] sm:$0xff]
        %v594 = vld [vmem:[%s258 + $0x828] sm:$0xff]
        %v595 = vld [vmem:[%s258 + $0x830] sm:$0xff]
        %v596 = vld [vmem:[%s258 + $0x838] sm:$0xff]
        %v597 = vld [vmem:[%s258 + $0x840] sm:$0xff]
        %v598 = vld [vmem:[%s258 + $0x848] sm:$0xff]
        %v599 = vld [vmem:[%s258 + $0x850] sm:$0xff]
        %v600 = vld [vmem:[%s258 + $0x858] sm:$0xff]
        %v601 = vld [vmem:[%s258 + $0x860] sm:$0xff]
        %v602 = vld [vmem:[%s258 + $0x868] sm:$0xff]
        %v603 = vld [vmem:[%s258 + $0x870] sm:$0xff]
        %v604 = vld [vmem:[%s258 + $0x878] sm:$0xff]
        %v605 = vld [vmem:[%s258 + $0x880] sm:$0xff]
        %v606 = vld [vmem:[%s258 + $0x888] sm:$0xff]
        %v607 = vld [vmem:[%s258 + $0x890] sm:$0xff]
        %v608 = vld [vmem:[%s258 + $0x898] sm:$0xff]
        %v609 = vld [vmem:[%s258 + $0x8a0] sm:$0xff]
        %v610 = vld [vmem:[%s258 + $0x8a8] sm:$0xff]
        %v611 = vld [vmem:[%s258 + $0x8b0] sm:$0xff]
        %v612 = vld [vmem:[%s258 + $0x8b8] sm:$0xff]
        %v613 = vld [vmem:[%s258 + $0x8c0] sm:$0xff]
        %v614 = vld [vmem:[%s258 + $0x8c8] sm:$0xff]
        %v615 = vld [vmem:[%s258 + $0x8d0] sm:$0xff]
        %v616 = vld [vmem:[%s258 + $0x8d8] sm:$0xff]
        %v617 = vld [vmem:[%s258 + $0x8e0] sm:$0xff]
        %v618 = vld [vmem:[%s258 + $0x8e8] sm:$0xff]
        %v619 = vld [vmem:[%s258 + $0x8f0] sm:$0xff]
        %v620 = vld [vmem:[%s258 + $0x8f8] sm:$0xff]
        %v621 = vld [vmem:[%s258 + $0x900] sm:$0xff]
        %v622 = vld [vmem:[%s258 + $0x908] sm:$0xff]
        %v623 = vld [vmem:[%s258 + $0x910] sm:$0xff]
        %v624 = vld [vmem:[%s258 + $0x918] sm:$0xff]
        %v625 = vld [vmem:[%s258 + $0x920] sm:$0xff]
        %v626 = vld [vmem:[%s258 + $0x928] sm:$0xff]
        %v627 = vld [vmem:[%s258 + $0x930] sm:$0xff]
        %v628 = vld [vmem:[%s258 + $0x938] sm:$0xff]
        %v629 = vld [vmem:[%s258 + $0x940] sm:$0xff]
        %v630 = vld [vmem:[%s258 + $0x948] sm:$0xff]
        %v631 = vld [vmem:[%s258 + $0x950] sm:$0xff]
        %v632 = vld [vmem:[%s258 + $0x958] sm:$0xff]
        %v633 = vld [vmem:[%s258 + $0x960] sm:$0xff]
        %v634 = vld [vmem:[%s258 + $0x968] sm:$0xff]
        %v635 = vld [vmem:[%s258 + $0x970] sm:$0xff]
        %v636 = vld [vmem:[%s258 + $0x978] sm:$0xff]
        %v637 = vld [vmem:[%s258 + $0x980] sm:$0xff]
        %v638 = vld [vmem:[%s258 + $0x988] sm:$0xff]
        %v639 = vld [vmem:[%s258 + $0x990] sm:$0xff]
        %v640 = vld [vmem:[%s258 + $0x998] sm:$0xff]
        %v641 = vld [vmem:[%s258 + $0x9a0] sm:$0xff]
        %v642 = vld [vmem:[%s258 + $0x9a8] sm:$0xff]
        %v643 = vld [vmem:[%s258 + $0x9b0] sm:$0xff]
        %v644 = vld [vmem:[%s258 + $0x9b8] sm:$0xff]
        %v645 = vld [vmem:[%s258 + $0x9c0] sm:$0xff]
        %v646 = vld [vmem:[%s258 + $0x9c8] sm:$0xff]
        %v647 = vld [vmem:[%s258 + $0x9d0] sm:$0xff]
        %v648 = vld [vmem:[%s258 + $0x9d8] sm:$0xff]
        %v649 = vld [vmem:[%s258 + $0x9e0] sm:$0xff]
        %v650 = vld [vmem:[%s258 + $0x9e8] sm:$0xff]
        %v651 = vld [vmem:[%s258 + $0x9f0] sm:$0xff]
        %v652 = vld [vmem:[%s258 + $0x9f8] sm:$0xff]
        %v653 = vld [vmem:[%s258 + $0xa00] sm:$0xff]
        %v654 = vld [vmem:[%s258 + $0xa08] sm:$0xff]
        %v655 = vld [vmem:[%s258 + $0xa10] sm:$0xff]
        %v656 = vld [vmem:[%s258 + $0xa18] sm:$0xff]
        %v657 = vld [vmem:[%s258 + $0xa20] sm:$0xff]
        %v658 = vld [vmem:[%s258 + $0xa28] sm:$0xff]
        %v659 = vld [vmem:[%s258 + $0xa30] sm:$0xff]
        %v660 = vld [vmem:[%s258 + $0xa38] sm:$0xff]
        %v661 = vld [vmem:[%s258 + $0xa40] sm:$0xff]
        %v662 = vld [vmem:[%s258 + $0xa48] sm:$0xff]
        %v663 = vld [vmem:[%s258 + $0xa50] sm:$0xff]
        %v664 = vld [vmem:[%s258 + $0xa58] sm:$0xff]
        %v665 = vld [vmem:[%s258 + $0xa60] sm:$0xff]
        %v666 = vld [vmem:[%s258 + $0xa68] sm:$0xff]
        %v667 = vld [vmem:[%s258 + $0xa70] sm:$0xff]
        %v668 = vld [vmem:[%s258 + $0xa78] sm:$0xff]
        %v669 = vld [vmem:[%s258 + $0xa80] sm:$0xff]
        %v670 = vld [vmem:[%s258 + $0xa88] sm:$0xff]
        %v671 = vld [vmem:[%s258 + $0xa90] sm:$0xff]
        %v672 = vld [vmem:[%s258 + $0xa98] sm:$0xff]
        %v673 = vld [vmem:[%s258 + $0xaa0] sm:$0xff]
        %v674 = vld [vmem:[%s258 + $0xaa8] sm:$0xff]
        %v675 = vld [vmem:[%s258 + $0xab0] sm:$0xff]
        %v676 = vld [vmem:[%s258 + $0xab8] sm:$0xff]
        %v677 = vld [vmem:[%s258 + $0xac0] sm:$0xff]
        %v678 = vld [vmem:[%s258 + $0xac8] sm:$0xff]
        %v679 = vld [vmem:[%s258 + $0xad0] sm:$0xff]
        %v680 = vld [vmem:[%s258 + $0xad8] sm:$0xff]
        %v681 = vld [vmem:[%s258 + $0xae0] sm:$0xff]
        %v682 = vld [vmem:[%s258 + $0xae8] sm:$0xff]
        %v683 = vld [vmem:[%s258 + $0xaf0] sm:$0xff]
        %v684 = vld [vmem:[%s258 + $0xaf8] sm:$0xff]
        %v685 = vld [vmem:[%s258 + $0xb00] sm:$0xff]
        %v686 = vld [vmem:[%s258 + $0xb08] sm:$0xff]
        %v687 = vld [vmem:[%s258 + $0xb10] sm:$0xff]
        %v688 = vld [vmem:[%s258 + $0xb18] sm:$0xff]
        %v689 = vld [vmem:[%s258 + $0xb20] sm:$0xff]
        %v690 = vld [vmem:[%s258 + $0xb28] sm:$0xff]
        %v691 = vld [vmem:[%s258 + $0xb30] sm:$0xff]
        %v692 = vld [vmem:[%s258 + $0xb38] sm:$0xff]
        %v693 = vld [vmem:[%s258 + $0xb40] sm:$0xff]
        %v694 = vld [vmem:[%s258 + $0xb48] sm:$0xff]
        %v695 = vld [vmem:[%s258 + $0xb50] sm:$0xff]
        %v696 = vld [vmem:[%s258 + $0xb58] sm:$0xff]
        %v697 = vld [vmem:[%s258 + $0xb60] sm:$0xff]
        %v698 = vld [vmem:[%s258 + $0xb68] sm:$0xff]
        %v699 = vld [vmem:[%s258 + $0xb70] sm:$0xff]
        %v700 = vld [vmem:[%s258 + $0xb78] sm:$0xff]
        %v701 = vld [vmem:[%s258 + $0xb80] sm:$0xff]
        %v702 = vld [vmem:[%s258 + $0xb88] sm:$0xff]
        %v703 = vld [vmem:[%s258 + $0xb90] sm:$0xff]
        %v704 = vld [vmem:[%s258 + $0xb98] sm:$0xff]
        %v705 = vld [vmem:[%s258 + $0xba0] sm:$0xff]
        %v706 = vld [vmem:[%s258 + $0xba8] sm:$0xff]
        %v707 = vld [vmem:[%s258 + $0xbb0] sm:$0xff]
        %v708 = vld [vmem:[%s258 + $0xbb8] sm:$0xff]
        %v709 = vld [vmem:[%s258 + $0xbc0] sm:$0xff]
        %v710 = vld [vmem:[%s258 + $0xbc8] sm:$0xff]
        %v711 = vld [vmem:[%s258 + $0xbd0] sm:$0xff]
        %v712 = vld [vmem:[%s258 + $0xbd8] sm:$0xff]
        %v713 = vld [vmem:[%s258 + $0xbe0] sm:$0xff]
        %v714 = vld [vmem:[%s258 + $0xbe8] sm:$0xff]
        %v715 = vld [vmem:[%s258 + $0xbf0] sm:$0xff]
        %v716 = vld [vmem:[%s258 + $0xbf8] sm:$0xff]
        %v717 = vld [vmem:[%s258 + $0xc00] sm:$0xff]
        %v718 = vld [vmem:[%s258 + $0xc08] sm:$0xff]
        %v719 = vld [vmem:[%s258 + $0xc10] sm:$0xff]
        %v720 = vld [vmem:[%s258 + $0xc18] sm:$0xff]
        %v721 = vld [vmem:[%s258 + $0xc20] sm:$0xff]
        %v722 = vld [vmem:[%s258 + $0xc28] sm:$0xff]
        %v723 = vld [vmem:[%s258 + $0xc30] sm:$0xff]
        %v724 = vld [vmem:[%s258 + $0xc38] sm:$0xff]
        %v725 = vld [vmem:[%s258 + $0xc40] sm:$0xff]
        %v726 = vld [vmem:[%s258 + $0xc48] sm:$0xff]
        %v727 = vld [vmem:[%s258 + $0xc50] sm:$0xff]
        %v728 = vld [vmem:[%s258 + $0xc58] sm:$0xff]
        %v729 = vld [vmem:[%s258 + $0xc60] sm:$0xff]
        %v730 = vld [vmem:[%s258 + $0xc68] sm:$0xff]
        %v731 = vld [vmem:[%s258 + $0xc70] sm:$0xff]
        %v732 = vld [vmem:[%s258 + $0xc78] sm:$0xff]
        %v733 = vld [vmem:[%s258 + $0xc80] sm:$0xff]
        %v734 = vld [vmem:[%s258 + $0xc88] sm:$0xff]
        %v735 = vld [vmem:[%s258 + $0xc90] sm:$0xff]
        %v736 = vld [vmem:[%s258 + $0xc98] sm:$0xff]
        %v737 = vld [vmem:[%s258 + $0xca0] sm:$0xff]
        %v738 = vld [vmem:[%s258 + $0xca8] sm:$0xff]
        %v739 = vld [vmem:[%s258 + $0xcb0] sm:$0xff]
        %v740 = vld [vmem:[%s258 + $0xcb8] sm:$0xff]
        %v741 = vld [vmem:[%s258 + $0xcc0] sm:$0xff]
        %v742 = vld [vmem:[%s258 + $0xcc8] sm:$0xff]
        %v743 = vld [vmem:[%s258 + $0xcd0] sm:$0xff]
        %v744 = vld [vmem:[%s258 + $0xcd8] sm:$0xff]
        %v745 = vld [vmem:[%s258 + $0xce0] sm:$0xff]
        %v746 = vld [vmem:[%s258 + $0xce8] sm:$0xff]
        %v747 = vld [vmem:[%s258 + $0xcf0] sm:$0xff]
        %v748 = vld [vmem:[%s258 + $0xcf8] sm:$0xff]
        %v749 = vld [vmem:[%s258 + $0xd00] sm:$0xff]
        %v750 = vld [vmem:[%s258 + $0xd08] sm:$0xff]
        %v751 = vld [vmem:[%s258 + $0xd10] sm:$0xff]
        %v752 = vld [vmem:[%s258 + $0xd18] sm:$0xff]
        %v753 = vld [vmem:[%s258 + $0xd20] sm:$0xff]
        %v754 = vld [vmem:[%s258 + $0xd28] sm:$0xff]
        %v755 = vld [vmem:[%s258 + $0xd30] sm:$0xff]
        %v756 = vld [vmem:[%s258 + $0xd38] sm:$0xff]
        %v757 = vld [vmem:[%s258 + $0xd40] sm:$0xff]
        %v758 = vld [vmem:[%s258 + $0xd48] sm:$0xff]
        %v759 = vld [vmem:[%s258 + $0xd50] sm:$0xff]
        %v760 = vld [vmem:[%s258 + $0xd58] sm:$0xff]
        %v761 = vld [vmem:[%s258 + $0xd60] sm:$0xff]
        %v762 = vld [vmem:[%s258 + $0xd68] sm:$0xff]
        %v763 = vld [vmem:[%s258 + $0xd70] sm:$0xff]
        %v764 = vld [vmem:[%s258 + $0xd78] sm:$0xff]
        %v765 = vld [vmem:[%s258 + $0xd80] sm:$0xff]
        %v766 = vld [vmem:[%s258 + $0xd88] sm:$0xff]
        %v767 = vld [vmem:[%s258 + $0xd90] sm:$0xff]
        %v768 = vld [vmem:[%s258 + $0xd98] sm:$0xff]
        %v769 = vld [vmem:[%s258 + $0xda0] sm:$0xff]
        %v770 = vld [vmem:[%s258 + $0xda8] sm:$0xff]
        %v771 = vld [vmem:[%s258 + $0xdb0] sm:$0xff]
        %v772 = vld [vmem:[%s258 + $0xdb8] sm:$0xff]
        %v773 = vld [vmem:[%s258 + $0xdc0] sm:$0xff]
        %v774 = vld [vmem:[%s258 + $0xdc8] sm:$0xff]
        %v775 = vld [vmem:[%s258 + $0xdd0] sm:$0xff]
        %v776 = vld [vmem:[%s258 + $0xdd8] sm:$0xff]
        %v777 = vld [vmem:[%s258 + $0xde0] sm:$0xff]
        %v778 = vld [vmem:[%s258 + $0xde8] sm:$0xff]
        %v779 = vld [vmem:[%s258 + $0xdf0] sm:$0xff]
        %v780 = vld [vmem:[%s258 + $0xdf8] sm:$0xff]
        %v781 = vld [vmem:[%s258 + $0xe00] sm:$0xff]
        %v782 = vld [vmem:[%s258 + $0xe08] sm:$0xff]
        %v783 = vld [vmem:[%s258 + $0xe10] sm:$0xff]
        %v784 = vld [vmem:[%s258 + $0xe18] sm:$0xff]
        %v785 = vld [vmem:[%s258 + $0xe20] sm:$0xff]
        %v786 = vld [vmem:[%s258 + $0xe28] sm:$0xff]
        %v787 = vld [vmem:[%s258 + $0xe30] sm:$0xff]
        %v788 = vld [vmem:[%s258 + $0xe38] sm:$0xff]
        %v789 = vld [vmem:[%s258 + $0xe40] sm:$0xff]
        %v790 = vld [vmem:[%s258 + $0xe48] sm:$0xff]
        %v791 = vld [vmem:[%s258 + $0xe50] sm:$0xff]
        %v792 = vld [vmem:[%s258 + $0xe58] sm:$0xff]
        %v793 = vld [vmem:[%s258 + $0xe60] sm:$0xff]
        %v794 = vld [vmem:[%s258 + $0xe68] sm:$0xff]
        %v795 = vld [vmem:[%s258 + $0xe70] sm:$0xff]
        %v796 = vld [vmem:[%s258 + $0xe78] sm:$0xff]
        %v797 = vld [vmem:[%s258 + $0xe80] sm:$0xff]
        %v798 = vld [vmem:[%s258 + $0xe88] sm:$0xff]
        %v799 = vld [vmem:[%s258 + $0xe90] sm:$0xff]
        %v800 = vld [vmem:[%s258 + $0xe98] sm:$0xff]
        %v801 = vld [vmem:[%s258 + $0xea0] sm:$0xff]
        %v802 = vld [vmem:[%s258 + $0xea8] sm:$0xff]
        %v803 = vld [vmem:[%s258 + $0xeb0] sm:$0xff]
        %v804 = vld [vmem:[%s258 + $0xeb8] sm:$0xff]
        %v805 = vld [vmem:[%s258 + $0xec0] sm:$0xff]
        %v806 = vld [vmem:[%s258 + $0xec8] sm:$0xff]
        %v807 = vld [vmem:[%s258 + $0xed0] sm:$0xff]
        %v808 = vld [vmem:[%s258 + $0xed8] sm:$0xff]
        %v809 = vld [vmem:[%s258 + $0xee0] sm:$0xff]
        %v810 = vld [vmem:[%s258 + $0xee8] sm:$0xff]
        %v811 = vld [vmem:[%s258 + $0xef0] sm:$0xff]
        %v812 = vld [vmem:[%s258 + $0xef8] sm:$0xff]
        %v813 = vld [vmem:[%s258 + $0xf00] sm:$0xff]
        %v814 = vld [vmem:[%s258 + $0xf08] sm:$0xff]
        %v815 = vld [vmem:[%s258 + $0xf10] sm:$0xff]
        %v816 = vld [vmem:[%s258 + $0xf18] sm:$0xff]
        %v817 = vld [vmem:[%s258 + $0xf20] sm:$0xff]
        %v818 = vld [vmem:[%s258 + $0xf28] sm:$0xff]
        %v819 = vld [vmem:[%s258 + $0xf30] sm:$0xff]
        %v820 = vld [vmem:[%s258 + $0xf38] sm:$0xff]
        %v821 = vld [vmem:[%s258 + $0xf40] sm:$0xff]
        %v822 = vld [vmem:[%s258 + $0xf48] sm:$0xff]
        %v823 = vld [vmem:[%s258 + $0xf50] sm:$0xff]
        %v824 = vld [vmem:[%s258 + $0xf58] sm:$0xff]
        %v825 = vld [vmem:[%s258 + $0xf60] sm:$0xff]
        %v826 = vld [vmem:[%s258 + $0xf68] sm:$0xff]
        %v827 = vld [vmem:[%s258 + $0xf70] sm:$0xff]
        %v828 = vld [vmem:[%s258 + $0xf78] sm:$0xff]
        %v829 = vld [vmem:[%s258 + $0xf80] sm:$0xff]
        %v830 = vld [vmem:[%s258 + $0xf88] sm:$0xff]
        %v831 = vld [vmem:[%s258 + $0xf90] sm:$0xff]
        %v832 = vld [vmem:[%s258 + $0xf98] sm:$0xff]
        %v833 = vld [vmem:[%s258 + $0xfa0] sm:$0xff]
        %v834 = vld [vmem:[%s258 + $0xfa8] sm:$0xff]
        %v835 = vld [vmem:[%s258 + $0xfb0] sm:$0xff]
        %v836 = vld [vmem:[%s258 + $0xfb8] sm:$0xff]
        %v837 = vld [vmem:[%s258 + $0xfc0] sm:$0xff]
        %v838 = vld [vmem:[%s258 + $0xfc8] sm:$0xff]
        %v839 = vld [vmem:[%s258 + $0xfd0] sm:$0xff]
        %v840 = vld [vmem:[%s258 + $0xfd8] sm:$0xff]
        %v841 = vld [vmem:[%s258 + $0xfe0] sm:$0xff]
        %v842 = vld [vmem:[%s258 + $0xfe8] sm:$0xff]
        %v843 = vld [vmem:[%s258 + $0xff0] sm:$0xff]
        %v844 = vld [vmem:[%s258 + $0xff8] sm:$0xff]
        %v845 = vld [vmem:[%s258 + $0x1000] sm:$0xff]
        %v846 = vld [vmem:[%s258 + $0x1008] sm:$0xff]
        %v847 = vld [vmem:[%s258 + $0x1010] sm:$0xff]
        %v848 = vld [vmem:[%s258 + $0x1018] sm:$0xff]
        %v849 = vld [vmem:[%s258 + $0x1020] sm:$0xff]
        %v850 = vld [vmem:[%s258 + $0x1028] sm:$0xff]
        %v851 = vld [vmem:[%s258 + $0x1030] sm:$0xff]
        %v852 = vld [vmem:[%s258 + $0x1038] sm:$0xff]
        %v853 = vld [vmem:[%s258 + $0x1040] sm:$0xff]
        %v854 = vld [vmem:[%s258 + $0x1048] sm:$0xff]
        %v855 = vld [vmem:[%s258 + $0x1050] sm:$0xff]
        %v856 = vld [vmem:[%s258 + $0x1058] sm:$0xff]
        %v857 = vld [vmem:[%s258 + $0x1060] sm:$0xff]
        %v858 = vld [vmem:[%s258 + $0x1068] sm:$0xff]
        %v859 = vld [vmem:[%s258 + $0x1070] sm:$0xff]
        %v860 = vld [vmem:[%s258 + $0x1078] sm:$0xff]
        %v861 = vld [vmem:[%s258 + $0x1080] sm:$0xff]
        %v862 = vld [vmem:[%s258 + $0x1088] sm:$0xff]
        %v863 = vld [vmem:[%s258 + $0x1090] sm:$0xff]
        %v864 = vld [vmem:[%s258 + $0x1098] sm:$0xff]
        %v865 = vld [vmem:[%s258 + $0x10a0] sm:$0xff]
        %v866 = vld [vmem:[%s258 + $0x10a8] sm:$0xff]
        %v867 = vld [vmem:[%s258 + $0x10b0] sm:$0xff]
        %v868 = vld [vmem:[%s258 + $0x10b8] sm:$0xff]
        %v869 = vld [vmem:[%s258 + $0x10c0] sm:$0xff]
        %v870 = vld [vmem:[%s258 + $0x10c8] sm:$0xff]
        %v871 = vld [vmem:[%s258 + $0x10d0] sm:$0xff]
        %v872 = vld [vmem:[%s258 + $0x10d8] sm:$0xff]
        %v873 = vld [vmem:[%s258 + $0x10e0] sm:$0xff]
        %v874 = vld [vmem:[%s258 + $0x10e8] sm:$0xff]
        %v875 = vld [vmem:[%s258 + $0x10f0] sm:$0xff]
        %v876 = vld [vmem:[%s258 + $0x10f8] sm:$0xff]
        %v877 = vld [vmem:[%s258 + $0x1100] sm:$0xff]
        %v878 = vld [vmem:[%s258 + $0x1108] sm:$0xff]
        %v879 = vld [vmem:[%s258 + $0x1110] sm:$0xff]
        %v880 = vld [vmem:[%s258 + $0x1118] sm:$0xff]
        %v881 = vld [vmem:[%s258 + $0x1120] sm:$0xff]
        %v882 = vld [vmem:[%s258 + $0x1128] sm:$0xff]
        %v883 = vld [vmem:[%s258 + $0x1130] sm:$0xff]
        %v884 = vld [vmem:[%s258 + $0x1138] sm:$0xff]
        %v885 = vld [vmem:[%s258 + $0x1140] sm:$0xff]
        %v886 = vld [vmem:[%s258 + $0x1148] sm:$0xff]
        %v887 = vld [vmem:[%s258 + $0x1150] sm:$0xff]
        %v888 = vld [vmem:[%s258 + $0x1158] sm:$0xff]
        %v889 = vld [vmem:[%s258 + $0x1160] sm:$0xff]
        %v890 = vld [vmem:[%s258 + $0x1168] sm:$0xff]
        %v891 = vld [vmem:[%s258 + $0x1170] sm:$0xff]
        %v892 = vld [vmem:[%s258 + $0x1178] sm:$0xff]
        %v893 = vld [vmem:[%s258 + $0x1180] sm:$0xff]
        %v894 = vld [vmem:[%s258 + $0x1188] sm:$0xff]
        %v895 = vld [vmem:[%s258 + $0x1190] sm:$0xff]
        %v896 = vld [vmem:[%s258 + $0x1198] sm:$0xff]
        %v897 = vld [vmem:[%s258 + $0x11a0] sm:$0xff]
        %v898 = vld [vmem:[%s258 + $0x11a8] sm:$0xff]
        %v899 = vld [vmem:[%s258 + $0x11b0] sm:$0xff]
        %v900 = vld [vmem:[%s258 + $0x11b8] sm:$0xff]
        %v901 = vld [vmem:[%s258 + $0x11c0] sm:$0xff]
        %v902 = vld [vmem:[%s258 + $0x11c8] sm:$0xff]
        %v903 = vld [vmem:[%s258 + $0x11d0] sm:$0xff]
        %v904 = vld [vmem:[%s258 + $0x11d8] sm:$0xff]
        %v905 = vld [vmem:[%s258 + $0x11e0] sm:$0xff]
        %v906 = vld [vmem:[%s258 + $0x11e8] sm:$0xff]
        %v907 = vld [vmem:[%s258 + $0x11f0] sm:$0xff]
        %v908 = vld [vmem:[%s258 + $0x11f8] sm:$0xff]
        %v909 = vld [vmem:[%s258 + $0x1200] sm:$0xff]
        %v910 = vld [vmem:[%s258 + $0x1208] sm:$0xff]
        %v911 = vld [vmem:[%s258 + $0x1210] sm:$0xff]
        %v912 = vld [vmem:[%s258 + $0x1218] sm:$0xff]
        %v913 = vld [vmem:[%s258 + $0x1220] sm:$0xff]
        %v914 = vld [vmem:[%s258 + $0x1228] sm:$0xff]
        %v915 = vld [vmem:[%s258 + $0x1230] sm:$0xff]
        %v916 = vld [vmem:[%s258 + $0x1238] sm:$0xff]
        %v917 = vld [vmem:[%s258 + $0x1240] sm:$0xff]
        %v918 = vld [vmem:[%s258 + $0x1248] sm:$0xff]
        %v919 = vld [vmem:[%s258 + $0x1250] sm:$0xff]
        %v920 = vld [vmem:[%s258 + $0x1258] sm:$0xff]
        %v921 = vld [vmem:[%s258 + $0x1260] sm:$0xff]
        %v922 = vld [vmem:[%s258 + $0x1268] sm:$0xff]
        %v923 = vld [vmem:[%s258 + $0x1270] sm:$0xff]
        %v924 = vld [vmem:[%s258 + $0x1278] sm:$0xff]
        %v925 = vld [vmem:[%s258 + $0x1280] sm:$0xff]
        %v926 = vld [vmem:[%s258 + $0x1288] sm:$0xff]
        %v927 = vld [vmem:[%s258 + $0x1290] sm:$0xff]
        %v928 = vld [vmem:[%s258 + $0x1298] sm:$0xff]
        %v929 = vld [vmem:[%s258 + $0x12a0] sm:$0xff]
        %v930 = vld [vmem:[%s258 + $0x12a8] sm:$0xff]
        %v931 = vld [vmem:[%s258 + $0x12b0] sm:$0xff]
        %v932 = vld [vmem:[%s258 + $0x12b8] sm:$0xff]
        %v933 = vld [vmem:[%s258 + $0x12c0] sm:$0xff]
        %v934 = vld [vmem:[%s258 + $0x12c8] sm:$0xff]
        %v935 = vld [vmem:[%s258 + $0x12d0] sm:$0xff]
        %v936 = vld [vmem:[%s258 + $0x12d8] sm:$0xff]
        %v937 = vld [vmem:[%s258 + $0x12e0] sm:$0xff]
        %v938 = vld [vmem:[%s258 + $0x12e8] sm:$0xff]
        %v939 = vld [vmem:[%s258 + $0x12f0] sm:$0xff]
        %v940 = vld [vmem:[%s258 + $0x12f8] sm:$0xff]
        %v941 = vld [vmem:[%s258 + $0x1300] sm:$0xff]
        %v942 = vld [vmem:[%s258 + $0x1308] sm:$0xff]
        %v943 = vld [vmem:[%s258 + $0x1310] sm:$0xff]
        %v944 = vld [vmem:[%s258 + $0x1318] sm:$0xff]
        %v945 = vld [vmem:[%s258 + $0x1320] sm:$0xff]
        %v946 = vld [vmem:[%s258 + $0x1328] sm:$0xff]
        %v947 = vld [vmem:[%s258 + $0x1330] sm:$0xff]
        %v948 = vld [vmem:[%s258 + $0x1338] sm:$0xff]
        %v949 = vld [vmem:[%s258 + $0x1340] sm:$0xff]
        %v950 = vld [vmem:[%s258 + $0x1348] sm:$0xff]
        %v951 = vld [vmem:[%s258 + $0x1350] sm:$0xff]
        %v952 = vld [vmem:[%s258 + $0x1358] sm:$0xff]
        %v953 = vld [vmem:[%s258 + $0x1360] sm:$0xff]
        %v954 = vld [vmem:[%s258 + $0x1368] sm:$0xff]
        %v955 = vld [vmem:[%s258 + $0x1370] sm:$0xff]
        %v956 = vld [vmem:[%s258 + $0x1378] sm:$0xff]
        %v957 = vld [vmem:[%s258 + $0x1380] sm:$0xff]
        %v958 = vld [vmem:[%s258 + $0x1388] sm:$0xff]
        %v959 = vld [vmem:[%s258 + $0x1390] sm:$0xff]
        %v960 = vld [vmem:[%s258 + $0x1398] sm:$0xff]
        %v961 = vld [vmem:[%s258 + $0x13a0] sm:$0xff]
        %v962 = vld [vmem:[%s258 + $0x13a8] sm:$0xff]
        %v963 = vld [vmem:[%s258 + $0x13b0] sm:$0xff]
        %v964 = vld [vmem:[%s258 + $0x13b8] sm:$0xff]
        %v965 = vld [vmem:[%s258 + $0x13c0] sm:$0xff]
        %v966 = vld [vmem:[%s258 + $0x13c8] sm:$0xff]
        %v967 = vld [vmem:[%s258 + $0x13d0] sm:$0xff]
        %v968 = vld [vmem:[%s258 + $0x13d8] sm:$0xff]
        %v969 = vld [vmem:[%s258 + $0x13e0] sm:$0xff]
        %v970 = vld [vmem:[%s258 + $0x13e8] sm:$0xff]
        %v971 = vld [vmem:[%s258 + $0x13f0] sm:$0xff]
        %v972 = vld [vmem:[%s258 + $0x13f8] sm:$0xff]
        %v973 = vld [vmem:[%s258 + $0x1400] sm:$0xff]
        %v974 = vld [vmem:[%s258 + $0x1408] sm:$0xff]
        %v975 = vld [vmem:[%s258 + $0x1410] sm:$0xff]
        %v976 = vld [vmem:[%s258 + $0x1418] sm:$0xff]
        %v977 = vld [vmem:[%s258 + $0x1420] sm:$0xff]
        %v978 = vld [vmem:[%s258 + $0x1428] sm:$0xff]
        %v979 = vld [vmem:[%s258 + $0x1430] sm:$0xff]
        %v980 = vld [vmem:[%s258 + $0x1438] sm:$0xff]
        %v981 = vld [vmem:[%s258 + $0x1440] sm:$0xff]
        %v982 = vld [vmem:[%s258 + $0x1448] sm:$0xff]
        %v983 = vld [vmem:[%s258 + $0x1450] sm:$0xff]
        %v984 = vld [vmem:[%s258 + $0x1458] sm:$0xff]
        %v985 = vld [vmem:[%s258 + $0x1460] sm:$0xff]
        %v986 = vld [vmem:[%s258 + $0x1468] sm:$0xff]
        %v987 = vld [vmem:[%s258 + $0x1470] sm:$0xff]
        %v988 = vld [vmem:[%s258 + $0x1478] sm:$0xff]
        %v989 = vld [vmem:[%s258 + $0x1480] sm:$0xff]
        %v990 = vld [vmem:[%s258 + $0x1488] sm:$0xff]
        %v991 = vld [vmem:[%s258 + $0x1490] sm:$0xff]
        %v992 = vld [vmem:[%s258 + $0x1498] sm:$0xff]
        %v993 = vld [vmem:[%s258 + $0x14a0] sm:$0xff]
        %v994 = vld [vmem:[%s258 + $0x14a8] sm:$0xff]
        %v995 = vld [vmem:[%s258 + $0x14b0] sm:$0xff]
        %v996 = vld [vmem:[%s258 + $0x14b8] sm:$0xff]
        %v997 = vld [vmem:[%s258 + $0x14c0] sm:$0xff]
        %v998 = vld [vmem:[%s258 + $0x14c8] sm:$0xff]
        %v999 = vld [vmem:[%s258 + $0x14d0] sm:$0xff]
        %v1000 = vld [vmem:[%s258 + $0x14d8] sm:$0xff]
        %v1001 = vld [vmem:[%s258 + $0x14e0] sm:$0xff]
        %v1002 = vld [vmem:[%s258 + $0x14e8] sm:$0xff]
        %v1003 = vld [vmem:[%s258 + $0x14f0] sm:$0xff]
        %v1004 = vld [vmem:[%s258 + $0x14f8] sm:$0xff]
        %v1005 = vld [vmem:[%s258 + $0x1500] sm:$0xff]
        %v1006 = vld [vmem:[%s258 + $0x1508] sm:$0xff]
        %v1007 = vld [vmem:[%s258 + $0x1510] sm:$0xff]
        %v1008 = vld [vmem:[%s258 + $0x1518] sm:$0xff]
        %v1009 = vld [vmem:[%s258 + $0x1520] sm:$0xff]
        %v1010 = vld [vmem:[%s258 + $0x1528] sm:$0xff]
        %v1011 = vld [vmem:[%s258 + $0x1530] sm:$0xff]
        %v1012 = vld [vmem:[%s258 + $0x1538] sm:$0xff]
        %v1013 = vld [vmem:[%s258 + $0x1540] sm:$0xff]
        %v1014 = vld [vmem:[%s258 + $0x1548] sm:$0xff]
        %v1015 = vld [vmem:[%s258 + $0x1550] sm:$0xff]
        %v1016 = vld [vmem:[%s258 + $0x1558] sm:$0xff]
        %v1017 = vld [vmem:[%s258 + $0x1560] sm:$0xff]
        %v1018 = vld [vmem:[%s258 + $0x1568] sm:$0xff]
        %v1019 = vld [vmem:[%s258 + $0x1570] sm:$0xff]
        %v1020 = vld [vmem:[%s258 + $0x1578] sm:$0xff]
        %v1021 = vld [vmem:[%s258 + $0x1580] sm:$0xff]
        %v1022 = vld [vmem:[%s258 + $0x1588] sm:$0xff]
        %v1023 = vld [vmem:[%s258 + $0x1590] sm:$0xff]
        %v1024 = vld [vmem:[%s258 + $0x1598] sm:$0xff]
        %v1025 = vld [vmem:[%s258 + $0x15a0] sm:$0xff]
        %v1026 = vld [vmem:[%s258 + $0x15a8] sm:$0xff]
        %v1027 = vld [vmem:[%s258 + $0x15b0] sm:$0xff]
        %v1028 = vld [vmem:[%s258 + $0x15b8] sm:$0xff]
        %v1029 = vld [vmem:[%s258 + $0x15c0] sm:$0xff]
        %v1030 = vld [vmem:[%s258 + $0x15c8] sm:$0xff]
        %v1031 = vld [vmem:[%s258 + $0x15d0] sm:$0xff]
        %v1032 = vld [vmem:[%s258 + $0x15d8] sm:$0xff]
        %v1033 = vld [vmem:[%s258 + $0x15e0] sm:$0xff]
        %v1034 = vld [vmem:[%s258 + $0x15e8] sm:$0xff]
        %v1035 = vld [vmem:[%s258 + $0x15f0] sm:$0xff]
        %v1036 = vld [vmem:[%s258 + $0x15f8] sm:$0xff]
        %v1037 = vld [vmem:[%s258 + $0x1600] sm:$0xff]
        %v1038 = vld [vmem:[%s258 + $0x1608] sm:$0xff]
        %v1039 = vld [vmem:[%s258 + $0x1610] sm:$0xff]
        %v1040 = vld [vmem:[%s258 + $0x1618] sm:$0xff]
        %v1041 = vld [vmem:[%s258 + $0x1620] sm:$0xff]
        %v1042 = vld [vmem:[%s258 + $0x1628] sm:$0xff]
        %v1043 = vld [vmem:[%s258 + $0x1630] sm:$0xff]
        %v1044 = vld [vmem:[%s258 + $0x1638] sm:$0xff]
        %v1045 = vld [vmem:[%s258 + $0x1640] sm:$0xff]
        %v1046 = vld [vmem:[%s258 + $0x1648] sm:$0xff]
        %v1047 = vld [vmem:[%s258 + $0x1650] sm:$0xff]
        %v1048 = vld [vmem:[%s258 + $0x1658] sm:$0xff]
        %v1049 = vld [vmem:[%s258 + $0x1660] sm:$0xff]
        %v1050 = vld [vmem:[%s258 + $0x1668] sm:$0xff]
        %v1051 = vld [vmem:[%s258 + $0x1670] sm:$0xff]
        %v1052 = vld [vmem:[%s258 + $0x1678] sm:$0xff]
        %v1053 = vld [vmem:[%s258 + $0x1680] sm:$0xff]
        %v1054 = vld [vmem:[%s258 + $0x1688] sm:$0xff]
        %v1055 = vld [vmem:[%s258 + $0x1690] sm:$0xff]
        %v1056 = vld [vmem:[%s258 + $0x1698] sm:$0xff]
        %v1057 = vld [vmem:[%s258 + $0x16a0] sm:$0xff]
        %v1058 = vld [vmem:[%s258 + $0x16a8] sm:$0xff]
        %v1059 = vld [vmem:[%s258 + $0x16b0] sm:$0xff]
        %v1060 = vld [vmem:[%s258 + $0x16b8] sm:$0xff]
        %v1061 = vld [vmem:[%s258 + $0x16c0] sm:$0xff]
        %v1062 = vld [vmem:[%s258 + $0x16c8] sm:$0xff]
        %v1063 = vld [vmem:[%s258 + $0x16d0] sm:$0xff]
        %v1064 = vld [vmem:[%s258 + $0x16d8] sm:$0xff]
        %v1065 = vld [vmem:[%s258 + $0x16e0] sm:$0xff]
        %v1066 = vld [vmem:[%s258 + $0x16e8] sm:$0xff]
        %v1067 = vld [vmem:[%s258 + $0x16f0] sm:$0xff]
        %v1068 = vld [vmem:[%s258 + $0x16f8] sm:$0xff]
        %v1069 = vld [vmem:[%s258 + $0x1700] sm:$0xff]
        %v1070 = vld [vmem:[%s258 + $0x1708] sm:$0xff]
        %v1071 = vld [vmem:[%s258 + $0x1710] sm:$0xff]
        %v1072 = vld [vmem:[%s258 + $0x1718] sm:$0xff]
        %v1073 = vld [vmem:[%s258 + $0x1720] sm:$0xff]
        %v1074 = vld [vmem:[%s258 + $0x1728] sm:$0xff]
        %v1075 = vld [vmem:[%s258 + $0x1730] sm:$0xff]
        %v1076 = vld [vmem:[%s258 + $0x1738] sm:$0xff]
        %v1077 = vld [vmem:[%s258 + $0x1740] sm:$0xff]
        %v1078 = vld [vmem:[%s258 + $0x1748] sm:$0xff]
        %v1079 = vld [vmem:[%s258 + $0x1750] sm:$0xff]
        %v1080 = vld [vmem:[%s258 + $0x1758] sm:$0xff]
        %v1081 = vld [vmem:[%s258 + $0x1760] sm:$0xff]
        %v1082 = vld [vmem:[%s258 + $0x1768] sm:$0xff]
        %v1083 = vld [vmem:[%s258 + $0x1770] sm:$0xff]
        %v1084 = vld [vmem:[%s258 + $0x1778] sm:$0xff]
        %v1085 = vld [vmem:[%s258 + $0x1780] sm:$0xff]
        %v1086 = vld [vmem:[%s258 + $0x1788] sm:$0xff]
        %v1087 = vld [vmem:[%s258 + $0x1790] sm:$0xff]
        %v1088 = vld [vmem:[%s258 + $0x1798] sm:$0xff]
        %v1089 = vld [vmem:[%s258 + $0x17a0] sm:$0xff]
        %v1090 = vld [vmem:[%s258 + $0x17a8] sm:$0xff]
        %v1091 = vld [vmem:[%s258 + $0x17b0] sm:$0xff]
        %v1092 = vld [vmem:[%s258 + $0x17b8] sm:$0xff]
        %v1093 = vld [vmem:[%s258 + $0x17c0] sm:$0xff]
        %v1094 = vld [vmem:[%s258 + $0x17c8] sm:$0xff]
        %v1095 = vld [vmem:[%s258 + $0x17d0] sm:$0xff]
        %v1096 = vld [vmem:[%s258 + $0x17d8] sm:$0xff]
        %v1097 = vld [vmem:[%s258 + $0x17e0] sm:$0xff]
        %v1098 = vld [vmem:[%s258 + $0x17e8] sm:$0xff]
        %v1099 = vld [vmem:[%s258 + $0x17f0] sm:$0xff]
        %v1100 = vld [vmem:[%s258 + $0x17f8] sm:$0xff]
        %v1101 = vld [vmem:[%s258 + $0x1800] sm:$0xff]
        %v1102 = vld [vmem:[%s258 + $0x1808] sm:$0xff]
        %v1103 = vld [vmem:[%s258 + $0x1810] sm:$0xff]
        %v1104 = vld [vmem:[%s258 + $0x1818] sm:$0xff]
        %v1105 = vld [vmem:[%s258 + $0x1820] sm:$0xff]
        %v1106 = vld [vmem:[%s258 + $0x1828] sm:$0xff]
        %v1107 = vld [vmem:[%s258 + $0x1830] sm:$0xff]
        %v1108 = vld [vmem:[%s258 + $0x1838] sm:$0xff]
        %v1109 = vld [vmem:[%s258 + $0x1840] sm:$0xff]
        %v1110 = vld [vmem:[%s258 + $0x1848] sm:$0xff]
        %v1111 = vld [vmem:[%s258 + $0x1850] sm:$0xff]
        %v1112 = vld [vmem:[%s258 + $0x1858] sm:$0xff]
        %v1113 = vld [vmem:[%s258 + $0x1860] sm:$0xff]
        %v1114 = vld [vmem:[%s258 + $0x1868] sm:$0xff]
        %v1115 = vld [vmem:[%s258 + $0x1870] sm:$0xff]
        %v1116 = vld [vmem:[%s258 + $0x1878] sm:$0xff]
        %v1117 = vld [vmem:[%s258 + $0x1880] sm:$0xff]
        %v1118 = vld [vmem:[%s258 + $0x1888] sm:$0xff]
        %v1119 = vld [vmem:[%s258 + $0x1890] sm:$0xff]
        %v1120 = vld [vmem:[%s258 + $0x1898] sm:$0xff]
        %v1121 = vld [vmem:[%s258 + $0x18a0] sm:$0xff]
        %v1122 = vld [vmem:[%s258 + $0x18a8] sm:$0xff]
        %v1123 = vld [vmem:[%s258 + $0x18b0] sm:$0xff]
        %v1124 = vld [vmem:[%s258 + $0x18b8] sm:$0xff]
        %v1125 = vld [vmem:[%s258 + $0x18c0] sm:$0xff]
        %v1126 = vld [vmem:[%s258 + $0x18c8] sm:$0xff]
        %v1127 = vld [vmem:[%s258 + $0x18d0] sm:$0xff]
        %v1128 = vld [vmem:[%s258 + $0x18d8] sm:$0xff]
        %v1129 = vld [vmem:[%s258 + $0x18e0] sm:$0xff]
        %v1130 = vld [vmem:[%s258 + $0x18e8] sm:$0xff]
        %v1131 = vld [vmem:[%s258 + $0x18f0] sm:$0xff]
        %v1132 = vld [vmem:[%s258 + $0x18f8] sm:$0xff]
        %v1133 = vld [vmem:[%s258 + $0x1900] sm:$0xff]
        %v1134 = vld [vmem:[%s258 + $0x1908] sm:$0xff]
        %v1135 = vld [vmem:[%s258 + $0x1910] sm:$0xff]
        %v1136 = vld [vmem:[%s258 + $0x1918] sm:$0xff]
        %v1137 = vld [vmem:[%s258 + $0x1920] sm:$0xff]
        %v1138 = vld [vmem:[%s258 + $0x1928] sm:$0xff]
        %v1139 = vld [vmem:[%s258 + $0x1930] sm:$0xff]
        %v1140 = vld [vmem:[%s258 + $0x1938] sm:$0xff]
        %v1141 = vld [vmem:[%s258 + $0x1940] sm:$0xff]
        %v1142 = vld [vmem:[%s258 + $0x1948] sm:$0xff]
        %v1143 = vld [vmem:[%s258 + $0x1950] sm:$0xff]
        %v1144 = vld [vmem:[%s258 + $0x1958] sm:$0xff]
        %v1145 = vld [vmem:[%s258 + $0x1960] sm:$0xff]
        %v1146 = vld [vmem:[%s258 + $0x1968] sm:$0xff]
        %v1147 = vld [vmem:[%s258 + $0x1970] sm:$0xff]
        %v1148 = vld [vmem:[%s258 + $0x1978] sm:$0xff]
        %v1149 = vld [vmem:[%s258 + $0x1980] sm:$0xff]
        %v1150 = vld [vmem:[%s258 + $0x1988] sm:$0xff]
        %v1151 = vld [vmem:[%s258 + $0x1990] sm:$0xff]
        %v1152 = vld [vmem:[%s258 + $0x1998] sm:$0xff]
        %v1153 = vld [vmem:[%s258 + $0x19a0] sm:$0xff]
        %v1154 = vld [vmem:[%s258 + $0x19a8] sm:$0xff]
        %v1155 = vld [vmem:[%s258 + $0x19b0] sm:$0xff]
        %v1156 = vld [vmem:[%s258 + $0x19b8] sm:$0xff]
        %v1157 = vld [vmem:[%s258 + $0x19c0] sm:$0xff]
        %v1158 = vld [vmem:[%s258 + $0x19c8] sm:$0xff]
        %v1159 = vld [vmem:[%s258 + $0x19d0] sm:$0xff]
        %v1160 = vld [vmem:[%s258 + $0x19d8] sm:$0xff]
        %v1161 = vld [vmem:[%s258 + $0x19e0] sm:$0xff]
        %v1162 = vld [vmem:[%s258 + $0x19e8] sm:$0xff]
        %v1163 = vld [vmem:[%s258 + $0x19f0] sm:$0xff]
        %v1164 = vld [vmem:[%s258 + $0x19f8] sm:$0xff]
        %v1165 = vld [vmem:[%s258 + $0x1a00] sm:$0xff]
        %v1166 = vld [vmem:[%s258 + $0x1a08] sm:$0xff]
        %v1167 = vld [vmem:[%s258 + $0x1a10] sm:$0xff]
        %v1168 = vld [vmem:[%s258 + $0x1a18] sm:$0xff]
        %v1169 = vld [vmem:[%s258 + $0x1a20] sm:$0xff]
        %v1170 = vld [vmem:[%s258 + $0x1a28] sm:$0xff]
        %v1171 = vld [vmem:[%s258 + $0x1a30] sm:$0xff]
        %v1172 = vld [vmem:[%s258 + $0x1a38] sm:$0xff]
        %v1173 = vld [vmem:[%s258 + $0x1a40] sm:$0xff]
        %v1174 = vld [vmem:[%s258 + $0x1a48] sm:$0xff]
        %v1175 = vld [vmem:[%s258 + $0x1a50] sm:$0xff]
        %v1176 = vld [vmem:[%s258 + $0x1a58] sm:$0xff]
        %v1177 = vld [vmem:[%s258 + $0x1a60] sm:$0xff]
        %v1178 = vld [vmem:[%s258 + $0x1a68] sm:$0xff]
        %v1179 = vld [vmem:[%s258 + $0x1a70] sm:$0xff]
        %v1180 = vld [vmem:[%s258 + $0x1a78] sm:$0xff]
        %v1181 = vld [vmem:[%s258 + $0x1a80] sm:$0xff]
        %v1182 = vld [vmem:[%s258 + $0x1a88] sm:$0xff]
        %v1183 = vld [vmem:[%s258 + $0x1a90] sm:$0xff]
        %v1184 = vld [vmem:[%s258 + $0x1a98] sm:$0xff]
        %v1185 = vld [vmem:[%s258 + $0x1aa0] sm:$0xff]
        %v1186 = vld [vmem:[%s258 + $0x1aa8] sm:$0xff]
        %v1187 = vld [vmem:[%s258 + $0x1ab0] sm:$0xff]
        %v1188 = vld [vmem:[%s258 + $0x1ab8] sm:$0xff]
        %v1189 = vld [vmem:[%s258 + $0x1ac0] sm:$0xff]
        %v1190 = vld [vmem:[%s258 + $0x1ac8] sm:$0xff]
        %v1191 = vld [vmem:[%s258 + $0x1ad0] sm:$0xff]
        %v1192 = vld [vmem:[%s258 + $0x1ad8] sm:$0xff]
        %v1193 = vld [vmem:[%s258 + $0x1ae0] sm:$0xff]
        %v1194 = vld [vmem:[%s258 + $0x1ae8] sm:$0xff]
        %v1195 = vld [vmem:[%s258 + $0x1af0] sm:$0xff]
        %v1196 = vld [vmem:[%s258 + $0x1af8] sm:$0xff]
        %v1197 = vld [vmem:[%s258 + $0x1b00] sm:$0xff]
        %v1198 = vld [vmem:[%s258 + $0x1b08] sm:$0xff]
        %v1199 = vld [vmem:[%s258 + $0x1b10] sm:$0xff]
        %v1200 = vld [vmem:[%s258 + $0x1b18] sm:$0xff]
        %v1201 = vld [vmem:[%s258 + $0x1b20] sm:$0xff]
        %v1202 = vld [vmem:[%s258 + $0x1b28] sm:$0xff]
        %v1203 = vld [vmem:[%s258 + $0x1b30] sm:$0xff]
        %v1204 = vld [vmem:[%s258 + $0x1b38] sm:$0xff]
        %v1205 = vld [vmem:[%s258 + $0x1b40] sm:$0xff]
        %v1206 = vld [vmem:[%s258 + $0x1b48] sm:$0xff]
        %v1207 = vld [vmem:[%s258 + $0x1b50] sm:$0xff]
        %v1208 = vld [vmem:[%s258 + $0x1b58] sm:$0xff]
        %v1209 = vld [vmem:[%s258 + $0x1b60] sm:$0xff]
        %v1210 = vld [vmem:[%s258 + $0x1b68] sm:$0xff]
        %v1211 = vld [vmem:[%s258 + $0x1b70] sm:$0xff]
        %v1212 = vld [vmem:[%s258 + $0x1b78] sm:$0xff]
        %v1213 = vld [vmem:[%s258 + $0x1b80] sm:$0xff]
        %v1214 = vld [vmem:[%s258 + $0x1b88] sm:$0xff]
        %v1215 = vld [vmem:[%s258 + $0x1b90] sm:$0xff]
        %v1216 = vld [vmem:[%s258 + $0x1b98] sm:$0xff]
        %v1217 = vld [vmem:[%s258 + $0x1ba0] sm:$0xff]
        %v1218 = vld [vmem:[%s258 + $0x1ba8] sm:$0xff]
        %v1219 = vld [vmem:[%s258 + $0x1bb0] sm:$0xff]
        %v1220 = vld [vmem:[%s258 + $0x1bb8] sm:$0xff]
        %v1221 = vld [vmem:[%s258 + $0x1bc0] sm:$0xff]
        %v1222 = vld [vmem:[%s258 + $0x1bc8] sm:$0xff]
        %v1223 = vld [vmem:[%s258 + $0x1bd0] sm:$0xff]
        %v1224 = vld [vmem:[%s258 + $0x1bd8] sm:$0xff]
        %v1225 = vld [vmem:[%s258 + $0x1be0] sm:$0xff]
        %v1226 = vld [vmem:[%s258 + $0x1be8] sm:$0xff]
        %v1227 = vld [vmem:[%s258 + $0x1bf0] sm:$0xff]
        %v1228 = vld [vmem:[%s258 + $0x1bf8] sm:$0xff]
        %v1229 = vld [vmem:[%s258 + $0x1c00] sm:$0xff]
        %v1230 = vld [vmem:[%s258 + $0x1c08] sm:$0xff]
        %v1231 = vld [vmem:[%s258 + $0x1c10] sm:$0xff]
        %v1232 = vld [vmem:[%s258 + $0x1c18] sm:$0xff]
        %v1233 = vld [vmem:[%s258 + $0x1c20] sm:$0xff]
        %v1234 = vld [vmem:[%s258 + $0x1c28] sm:$0xff]
        %v1235 = vld [vmem:[%s258 + $0x1c30] sm:$0xff]
        %v1236 = vld [vmem:[%s258 + $0x1c38] sm:$0xff]
        %v1237 = vld [vmem:[%s258 + $0x1c40] sm:$0xff]
        %v1238 = vld [vmem:[%s258 + $0x1c48] sm:$0xff]
        %v1239 = vld [vmem:[%s258 + $0x1c50] sm:$0xff]
        %v1240 = vld [vmem:[%s258 + $0x1c58] sm:$0xff]
        %v1241 = vld [vmem:[%s258 + $0x1c60] sm:$0xff]
        %v1242 = vld [vmem:[%s258 + $0x1c68] sm:$0xff]
        %v1243 = vld [vmem:[%s258 + $0x1c70] sm:$0xff]
        %v1244 = vld [vmem:[%s258 + $0x1c78] sm:$0xff]
        %v1245 = vld [vmem:[%s258 + $0x1c80] sm:$0xff]
        %v1246 = vld [vmem:[%s258 + $0x1c88] sm:$0xff]
        %v1247 = vld [vmem:[%s258 + $0x1c90] sm:$0xff]
        %v1248 = vld [vmem:[%s258 + $0x1c98] sm:$0xff]
        %v1249 = vld [vmem:[%s258 + $0x1ca0] sm:$0xff]
        %v1250 = vld [vmem:[%s258 + $0x1ca8] sm:$0xff]
        %v1251 = vld [vmem:[%s258 + $0x1cb0] sm:$0xff]
        %v1252 = vld [vmem:[%s258 + $0x1cb8] sm:$0xff]
        %v1253 = vld [vmem:[%s258 + $0x1cc0] sm:$0xff]
        %v1254 = vld [vmem:[%s258 + $0x1cc8] sm:$0xff]
        %v1255 = vld [vmem:[%s258 + $0x1cd0] sm:$0xff]
        %v1256 = vld [vmem:[%s258 + $0x1cd8] sm:$0xff]
        %v1257 = vld [vmem:[%s258 + $0x1ce0] sm:$0xff]
        %v1258 = vld [vmem:[%s258 + $0x1ce8] sm:$0xff]
        %v1259 = vld [vmem:[%s258 + $0x1cf0] sm:$0xff]
        %v1260 = vld [vmem:[%s258 + $0x1cf8] sm:$0xff]
        %v1261 = vld [vmem:[%s258 + $0x1d00] sm:$0xff]
        %v1262 = vld [vmem:[%s258 + $0x1d08] sm:$0xff]
        %v1263 = vld [vmem:[%s258 + $0x1d10] sm:$0xff]
        %v1264 = vld [vmem:[%s258 + $0x1d18] sm:$0xff]
        %v1265 = vld [vmem:[%s258 + $0x1d20] sm:$0xff]
        %v1266 = vld [vmem:[%s258 + $0x1d28] sm:$0xff]
        %v1267 = vld [vmem:[%s258 + $0x1d30] sm:$0xff]
        %v1268 = vld [vmem:[%s258 + $0x1d38] sm:$0xff]
        %v1269 = vld [vmem:[%s258 + $0x1d40] sm:$0xff]
        %v1270 = vld [vmem:[%s258 + $0x1d48] sm:$0xff]
        %v1271 = vld [vmem:[%s258 + $0x1d50] sm:$0xff]
        %v1272 = vld [vmem:[%s258 + $0x1d58] sm:$0xff]
        %v1273 = vld [vmem:[%s258 + $0x1d60] sm:$0xff]
        %v1274 = vld [vmem:[%s258 + $0x1d68] sm:$0xff]
        %v1275 = vld [vmem:[%s258 + $0x1d70] sm:$0xff]
        %v1276 = vld [vmem:[%s258 + $0x1d78] sm:$0xff]
        %v1277 = vld [vmem:[%s258 + $0x1d80] sm:$0xff]
        %v1278 = vld [vmem:[%s258 + $0x1d88] sm:$0xff]
        %v1279 = vld [vmem:[%s258 + $0x1d90] sm:$0xff]
        %v1280 = vld [vmem:[%s258 + $0x1d98] sm:$0xff]
        %v1281 = vld [vmem:[%s258 + $0x1da0] sm:$0xff]
        %v1282 = vld [vmem:[%s258 + $0x1da8] sm:$0xff]
        %v1283 = vld [vmem:[%s258 + $0x1db0] sm:$0xff]
        %v1284 = vld [vmem:[%s258 + $0x1db8] sm:$0xff]
        %v1285 = vld [vmem:[%s258 + $0x1dc0] sm:$0xff]
        %v1286 = vld [vmem:[%s258 + $0x1dc8] sm:$0xff]
        %v1287 = vld [vmem:[%s258 + $0x1dd0] sm:$0xff]
        %v1288 = vld [vmem:[%s258 + $0x1dd8] sm:$0xff]
        %v1289 = vld [vmem:[%s258 + $0x1de0] sm:$0xff]
        %v1290 = vld [vmem:[%s258 + $0x1de8] sm:$0xff]
        %v1291 = vld [vmem:[%s258 + $0x1df0] sm:$0xff]
        %v1292 = vld [vmem:[%s258 + $0x1df8] sm:$0xff]
        %v1293 = vld [vmem:[%s258 + $0x1e00] sm:$0xff]
        %v1294 = vld [vmem:[%s258 + $0x1e08] sm:$0xff]
        %v1295 = vld [vmem:[%s258 + $0x1e10] sm:$0xff]
        %v1296 = vld [vmem:[%s258 + $0x1e18] sm:$0xff]
        %v1297 = vld [vmem:[%s258 + $0x1e20] sm:$0xff]
        %v1298 = vld [vmem:[%s258 + $0x1e28] sm:$0xff]
        %v1299 = vld [vmem:[%s258 + $0x1e30] sm:$0xff]
        %v1300 = vld [vmem:[%s258 + $0x1e38] sm:$0xff]
        %v1301 = vld [vmem:[%s258 + $0x1e40] sm:$0xff]
        %v1302 = vld [vmem:[%s258 + $0x1e48] sm:$0xff]
        %v1303 = vld [vmem:[%s258 + $0x1e50] sm:$0xff]
        %v1304 = vld [vmem:[%s258 + $0x1e58] sm:$0xff]
        %v1305 = vld [vmem:[%s258 + $0x1e60] sm:$0xff]
        %v1306 = vld [vmem:[%s258 + $0x1e68] sm:$0xff]
        %v1307 = vld [vmem:[%s258 + $0x1e70] sm:$0xff]
        %v1308 = vld [vmem:[%s258 + $0x1e78] sm:$0xff]
        %v1309 = vld [vmem:[%s258 + $0x1e80] sm:$0xff]
        %v1310 = vld [vmem:[%s258 + $0x1e88] sm:$0xff]
        %v1311 = vld [vmem:[%s258 + $0x1e90] sm:$0xff]
        %v1312 = vld [vmem:[%s258 + $0x1e98] sm:$0xff]
        %v1313 = vld [vmem:[%s258 + $0x1ea0] sm:$0xff]
        %v1314 = vld [vmem:[%s258 + $0x1ea8] sm:$0xff]
        %v1315 = vld [vmem:[%s258 + $0x1eb0] sm:$0xff]
        %v1316 = vld [vmem:[%s258 + $0x1eb8] sm:$0xff]
        %v1317 = vld [vmem:[%s258 + $0x1ec0] sm:$0xff]
        %v1318 = vld [vmem:[%s258 + $0x1ec8] sm:$0xff]
        %v1319 = vld [vmem:[%s258 + $0x1ed0] sm:$0xff]
        %v1320 = vld [vmem:[%s258 + $0x1ed8] sm:$0xff]
        %v1321 = vld [vmem:[%s258 + $0x1ee0] sm:$0xff]
        %v1322 = vld [vmem:[%s258 + $0x1ee8] sm:$0xff]
        %v1323 = vld [vmem:[%s258 + $0x1ef0] sm:$0xff]
        %v1324 = vld [vmem:[%s258 + $0x1ef8] sm:$0xff]
        %v1325 = vld [vmem:[%s258 + $0x1f00] sm:$0xff]
        %v1326 = vld [vmem:[%s258 + $0x1f08] sm:$0xff]
        %v1327 = vld [vmem:[%s258 + $0x1f10] sm:$0xff]
        %v1328 = vld [vmem:[%s258 + $0x1f18] sm:$0xff]
        %v1329 = vld [vmem:[%s258 + $0x1f20] sm:$0xff]
        %v1330 = vld [vmem:[%s258 + $0x1f28] sm:$0xff]
        %v1331 = vld [vmem:[%s258 + $0x1f30] sm:$0xff]
        %v1332 = vld [vmem:[%s258 + $0x1f38] sm:$0xff]
        %v1333 = vld [vmem:[%s258 + $0x1f40] sm:$0xff]
        %v1334 = vld [vmem:[%s258 + $0x1f48] sm:$0xff]
        %v1335 = vld [vmem:[%s258 + $0x1f50] sm:$0xff]
        %v1336 = vld [vmem:[%s258 + $0x1f58] sm:$0xff]
        %v1337 = vld [vmem:[%s258 + $0x1f60] sm:$0xff]
        %v1338 = vld [vmem:[%s258 + $0x1f68] sm:$0xff]
        %v1339 = vld [vmem:[%s258 + $0x1f70] sm:$0xff]
        %v1340 = vld [vmem:[%s258 + $0x1f78] sm:$0xff]
        %v1341 = vld [vmem:[%s258 + $0x1f80] sm:$0xff]
        %v1342 = vld [vmem:[%s258 + $0x1f88] sm:$0xff]
        %v1343 = vld [vmem:[%s258 + $0x1f90] sm:$0xff]
        %v1344 = vld [vmem:[%s258 + $0x1f98] sm:$0xff]
        %v1345 = vld [vmem:[%s258 + $0x1fa0] sm:$0xff]
        %v1346 = vld [vmem:[%s258 + $0x1fa8] sm:$0xff]
        %v1347 = vld [vmem:[%s258 + $0x1fb0] sm:$0xff]
        %v1348 = vld [vmem:[%s258 + $0x1fb8] sm:$0xff]
        %v1349 = vld [vmem:[%s258 + $0x1fc0] sm:$0xff]
        %v1350 = vld [vmem:[%s258 + $0x1fc8] sm:$0xff]
        %v1351 = vld [vmem:[%s258 + $0x1fd0] sm:$0xff]
        %v1352 = vld [vmem:[%s258 + $0x1fd8] sm:$0xff]
        %v1353 = vld [vmem:[%s258 + $0x1fe0] sm:$0xff]
        %v1354 = vld [vmem:[%s258 + $0x1fe8] sm:$0xff]
        %v1355 = vld [vmem:[%s258 + $0x1ff0] sm:$0xff]
        %v1356 = vld [vmem:[%s258 + $0x1ff8] sm:$0xff]
        %v1357 = vld [vmem:[%s258 + $0x2000] sm:$0xff]
        %v1358 = vld [vmem:[%s258 + $0x2008] sm:$0xff]
        %v1359 = vld [vmem:[%s258 + $0x2010] sm:$0xff]
        %v1360 = vld [vmem:[%s258 + $0x2018] sm:$0xff]
        %v1361 = vld [vmem:[%s258 + $0x2020] sm:$0xff]
        %v1362 = vld [vmem:[%s258 + $0x2028] sm:$0xff]
        %v1363 = vld [vmem:[%s258 + $0x2030] sm:$0xff]
        %v1364 = vld [vmem:[%s258 + $0x2038] sm:$0xff]
        %v1365 = vld [vmem:[%s258 + $0x2040] sm:$0xff]
        %v1366 = vld [vmem:[%s258 + $0x2048] sm:$0xff]
        %v1367 = vld [vmem:[%s258 + $0x2050] sm:$0xff]
        %v1368 = vld [vmem:[%s258 + $0x2058] sm:$0xff]
        %v1369 = vld [vmem:[%s258 + $0x2060] sm:$0xff]
        %v1370 = vld [vmem:[%s258 + $0x2068] sm:$0xff]
        %v1371 = vld [vmem:[%s258 + $0x2070] sm:$0xff]
        %v1372 = vld [vmem:[%s258 + $0x2078] sm:$0xff]
        %v1373 = vld [vmem:[%s258 + $0x2080] sm:$0xff]
        %v1374 = vld [vmem:[%s258 + $0x2088] sm:$0xff]
        %v1375 = vld [vmem:[%s258 + $0x2090] sm:$0xff]
        %v1376 = vld [vmem:[%s258 + $0x2098] sm:$0xff]
        %v1377 = vld [vmem:[%s258 + $0x20a0] sm:$0xff]
        %v1378 = vld [vmem:[%s258 + $0x20a8] sm:$0xff]
        %v1379 = vld [vmem:[%s258 + $0x20b0] sm:$0xff]
        %v1380 = vld [vmem:[%s258 + $0x20b8] sm:$0xff]
        %v1381 = vld [vmem:[%s258 + $0x20c0] sm:$0xff]
        %v1382 = vld [vmem:[%s258 + $0x20c8] sm:$0xff]
        %v1383 = vld [vmem:[%s258 + $0x20d0] sm:$0xff]
        %v1384 = vld [vmem:[%s258 + $0x20d8] sm:$0xff]
        %v1385 = vld [vmem:[%s258 + $0x20e0] sm:$0xff]
        %v1386 = vld [vmem:[%s258 + $0x20e8] sm:$0xff]
        %v1387 = vld [vmem:[%s258 + $0x20f0] sm:$0xff]
        %v1388 = vld [vmem:[%s258 + $0x20f8] sm:$0xff]
        %v1389 = vld [vmem:[%s258 + $0x2100] sm:$0xff]
        %v1390 = vld [vmem:[%s258 + $0x2108] sm:$0xff]
        %v1391 = vld [vmem:[%s258 + $0x2110] sm:$0xff]
        %v1392 = vld [vmem:[%s258 + $0x2118] sm:$0xff]
        %v1393 = vld [vmem:[%s258 + $0x2120] sm:$0xff]
        %v1394 = vld [vmem:[%s258 + $0x2128] sm:$0xff]
        %v1395 = vld [vmem:[%s258 + $0x2130] sm:$0xff]
        %v1396 = vld [vmem:[%s258 + $0x2138] sm:$0xff]
        %v1397 = vld [vmem:[%s258 + $0x2140] sm:$0xff]
        %v1398 = vld [vmem:[%s258 + $0x2148] sm:$0xff]
        %v1399 = vld [vmem:[%s258 + $0x2150] sm:$0xff]
        %v1400 = vld [vmem:[%s258 + $0x2158] sm:$0xff]
        %v1401 = vld [vmem:[%s258 + $0x2160] sm:$0xff]
        %v1402 = vld [vmem:[%s258 + $0x2168] sm:$0xff]
        %v1403 = vld [vmem:[%s258 + $0x2170] sm:$0xff]
        %v1404 = vld [vmem:[%s258 + $0x2178] sm:$0xff]
        %v1405 = vld [vmem:[%s258 + $0x2180] sm:$0xff]
        %v1406 = vld [vmem:[%s258 + $0x2188] sm:$0xff]
        %v1407 = vld [vmem:[%s258 + $0x2190] sm:$0xff]
        %v1408 = vld [vmem:[%s258 + $0x2198] sm:$0xff]
        %v1409 = vld [vmem:[%s258 + $0x21a0] sm:$0xff]
        %v1410 = vld [vmem:[%s258 + $0x21a8] sm:$0xff]
        %v1411 = vld [vmem:[%s258 + $0x21b0] sm:$0xff]
        %v1412 = vld [vmem:[%s258 + $0x21b8] sm:$0xff]
        %v1413 = vld [vmem:[%s258 + $0x21c0] sm:$0xff]
        %v1414 = vld [vmem:[%s258 + $0x21c8] sm:$0xff]
        %v1415 = vld [vmem:[%s258 + $0x21d0] sm:$0xff]
        %v1416 = vld [vmem:[%s258 + $0x21d8] sm:$0xff]
        %v1417 = vld [vmem:[%s258 + $0x21e0] sm:$0xff]
        %v1418 = vld [vmem:[%s258 + $0x21e8] sm:$0xff]
        %v1419 = vld [vmem:[%s258 + $0x21f0] sm:$0xff]
        %v1420 = vld [vmem:[%s258 + $0x21f8] sm:$0xff]
        %v1421 = vld [vmem:[%s258 + $0x2200] sm:$0xff]
        %v1422 = vld [vmem:[%s258 + $0x2208] sm:$0xff]
        %v1423 = vld [vmem:[%s258 + $0x2210] sm:$0xff]
        %v1424 = vld [vmem:[%s258 + $0x2218] sm:$0xff]
        %v1425 = vld [vmem:[%s258 + $0x2220] sm:$0xff]
        %v1426 = vld [vmem:[%s258 + $0x2228] sm:$0xff]
        %v1427 = vld [vmem:[%s258 + $0x2230] sm:$0xff]
        %v1428 = vld [vmem:[%s258 + $0x2238] sm:$0xff]
        %v1429 = vld [vmem:[%s258 + $0x2240] sm:$0xff]
        %v1430 = vld [vmem:[%s258 + $0x2248] sm:$0xff]
        %v1431 = vld [vmem:[%s258 + $0x2250] sm:$0xff]
        %v1432 = vld [vmem:[%s258 + $0x2258] sm:$0xff]
        %v1433 = vld [vmem:[%s258 + $0x2260] sm:$0xff]
        %v1434 = vld [vmem:[%s258 + $0x2268] sm:$0xff]
        %v1435 = vld [vmem:[%s258 + $0x2270] sm:$0xff]
        %v1436 = vld [vmem:[%s258 + $0x2278] sm:$0xff]
        %v1437 = vld [vmem:[%s258 + $0x2280] sm:$0xff]
        %v1438 = vld [vmem:[%s258 + $0x2288] sm:$0xff]
        %v1439 = vld [vmem:[%s258 + $0x2290] sm:$0xff]
        %v1440 = vld [vmem:[%s258 + $0x2298] sm:$0xff]
        %v1441 = vld [vmem:[%s258 + $0x22a0] sm:$0xff]
        %v1442 = vld [vmem:[%s258 + $0x22a8] sm:$0xff]
        %v1443 = vld [vmem:[%s258 + $0x22b0] sm:$0xff]
        %v1444 = vld [vmem:[%s258 + $0x22b8] sm:$0xff]
        %v1445 = vld [vmem:[%s258 + $0x22c0] sm:$0xff]
        %v1446 = vld [vmem:[%s258 + $0x22c8] sm:$0xff]
        %v1447 = vld [vmem:[%s258 + $0x22d0] sm:$0xff]
        %v1448 = vld [vmem:[%s258 + $0x22d8] sm:$0xff]
        %v1449 = vld [vmem:[%s258 + $0x22e0] sm:$0xff]
        %v1450 = vld [vmem:[%s258 + $0x22e8] sm:$0xff]
        %v1451 = vld [vmem:[%s258 + $0x22f0] sm:$0xff]
        %v1452 = vld [vmem:[%s258 + $0x22f8] sm:$0xff]
        %v1453 = vld [vmem:[%s258 + $0x2300] sm:$0xff]
        %v1454 = vld [vmem:[%s258 + $0x2308] sm:$0xff]
        %v1455 = vld [vmem:[%s258 + $0x2310] sm:$0xff]
        %v1456 = vld [vmem:[%s258 + $0x2318] sm:$0xff]
        %v1457 = vld [vmem:[%s258 + $0x2320] sm:$0xff]
        %v1458 = vld [vmem:[%s258 + $0x2328] sm:$0xff]
        %v1459 = vld [vmem:[%s258 + $0x2330] sm:$0xff]
        %v1460 = vld [vmem:[%s258 + $0x2338] sm:$0xff]
        %v1461 = vld [vmem:[%s258 + $0x2340] sm:$0xff]
        %v1462 = vld [vmem:[%s258 + $0x2348] sm:$0xff]
        %v1463 = vld [vmem:[%s258 + $0x2350] sm:$0xff]
        %v1464 = vld [vmem:[%s258 + $0x2358] sm:$0xff]
        %v1465 = vld [vmem:[%s258 + $0x2360] sm:$0xff]
        %v1466 = vld [vmem:[%s258 + $0x2368] sm:$0xff]
        %v1467 = vld [vmem:[%s258 + $0x2370] sm:$0xff]
        %v1468 = vld [vmem:[%s258 + $0x2378] sm:$0xff]
        %v1469 = vld [vmem:[%s258 + $0x2380] sm:$0xff]
        %v1470 = vld [vmem:[%s258 + $0x2388] sm:$0xff]
        %v1471 = vld [vmem:[%s258 + $0x2390] sm:$0xff]
        %v1472 = vld [vmem:[%s258 + $0x2398] sm:$0xff]
        %v1473 = vld [vmem:[%s258 + $0x23a0] sm:$0xff]
        %v1474 = vld [vmem:[%s258 + $0x23a8] sm:$0xff]
        %v1475 = vld [vmem:[%s258 + $0x23b0] sm:$0xff]
        %v1476 = vld [vmem:[%s258 + $0x23b8] sm:$0xff]
        %v1477 = vld [vmem:[%s258 + $0x23c0] sm:$0xff]
        %v1478 = vld [vmem:[%s258 + $0x23c8] sm:$0xff]
        %v1479 = vld [vmem:[%s258 + $0x23d0] sm:$0xff]
        %v1480 = vld [vmem:[%s258 + $0x23d8] sm:$0xff]
        %v1481 = vld [vmem:[%s258 + $0x23e0] sm:$0xff]
        %v1482 = vld [vmem:[%s258 + $0x23e8] sm:$0xff]
        %v1483 = vld [vmem:[%s258 + $0x23f0] sm:$0xff]
        %v1484 = vld [vmem:[%s258 + $0x23f8] sm:$0xff]
        %v1485 = vld [vmem:[%s258 + $0x2400] sm:$0xff]
        %v1486 = vld [vmem:[%s258 + $0x2408] sm:$0xff]
        %v1487 = vld [vmem:[%s258 + $0x2410] sm:$0xff]
        %v1488 = vld [vmem:[%s258 + $0x2418] sm:$0xff]
        %v1489 = vld [vmem:[%s258 + $0x2420] sm:$0xff]
        %v1490 = vld [vmem:[%s258 + $0x2428] sm:$0xff]
        %v1491 = vld [vmem:[%s258 + $0x2430] sm:$0xff]
        %v1492 = vld [vmem:[%s258 + $0x2438] sm:$0xff]
        %v1493 = vld [vmem:[%s258 + $0x2440] sm:$0xff]
        %v1494 = vld [vmem:[%s258 + $0x2448] sm:$0xff]
        %v1495 = vld [vmem:[%s258 + $0x2450] sm:$0xff]
        %v1496 = vld [vmem:[%s258 + $0x2458] sm:$0xff]
        %v1497 = vld [vmem:[%s258 + $0x2460] sm:$0xff]
        %v1498 = vld [vmem:[%s258 + $0x2468] sm:$0xff]
        %v1499 = vld [vmem:[%s258 + $0x2470] sm:$0xff]
        %v1500 = vld [vmem:[%s258 + $0x2478] sm:$0xff]
        %v1501 = vld [vmem:[%s258 + $0x2480] sm:$0xff]
        %v1502 = vld [vmem:[%s258 + $0x2488] sm:$0xff]
        %v1503 = vld [vmem:[%s258 + $0x2490] sm:$0xff]
        %v1504 = vld [vmem:[%s258 + $0x2498] sm:$0xff]
        %v1505 = vld [vmem:[%s258 + $0x24a0] sm:$0xff]
        %v1506 = vld [vmem:[%s258 + $0x24a8] sm:$0xff]
        %v1507 = vld [vmem:[%s258 + $0x24b0] sm:$0xff]
        %v1508 = vld [vmem:[%s258 + $0x24b8] sm:$0xff]
        %v1509 = vld [vmem:[%s258 + $0x24c0] sm:$0xff]
        %v1510 = vld [vmem:[%s258 + $0x24c8] sm:$0xff]
        %v1511 = vld [vmem:[%s258 + $0x24d0] sm:$0xff]
        %v1512 = vld [vmem:[%s258 + $0x24d8] sm:$0xff]
        %v1513 = vld [vmem:[%s258 + $0x24e0] sm:$0xff]
        %v1514 = vld [vmem:[%s258 + $0x24e8] sm:$0xff]
        %v1515 = vld [vmem:[%s258 + $0x24f0] sm:$0xff]
        %v1516 = vld [vmem:[%s258 + $0x24f8] sm:$0xff]
        %v1517 = vld [vmem:[%s258 + $0x2500] sm:$0xff]
        %v1518 = vld [vmem:[%s258 + $0x2508] sm:$0xff]
        %v1519 = vld [vmem:[%s258 + $0x2510] sm:$0xff]
        %v1520 = vld [vmem:[%s258 + $0x2518] sm:$0xff]
        %v1521 = vld [vmem:[%s258 + $0x2520] sm:$0xff]
        %v1522 = vld [vmem:[%s258 + $0x2528] sm:$0xff]
        %v1523 = vld [vmem:[%s258 + $0x2530] sm:$0xff]
        %v1524 = vld [vmem:[%s258 + $0x2538] sm:$0xff]
        %v1525 = vld [vmem:[%s258 + $0x2540] sm:$0xff]
        %v1526 = vld [vmem:[%s258 + $0x2548] sm:$0xff]
        %v1527 = vld [vmem:[%s258 + $0x2550] sm:$0xff]
        %v1528 = vld [vmem:[%s258 + $0x2558] sm:$0xff]
        %v1529 = vld [vmem:[%s258 + $0x2560] sm:$0xff]
        %v1530 = vld [vmem:[%s258 + $0x2568] sm:$0xff]
        %v1531 = vld [vmem:[%s258 + $0x2570] sm:$0xff]
        %v1532 = vld [vmem:[%s258 + $0x2578] sm:$0xff]
        %v1533 = vld [vmem:[%s258 + $0x2580] sm:$0xff]
        %v1534 = vld [vmem:[%s258 + $0x2588] sm:$0xff]
        %v1535 = vld [vmem:[%s258 + $0x2590] sm:$0xff]
        %v1536 = vld [vmem:[%s258 + $0x2598] sm:$0xff]
        %v1537 = vld [vmem:[%s258 + $0x25a0] sm:$0xff]
        %v1538 = vld [vmem:[%s258 + $0x25a8] sm:$0xff]
        %v1539 = vld [vmem:[%s258 + $0x25b0] sm:$0xff]
        %v1540 = vld [vmem:[%s258 + $0x25b8] sm:$0xff]
        %v1541 = vld [vmem:[%s258 + $0x25c0] sm:$0xff]
        %v1542 = vld [vmem:[%s258 + $0x25c8] sm:$0xff]
        %v1543 = vld [vmem:[%s258 + $0x25d0] sm:$0xff]
        %v1544 = vld [vmem:[%s258 + $0x25d8] sm:$0xff]
        %v1545 = vld [vmem:[%s258 + $0x25e0] sm:$0xff]
        %v1546 = vld [vmem:[%s258 + $0x25e8] sm:$0xff]
        %v1547 = vld [vmem:[%s258 + $0x25f0] sm:$0xff]
        %v1548 = vld [vmem:[%s258 + $0x25f8] sm:$0xff]
        %v1549 = vld [vmem:[%s258 + $0x2600] sm:$0xff]
        %v1550 = vld [vmem:[%s258 + $0x2608] sm:$0xff]
        %v1551 = vld [vmem:[%s258 + $0x2610] sm:$0xff]
        %v1552 = vld [vmem:[%s258 + $0x2618] sm:$0xff]
        %v1553 = vld [vmem:[%s258 + $0x2620] sm:$0xff]
        %v1554 = vld [vmem:[%s258 + $0x2628] sm:$0xff]
        %v1555 = vld [vmem:[%s258 + $0x2630] sm:$0xff]
        %v1556 = vld [vmem:[%s258 + $0x2638] sm:$0xff]
        %v1557 = vld [vmem:[%s258 + $0x2640] sm:$0xff]
        %v1558 = vld [vmem:[%s258 + $0x2648] sm:$0xff]
        %v1559 = vld [vmem:[%s258 + $0x2650] sm:$0xff]
        %v1560 = vld [vmem:[%s258 + $0x2658] sm:$0xff]
        %v1561 = vld [vmem:[%s258 + $0x2660] sm:$0xff]
        %v1562 = vld [vmem:[%s258 + $0x2668] sm:$0xff]
        %v1563 = vld [vmem:[%s258 + $0x2670] sm:$0xff]
        %v1564 = vld [vmem:[%s258 + $0x2678] sm:$0xff]
        %v1565 = vld [vmem:[%s258 + $0x2680] sm:$0xff]
        %v1566 = vld [vmem:[%s258 + $0x2688] sm:$0xff]
        %v1567 = vld [vmem:[%s258 + $0x2690] sm:$0xff]
        %v1568 = vld [vmem:[%s258 + $0x2698] sm:$0xff]
        %v1569 = vld [vmem:[%s258 + $0x26a0] sm:$0xff]
        %v1570 = vld [vmem:[%s258 + $0x26a8] sm:$0xff]
        %v1571 = vld [vmem:[%s258 + $0x26b0] sm:$0xff]
        %v1572 = vld [vmem:[%s258 + $0x26b8] sm:$0xff]
        %v1573 = vld [vmem:[%s258 + $0x26c0] sm:$0xff]
        %v1574 = vld [vmem:[%s258 + $0x26c8] sm:$0xff]
        %v1575 = vld [vmem:[%s258 + $0x26d0] sm:$0xff]
        %v1576 = vld [vmem:[%s258 + $0x26d8] sm:$0xff]
        %v1577 = vld [vmem:[%s258 + $0x26e0] sm:$0xff]
        %v1578 = vld [vmem:[%s258 + $0x26e8] sm:$0xff]
        %v1579 = vld [vmem:[%s258 + $0x26f0] sm:$0xff]
        %v1580 = vld [vmem:[%s258 + $0x26f8] sm:$0xff]
        %v1581 = vld [vmem:[%s258 + $0x2700] sm:$0xff]
        %v1582 = vld [vmem:[%s258 + $0x2708] sm:$0xff]
        %v1583 = vld [vmem:[%s258 + $0x2710] sm:$0xff]
        %v1584 = vld [vmem:[%s258 + $0x2718] sm:$0xff]
        %v1585 = vld [vmem:[%s258 + $0x2720] sm:$0xff]
        %v1586 = vld [vmem:[%s258 + $0x2728] sm:$0xff]
        %v1587 = vld [vmem:[%s258 + $0x2730] sm:$0xff]
        %v1588 = vld [vmem:[%s258 + $0x2738] sm:$0xff]
        %v1589 = vld [vmem:[%s258 + $0x2740] sm:$0xff]
        %v1590 = vld [vmem:[%s258 + $0x2748] sm:$0xff]
        %v1591 = vld [vmem:[%s258 + $0x2750] sm:$0xff]
        %v1592 = vld [vmem:[%s258 + $0x2758] sm:$0xff]
        %v1593 = vld [vmem:[%s258 + $0x2760] sm:$0xff]
        %v1594 = vld [vmem:[%s258 + $0x2768] sm:$0xff]
        %v1595 = vld [vmem:[%s258 + $0x2770] sm:$0xff]
        %v1596 = vld [vmem:[%s258 + $0x2778] sm:$0xff]
        %v1597 = vld [vmem:[%s258 + $0x2780] sm:$0xff]
        %v1598 = vld [vmem:[%s258 + $0x2788] sm:$0xff]
        %v1599 = vld [vmem:[%s258 + $0x2790] sm:$0xff]
        %v1600 = vld [vmem:[%s258 + $0x2798] sm:$0xff]
        %v1601 = vld [vmem:[%s258 + $0x27a0] sm:$0xff]
        %v1602 = vld [vmem:[%s258 + $0x27a8] sm:$0xff]
        %v1603 = vld [vmem:[%s258 + $0x27b0] sm:$0xff]
        %v1604 = vld [vmem:[%s258 + $0x27b8] sm:$0xff]
        %v1605 = vld [vmem:[%s258 + $0x27c0] sm:$0xff]
        %v1606 = vld [vmem:[%s258 + $0x27c8] sm:$0xff]
        %v1607 = vld [vmem:[%s258 + $0x27d0] sm:$0xff]
        %v1608 = vld [vmem:[%s258 + $0x27d8] sm:$0xff]
        %v1609 = vld [vmem:[%s258 + $0x27e0] sm:$0xff]
        %v1610 = vld [vmem:[%s258 + $0x27e8] sm:$0xff]
        %v1611 = vld [vmem:[%s258 + $0x27f0] sm:$0xff]
        %v1612 = vld [vmem:[%s258 + $0x27f8] sm:$0xff]
        %v1633 = vunpack.c.l.b16 %v293
        %v1634 = vunpack.c.h.b16 %v293
        %v1635 = vunpack.c.l.b16 %v294
        %v1636 = vunpack.c.h.b16 %v294
        %v1637 = vunpack.c.l.b16 %v295
        %v1638 = vunpack.c.h.b16 %v295
        %v1639 = vunpack.c.l.b16 %v296
        %v1640 = vunpack.c.h.b16 %v296
        %v1641 = vunpack.c.l.b16 %v297
        %v1642 = vunpack.c.h.b16 %v297
        %v1643 = vunpack.c.l.b16 %v298
        %v1644 = vunpack.c.h.b16 %v298
        %v1645 = vunpack.c.l.b16 %v299
        %v1646 = vunpack.c.h.b16 %v299
        %v1647 = vunpack.c.l.b16 %v300
        %v1648 = vunpack.c.h.b16 %v300
        %v1649 = vunpack.c.l.b16 %v301
        %v1650 = vunpack.c.h.b16 %v301
        %v1651 = vunpack.c.l.b16 %v302
        %v1652 = vunpack.c.h.b16 %v302
        %v1653 = vunpack.c.l.b16 %v303
        %v1654 = vunpack.c.h.b16 %v303
        %v1655 = vunpack.c.l.b16 %v304
        %v1656 = vunpack.c.h.b16 %v304
        %v1657 = vunpack.c.l.b16 %v305
        %v1658 = vunpack.c.h.b16 %v305
        %v1659 = vunpack.c.l.b16 %v306
        %v1660 = vunpack.c.h.b16 %v306
        %v1661 = vunpack.c.l.b16 %v307
        %v1662 = vunpack.c.h.b16 %v307
        %v1663 = vunpack.c.l.b16 %v308
        %v1664 = vunpack.c.h.b16 %v308
        %v1665 = vunpack.c.l.b16 %v309
        %v1666 = vunpack.c.h.b16 %v309
        %v1667 = vunpack.c.l.b16 %v310
        %v1668 = vunpack.c.h.b16 %v310
        %v1669 = vunpack.c.l.b16 %v311
        %v1670 = vunpack.c.h.b16 %v311
        %v1671 = vunpack.c.l.b16 %v312
        %v1672 = vunpack.c.h.b16 %v312
        %v1673 = vpack.c.b16 %v1653, %v1633
        %v1674 = vpack.c.b16 %v1654, %v1634
        %v1675 = vpack.c.b16 %v1655, %v1635
        %v1676 = vpack.c.b16 %v1656, %v1636
        %v1677 = vpack.c.b16 %v1657, %v1637
        %v1678 = vpack.c.b16 %v1658, %v1638
        %v1679 = vpack.c.b16 %v1659, %v1639
        %v1680 = vpack.c.b16 %v1660, %v1640
        %v1681 = vpack.c.b16 %v1661, %v1641
        %v1682 = vpack.c.b16 %v1662, %v1642
        %v1683 = vpack.c.b16 %v1663, %v1643
        %v1684 = vpack.c.b16 %v1664, %v1644
        %v1685 = vpack.c.b16 %v1665, %v1645
        %v1686 = vpack.c.b16 %v1666, %v1646
        %v1687 = vpack.c.b16 %v1667, %v1647
        %v1688 = vpack.c.b16 %v1668, %v1648
        %v1689 = vpack.c.b16 %v1669, %v1649
        %v1690 = vpack.c.b16 %v1670, %v1650
        %v1691 = vpack.c.b16 %v1671, %v1651
        %v1692 = vpack.c.b16 %v1672, %v1652
        %v2993 = vunpack.c.l.b16 %v333
        %v2994 = vunpack.c.h.b16 %v333
        %v2995 = vunpack.c.l.b16 %v334
        %v2996 = vunpack.c.h.b16 %v334
        %v2997 = vunpack.c.l.b16 %v335
        %v2998 = vunpack.c.h.b16 %v335
        %v2999 = vunpack.c.l.b16 %v336
        %v3000 = vunpack.c.h.b16 %v336
        %v3001 = vunpack.c.l.b16 %v337
        %v3002 = vunpack.c.h.b16 %v337
        %v3003 = vunpack.c.l.b16 %v338
        %v3004 = vunpack.c.h.b16 %v338
        %v3005 = vunpack.c.l.b16 %v339
        %v3006 = vunpack.c.h.b16 %v339
        %v3007 = vunpack.c.l.b16 %v340
        %v3008 = vunpack.c.h.b16 %v340
        %v3009 = vunpack.c.l.b16 %v341
        %v3010 = vunpack.c.h.b16 %v341
        %v3011 = vunpack.c.l.b16 %v342
        %v3012 = vunpack.c.h.b16 %v342
        %v3013 = vunpack.c.l.b16 %v343
        %v3014 = vunpack.c.h.b16 %v343
        %v3015 = vunpack.c.l.b16 %v344
        %v3016 = vunpack.c.h.b16 %v344
        %v3017 = vunpack.c.l.b16 %v345
        %v3018 = vunpack.c.h.b16 %v345
        %v3019 = vunpack.c.l.b16 %v346
        %v3020 = vunpack.c.h.b16 %v346
        %v3021 = vunpack.c.l.b16 %v347
        %v3022 = vunpack.c.h.b16 %v347
        %v3023 = vunpack.c.l.b16 %v348
        %v3024 = vunpack.c.h.b16 %v348
        %v3025 = vunpack.c.l.b16 %v349
        %v3026 = vunpack.c.h.b16 %v349
        %v3027 = vunpack.c.l.b16 %v350
        %v3028 = vunpack.c.h.b16 %v350
        %v3029 = vunpack.c.l.b16 %v351
        %v3030 = vunpack.c.h.b16 %v351
        %v3031 = vunpack.c.l.b16 %v352
        %v3032 = vunpack.c.h.b16 %v352
        %v3033 = vunpack.c.l.b16 %v353
        %v3034 = vunpack.c.h.b16 %v353
        %v3035 = vunpack.c.l.b16 %v354
        %v3036 = vunpack.c.h.b16 %v354
        %v3037 = vunpack.c.l.b16 %v355
        %v3038 = vunpack.c.h.b16 %v355
        %v3039 = vunpack.c.l.b16 %v356
        %v3040 = vunpack.c.h.b16 %v356
        %v3041 = vunpack.c.l.b16 %v357
        %v3042 = vunpack.c.h.b16 %v357
        %v3043 = vunpack.c.l.b16 %v358
        %v3044 = vunpack.c.h.b16 %v358
        %v3045 = vunpack.c.l.b16 %v359
        %v3046 = vunpack.c.h.b16 %v359
        %v3047 = vunpack.c.l.b16 %v360
        %v3048 = vunpack.c.h.b16 %v360
        %v3049 = vunpack.c.l.b16 %v361
        %v3050 = vunpack.c.h.b16 %v361
        %v3051 = vunpack.c.l.b16 %v362
        %v3052 = vunpack.c.h.b16 %v362
        %v3053 = vunpack.c.l.b16 %v363
        %v3054 = vunpack.c.h.b16 %v363
        %v3055 = vunpack.c.l.b16 %v364
        %v3056 = vunpack.c.h.b16 %v364
        %v3057 = vunpack.c.l.b16 %v365
        %v3058 = vunpack.c.h.b16 %v365
        %v3059 = vunpack.c.l.b16 %v366
        %v3060 = vunpack.c.h.b16 %v366
        %v3061 = vunpack.c.l.b16 %v367
        %v3062 = vunpack.c.h.b16 %v367
        %v3063 = vunpack.c.l.b16 %v368
        %v3064 = vunpack.c.h.b16 %v368
        %v3065 = vunpack.c.l.b16 %v369
        %v3066 = vunpack.c.h.b16 %v369
        %v3067 = vunpack.c.l.b16 %v370
        %v3068 = vunpack.c.h.b16 %v370
        %v3069 = vunpack.c.l.b16 %v371
        %v3070 = vunpack.c.h.b16 %v371
        %v3071 = vunpack.c.l.b16 %v372
        %v3072 = vunpack.c.h.b16 %v372
        %v3073 = vunpack.c.l.b16 %v373
        %v3074 = vunpack.c.h.b16 %v373
        %v3075 = vunpack.c.l.b16 %v374
        %v3076 = vunpack.c.h.b16 %v374
        %v3077 = vunpack.c.l.b16 %v375
        %v3078 = vunpack.c.h.b16 %v375
        %v3079 = vunpack.c.l.b16 %v376
        %v3080 = vunpack.c.h.b16 %v376
        %v3081 = vunpack.c.l.b16 %v377
        %v3082 = vunpack.c.h.b16 %v377
        %v3083 = vunpack.c.l.b16 %v378
        %v3084 = vunpack.c.h.b16 %v378
        %v3085 = vunpack.c.l.b16 %v379
        %v3086 = vunpack.c.h.b16 %v379
        %v3087 = vunpack.c.l.b16 %v380
        %v3088 = vunpack.c.h.b16 %v380
        %v3089 = vunpack.c.l.b16 %v381
        %v3090 = vunpack.c.h.b16 %v381
        %v3091 = vunpack.c.l.b16 %v382
        %v3092 = vunpack.c.h.b16 %v382
        %v3093 = vunpack.c.l.b16 %v383
        %v3094 = vunpack.c.h.b16 %v383
        %v3095 = vunpack.c.l.b16 %v384
        %v3096 = vunpack.c.h.b16 %v384
        %v3097 = vunpack.c.l.b16 %v385
        %v3098 = vunpack.c.h.b16 %v385
        %v3099 = vunpack.c.l.b16 %v386
        %v3100 = vunpack.c.h.b16 %v386
        %v3101 = vunpack.c.l.b16 %v387
        %v3102 = vunpack.c.h.b16 %v387
        %v3103 = vunpack.c.l.b16 %v388
        %v3104 = vunpack.c.h.b16 %v388
        %v3105 = vunpack.c.l.b16 %v389
        %v3106 = vunpack.c.h.b16 %v389
        %v3107 = vunpack.c.l.b16 %v390
        %v3108 = vunpack.c.h.b16 %v390
        %v3109 = vunpack.c.l.b16 %v391
        %v3110 = vunpack.c.h.b16 %v391
        %v3111 = vunpack.c.l.b16 %v392
        %v3112 = vunpack.c.h.b16 %v392
        %v3113 = vunpack.c.l.b16 %v393
        %v3114 = vunpack.c.h.b16 %v393
        %v3115 = vunpack.c.l.b16 %v394
        %v3116 = vunpack.c.h.b16 %v394
        %v3117 = vunpack.c.l.b16 %v395
        %v3118 = vunpack.c.h.b16 %v395
        %v3119 = vunpack.c.l.b16 %v396
        %v3120 = vunpack.c.h.b16 %v396
        %v3121 = vunpack.c.l.b16 %v397
        %v3122 = vunpack.c.h.b16 %v397
        %v3123 = vunpack.c.l.b16 %v398
        %v3124 = vunpack.c.h.b16 %v398
        %v3125 = vunpack.c.l.b16 %v399
        %v3126 = vunpack.c.h.b16 %v399
        %v3127 = vunpack.c.l.b16 %v400
        %v3128 = vunpack.c.h.b16 %v400
        %v3129 = vunpack.c.l.b16 %v401
        %v3130 = vunpack.c.h.b16 %v401
        %v3131 = vunpack.c.l.b16 %v402
        %v3132 = vunpack.c.h.b16 %v402
        %v3133 = vunpack.c.l.b16 %v403
        %v3134 = vunpack.c.h.b16 %v403
        %v3135 = vunpack.c.l.b16 %v404
        %v3136 = vunpack.c.h.b16 %v404
        %v3137 = vunpack.c.l.b16 %v405
        %v3138 = vunpack.c.h.b16 %v405
        %v3139 = vunpack.c.l.b16 %v406
        %v3140 = vunpack.c.h.b16 %v406
        %v3141 = vunpack.c.l.b16 %v407
        %v3142 = vunpack.c.h.b16 %v407
        %v3143 = vunpack.c.l.b16 %v408
        %v3144 = vunpack.c.h.b16 %v408
        %v3145 = vunpack.c.l.b16 %v409
        %v3146 = vunpack.c.h.b16 %v409
        %v3147 = vunpack.c.l.b16 %v410
        %v3148 = vunpack.c.h.b16 %v410
        %v3149 = vunpack.c.l.b16 %v411
        %v3150 = vunpack.c.h.b16 %v411
        %v3151 = vunpack.c.l.b16 %v412
        %v3152 = vunpack.c.h.b16 %v412
        %v3153 = vunpack.c.l.b16 %v413
        %v3154 = vunpack.c.h.b16 %v413
        %v3155 = vunpack.c.l.b16 %v414
        %v3156 = vunpack.c.h.b16 %v414
        %v3157 = vunpack.c.l.b16 %v415
        %v3158 = vunpack.c.h.b16 %v415
        %v3159 = vunpack.c.l.b16 %v416
        %v3160 = vunpack.c.h.b16 %v416
        %v3161 = vunpack.c.l.b16 %v417
        %v3162 = vunpack.c.h.b16 %v417
        %v3163 = vunpack.c.l.b16 %v418
        %v3164 = vunpack.c.h.b16 %v418
        %v3165 = vunpack.c.l.b16 %v419
        %v3166 = vunpack.c.h.b16 %v419
        %v3167 = vunpack.c.l.b16 %v420
        %v3168 = vunpack.c.h.b16 %v420
        %v3169 = vunpack.c.l.b16 %v421
        %v3170 = vunpack.c.h.b16 %v421
        %v3171 = vunpack.c.l.b16 %v422
        %v3172 = vunpack.c.h.b16 %v422
        %v3173 = vunpack.c.l.b16 %v423
        %v3174 = vunpack.c.h.b16 %v423
        %v3175 = vunpack.c.l.b16 %v424
        %v3176 = vunpack.c.h.b16 %v424
        %v3177 = vunpack.c.l.b16 %v425
        %v3178 = vunpack.c.h.b16 %v425
        %v3179 = vunpack.c.l.b16 %v426
        %v3180 = vunpack.c.h.b16 %v426
        %v3181 = vunpack.c.l.b16 %v427
        %v3182 = vunpack.c.h.b16 %v427
        %v3183 = vunpack.c.l.b16 %v428
        %v3184 = vunpack.c.h.b16 %v428
        %v3185 = vunpack.c.l.b16 %v429
        %v3186 = vunpack.c.h.b16 %v429
        %v3187 = vunpack.c.l.b16 %v430
        %v3188 = vunpack.c.h.b16 %v430
        %v3189 = vunpack.c.l.b16 %v431
        %v3190 = vunpack.c.h.b16 %v431
        %v3191 = vunpack.c.l.b16 %v432
        %v3192 = vunpack.c.h.b16 %v432
        %v3193 = vunpack.c.l.b16 %v433
        %v3194 = vunpack.c.h.b16 %v433
        %v3195 = vunpack.c.l.b16 %v434
        %v3196 = vunpack.c.h.b16 %v434
        %v3197 = vunpack.c.l.b16 %v435
        %v3198 = vunpack.c.h.b16 %v435
        %v3199 = vunpack.c.l.b16 %v436
        %v3200 = vunpack.c.h.b16 %v436
        %v3201 = vunpack.c.l.b16 %v437
        %v3202 = vunpack.c.h.b16 %v437
        %v3203 = vunpack.c.l.b16 %v438
        %v3204 = vunpack.c.h.b16 %v438
        %v3205 = vunpack.c.l.b16 %v439
        %v3206 = vunpack.c.h.b16 %v439
        %v3207 = vunpack.c.l.b16 %v440
        %v3208 = vunpack.c.h.b16 %v440
        %v3209 = vunpack.c.l.b16 %v441
        %v3210 = vunpack.c.h.b16 %v441
        %v3211 = vunpack.c.l.b16 %v442
        %v3212 = vunpack.c.h.b16 %v442
        %v3213 = vunpack.c.l.b16 %v443
        %v3214 = vunpack.c.h.b16 %v443
        %v3215 = vunpack.c.l.b16 %v444
        %v3216 = vunpack.c.h.b16 %v444
        %v3217 = vunpack.c.l.b16 %v445
        %v3218 = vunpack.c.h.b16 %v445
        %v3219 = vunpack.c.l.b16 %v446
        %v3220 = vunpack.c.h.b16 %v446
        %v3221 = vunpack.c.l.b16 %v447
        %v3222 = vunpack.c.h.b16 %v447
        %v3223 = vunpack.c.l.b16 %v448
        %v3224 = vunpack.c.h.b16 %v448
        %v3225 = vunpack.c.l.b16 %v449
        %v3226 = vunpack.c.h.b16 %v449
        %v3227 = vunpack.c.l.b16 %v450
        %v3228 = vunpack.c.h.b16 %v450
        %v3229 = vunpack.c.l.b16 %v451
        %v3230 = vunpack.c.h.b16 %v451
        %v3231 = vunpack.c.l.b16 %v452
        %v3232 = vunpack.c.h.b16 %v452
        %v3233 = vunpack.c.l.b16 %v453
        %v3234 = vunpack.c.h.b16 %v453
        %v3235 = vunpack.c.l.b16 %v454
        %v3236 = vunpack.c.h.b16 %v454
        %v3237 = vunpack.c.l.b16 %v455
        %v3238 = vunpack.c.h.b16 %v455
        %v3239 = vunpack.c.l.b16 %v456
        %v3240 = vunpack.c.h.b16 %v456
        %v3241 = vunpack.c.l.b16 %v457
        %v3242 = vunpack.c.h.b16 %v457
        %v3243 = vunpack.c.l.b16 %v458
        %v3244 = vunpack.c.h.b16 %v458
        %v3245 = vunpack.c.l.b16 %v459
        %v3246 = vunpack.c.h.b16 %v459
        %v3247 = vunpack.c.l.b16 %v460
        %v3248 = vunpack.c.h.b16 %v460
        %v3249 = vunpack.c.l.b16 %v461
        %v3250 = vunpack.c.h.b16 %v461
        %v3251 = vunpack.c.l.b16 %v462
        %v3252 = vunpack.c.h.b16 %v462
        %v3253 = vunpack.c.l.b16 %v463
        %v3254 = vunpack.c.h.b16 %v463
        %v3255 = vunpack.c.l.b16 %v464
        %v3256 = vunpack.c.h.b16 %v464
        %v3257 = vunpack.c.l.b16 %v465
        %v3258 = vunpack.c.h.b16 %v465
        %v3259 = vunpack.c.l.b16 %v466
        %v3260 = vunpack.c.h.b16 %v466
        %v3261 = vunpack.c.l.b16 %v467
        %v3262 = vunpack.c.h.b16 %v467
        %v3263 = vunpack.c.l.b16 %v468
        %v3264 = vunpack.c.h.b16 %v468
        %v3265 = vunpack.c.l.b16 %v469
        %v3266 = vunpack.c.h.b16 %v469
        %v3267 = vunpack.c.l.b16 %v470
        %v3268 = vunpack.c.h.b16 %v470
        %v3269 = vunpack.c.l.b16 %v471
        %v3270 = vunpack.c.h.b16 %v471
        %v3271 = vunpack.c.l.b16 %v472
        %v3272 = vunpack.c.h.b16 %v472
        %v3273 = vunpack.c.l.b16 %v473
        %v3274 = vunpack.c.h.b16 %v473
        %v3275 = vunpack.c.l.b16 %v474
        %v3276 = vunpack.c.h.b16 %v474
        %v3277 = vunpack.c.l.b16 %v475
        %v3278 = vunpack.c.h.b16 %v475
        %v3279 = vunpack.c.l.b16 %v476
        %v3280 = vunpack.c.h.b16 %v476
        %v3281 = vunpack.c.l.b16 %v477
        %v3282 = vunpack.c.h.b16 %v477
        %v3283 = vunpack.c.l.b16 %v478
        %v3284 = vunpack.c.h.b16 %v478
        %v3285 = vunpack.c.l.b16 %v479
        %v3286 = vunpack.c.h.b16 %v479
        %v3287 = vunpack.c.l.b16 %v480
        %v3288 = vunpack.c.h.b16 %v480
        %v3289 = vunpack.c.l.b16 %v481
        %v3290 = vunpack.c.h.b16 %v481
        %v3291 = vunpack.c.l.b16 %v482
        %v3292 = vunpack.c.h.b16 %v482
        %v3293 = vunpack.c.l.b16 %v483
        %v3294 = vunpack.c.h.b16 %v483
        %v3295 = vunpack.c.l.b16 %v484
        %v3296 = vunpack.c.h.b16 %v484
        %v3297 = vunpack.c.l.b16 %v485
        %v3298 = vunpack.c.h.b16 %v485
        %v3299 = vunpack.c.l.b16 %v486
        %v3300 = vunpack.c.h.b16 %v486
        %v3301 = vunpack.c.l.b16 %v487
        %v3302 = vunpack.c.h.b16 %v487
        %v3303 = vunpack.c.l.b16 %v488
        %v3304 = vunpack.c.h.b16 %v488
        %v3305 = vunpack.c.l.b16 %v489
        %v3306 = vunpack.c.h.b16 %v489
        %v3307 = vunpack.c.l.b16 %v490
        %v3308 = vunpack.c.h.b16 %v490
        %v3309 = vunpack.c.l.b16 %v491
        %v3310 = vunpack.c.h.b16 %v491
        %v3311 = vunpack.c.l.b16 %v492
        %v3312 = vunpack.c.h.b16 %v492
        %v3313 = vunpack.c.l.b16 %v493
        %v3314 = vunpack.c.h.b16 %v493
        %v3315 = vunpack.c.l.b16 %v494
        %v3316 = vunpack.c.h.b16 %v494
        %v3317 = vunpack.c.l.b16 %v495
        %v3318 = vunpack.c.h.b16 %v495
        %v3319 = vunpack.c.l.b16 %v496
        %v3320 = vunpack.c.h.b16 %v496
        %v3321 = vunpack.c.l.b16 %v497
        %v3322 = vunpack.c.h.b16 %v497
        %v3323 = vunpack.c.l.b16 %v498
        %v3324 = vunpack.c.h.b16 %v498
        %v3325 = vunpack.c.l.b16 %v499
        %v3326 = vunpack.c.h.b16 %v499
        %v3327 = vunpack.c.l.b16 %v500
        %v3328 = vunpack.c.h.b16 %v500
        %v3329 = vunpack.c.l.b16 %v501
        %v3330 = vunpack.c.h.b16 %v501
        %v3331 = vunpack.c.l.b16 %v502
        %v3332 = vunpack.c.h.b16 %v502
        %v3333 = vunpack.c.l.b16 %v503
        %v3334 = vunpack.c.h.b16 %v503
        %v3335 = vunpack.c.l.b16 %v504
        %v3336 = vunpack.c.h.b16 %v504
        %v3337 = vunpack.c.l.b16 %v505
        %v3338 = vunpack.c.h.b16 %v505
        %v3339 = vunpack.c.l.b16 %v506
        %v3340 = vunpack.c.h.b16 %v506
        %v3341 = vunpack.c.l.b16 %v507
        %v3342 = vunpack.c.h.b16 %v507
        %v3343 = vunpack.c.l.b16 %v508
        %v3344 = vunpack.c.h.b16 %v508
        %v3345 = vunpack.c.l.b16 %v509
        %v3346 = vunpack.c.h.b16 %v509
        %v3347 = vunpack.c.l.b16 %v510
        %v3348 = vunpack.c.h.b16 %v510
        %v3349 = vunpack.c.l.b16 %v511
        %v3350 = vunpack.c.h.b16 %v511
        %v3351 = vunpack.c.l.b16 %v512
        %v3352 = vunpack.c.h.b16 %v512
        %v3353 = vunpack.c.l.b16 %v513
        %v3354 = vunpack.c.h.b16 %v513
        %v3355 = vunpack.c.l.b16 %v514
        %v3356 = vunpack.c.h.b16 %v514
        %v3357 = vunpack.c.l.b16 %v515
        %v3358 = vunpack.c.h.b16 %v515
        %v3359 = vunpack.c.l.b16 %v516
        %v3360 = vunpack.c.h.b16 %v516
        %v3361 = vunpack.c.l.b16 %v517
        %v3362 = vunpack.c.h.b16 %v517
        %v3363 = vunpack.c.l.b16 %v518
        %v3364 = vunpack.c.h.b16 %v518
        %v3365 = vunpack.c.l.b16 %v519
        %v3366 = vunpack.c.h.b16 %v519
        %v3367 = vunpack.c.l.b16 %v520
        %v3368 = vunpack.c.h.b16 %v520
        %v3369 = vunpack.c.l.b16 %v521
        %v3370 = vunpack.c.h.b16 %v521
        %v3371 = vunpack.c.l.b16 %v522
        %v3372 = vunpack.c.h.b16 %v522
        %v3373 = vunpack.c.l.b16 %v523
        %v3374 = vunpack.c.h.b16 %v523
        %v3375 = vunpack.c.l.b16 %v524
        %v3376 = vunpack.c.h.b16 %v524
        %v3377 = vunpack.c.l.b16 %v525
        %v3378 = vunpack.c.h.b16 %v525
        %v3379 = vunpack.c.l.b16 %v526
        %v3380 = vunpack.c.h.b16 %v526
        %v3381 = vunpack.c.l.b16 %v527
        %v3382 = vunpack.c.h.b16 %v527
        %v3383 = vunpack.c.l.b16 %v528
        %v3384 = vunpack.c.h.b16 %v528
        %v3385 = vunpack.c.l.b16 %v529
        %v3386 = vunpack.c.h.b16 %v529
        %v3387 = vunpack.c.l.b16 %v530
        %v3388 = vunpack.c.h.b16 %v530
        %v3389 = vunpack.c.l.b16 %v531
        %v3390 = vunpack.c.h.b16 %v531
        %v3391 = vunpack.c.l.b16 %v532
        %v3392 = vunpack.c.h.b16 %v532
        %v3393 = vunpack.c.l.b16 %v533
        %v3394 = vunpack.c.h.b16 %v533
        %v3395 = vunpack.c.l.b16 %v534
        %v3396 = vunpack.c.h.b16 %v534
        %v3397 = vunpack.c.l.b16 %v535
        %v3398 = vunpack.c.h.b16 %v535
        %v3399 = vunpack.c.l.b16 %v536
        %v3400 = vunpack.c.h.b16 %v536
        %v3401 = vunpack.c.l.b16 %v537
        %v3402 = vunpack.c.h.b16 %v537
        %v3403 = vunpack.c.l.b16 %v538
        %v3404 = vunpack.c.h.b16 %v538
        %v3405 = vunpack.c.l.b16 %v539
        %v3406 = vunpack.c.h.b16 %v539
        %v3407 = vunpack.c.l.b16 %v540
        %v3408 = vunpack.c.h.b16 %v540
        %v3409 = vunpack.c.l.b16 %v541
        %v3410 = vunpack.c.h.b16 %v541
        %v3411 = vunpack.c.l.b16 %v542
        %v3412 = vunpack.c.h.b16 %v542
        %v3413 = vunpack.c.l.b16 %v543
        %v3414 = vunpack.c.h.b16 %v543
        %v3415 = vunpack.c.l.b16 %v544
        %v3416 = vunpack.c.h.b16 %v544
        %v3417 = vunpack.c.l.b16 %v545
        %v3418 = vunpack.c.h.b16 %v545
        %v3419 = vunpack.c.l.b16 %v546
        %v3420 = vunpack.c.h.b16 %v546
        %v3421 = vunpack.c.l.b16 %v547
        %v3422 = vunpack.c.h.b16 %v547
        %v3423 = vunpack.c.l.b16 %v548
        %v3424 = vunpack.c.h.b16 %v548
        %v3425 = vunpack.c.l.b16 %v549
        %v3426 = vunpack.c.h.b16 %v549
        %v3427 = vunpack.c.l.b16 %v550
        %v3428 = vunpack.c.h.b16 %v550
        %v3429 = vunpack.c.l.b16 %v551
        %v3430 = vunpack.c.h.b16 %v551
        %v3431 = vunpack.c.l.b16 %v552
        %v3432 = vunpack.c.h.b16 %v552
        %v3433 = vunpack.c.l.b16 %v553
        %v3434 = vunpack.c.h.b16 %v553
        %v3435 = vunpack.c.l.b16 %v554
        %v3436 = vunpack.c.h.b16 %v554
        %v3437 = vunpack.c.l.b16 %v555
        %v3438 = vunpack.c.h.b16 %v555
        %v3439 = vunpack.c.l.b16 %v556
        %v3440 = vunpack.c.h.b16 %v556
        %v3441 = vunpack.c.l.b16 %v557
        %v3442 = vunpack.c.h.b16 %v557
        %v3443 = vunpack.c.l.b16 %v558
        %v3444 = vunpack.c.h.b16 %v558
        %v3445 = vunpack.c.l.b16 %v559
        %v3446 = vunpack.c.h.b16 %v559
        %v3447 = vunpack.c.l.b16 %v560
        %v3448 = vunpack.c.h.b16 %v560
        %v3449 = vunpack.c.l.b16 %v561
        %v3450 = vunpack.c.h.b16 %v561
        %v3451 = vunpack.c.l.b16 %v562
        %v3452 = vunpack.c.h.b16 %v562
        %v3453 = vunpack.c.l.b16 %v563
        %v3454 = vunpack.c.h.b16 %v563
        %v3455 = vunpack.c.l.b16 %v564
        %v3456 = vunpack.c.h.b16 %v564
        %v3457 = vunpack.c.l.b16 %v565
        %v3458 = vunpack.c.h.b16 %v565
        %v3459 = vunpack.c.l.b16 %v566
        %v3460 = vunpack.c.h.b16 %v566
        %v3461 = vunpack.c.l.b16 %v567
        %v3462 = vunpack.c.h.b16 %v567
        %v3463 = vunpack.c.l.b16 %v568
        %v3464 = vunpack.c.h.b16 %v568
        %v3465 = vunpack.c.l.b16 %v569
        %v3466 = vunpack.c.h.b16 %v569
        %v3467 = vunpack.c.l.b16 %v570
        %v3468 = vunpack.c.h.b16 %v570
        %v3469 = vunpack.c.l.b16 %v571
        %v3470 = vunpack.c.h.b16 %v571
        %v3471 = vunpack.c.l.b16 %v572
        %v3472 = vunpack.c.h.b16 %v572
        %v3473 = vunpack.c.l.b16 %v573
        %v3474 = vunpack.c.h.b16 %v573
        %v3475 = vunpack.c.l.b16 %v574
        %v3476 = vunpack.c.h.b16 %v574
        %v3477 = vunpack.c.l.b16 %v575
        %v3478 = vunpack.c.h.b16 %v575
        %v3479 = vunpack.c.l.b16 %v576
        %v3480 = vunpack.c.h.b16 %v576
        %v3481 = vunpack.c.l.b16 %v577
        %v3482 = vunpack.c.h.b16 %v577
        %v3483 = vunpack.c.l.b16 %v578
        %v3484 = vunpack.c.h.b16 %v578
        %v3485 = vunpack.c.l.b16 %v579
        %v3486 = vunpack.c.h.b16 %v579
        %v3487 = vunpack.c.l.b16 %v580
        %v3488 = vunpack.c.h.b16 %v580
        %v3489 = vunpack.c.l.b16 %v581
        %v3490 = vunpack.c.h.b16 %v581
        %v3491 = vunpack.c.l.b16 %v582
        %v3492 = vunpack.c.h.b16 %v582
        %v3493 = vunpack.c.l.b16 %v583
        %v3494 = vunpack.c.h.b16 %v583
        %v3495 = vunpack.c.l.b16 %v584
        %v3496 = vunpack.c.h.b16 %v584
        %v3497 = vunpack.c.l.b16 %v585
        %v3498 = vunpack.c.h.b16 %v585
        %v3499 = vunpack.c.l.b16 %v586
        %v3500 = vunpack.c.h.b16 %v586
        %v3501 = vunpack.c.l.b16 %v587
        %v3502 = vunpack.c.h.b16 %v587
        %v3503 = vunpack.c.l.b16 %v588
        %v3504 = vunpack.c.h.b16 %v588
        %v3505 = vunpack.c.l.b16 %v589
        %v3506 = vunpack.c.h.b16 %v589
        %v3507 = vunpack.c.l.b16 %v590
        %v3508 = vunpack.c.h.b16 %v590
        %v3509 = vunpack.c.l.b16 %v591
        %v3510 = vunpack.c.h.b16 %v591
        %v3511 = vunpack.c.l.b16 %v592
        %v3512 = vunpack.c.h.b16 %v592
        %v3513 = vunpack.c.l.b16 %v593
        %v3514 = vunpack.c.h.b16 %v593
        %v3515 = vunpack.c.l.b16 %v594
        %v3516 = vunpack.c.h.b16 %v594
        %v3517 = vunpack.c.l.b16 %v595
        %v3518 = vunpack.c.h.b16 %v595
        %v3519 = vunpack.c.l.b16 %v596
        %v3520 = vunpack.c.h.b16 %v596
        %v3521 = vunpack.c.l.b16 %v597
        %v3522 = vunpack.c.h.b16 %v597
        %v3523 = vunpack.c.l.b16 %v598
        %v3524 = vunpack.c.h.b16 %v598
        %v3525 = vunpack.c.l.b16 %v599
        %v3526 = vunpack.c.h.b16 %v599
        %v3527 = vunpack.c.l.b16 %v600
        %v3528 = vunpack.c.h.b16 %v600
        %v3529 = vunpack.c.l.b16 %v601
        %v3530 = vunpack.c.h.b16 %v601
        %v3531 = vunpack.c.l.b16 %v602
        %v3532 = vunpack.c.h.b16 %v602
        %v3533 = vunpack.c.l.b16 %v603
        %v3534 = vunpack.c.h.b16 %v603
        %v3535 = vunpack.c.l.b16 %v604
        %v3536 = vunpack.c.h.b16 %v604
        %v3537 = vunpack.c.l.b16 %v605
        %v3538 = vunpack.c.h.b16 %v605
        %v3539 = vunpack.c.l.b16 %v606
        %v3540 = vunpack.c.h.b16 %v606
        %v3541 = vunpack.c.l.b16 %v607
        %v3542 = vunpack.c.h.b16 %v607
        %v3543 = vunpack.c.l.b16 %v608
        %v3544 = vunpack.c.h.b16 %v608
        %v3545 = vunpack.c.l.b16 %v609
        %v3546 = vunpack.c.h.b16 %v609
        %v3547 = vunpack.c.l.b16 %v610
        %v3548 = vunpack.c.h.b16 %v610
        %v3549 = vunpack.c.l.b16 %v611
        %v3550 = vunpack.c.h.b16 %v611
        %v3551 = vunpack.c.l.b16 %v612
        %v3552 = vunpack.c.h.b16 %v612
        %v3553 = vunpack.c.l.b16 %v613
        %v3554 = vunpack.c.h.b16 %v613
        %v3555 = vunpack.c.l.b16 %v614
        %v3556 = vunpack.c.h.b16 %v614
        %v3557 = vunpack.c.l.b16 %v615
        %v3558 = vunpack.c.h.b16 %v615
        %v3559 = vunpack.c.l.b16 %v616
        %v3560 = vunpack.c.h.b16 %v616
        %v3561 = vunpack.c.l.b16 %v617
        %v3562 = vunpack.c.h.b16 %v617
        %v3563 = vunpack.c.l.b16 %v618
        %v3564 = vunpack.c.h.b16 %v618
        %v3565 = vunpack.c.l.b16 %v619
        %v3566 = vunpack.c.h.b16 %v619
        %v3567 = vunpack.c.l.b16 %v620
        %v3568 = vunpack.c.h.b16 %v620
        %v3569 = vunpack.c.l.b16 %v621
        %v3570 = vunpack.c.h.b16 %v621
        %v3571 = vunpack.c.l.b16 %v622
        %v3572 = vunpack.c.h.b16 %v622
        %v3573 = vunpack.c.l.b16 %v623
        %v3574 = vunpack.c.h.b16 %v623
        %v3575 = vunpack.c.l.b16 %v624
        %v3576 = vunpack.c.h.b16 %v624
        %v3577 = vunpack.c.l.b16 %v625
        %v3578 = vunpack.c.h.b16 %v625
        %v3579 = vunpack.c.l.b16 %v626
        %v3580 = vunpack.c.h.b16 %v626
        %v3581 = vunpack.c.l.b16 %v627
        %v3582 = vunpack.c.h.b16 %v627
        %v3583 = vunpack.c.l.b16 %v628
        %v3584 = vunpack.c.h.b16 %v628
        %v3585 = vunpack.c.l.b16 %v629
        %v3586 = vunpack.c.h.b16 %v629
        %v3587 = vunpack.c.l.b16 %v630
        %v3588 = vunpack.c.h.b16 %v630
        %v3589 = vunpack.c.l.b16 %v631
        %v3590 = vunpack.c.h.b16 %v631
        %v3591 = vunpack.c.l.b16 %v632
        %v3592 = vunpack.c.h.b16 %v632
        %v3593 = vunpack.c.l.b16 %v633
        %v3594 = vunpack.c.h.b16 %v633
        %v3595 = vunpack.c.l.b16 %v634
        %v3596 = vunpack.c.h.b16 %v634
        %v3597 = vunpack.c.l.b16 %v635
        %v3598 = vunpack.c.h.b16 %v635
        %v3599 = vunpack.c.l.b16 %v636
        %v3600 = vunpack.c.h.b16 %v636
        %v3601 = vunpack.c.l.b16 %v637
        %v3602 = vunpack.c.h.b16 %v637
        %v3603 = vunpack.c.l.b16 %v638
        %v3604 = vunpack.c.h.b16 %v638
        %v3605 = vunpack.c.l.b16 %v639
        %v3606 = vunpack.c.h.b16 %v639
        %v3607 = vunpack.c.l.b16 %v640
        %v3608 = vunpack.c.h.b16 %v640
        %v3609 = vunpack.c.l.b16 %v641
        %v3610 = vunpack.c.h.b16 %v641
        %v3611 = vunpack.c.l.b16 %v642
        %v3612 = vunpack.c.h.b16 %v642
        %v3613 = vunpack.c.l.b16 %v643
        %v3614 = vunpack.c.h.b16 %v643
        %v3615 = vunpack.c.l.b16 %v644
        %v3616 = vunpack.c.h.b16 %v644
        %v3617 = vunpack.c.l.b16 %v645
        %v3618 = vunpack.c.h.b16 %v645
        %v3619 = vunpack.c.l.b16 %v646
        %v3620 = vunpack.c.h.b16 %v646
        %v3621 = vunpack.c.l.b16 %v647
        %v3622 = vunpack.c.h.b16 %v647
        %v3623 = vunpack.c.l.b16 %v648
        %v3624 = vunpack.c.h.b16 %v648
        %v3625 = vunpack.c.l.b16 %v649
        %v3626 = vunpack.c.h.b16 %v649
        %v3627 = vunpack.c.l.b16 %v650
        %v3628 = vunpack.c.h.b16 %v650
        %v3629 = vunpack.c.l.b16 %v651
        %v3630 = vunpack.c.h.b16 %v651
        %v3631 = vunpack.c.l.b16 %v652
        %v3632 = vunpack.c.h.b16 %v652
        %v3633 = vunpack.c.l.b16 %v653
        %v3634 = vunpack.c.h.b16 %v653
        %v3635 = vunpack.c.l.b16 %v654
        %v3636 = vunpack.c.h.b16 %v654
        %v3637 = vunpack.c.l.b16 %v655
        %v3638 = vunpack.c.h.b16 %v655
        %v3639 = vunpack.c.l.b16 %v656
        %v3640 = vunpack.c.h.b16 %v656
        %v3641 = vunpack.c.l.b16 %v657
        %v3642 = vunpack.c.h.b16 %v657
        %v3643 = vunpack.c.l.b16 %v658
        %v3644 = vunpack.c.h.b16 %v658
        %v3645 = vunpack.c.l.b16 %v659
        %v3646 = vunpack.c.h.b16 %v659
        %v3647 = vunpack.c.l.b16 %v660
        %v3648 = vunpack.c.h.b16 %v660
        %v3649 = vunpack.c.l.b16 %v661
        %v3650 = vunpack.c.h.b16 %v661
        %v3651 = vunpack.c.l.b16 %v662
        %v3652 = vunpack.c.h.b16 %v662
        %v3653 = vunpack.c.l.b16 %v663
        %v3654 = vunpack.c.h.b16 %v663
        %v3655 = vunpack.c.l.b16 %v664
        %v3656 = vunpack.c.h.b16 %v664
        %v3657 = vunpack.c.l.b16 %v665
        %v3658 = vunpack.c.h.b16 %v665
        %v3659 = vunpack.c.l.b16 %v666
        %v3660 = vunpack.c.h.b16 %v666
        %v3661 = vunpack.c.l.b16 %v667
        %v3662 = vunpack.c.h.b16 %v667
        %v3663 = vunpack.c.l.b16 %v668
        %v3664 = vunpack.c.h.b16 %v668
        %v3665 = vunpack.c.l.b16 %v669
        %v3666 = vunpack.c.h.b16 %v669
        %v3667 = vunpack.c.l.b16 %v670
        %v3668 = vunpack.c.h.b16 %v670
        %v3669 = vunpack.c.l.b16 %v671
        %v3670 = vunpack.c.h.b16 %v671
        %v3671 = vunpack.c.l.b16 %v672
        %v3672 = vunpack.c.h.b16 %v672
        %v3673 = vunpack.c.l.b16 %v673
        %v3674 = vunpack.c.h.b16 %v673
        %v3675 = vunpack.c.l.b16 %v674
        %v3676 = vunpack.c.h.b16 %v674
        %v3677 = vunpack.c.l.b16 %v675
        %v3678 = vunpack.c.h.b16 %v675
        %v3679 = vunpack.c.l.b16 %v676
        %v3680 = vunpack.c.h.b16 %v676
        %v3681 = vunpack.c.l.b16 %v677
        %v3682 = vunpack.c.h.b16 %v677
        %v3683 = vunpack.c.l.b16 %v678
        %v3684 = vunpack.c.h.b16 %v678
        %v3685 = vunpack.c.l.b16 %v679
        %v3686 = vunpack.c.h.b16 %v679
        %v3687 = vunpack.c.l.b16 %v680
        %v3688 = vunpack.c.h.b16 %v680
        %v3689 = vunpack.c.l.b16 %v681
        %v3690 = vunpack.c.h.b16 %v681
        %v3691 = vunpack.c.l.b16 %v682
        %v3692 = vunpack.c.h.b16 %v682
        %v3693 = vunpack.c.l.b16 %v683
        %v3694 = vunpack.c.h.b16 %v683
        %v3695 = vunpack.c.l.b16 %v684
        %v3696 = vunpack.c.h.b16 %v684
        %v3697 = vunpack.c.l.b16 %v685
        %v3698 = vunpack.c.h.b16 %v685
        %v3699 = vunpack.c.l.b16 %v686
        %v3700 = vunpack.c.h.b16 %v686
        %v3701 = vunpack.c.l.b16 %v687
        %v3702 = vunpack.c.h.b16 %v687
        %v3703 = vunpack.c.l.b16 %v688
        %v3704 = vunpack.c.h.b16 %v688
        %v3705 = vunpack.c.l.b16 %v689
        %v3706 = vunpack.c.h.b16 %v689
        %v3707 = vunpack.c.l.b16 %v690
        %v3708 = vunpack.c.h.b16 %v690
        %v3709 = vunpack.c.l.b16 %v691
        %v3710 = vunpack.c.h.b16 %v691
        %v3711 = vunpack.c.l.b16 %v692
        %v3712 = vunpack.c.h.b16 %v692
        %v3713 = vunpack.c.l.b16 %v693
        %v3714 = vunpack.c.h.b16 %v693
        %v3715 = vunpack.c.l.b16 %v694
        %v3716 = vunpack.c.h.b16 %v694
        %v3717 = vunpack.c.l.b16 %v695
        %v3718 = vunpack.c.h.b16 %v695
        %v3719 = vunpack.c.l.b16 %v696
        %v3720 = vunpack.c.h.b16 %v696
        %v3721 = vunpack.c.l.b16 %v697
        %v3722 = vunpack.c.h.b16 %v697
        %v3723 = vunpack.c.l.b16 %v698
        %v3724 = vunpack.c.h.b16 %v698
        %v3725 = vunpack.c.l.b16 %v699
        %v3726 = vunpack.c.h.b16 %v699
        %v3727 = vunpack.c.l.b16 %v700
        %v3728 = vunpack.c.h.b16 %v700
        %v3729 = vunpack.c.l.b16 %v701
        %v3730 = vunpack.c.h.b16 %v701
        %v3731 = vunpack.c.l.b16 %v702
        %v3732 = vunpack.c.h.b16 %v702
        %v3733 = vunpack.c.l.b16 %v703
        %v3734 = vunpack.c.h.b16 %v703
        %v3735 = vunpack.c.l.b16 %v704
        %v3736 = vunpack.c.h.b16 %v704
        %v3737 = vunpack.c.l.b16 %v705
        %v3738 = vunpack.c.h.b16 %v705
        %v3739 = vunpack.c.l.b16 %v706
        %v3740 = vunpack.c.h.b16 %v706
        %v3741 = vunpack.c.l.b16 %v707
        %v3742 = vunpack.c.h.b16 %v707
        %v3743 = vunpack.c.l.b16 %v708
        %v3744 = vunpack.c.h.b16 %v708
        %v3745 = vunpack.c.l.b16 %v709
        %v3746 = vunpack.c.h.b16 %v709
        %v3747 = vunpack.c.l.b16 %v710
        %v3748 = vunpack.c.h.b16 %v710
        %v3749 = vunpack.c.l.b16 %v711
        %v3750 = vunpack.c.h.b16 %v711
        %v3751 = vunpack.c.l.b16 %v712
        %v3752 = vunpack.c.h.b16 %v712
        %v3753 = vunpack.c.l.b16 %v713
        %v3754 = vunpack.c.h.b16 %v713
        %v3755 = vunpack.c.l.b16 %v714
        %v3756 = vunpack.c.h.b16 %v714
        %v3757 = vunpack.c.l.b16 %v715
        %v3758 = vunpack.c.h.b16 %v715
        %v3759 = vunpack.c.l.b16 %v716
        %v3760 = vunpack.c.h.b16 %v716
        %v3761 = vunpack.c.l.b16 %v717
        %v3762 = vunpack.c.h.b16 %v717
        %v3763 = vunpack.c.l.b16 %v718
        %v3764 = vunpack.c.h.b16 %v718
        %v3765 = vunpack.c.l.b16 %v719
        %v3766 = vunpack.c.h.b16 %v719
        %v3767 = vunpack.c.l.b16 %v720
        %v3768 = vunpack.c.h.b16 %v720
        %v3769 = vunpack.c.l.b16 %v721
        %v3770 = vunpack.c.h.b16 %v721
        %v3771 = vunpack.c.l.b16 %v722
        %v3772 = vunpack.c.h.b16 %v722
        %v3773 = vunpack.c.l.b16 %v723
        %v3774 = vunpack.c.h.b16 %v723
        %v3775 = vunpack.c.l.b16 %v724
        %v3776 = vunpack.c.h.b16 %v724
        %v3777 = vunpack.c.l.b16 %v725
        %v3778 = vunpack.c.h.b16 %v725
        %v3779 = vunpack.c.l.b16 %v726
        %v3780 = vunpack.c.h.b16 %v726
        %v3781 = vunpack.c.l.b16 %v727
        %v3782 = vunpack.c.h.b16 %v727
        %v3783 = vunpack.c.l.b16 %v728
        %v3784 = vunpack.c.h.b16 %v728
        %v3785 = vunpack.c.l.b16 %v729
        %v3786 = vunpack.c.h.b16 %v729
        %v3787 = vunpack.c.l.b16 %v730
        %v3788 = vunpack.c.h.b16 %v730
        %v3789 = vunpack.c.l.b16 %v731
        %v3790 = vunpack.c.h.b16 %v731
        %v3791 = vunpack.c.l.b16 %v732
        %v3792 = vunpack.c.h.b16 %v732
        %v3793 = vunpack.c.l.b16 %v733
        %v3794 = vunpack.c.h.b16 %v733
        %v3795 = vunpack.c.l.b16 %v734
        %v3796 = vunpack.c.h.b16 %v734
        %v3797 = vunpack.c.l.b16 %v735
        %v3798 = vunpack.c.h.b16 %v735
        %v3799 = vunpack.c.l.b16 %v736
        %v3800 = vunpack.c.h.b16 %v736
        %v3801 = vunpack.c.l.b16 %v737
        %v3802 = vunpack.c.h.b16 %v737
        %v3803 = vunpack.c.l.b16 %v738
        %v3804 = vunpack.c.h.b16 %v738
        %v3805 = vunpack.c.l.b16 %v739
        %v3806 = vunpack.c.h.b16 %v739
        %v3807 = vunpack.c.l.b16 %v740
        %v3808 = vunpack.c.h.b16 %v740
        %v3809 = vunpack.c.l.b16 %v741
        %v3810 = vunpack.c.h.b16 %v741
        %v3811 = vunpack.c.l.b16 %v742
        %v3812 = vunpack.c.h.b16 %v742
        %v3813 = vunpack.c.l.b16 %v743
        %v3814 = vunpack.c.h.b16 %v743
        %v3815 = vunpack.c.l.b16 %v744
        %v3816 = vunpack.c.h.b16 %v744
        %v3817 = vunpack.c.l.b16 %v745
        %v3818 = vunpack.c.h.b16 %v745
        %v3819 = vunpack.c.l.b16 %v746
        %v3820 = vunpack.c.h.b16 %v746
        %v3821 = vunpack.c.l.b16 %v747
        %v3822 = vunpack.c.h.b16 %v747
        %v3823 = vunpack.c.l.b16 %v748
        %v3824 = vunpack.c.h.b16 %v748
        %v3825 = vunpack.c.l.b16 %v749
        %v3826 = vunpack.c.h.b16 %v749
        %v3827 = vunpack.c.l.b16 %v750
        %v3828 = vunpack.c.h.b16 %v750
        %v3829 = vunpack.c.l.b16 %v751
        %v3830 = vunpack.c.h.b16 %v751
        %v3831 = vunpack.c.l.b16 %v752
        %v3832 = vunpack.c.h.b16 %v752
        %v3833 = vunpack.c.l.b16 %v753
        %v3834 = vunpack.c.h.b16 %v753
        %v3835 = vunpack.c.l.b16 %v754
        %v3836 = vunpack.c.h.b16 %v754
        %v3837 = vunpack.c.l.b16 %v755
        %v3838 = vunpack.c.h.b16 %v755
        %v3839 = vunpack.c.l.b16 %v756
        %v3840 = vunpack.c.h.b16 %v756
        %v3841 = vunpack.c.l.b16 %v757
        %v3842 = vunpack.c.h.b16 %v757
        %v3843 = vunpack.c.l.b16 %v758
        %v3844 = vunpack.c.h.b16 %v758
        %v3845 = vunpack.c.l.b16 %v759
        %v3846 = vunpack.c.h.b16 %v759
        %v3847 = vunpack.c.l.b16 %v760
        %v3848 = vunpack.c.h.b16 %v760
        %v3849 = vunpack.c.l.b16 %v761
        %v3850 = vunpack.c.h.b16 %v761
        %v3851 = vunpack.c.l.b16 %v762
        %v3852 = vunpack.c.h.b16 %v762
        %v3853 = vunpack.c.l.b16 %v763
        %v3854 = vunpack.c.h.b16 %v763
        %v3855 = vunpack.c.l.b16 %v764
        %v3856 = vunpack.c.h.b16 %v764
        %v3857 = vunpack.c.l.b16 %v765
        %v3858 = vunpack.c.h.b16 %v765
        %v3859 = vunpack.c.l.b16 %v766
        %v3860 = vunpack.c.h.b16 %v766
        %v3861 = vunpack.c.l.b16 %v767
        %v3862 = vunpack.c.h.b16 %v767
        %v3863 = vunpack.c.l.b16 %v768
        %v3864 = vunpack.c.h.b16 %v768
        %v3865 = vunpack.c.l.b16 %v769
        %v3866 = vunpack.c.h.b16 %v769
        %v3867 = vunpack.c.l.b16 %v770
        %v3868 = vunpack.c.h.b16 %v770
        %v3869 = vunpack.c.l.b16 %v771
        %v3870 = vunpack.c.h.b16 %v771
        %v3871 = vunpack.c.l.b16 %v772
        %v3872 = vunpack.c.h.b16 %v772
        %v3873 = vunpack.c.l.b16 %v773
        %v3874 = vunpack.c.h.b16 %v773
        %v3875 = vunpack.c.l.b16 %v774
        %v3876 = vunpack.c.h.b16 %v774
        %v3877 = vunpack.c.l.b16 %v775
        %v3878 = vunpack.c.h.b16 %v775
        %v3879 = vunpack.c.l.b16 %v776
        %v3880 = vunpack.c.h.b16 %v776
        %v3881 = vunpack.c.l.b16 %v777
        %v3882 = vunpack.c.h.b16 %v777
        %v3883 = vunpack.c.l.b16 %v778
        %v3884 = vunpack.c.h.b16 %v778
        %v3885 = vunpack.c.l.b16 %v779
        %v3886 = vunpack.c.h.b16 %v779
        %v3887 = vunpack.c.l.b16 %v780
        %v3888 = vunpack.c.h.b16 %v780
        %v3889 = vunpack.c.l.b16 %v781
        %v3890 = vunpack.c.h.b16 %v781
        %v3891 = vunpack.c.l.b16 %v782
        %v3892 = vunpack.c.h.b16 %v782
        %v3893 = vunpack.c.l.b16 %v783
        %v3894 = vunpack.c.h.b16 %v783
        %v3895 = vunpack.c.l.b16 %v784
        %v3896 = vunpack.c.h.b16 %v784
        %v3897 = vunpack.c.l.b16 %v785
        %v3898 = vunpack.c.h.b16 %v785
        %v3899 = vunpack.c.l.b16 %v786
        %v3900 = vunpack.c.h.b16 %v786
        %v3901 = vunpack.c.l.b16 %v787
        %v3902 = vunpack.c.h.b16 %v787
        %v3903 = vunpack.c.l.b16 %v788
        %v3904 = vunpack.c.h.b16 %v788
        %v3905 = vunpack.c.l.b16 %v789
        %v3906 = vunpack.c.h.b16 %v789
        %v3907 = vunpack.c.l.b16 %v790
        %v3908 = vunpack.c.h.b16 %v790
        %v3909 = vunpack.c.l.b16 %v791
        %v3910 = vunpack.c.h.b16 %v791
        %v3911 = vunpack.c.l.b16 %v792
        %v3912 = vunpack.c.h.b16 %v792
        %v3913 = vunpack.c.l.b16 %v793
        %v3914 = vunpack.c.h.b16 %v793
        %v3915 = vunpack.c.l.b16 %v794
        %v3916 = vunpack.c.h.b16 %v794
        %v3917 = vunpack.c.l.b16 %v795
        %v3918 = vunpack.c.h.b16 %v795
        %v3919 = vunpack.c.l.b16 %v796
        %v3920 = vunpack.c.h.b16 %v796
        %v3921 = vunpack.c.l.b16 %v797
        %v3922 = vunpack.c.h.b16 %v797
        %v3923 = vunpack.c.l.b16 %v798
        %v3924 = vunpack.c.h.b16 %v798
        %v3925 = vunpack.c.l.b16 %v799
        %v3926 = vunpack.c.h.b16 %v799
        %v3927 = vunpack.c.l.b16 %v800
        %v3928 = vunpack.c.h.b16 %v800
        %v3929 = vunpack.c.l.b16 %v801
        %v3930 = vunpack.c.h.b16 %v801
        %v3931 = vunpack.c.l.b16 %v802
        %v3932 = vunpack.c.h.b16 %v802
        %v3933 = vunpack.c.l.b16 %v803
        %v3934 = vunpack.c.h.b16 %v803
        %v3935 = vunpack.c.l.b16 %v804
        %v3936 = vunpack.c.h.b16 %v804
        %v3937 = vunpack.c.l.b16 %v805
        %v3938 = vunpack.c.h.b16 %v805
        %v3939 = vunpack.c.l.b16 %v806
        %v3940 = vunpack.c.h.b16 %v806
        %v3941 = vunpack.c.l.b16 %v807
        %v3942 = vunpack.c.h.b16 %v807
        %v3943 = vunpack.c.l.b16 %v808
        %v3944 = vunpack.c.h.b16 %v808
        %v3945 = vunpack.c.l.b16 %v809
        %v3946 = vunpack.c.h.b16 %v809
        %v3947 = vunpack.c.l.b16 %v810
        %v3948 = vunpack.c.h.b16 %v810
        %v3949 = vunpack.c.l.b16 %v811
        %v3950 = vunpack.c.h.b16 %v811
        %v3951 = vunpack.c.l.b16 %v812
        %v3952 = vunpack.c.h.b16 %v812
        %v3953 = vunpack.c.l.b16 %v813
        %v3954 = vunpack.c.h.b16 %v813
        %v3955 = vunpack.c.l.b16 %v814
        %v3956 = vunpack.c.h.b16 %v814
        %v3957 = vunpack.c.l.b16 %v815
        %v3958 = vunpack.c.h.b16 %v815
        %v3959 = vunpack.c.l.b16 %v816
        %v3960 = vunpack.c.h.b16 %v816
        %v3961 = vunpack.c.l.b16 %v817
        %v3962 = vunpack.c.h.b16 %v817
        %v3963 = vunpack.c.l.b16 %v818
        %v3964 = vunpack.c.h.b16 %v818
        %v3965 = vunpack.c.l.b16 %v819
        %v3966 = vunpack.c.h.b16 %v819
        %v3967 = vunpack.c.l.b16 %v820
        %v3968 = vunpack.c.h.b16 %v820
        %v3969 = vunpack.c.l.b16 %v821
        %v3970 = vunpack.c.h.b16 %v821
        %v3971 = vunpack.c.l.b16 %v822
        %v3972 = vunpack.c.h.b16 %v822
        %v3973 = vunpack.c.l.b16 %v823
        %v3974 = vunpack.c.h.b16 %v823
        %v3975 = vunpack.c.l.b16 %v824
        %v3976 = vunpack.c.h.b16 %v824
        %v3977 = vunpack.c.l.b16 %v825
        %v3978 = vunpack.c.h.b16 %v825
        %v3979 = vunpack.c.l.b16 %v826
        %v3980 = vunpack.c.h.b16 %v826
        %v3981 = vunpack.c.l.b16 %v827
        %v3982 = vunpack.c.h.b16 %v827
        %v3983 = vunpack.c.l.b16 %v828
        %v3984 = vunpack.c.h.b16 %v828
        %v3985 = vunpack.c.l.b16 %v829
        %v3986 = vunpack.c.h.b16 %v829
        %v3987 = vunpack.c.l.b16 %v830
        %v3988 = vunpack.c.h.b16 %v830
        %v3989 = vunpack.c.l.b16 %v831
        %v3990 = vunpack.c.h.b16 %v831
        %v3991 = vunpack.c.l.b16 %v832
        %v3992 = vunpack.c.h.b16 %v832
        %v3993 = vunpack.c.l.b16 %v833
        %v3994 = vunpack.c.h.b16 %v833
        %v3995 = vunpack.c.l.b16 %v834
        %v3996 = vunpack.c.h.b16 %v834
        %v3997 = vunpack.c.l.b16 %v835
        %v3998 = vunpack.c.h.b16 %v835
        %v3999 = vunpack.c.l.b16 %v836
        %v4000 = vunpack.c.h.b16 %v836
        %v4001 = vunpack.c.l.b16 %v837
        %v4002 = vunpack.c.h.b16 %v837
        %v4003 = vunpack.c.l.b16 %v838
        %v4004 = vunpack.c.h.b16 %v838
        %v4005 = vunpack.c.l.b16 %v839
        %v4006 = vunpack.c.h.b16 %v839
        %v4007 = vunpack.c.l.b16 %v840
        %v4008 = vunpack.c.h.b16 %v840
        %v4009 = vunpack.c.l.b16 %v841
        %v4010 = vunpack.c.h.b16 %v841
        %v4011 = vunpack.c.l.b16 %v842
        %v4012 = vunpack.c.h.b16 %v842
        %v4013 = vunpack.c.l.b16 %v843
        %v4014 = vunpack.c.h.b16 %v843
        %v4015 = vunpack.c.l.b16 %v844
        %v4016 = vunpack.c.h.b16 %v844
        %v4017 = vunpack.c.l.b16 %v845
        %v4018 = vunpack.c.h.b16 %v845
        %v4019 = vunpack.c.l.b16 %v846
        %v4020 = vunpack.c.h.b16 %v846
        %v4021 = vunpack.c.l.b16 %v847
        %v4022 = vunpack.c.h.b16 %v847
        %v4023 = vunpack.c.l.b16 %v848
        %v4024 = vunpack.c.h.b16 %v848
        %v4025 = vunpack.c.l.b16 %v849
        %v4026 = vunpack.c.h.b16 %v849
        %v4027 = vunpack.c.l.b16 %v850
        %v4028 = vunpack.c.h.b16 %v850
        %v4029 = vunpack.c.l.b16 %v851
        %v4030 = vunpack.c.h.b16 %v851
        %v4031 = vunpack.c.l.b16 %v852
        %v4032 = vunpack.c.h.b16 %v852
        %v4033 = vunpack.c.l.b16 %v853
        %v4034 = vunpack.c.h.b16 %v853
        %v4035 = vunpack.c.l.b16 %v854
        %v4036 = vunpack.c.h.b16 %v854
        %v4037 = vunpack.c.l.b16 %v855
        %v4038 = vunpack.c.h.b16 %v855
        %v4039 = vunpack.c.l.b16 %v856
        %v4040 = vunpack.c.h.b16 %v856
        %v4041 = vunpack.c.l.b16 %v857
        %v4042 = vunpack.c.h.b16 %v857
        %v4043 = vunpack.c.l.b16 %v858
        %v4044 = vunpack.c.h.b16 %v858
        %v4045 = vunpack.c.l.b16 %v859
        %v4046 = vunpack.c.h.b16 %v859
        %v4047 = vunpack.c.l.b16 %v860
        %v4048 = vunpack.c.h.b16 %v860
        %v4049 = vunpack.c.l.b16 %v861
        %v4050 = vunpack.c.h.b16 %v861
        %v4051 = vunpack.c.l.b16 %v862
        %v4052 = vunpack.c.h.b16 %v862
        %v4053 = vunpack.c.l.b16 %v863
        %v4054 = vunpack.c.h.b16 %v863
        %v4055 = vunpack.c.l.b16 %v864
        %v4056 = vunpack.c.h.b16 %v864
        %v4057 = vunpack.c.l.b16 %v865
        %v4058 = vunpack.c.h.b16 %v865
        %v4059 = vunpack.c.l.b16 %v866
        %v4060 = vunpack.c.h.b16 %v866
        %v4061 = vunpack.c.l.b16 %v867
        %v4062 = vunpack.c.h.b16 %v867
        %v4063 = vunpack.c.l.b16 %v868
        %v4064 = vunpack.c.h.b16 %v868
        %v4065 = vunpack.c.l.b16 %v869
        %v4066 = vunpack.c.h.b16 %v869
        %v4067 = vunpack.c.l.b16 %v870
        %v4068 = vunpack.c.h.b16 %v870
        %v4069 = vunpack.c.l.b16 %v871
        %v4070 = vunpack.c.h.b16 %v871
        %v4071 = vunpack.c.l.b16 %v872
        %v4072 = vunpack.c.h.b16 %v872
        %v4073 = vunpack.c.l.b16 %v873
        %v4074 = vunpack.c.h.b16 %v873
        %v4075 = vunpack.c.l.b16 %v874
        %v4076 = vunpack.c.h.b16 %v874
        %v4077 = vunpack.c.l.b16 %v875
        %v4078 = vunpack.c.h.b16 %v875
        %v4079 = vunpack.c.l.b16 %v876
        %v4080 = vunpack.c.h.b16 %v876
        %v4081 = vunpack.c.l.b16 %v877
        %v4082 = vunpack.c.h.b16 %v877
        %v4083 = vunpack.c.l.b16 %v878
        %v4084 = vunpack.c.h.b16 %v878
        %v4085 = vunpack.c.l.b16 %v879
        %v4086 = vunpack.c.h.b16 %v879
        %v4087 = vunpack.c.l.b16 %v880
        %v4088 = vunpack.c.h.b16 %v880
        %v4089 = vunpack.c.l.b16 %v881
        %v4090 = vunpack.c.h.b16 %v881
        %v4091 = vunpack.c.l.b16 %v882
        %v4092 = vunpack.c.h.b16 %v882
        %v4093 = vunpack.c.l.b16 %v883
        %v4094 = vunpack.c.h.b16 %v883
        %v4095 = vunpack.c.l.b16 %v884
        %v4096 = vunpack.c.h.b16 %v884
        %v4097 = vunpack.c.l.b16 %v885
        %v4098 = vunpack.c.h.b16 %v885
        %v4099 = vunpack.c.l.b16 %v886
        %v4100 = vunpack.c.h.b16 %v886
        %v4101 = vunpack.c.l.b16 %v887
        %v4102 = vunpack.c.h.b16 %v887
        %v4103 = vunpack.c.l.b16 %v888
        %v4104 = vunpack.c.h.b16 %v888
        %v4105 = vunpack.c.l.b16 %v889
        %v4106 = vunpack.c.h.b16 %v889
        %v4107 = vunpack.c.l.b16 %v890
        %v4108 = vunpack.c.h.b16 %v890
        %v4109 = vunpack.c.l.b16 %v891
        %v4110 = vunpack.c.h.b16 %v891
        %v4111 = vunpack.c.l.b16 %v892
        %v4112 = vunpack.c.h.b16 %v892
        %v4113 = vunpack.c.l.b16 %v893
        %v4114 = vunpack.c.h.b16 %v893
        %v4115 = vunpack.c.l.b16 %v894
        %v4116 = vunpack.c.h.b16 %v894
        %v4117 = vunpack.c.l.b16 %v895
        %v4118 = vunpack.c.h.b16 %v895
        %v4119 = vunpack.c.l.b16 %v896
        %v4120 = vunpack.c.h.b16 %v896
        %v4121 = vunpack.c.l.b16 %v897
        %v4122 = vunpack.c.h.b16 %v897
        %v4123 = vunpack.c.l.b16 %v898
        %v4124 = vunpack.c.h.b16 %v898
        %v4125 = vunpack.c.l.b16 %v899
        %v4126 = vunpack.c.h.b16 %v899
        %v4127 = vunpack.c.l.b16 %v900
        %v4128 = vunpack.c.h.b16 %v900
        %v4129 = vunpack.c.l.b16 %v901
        %v4130 = vunpack.c.h.b16 %v901
        %v4131 = vunpack.c.l.b16 %v902
        %v4132 = vunpack.c.h.b16 %v902
        %v4133 = vunpack.c.l.b16 %v903
        %v4134 = vunpack.c.h.b16 %v903
        %v4135 = vunpack.c.l.b16 %v904
        %v4136 = vunpack.c.h.b16 %v904
        %v4137 = vunpack.c.l.b16 %v905
        %v4138 = vunpack.c.h.b16 %v905
        %v4139 = vunpack.c.l.b16 %v906
        %v4140 = vunpack.c.h.b16 %v906
        %v4141 = vunpack.c.l.b16 %v907
        %v4142 = vunpack.c.h.b16 %v907
        %v4143 = vunpack.c.l.b16 %v908
        %v4144 = vunpack.c.h.b16 %v908
        %v4145 = vunpack.c.l.b16 %v909
        %v4146 = vunpack.c.h.b16 %v909
        %v4147 = vunpack.c.l.b16 %v910
        %v4148 = vunpack.c.h.b16 %v910
        %v4149 = vunpack.c.l.b16 %v911
        %v4150 = vunpack.c.h.b16 %v911
        %v4151 = vunpack.c.l.b16 %v912
        %v4152 = vunpack.c.h.b16 %v912
        %v4153 = vunpack.c.l.b16 %v913
        %v4154 = vunpack.c.h.b16 %v913
        %v4155 = vunpack.c.l.b16 %v914
        %v4156 = vunpack.c.h.b16 %v914
        %v4157 = vunpack.c.l.b16 %v915
        %v4158 = vunpack.c.h.b16 %v915
        %v4159 = vunpack.c.l.b16 %v916
        %v4160 = vunpack.c.h.b16 %v916
        %v4161 = vunpack.c.l.b16 %v917
        %v4162 = vunpack.c.h.b16 %v917
        %v4163 = vunpack.c.l.b16 %v918
        %v4164 = vunpack.c.h.b16 %v918
        %v4165 = vunpack.c.l.b16 %v919
        %v4166 = vunpack.c.h.b16 %v919
        %v4167 = vunpack.c.l.b16 %v920
        %v4168 = vunpack.c.h.b16 %v920
        %v4169 = vunpack.c.l.b16 %v921
        %v4170 = vunpack.c.h.b16 %v921
        %v4171 = vunpack.c.l.b16 %v922
        %v4172 = vunpack.c.h.b16 %v922
        %v4173 = vunpack.c.l.b16 %v923
        %v4174 = vunpack.c.h.b16 %v923
        %v4175 = vunpack.c.l.b16 %v924
        %v4176 = vunpack.c.h.b16 %v924
        %v4177 = vunpack.c.l.b16 %v925
        %v4178 = vunpack.c.h.b16 %v925
        %v4179 = vunpack.c.l.b16 %v926
        %v4180 = vunpack.c.h.b16 %v926
        %v4181 = vunpack.c.l.b16 %v927
        %v4182 = vunpack.c.h.b16 %v927
        %v4183 = vunpack.c.l.b16 %v928
        %v4184 = vunpack.c.h.b16 %v928
        %v4185 = vunpack.c.l.b16 %v929
        %v4186 = vunpack.c.h.b16 %v929
        %v4187 = vunpack.c.l.b16 %v930
        %v4188 = vunpack.c.h.b16 %v930
        %v4189 = vunpack.c.l.b16 %v931
        %v4190 = vunpack.c.h.b16 %v931
        %v4191 = vunpack.c.l.b16 %v932
        %v4192 = vunpack.c.h.b16 %v932
        %v4193 = vunpack.c.l.b16 %v933
        %v4194 = vunpack.c.h.b16 %v933
        %v4195 = vunpack.c.l.b16 %v934
        %v4196 = vunpack.c.h.b16 %v934
        %v4197 = vunpack.c.l.b16 %v935
        %v4198 = vunpack.c.h.b16 %v935
        %v4199 = vunpack.c.l.b16 %v936
        %v4200 = vunpack.c.h.b16 %v936
        %v4201 = vunpack.c.l.b16 %v937
        %v4202 = vunpack.c.h.b16 %v937
        %v4203 = vunpack.c.l.b16 %v938
        %v4204 = vunpack.c.h.b16 %v938
        %v4205 = vunpack.c.l.b16 %v939
        %v4206 = vunpack.c.h.b16 %v939
        %v4207 = vunpack.c.l.b16 %v940
        %v4208 = vunpack.c.h.b16 %v940
        %v4209 = vunpack.c.l.b16 %v941
        %v4210 = vunpack.c.h.b16 %v941
        %v4211 = vunpack.c.l.b16 %v942
        %v4212 = vunpack.c.h.b16 %v942
        %v4213 = vunpack.c.l.b16 %v943
        %v4214 = vunpack.c.h.b16 %v943
        %v4215 = vunpack.c.l.b16 %v944
        %v4216 = vunpack.c.h.b16 %v944
        %v4217 = vunpack.c.l.b16 %v945
        %v4218 = vunpack.c.h.b16 %v945
        %v4219 = vunpack.c.l.b16 %v946
        %v4220 = vunpack.c.h.b16 %v946
        %v4221 = vunpack.c.l.b16 %v947
        %v4222 = vunpack.c.h.b16 %v947
        %v4223 = vunpack.c.l.b16 %v948
        %v4224 = vunpack.c.h.b16 %v948
        %v4225 = vunpack.c.l.b16 %v949
        %v4226 = vunpack.c.h.b16 %v949
        %v4227 = vunpack.c.l.b16 %v950
        %v4228 = vunpack.c.h.b16 %v950
        %v4229 = vunpack.c.l.b16 %v951
        %v4230 = vunpack.c.h.b16 %v951
        %v4231 = vunpack.c.l.b16 %v952
        %v4232 = vunpack.c.h.b16 %v952
        %v4233 = vunpack.c.l.b16 %v953
        %v4234 = vunpack.c.h.b16 %v953
        %v4235 = vunpack.c.l.b16 %v954
        %v4236 = vunpack.c.h.b16 %v954
        %v4237 = vunpack.c.l.b16 %v955
        %v4238 = vunpack.c.h.b16 %v955
        %v4239 = vunpack.c.l.b16 %v956
        %v4240 = vunpack.c.h.b16 %v956
        %v4241 = vunpack.c.l.b16 %v957
        %v4242 = vunpack.c.h.b16 %v957
        %v4243 = vunpack.c.l.b16 %v958
        %v4244 = vunpack.c.h.b16 %v958
        %v4245 = vunpack.c.l.b16 %v959
        %v4246 = vunpack.c.h.b16 %v959
        %v4247 = vunpack.c.l.b16 %v960
        %v4248 = vunpack.c.h.b16 %v960
        %v4249 = vunpack.c.l.b16 %v961
        %v4250 = vunpack.c.h.b16 %v961
        %v4251 = vunpack.c.l.b16 %v962
        %v4252 = vunpack.c.h.b16 %v962
        %v4253 = vunpack.c.l.b16 %v963
        %v4254 = vunpack.c.h.b16 %v963
        %v4255 = vunpack.c.l.b16 %v964
        %v4256 = vunpack.c.h.b16 %v964
        %v4257 = vunpack.c.l.b16 %v965
        %v4258 = vunpack.c.h.b16 %v965
        %v4259 = vunpack.c.l.b16 %v966
        %v4260 = vunpack.c.h.b16 %v966
        %v4261 = vunpack.c.l.b16 %v967
        %v4262 = vunpack.c.h.b16 %v967
        %v4263 = vunpack.c.l.b16 %v968
        %v4264 = vunpack.c.h.b16 %v968
        %v4265 = vunpack.c.l.b16 %v969
        %v4266 = vunpack.c.h.b16 %v969
        %v4267 = vunpack.c.l.b16 %v970
        %v4268 = vunpack.c.h.b16 %v970
        %v4269 = vunpack.c.l.b16 %v971
        %v4270 = vunpack.c.h.b16 %v971
        %v4271 = vunpack.c.l.b16 %v972
        %v4272 = vunpack.c.h.b16 %v972
        %v4273 = vunpack.c.l.b16 %v973
        %v4274 = vunpack.c.h.b16 %v973
        %v4275 = vunpack.c.l.b16 %v974
        %v4276 = vunpack.c.h.b16 %v974
        %v4277 = vunpack.c.l.b16 %v975
        %v4278 = vunpack.c.h.b16 %v975
        %v4279 = vunpack.c.l.b16 %v976
        %v4280 = vunpack.c.h.b16 %v976
        %v4281 = vunpack.c.l.b16 %v977
        %v4282 = vunpack.c.h.b16 %v977
        %v4283 = vunpack.c.l.b16 %v978
        %v4284 = vunpack.c.h.b16 %v978
        %v4285 = vunpack.c.l.b16 %v979
        %v4286 = vunpack.c.h.b16 %v979
        %v4287 = vunpack.c.l.b16 %v980
        %v4288 = vunpack.c.h.b16 %v980
        %v4289 = vunpack.c.l.b16 %v981
        %v4290 = vunpack.c.h.b16 %v981
        %v4291 = vunpack.c.l.b16 %v982
        %v4292 = vunpack.c.h.b16 %v982
        %v4293 = vunpack.c.l.b16 %v983
        %v4294 = vunpack.c.h.b16 %v983
        %v4295 = vunpack.c.l.b16 %v984
        %v4296 = vunpack.c.h.b16 %v984
        %v4297 = vunpack.c.l.b16 %v985
        %v4298 = vunpack.c.h.b16 %v985
        %v4299 = vunpack.c.l.b16 %v986
        %v4300 = vunpack.c.h.b16 %v986
        %v4301 = vunpack.c.l.b16 %v987
        %v4302 = vunpack.c.h.b16 %v987
        %v4303 = vunpack.c.l.b16 %v988
        %v4304 = vunpack.c.h.b16 %v988
        %v4305 = vunpack.c.l.b16 %v989
        %v4306 = vunpack.c.h.b16 %v989
        %v4307 = vunpack.c.l.b16 %v990
        %v4308 = vunpack.c.h.b16 %v990
        %v4309 = vunpack.c.l.b16 %v991
        %v4310 = vunpack.c.h.b16 %v991
        %v4311 = vunpack.c.l.b16 %v992
        %v4312 = vunpack.c.h.b16 %v992
        %v4313 = vunpack.c.l.b16 %v993
        %v4314 = vunpack.c.h.b16 %v993
        %v4315 = vunpack.c.l.b16 %v994
        %v4316 = vunpack.c.h.b16 %v994
        %v4317 = vunpack.c.l.b16 %v995
        %v4318 = vunpack.c.h.b16 %v995
        %v4319 = vunpack.c.l.b16 %v996
        %v4320 = vunpack.c.h.b16 %v996
        %v4321 = vunpack.c.l.b16 %v997
        %v4322 = vunpack.c.h.b16 %v997
        %v4323 = vunpack.c.l.b16 %v998
        %v4324 = vunpack.c.h.b16 %v998
        %v4325 = vunpack.c.l.b16 %v999
        %v4326 = vunpack.c.h.b16 %v999
        %v4327 = vunpack.c.l.b16 %v1000
        %v4328 = vunpack.c.h.b16 %v1000
        %v4329 = vunpack.c.l.b16 %v1001
        %v4330 = vunpack.c.h.b16 %v1001
        %v4331 = vunpack.c.l.b16 %v1002
        %v4332 = vunpack.c.h.b16 %v1002
        %v4333 = vunpack.c.l.b16 %v1003
        %v4334 = vunpack.c.h.b16 %v1003
        %v4335 = vunpack.c.l.b16 %v1004
        %v4336 = vunpack.c.h.b16 %v1004
        %v4337 = vunpack.c.l.b16 %v1005
        %v4338 = vunpack.c.h.b16 %v1005
        %v4339 = vunpack.c.l.b16 %v1006
        %v4340 = vunpack.c.h.b16 %v1006
        %v4341 = vunpack.c.l.b16 %v1007
        %v4342 = vunpack.c.h.b16 %v1007
        %v4343 = vunpack.c.l.b16 %v1008
        %v4344 = vunpack.c.h.b16 %v1008
        %v4345 = vunpack.c.l.b16 %v1009
        %v4346 = vunpack.c.h.b16 %v1009
        %v4347 = vunpack.c.l.b16 %v1010
        %v4348 = vunpack.c.h.b16 %v1010
        %v4349 = vunpack.c.l.b16 %v1011
        %v4350 = vunpack.c.h.b16 %v1011
        %v4351 = vunpack.c.l.b16 %v1012
        %v4352 = vunpack.c.h.b16 %v1012
        %v4353 = vunpack.c.l.b16 %v1013
        %v4354 = vunpack.c.h.b16 %v1013
        %v4355 = vunpack.c.l.b16 %v1014
        %v4356 = vunpack.c.h.b16 %v1014
        %v4357 = vunpack.c.l.b16 %v1015
        %v4358 = vunpack.c.h.b16 %v1015
        %v4359 = vunpack.c.l.b16 %v1016
        %v4360 = vunpack.c.h.b16 %v1016
        %v4361 = vunpack.c.l.b16 %v1017
        %v4362 = vunpack.c.h.b16 %v1017
        %v4363 = vunpack.c.l.b16 %v1018
        %v4364 = vunpack.c.h.b16 %v1018
        %v4365 = vunpack.c.l.b16 %v1019
        %v4366 = vunpack.c.h.b16 %v1019
        %v4367 = vunpack.c.l.b16 %v1020
        %v4368 = vunpack.c.h.b16 %v1020
        %v4369 = vunpack.c.l.b16 %v1021
        %v4370 = vunpack.c.h.b16 %v1021
        %v4371 = vunpack.c.l.b16 %v1022
        %v4372 = vunpack.c.h.b16 %v1022
        %v4373 = vunpack.c.l.b16 %v1023
        %v4374 = vunpack.c.h.b16 %v1023
        %v4375 = vunpack.c.l.b16 %v1024
        %v4376 = vunpack.c.h.b16 %v1024
        %v4377 = vunpack.c.l.b16 %v1025
        %v4378 = vunpack.c.h.b16 %v1025
        %v4379 = vunpack.c.l.b16 %v1026
        %v4380 = vunpack.c.h.b16 %v1026
        %v4381 = vunpack.c.l.b16 %v1027
        %v4382 = vunpack.c.h.b16 %v1027
        %v4383 = vunpack.c.l.b16 %v1028
        %v4384 = vunpack.c.h.b16 %v1028
        %v4385 = vunpack.c.l.b16 %v1029
        %v4386 = vunpack.c.h.b16 %v1029
        %v4387 = vunpack.c.l.b16 %v1030
        %v4388 = vunpack.c.h.b16 %v1030
        %v4389 = vunpack.c.l.b16 %v1031
        %v4390 = vunpack.c.h.b16 %v1031
        %v4391 = vunpack.c.l.b16 %v1032
        %v4392 = vunpack.c.h.b16 %v1032
        %v4393 = vunpack.c.l.b16 %v1033
        %v4394 = vunpack.c.h.b16 %v1033
        %v4395 = vunpack.c.l.b16 %v1034
        %v4396 = vunpack.c.h.b16 %v1034
        %v4397 = vunpack.c.l.b16 %v1035
        %v4398 = vunpack.c.h.b16 %v1035
        %v4399 = vunpack.c.l.b16 %v1036
        %v4400 = vunpack.c.h.b16 %v1036
        %v4401 = vunpack.c.l.b16 %v1037
        %v4402 = vunpack.c.h.b16 %v1037
        %v4403 = vunpack.c.l.b16 %v1038
        %v4404 = vunpack.c.h.b16 %v1038
        %v4405 = vunpack.c.l.b16 %v1039
        %v4406 = vunpack.c.h.b16 %v1039
        %v4407 = vunpack.c.l.b16 %v1040
        %v4408 = vunpack.c.h.b16 %v1040
        %v4409 = vunpack.c.l.b16 %v1041
        %v4410 = vunpack.c.h.b16 %v1041
        %v4411 = vunpack.c.l.b16 %v1042
        %v4412 = vunpack.c.h.b16 %v1042
        %v4413 = vunpack.c.l.b16 %v1043
        %v4414 = vunpack.c.h.b16 %v1043
        %v4415 = vunpack.c.l.b16 %v1044
        %v4416 = vunpack.c.h.b16 %v1044
        %v4417 = vunpack.c.l.b16 %v1045
        %v4418 = vunpack.c.h.b16 %v1045
        %v4419 = vunpack.c.l.b16 %v1046
        %v4420 = vunpack.c.h.b16 %v1046
        %v4421 = vunpack.c.l.b16 %v1047
        %v4422 = vunpack.c.h.b16 %v1047
        %v4423 = vunpack.c.l.b16 %v1048
        %v4424 = vunpack.c.h.b16 %v1048
        %v4425 = vunpack.c.l.b16 %v1049
        %v4426 = vunpack.c.h.b16 %v1049
        %v4427 = vunpack.c.l.b16 %v1050
        %v4428 = vunpack.c.h.b16 %v1050
        %v4429 = vunpack.c.l.b16 %v1051
        %v4430 = vunpack.c.h.b16 %v1051
        %v4431 = vunpack.c.l.b16 %v1052
        %v4432 = vunpack.c.h.b16 %v1052
        %v4433 = vunpack.c.l.b16 %v1053
        %v4434 = vunpack.c.h.b16 %v1053
        %v4435 = vunpack.c.l.b16 %v1054
        %v4436 = vunpack.c.h.b16 %v1054
        %v4437 = vunpack.c.l.b16 %v1055
        %v4438 = vunpack.c.h.b16 %v1055
        %v4439 = vunpack.c.l.b16 %v1056
        %v4440 = vunpack.c.h.b16 %v1056
        %v4441 = vunpack.c.l.b16 %v1057
        %v4442 = vunpack.c.h.b16 %v1057
        %v4443 = vunpack.c.l.b16 %v1058
        %v4444 = vunpack.c.h.b16 %v1058
        %v4445 = vunpack.c.l.b16 %v1059
        %v4446 = vunpack.c.h.b16 %v1059
        %v4447 = vunpack.c.l.b16 %v1060
        %v4448 = vunpack.c.h.b16 %v1060
        %v4449 = vunpack.c.l.b16 %v1061
        %v4450 = vunpack.c.h.b16 %v1061
        %v4451 = vunpack.c.l.b16 %v1062
        %v4452 = vunpack.c.h.b16 %v1062
        %v4453 = vunpack.c.l.b16 %v1063
        %v4454 = vunpack.c.h.b16 %v1063
        %v4455 = vunpack.c.l.b16 %v1064
        %v4456 = vunpack.c.h.b16 %v1064
        %v4457 = vunpack.c.l.b16 %v1065
        %v4458 = vunpack.c.h.b16 %v1065
        %v4459 = vunpack.c.l.b16 %v1066
        %v4460 = vunpack.c.h.b16 %v1066
        %v4461 = vunpack.c.l.b16 %v1067
        %v4462 = vunpack.c.h.b16 %v1067
        %v4463 = vunpack.c.l.b16 %v1068
        %v4464 = vunpack.c.h.b16 %v1068
        %v4465 = vunpack.c.l.b16 %v1069
        %v4466 = vunpack.c.h.b16 %v1069
        %v4467 = vunpack.c.l.b16 %v1070
        %v4468 = vunpack.c.h.b16 %v1070
        %v4469 = vunpack.c.l.b16 %v1071
        %v4470 = vunpack.c.h.b16 %v1071
        %v4471 = vunpack.c.l.b16 %v1072
        %v4472 = vunpack.c.h.b16 %v1072
        %v4473 = vunpack.c.l.b16 %v1073
        %v4474 = vunpack.c.h.b16 %v1073
        %v4475 = vunpack.c.l.b16 %v1074
        %v4476 = vunpack.c.h.b16 %v1074
        %v4477 = vunpack.c.l.b16 %v1075
        %v4478 = vunpack.c.h.b16 %v1075
        %v4479 = vunpack.c.l.b16 %v1076
        %v4480 = vunpack.c.h.b16 %v1076
        %v4481 = vunpack.c.l.b16 %v1077
        %v4482 = vunpack.c.h.b16 %v1077
        %v4483 = vunpack.c.l.b16 %v1078
        %v4484 = vunpack.c.h.b16 %v1078
        %v4485 = vunpack.c.l.b16 %v1079
        %v4486 = vunpack.c.h.b16 %v1079
        %v4487 = vunpack.c.l.b16 %v1080
        %v4488 = vunpack.c.h.b16 %v1080
        %v4489 = vunpack.c.l.b16 %v1081
        %v4490 = vunpack.c.h.b16 %v1081
        %v4491 = vunpack.c.l.b16 %v1082
        %v4492 = vunpack.c.h.b16 %v1082
        %v4493 = vunpack.c.l.b16 %v1083
        %v4494 = vunpack.c.h.b16 %v1083
        %v4495 = vunpack.c.l.b16 %v1084
        %v4496 = vunpack.c.h.b16 %v1084
        %v4497 = vunpack.c.l.b16 %v1085
        %v4498 = vunpack.c.h.b16 %v1085
        %v4499 = vunpack.c.l.b16 %v1086
        %v4500 = vunpack.c.h.b16 %v1086
        %v4501 = vunpack.c.l.b16 %v1087
        %v4502 = vunpack.c.h.b16 %v1087
        %v4503 = vunpack.c.l.b16 %v1088
        %v4504 = vunpack.c.h.b16 %v1088
        %v4505 = vunpack.c.l.b16 %v1089
        %v4506 = vunpack.c.h.b16 %v1089
        %v4507 = vunpack.c.l.b16 %v1090
        %v4508 = vunpack.c.h.b16 %v1090
        %v4509 = vunpack.c.l.b16 %v1091
        %v4510 = vunpack.c.h.b16 %v1091
        %v4511 = vunpack.c.l.b16 %v1092
        %v4512 = vunpack.c.h.b16 %v1092
        %v4513 = vunpack.c.l.b16 %v1093
        %v4514 = vunpack.c.h.b16 %v1093
        %v4515 = vunpack.c.l.b16 %v1094
        %v4516 = vunpack.c.h.b16 %v1094
        %v4517 = vunpack.c.l.b16 %v1095
        %v4518 = vunpack.c.h.b16 %v1095
        %v4519 = vunpack.c.l.b16 %v1096
        %v4520 = vunpack.c.h.b16 %v1096
        %v4521 = vunpack.c.l.b16 %v1097
        %v4522 = vunpack.c.h.b16 %v1097
        %v4523 = vunpack.c.l.b16 %v1098
        %v4524 = vunpack.c.h.b16 %v1098
        %v4525 = vunpack.c.l.b16 %v1099
        %v4526 = vunpack.c.h.b16 %v1099
        %v4527 = vunpack.c.l.b16 %v1100
        %v4528 = vunpack.c.h.b16 %v1100
        %v4529 = vunpack.c.l.b16 %v1101
        %v4530 = vunpack.c.h.b16 %v1101
        %v4531 = vunpack.c.l.b16 %v1102
        %v4532 = vunpack.c.h.b16 %v1102
        %v4533 = vunpack.c.l.b16 %v1103
        %v4534 = vunpack.c.h.b16 %v1103
        %v4535 = vunpack.c.l.b16 %v1104
        %v4536 = vunpack.c.h.b16 %v1104
        %v4537 = vunpack.c.l.b16 %v1105
        %v4538 = vunpack.c.h.b16 %v1105
        %v4539 = vunpack.c.l.b16 %v1106
        %v4540 = vunpack.c.h.b16 %v1106
        %v4541 = vunpack.c.l.b16 %v1107
        %v4542 = vunpack.c.h.b16 %v1107
        %v4543 = vunpack.c.l.b16 %v1108
        %v4544 = vunpack.c.h.b16 %v1108
        %v4545 = vunpack.c.l.b16 %v1109
        %v4546 = vunpack.c.h.b16 %v1109
        %v4547 = vunpack.c.l.b16 %v1110
        %v4548 = vunpack.c.h.b16 %v1110
        %v4549 = vunpack.c.l.b16 %v1111
        %v4550 = vunpack.c.h.b16 %v1111
        %v4551 = vunpack.c.l.b16 %v1112
        %v4552 = vunpack.c.h.b16 %v1112
        %v4553 = vunpack.c.l.b16 %v1113
        %v4554 = vunpack.c.h.b16 %v1113
        %v4555 = vunpack.c.l.b16 %v1114
        %v4556 = vunpack.c.h.b16 %v1114
        %v4557 = vunpack.c.l.b16 %v1115
        %v4558 = vunpack.c.h.b16 %v1115
        %v4559 = vunpack.c.l.b16 %v1116
        %v4560 = vunpack.c.h.b16 %v1116
        %v4561 = vunpack.c.l.b16 %v1117
        %v4562 = vunpack.c.h.b16 %v1117
        %v4563 = vunpack.c.l.b16 %v1118
        %v4564 = vunpack.c.h.b16 %v1118
        %v4565 = vunpack.c.l.b16 %v1119
        %v4566 = vunpack.c.h.b16 %v1119
        %v4567 = vunpack.c.l.b16 %v1120
        %v4568 = vunpack.c.h.b16 %v1120
        %v4569 = vunpack.c.l.b16 %v1121
        %v4570 = vunpack.c.h.b16 %v1121
        %v4571 = vunpack.c.l.b16 %v1122
        %v4572 = vunpack.c.h.b16 %v1122
        %v4573 = vunpack.c.l.b16 %v1123
        %v4574 = vunpack.c.h.b16 %v1123
        %v4575 = vunpack.c.l.b16 %v1124
        %v4576 = vunpack.c.h.b16 %v1124
        %v4577 = vunpack.c.l.b16 %v1125
        %v4578 = vunpack.c.h.b16 %v1125
        %v4579 = vunpack.c.l.b16 %v1126
        %v4580 = vunpack.c.h.b16 %v1126
        %v4581 = vunpack.c.l.b16 %v1127
        %v4582 = vunpack.c.h.b16 %v1127
        %v4583 = vunpack.c.l.b16 %v1128
        %v4584 = vunpack.c.h.b16 %v1128
        %v4585 = vunpack.c.l.b16 %v1129
        %v4586 = vunpack.c.h.b16 %v1129
        %v4587 = vunpack.c.l.b16 %v1130
        %v4588 = vunpack.c.h.b16 %v1130
        %v4589 = vunpack.c.l.b16 %v1131
        %v4590 = vunpack.c.h.b16 %v1131
        %v4591 = vunpack.c.l.b16 %v1132
        %v4592 = vunpack.c.h.b16 %v1132
        %v4593 = vunpack.c.l.b16 %v1133
        %v4594 = vunpack.c.h.b16 %v1133
        %v4595 = vunpack.c.l.b16 %v1134
        %v4596 = vunpack.c.h.b16 %v1134
        %v4597 = vunpack.c.l.b16 %v1135
        %v4598 = vunpack.c.h.b16 %v1135
        %v4599 = vunpack.c.l.b16 %v1136
        %v4600 = vunpack.c.h.b16 %v1136
        %v4601 = vunpack.c.l.b16 %v1137
        %v4602 = vunpack.c.h.b16 %v1137
        %v4603 = vunpack.c.l.b16 %v1138
        %v4604 = vunpack.c.h.b16 %v1138
        %v4605 = vunpack.c.l.b16 %v1139
        %v4606 = vunpack.c.h.b16 %v1139
        %v4607 = vunpack.c.l.b16 %v1140
        %v4608 = vunpack.c.h.b16 %v1140
        %v4609 = vunpack.c.l.b16 %v1141
        %v4610 = vunpack.c.h.b16 %v1141
        %v4611 = vunpack.c.l.b16 %v1142
        %v4612 = vunpack.c.h.b16 %v1142
        %v4613 = vunpack.c.l.b16 %v1143
        %v4614 = vunpack.c.h.b16 %v1143
        %v4615 = vunpack.c.l.b16 %v1144
        %v4616 = vunpack.c.h.b16 %v1144
        %v4617 = vunpack.c.l.b16 %v1145
        %v4618 = vunpack.c.h.b16 %v1145
        %v4619 = vunpack.c.l.b16 %v1146
        %v4620 = vunpack.c.h.b16 %v1146
        %v4621 = vunpack.c.l.b16 %v1147
        %v4622 = vunpack.c.h.b16 %v1147
        %v4623 = vunpack.c.l.b16 %v1148
        %v4624 = vunpack.c.h.b16 %v1148
        %v4625 = vunpack.c.l.b16 %v1149
        %v4626 = vunpack.c.h.b16 %v1149
        %v4627 = vunpack.c.l.b16 %v1150
        %v4628 = vunpack.c.h.b16 %v1150
        %v4629 = vunpack.c.l.b16 %v1151
        %v4630 = vunpack.c.h.b16 %v1151
        %v4631 = vunpack.c.l.b16 %v1152
        %v4632 = vunpack.c.h.b16 %v1152
        %v4633 = vunpack.c.l.b16 %v1153
        %v4634 = vunpack.c.h.b16 %v1153
        %v4635 = vunpack.c.l.b16 %v1154
        %v4636 = vunpack.c.h.b16 %v1154
        %v4637 = vunpack.c.l.b16 %v1155
        %v4638 = vunpack.c.h.b16 %v1155
        %v4639 = vunpack.c.l.b16 %v1156
        %v4640 = vunpack.c.h.b16 %v1156
        %v4641 = vunpack.c.l.b16 %v1157
        %v4642 = vunpack.c.h.b16 %v1157
        %v4643 = vunpack.c.l.b16 %v1158
        %v4644 = vunpack.c.h.b16 %v1158
        %v4645 = vunpack.c.l.b16 %v1159
        %v4646 = vunpack.c.h.b16 %v1159
        %v4647 = vunpack.c.l.b16 %v1160
        %v4648 = vunpack.c.h.b16 %v1160
        %v4649 = vunpack.c.l.b16 %v1161
        %v4650 = vunpack.c.h.b16 %v1161
        %v4651 = vunpack.c.l.b16 %v1162
        %v4652 = vunpack.c.h.b16 %v1162
        %v4653 = vunpack.c.l.b16 %v1163
        %v4654 = vunpack.c.h.b16 %v1163
        %v4655 = vunpack.c.l.b16 %v1164
        %v4656 = vunpack.c.h.b16 %v1164
        %v4657 = vunpack.c.l.b16 %v1165
        %v4658 = vunpack.c.h.b16 %v1165
        %v4659 = vunpack.c.l.b16 %v1166
        %v4660 = vunpack.c.h.b16 %v1166
        %v4661 = vunpack.c.l.b16 %v1167
        %v4662 = vunpack.c.h.b16 %v1167
        %v4663 = vunpack.c.l.b16 %v1168
        %v4664 = vunpack.c.h.b16 %v1168
        %v4665 = vunpack.c.l.b16 %v1169
        %v4666 = vunpack.c.h.b16 %v1169
        %v4667 = vunpack.c.l.b16 %v1170
        %v4668 = vunpack.c.h.b16 %v1170
        %v4669 = vunpack.c.l.b16 %v1171
        %v4670 = vunpack.c.h.b16 %v1171
        %v4671 = vunpack.c.l.b16 %v1172
        %v4672 = vunpack.c.h.b16 %v1172
        %v4673 = vunpack.c.l.b16 %v1173
        %v4674 = vunpack.c.h.b16 %v1173
        %v4675 = vunpack.c.l.b16 %v1174
        %v4676 = vunpack.c.h.b16 %v1174
        %v4677 = vunpack.c.l.b16 %v1175
        %v4678 = vunpack.c.h.b16 %v1175
        %v4679 = vunpack.c.l.b16 %v1176
        %v4680 = vunpack.c.h.b16 %v1176
        %v4681 = vunpack.c.l.b16 %v1177
        %v4682 = vunpack.c.h.b16 %v1177
        %v4683 = vunpack.c.l.b16 %v1178
        %v4684 = vunpack.c.h.b16 %v1178
        %v4685 = vunpack.c.l.b16 %v1179
        %v4686 = vunpack.c.h.b16 %v1179
        %v4687 = vunpack.c.l.b16 %v1180
        %v4688 = vunpack.c.h.b16 %v1180
        %v4689 = vunpack.c.l.b16 %v1181
        %v4690 = vunpack.c.h.b16 %v1181
        %v4691 = vunpack.c.l.b16 %v1182
        %v4692 = vunpack.c.h.b16 %v1182
        %v4693 = vunpack.c.l.b16 %v1183
        %v4694 = vunpack.c.h.b16 %v1183
        %v4695 = vunpack.c.l.b16 %v1184
        %v4696 = vunpack.c.h.b16 %v1184
        %v4697 = vunpack.c.l.b16 %v1185
        %v4698 = vunpack.c.h.b16 %v1185
        %v4699 = vunpack.c.l.b16 %v1186
        %v4700 = vunpack.c.h.b16 %v1186
        %v4701 = vunpack.c.l.b16 %v1187
        %v4702 = vunpack.c.h.b16 %v1187
        %v4703 = vunpack.c.l.b16 %v1188
        %v4704 = vunpack.c.h.b16 %v1188
        %v4705 = vunpack.c.l.b16 %v1189
        %v4706 = vunpack.c.h.b16 %v1189
        %v4707 = vunpack.c.l.b16 %v1190
        %v4708 = vunpack.c.h.b16 %v1190
        %v4709 = vunpack.c.l.b16 %v1191
        %v4710 = vunpack.c.h.b16 %v1191
        %v4711 = vunpack.c.l.b16 %v1192
        %v4712 = vunpack.c.h.b16 %v1192
        %v4713 = vunpack.c.l.b16 %v1193
        %v4714 = vunpack.c.h.b16 %v1193
        %v4715 = vunpack.c.l.b16 %v1194
        %v4716 = vunpack.c.h.b16 %v1194
        %v4717 = vunpack.c.l.b16 %v1195
        %v4718 = vunpack.c.h.b16 %v1195
        %v4719 = vunpack.c.l.b16 %v1196
        %v4720 = vunpack.c.h.b16 %v1196
        %v4721 = vunpack.c.l.b16 %v1197
        %v4722 = vunpack.c.h.b16 %v1197
        %v4723 = vunpack.c.l.b16 %v1198
        %v4724 = vunpack.c.h.b16 %v1198
        %v4725 = vunpack.c.l.b16 %v1199
        %v4726 = vunpack.c.h.b16 %v1199
        %v4727 = vunpack.c.l.b16 %v1200
        %v4728 = vunpack.c.h.b16 %v1200
        %v4729 = vunpack.c.l.b16 %v1201
        %v4730 = vunpack.c.h.b16 %v1201
        %v4731 = vunpack.c.l.b16 %v1202
        %v4732 = vunpack.c.h.b16 %v1202
        %v4733 = vunpack.c.l.b16 %v1203
        %v4734 = vunpack.c.h.b16 %v1203
        %v4735 = vunpack.c.l.b16 %v1204
        %v4736 = vunpack.c.h.b16 %v1204
        %v4737 = vunpack.c.l.b16 %v1205
        %v4738 = vunpack.c.h.b16 %v1205
        %v4739 = vunpack.c.l.b16 %v1206
        %v4740 = vunpack.c.h.b16 %v1206
        %v4741 = vunpack.c.l.b16 %v1207
        %v4742 = vunpack.c.h.b16 %v1207
        %v4743 = vunpack.c.l.b16 %v1208
        %v4744 = vunpack.c.h.b16 %v1208
        %v4745 = vunpack.c.l.b16 %v1209
        %v4746 = vunpack.c.h.b16 %v1209
        %v4747 = vunpack.c.l.b16 %v1210
        %v4748 = vunpack.c.h.b16 %v1210
        %v4749 = vunpack.c.l.b16 %v1211
        %v4750 = vunpack.c.h.b16 %v1211
        %v4751 = vunpack.c.l.b16 %v1212
        %v4752 = vunpack.c.h.b16 %v1212
        %v4753 = vunpack.c.l.b16 %v1213
        %v4754 = vunpack.c.h.b16 %v1213
        %v4755 = vunpack.c.l.b16 %v1214
        %v4756 = vunpack.c.h.b16 %v1214
        %v4757 = vunpack.c.l.b16 %v1215
        %v4758 = vunpack.c.h.b16 %v1215
        %v4759 = vunpack.c.l.b16 %v1216
        %v4760 = vunpack.c.h.b16 %v1216
        %v4761 = vunpack.c.l.b16 %v1217
        %v4762 = vunpack.c.h.b16 %v1217
        %v4763 = vunpack.c.l.b16 %v1218
        %v4764 = vunpack.c.h.b16 %v1218
        %v4765 = vunpack.c.l.b16 %v1219
        %v4766 = vunpack.c.h.b16 %v1219
        %v4767 = vunpack.c.l.b16 %v1220
        %v4768 = vunpack.c.h.b16 %v1220
        %v4769 = vunpack.c.l.b16 %v1221
        %v4770 = vunpack.c.h.b16 %v1221
        %v4771 = vunpack.c.l.b16 %v1222
        %v4772 = vunpack.c.h.b16 %v1222
        %v4773 = vunpack.c.l.b16 %v1223
        %v4774 = vunpack.c.h.b16 %v1223
        %v4775 = vunpack.c.l.b16 %v1224
        %v4776 = vunpack.c.h.b16 %v1224
        %v4777 = vunpack.c.l.b16 %v1225
        %v4778 = vunpack.c.h.b16 %v1225
        %v4779 = vunpack.c.l.b16 %v1226
        %v4780 = vunpack.c.h.b16 %v1226
        %v4781 = vunpack.c.l.b16 %v1227
        %v4782 = vunpack.c.h.b16 %v1227
        %v4783 = vunpack.c.l.b16 %v1228
        %v4784 = vunpack.c.h.b16 %v1228
        %v4785 = vunpack.c.l.b16 %v1229
        %v4786 = vunpack.c.h.b16 %v1229
        %v4787 = vunpack.c.l.b16 %v1230
        %v4788 = vunpack.c.h.b16 %v1230
        %v4789 = vunpack.c.l.b16 %v1231
        %v4790 = vunpack.c.h.b16 %v1231
        %v4791 = vunpack.c.l.b16 %v1232
        %v4792 = vunpack.c.h.b16 %v1232
        %v4793 = vunpack.c.l.b16 %v1233
        %v4794 = vunpack.c.h.b16 %v1233
        %v4795 = vunpack.c.l.b16 %v1234
        %v4796 = vunpack.c.h.b16 %v1234
        %v4797 = vunpack.c.l.b16 %v1235
        %v4798 = vunpack.c.h.b16 %v1235
        %v4799 = vunpack.c.l.b16 %v1236
        %v4800 = vunpack.c.h.b16 %v1236
        %v4801 = vunpack.c.l.b16 %v1237
        %v4802 = vunpack.c.h.b16 %v1237
        %v4803 = vunpack.c.l.b16 %v1238
        %v4804 = vunpack.c.h.b16 %v1238
        %v4805 = vunpack.c.l.b16 %v1239
        %v4806 = vunpack.c.h.b16 %v1239
        %v4807 = vunpack.c.l.b16 %v1240
        %v4808 = vunpack.c.h.b16 %v1240
        %v4809 = vunpack.c.l.b16 %v1241
        %v4810 = vunpack.c.h.b16 %v1241
        %v4811 = vunpack.c.l.b16 %v1242
        %v4812 = vunpack.c.h.b16 %v1242
        %v4813 = vunpack.c.l.b16 %v1243
        %v4814 = vunpack.c.h.b16 %v1243
        %v4815 = vunpack.c.l.b16 %v1244
        %v4816 = vunpack.c.h.b16 %v1244
        %v4817 = vunpack.c.l.b16 %v1245
        %v4818 = vunpack.c.h.b16 %v1245
        %v4819 = vunpack.c.l.b16 %v1246
        %v4820 = vunpack.c.h.b16 %v1246
        %v4821 = vunpack.c.l.b16 %v1247
        %v4822 = vunpack.c.h.b16 %v1247
        %v4823 = vunpack.c.l.b16 %v1248
        %v4824 = vunpack.c.h.b16 %v1248
        %v4825 = vunpack.c.l.b16 %v1249
        %v4826 = vunpack.c.h.b16 %v1249
        %v4827 = vunpack.c.l.b16 %v1250
        %v4828 = vunpack.c.h.b16 %v1250
        %v4829 = vunpack.c.l.b16 %v1251
        %v4830 = vunpack.c.h.b16 %v1251
        %v4831 = vunpack.c.l.b16 %v1252
        %v4832 = vunpack.c.h.b16 %v1252
        %v4833 = vunpack.c.l.b16 %v1253
        %v4834 = vunpack.c.h.b16 %v1253
        %v4835 = vunpack.c.l.b16 %v1254
        %v4836 = vunpack.c.h.b16 %v1254
        %v4837 = vunpack.c.l.b16 %v1255
        %v4838 = vunpack.c.h.b16 %v1255
        %v4839 = vunpack.c.l.b16 %v1256
        %v4840 = vunpack.c.h.b16 %v1256
        %v4841 = vunpack.c.l.b16 %v1257
        %v4842 = vunpack.c.h.b16 %v1257
        %v4843 = vunpack.c.l.b16 %v1258
        %v4844 = vunpack.c.h.b16 %v1258
        %v4845 = vunpack.c.l.b16 %v1259
        %v4846 = vunpack.c.h.b16 %v1259
        %v4847 = vunpack.c.l.b16 %v1260
        %v4848 = vunpack.c.h.b16 %v1260
        %v4849 = vunpack.c.l.b16 %v1261
        %v4850 = vunpack.c.h.b16 %v1261
        %v4851 = vunpack.c.l.b16 %v1262
        %v4852 = vunpack.c.h.b16 %v1262
        %v4853 = vunpack.c.l.b16 %v1263
        %v4854 = vunpack.c.h.b16 %v1263
        %v4855 = vunpack.c.l.b16 %v1264
        %v4856 = vunpack.c.h.b16 %v1264
        %v4857 = vunpack.c.l.b16 %v1265
        %v4858 = vunpack.c.h.b16 %v1265
        %v4859 = vunpack.c.l.b16 %v1266
        %v4860 = vunpack.c.h.b16 %v1266
        %v4861 = vunpack.c.l.b16 %v1267
        %v4862 = vunpack.c.h.b16 %v1267
        %v4863 = vunpack.c.l.b16 %v1268
        %v4864 = vunpack.c.h.b16 %v1268
        %v4865 = vunpack.c.l.b16 %v1269
        %v4866 = vunpack.c.h.b16 %v1269
        %v4867 = vunpack.c.l.b16 %v1270
        %v4868 = vunpack.c.h.b16 %v1270
        %v4869 = vunpack.c.l.b16 %v1271
        %v4870 = vunpack.c.h.b16 %v1271
        %v4871 = vunpack.c.l.b16 %v1272
        %v4872 = vunpack.c.h.b16 %v1272
        %v4873 = vunpack.c.l.b16 %v1273
        %v4874 = vunpack.c.h.b16 %v1273
        %v4875 = vunpack.c.l.b16 %v1274
        %v4876 = vunpack.c.h.b16 %v1274
        %v4877 = vunpack.c.l.b16 %v1275
        %v4878 = vunpack.c.h.b16 %v1275
        %v4879 = vunpack.c.l.b16 %v1276
        %v4880 = vunpack.c.h.b16 %v1276
        %v4881 = vunpack.c.l.b16 %v1277
        %v4882 = vunpack.c.h.b16 %v1277
        %v4883 = vunpack.c.l.b16 %v1278
        %v4884 = vunpack.c.h.b16 %v1278
        %v4885 = vunpack.c.l.b16 %v1279
        %v4886 = vunpack.c.h.b16 %v1279
        %v4887 = vunpack.c.l.b16 %v1280
        %v4888 = vunpack.c.h.b16 %v1280
        %v4889 = vunpack.c.l.b16 %v1281
        %v4890 = vunpack.c.h.b16 %v1281
        %v4891 = vunpack.c.l.b16 %v1282
        %v4892 = vunpack.c.h.b16 %v1282
        %v4893 = vunpack.c.l.b16 %v1283
        %v4894 = vunpack.c.h.b16 %v1283
        %v4895 = vunpack.c.l.b16 %v1284
        %v4896 = vunpack.c.h.b16 %v1284
        %v4897 = vunpack.c.l.b16 %v1285
        %v4898 = vunpack.c.h.b16 %v1285
        %v4899 = vunpack.c.l.b16 %v1286
        %v4900 = vunpack.c.h.b16 %v1286
        %v4901 = vunpack.c.l.b16 %v1287
        %v4902 = vunpack.c.h.b16 %v1287
        %v4903 = vunpack.c.l.b16 %v1288
        %v4904 = vunpack.c.h.b16 %v1288
        %v4905 = vunpack.c.l.b16 %v1289
        %v4906 = vunpack.c.h.b16 %v1289
        %v4907 = vunpack.c.l.b16 %v1290
        %v4908 = vunpack.c.h.b16 %v1290
        %v4909 = vunpack.c.l.b16 %v1291
        %v4910 = vunpack.c.h.b16 %v1291
        %v4911 = vunpack.c.l.b16 %v1292
        %v4912 = vunpack.c.h.b16 %v1292
        %v4913 = vunpack.c.l.b16 %v1293
        %v4914 = vunpack.c.h.b16 %v1293
        %v4915 = vunpack.c.l.b16 %v1294
        %v4916 = vunpack.c.h.b16 %v1294
        %v4917 = vunpack.c.l.b16 %v1295
        %v4918 = vunpack.c.h.b16 %v1295
        %v4919 = vunpack.c.l.b16 %v1296
        %v4920 = vunpack.c.h.b16 %v1296
        %v4921 = vunpack.c.l.b16 %v1297
        %v4922 = vunpack.c.h.b16 %v1297
        %v4923 = vunpack.c.l.b16 %v1298
        %v4924 = vunpack.c.h.b16 %v1298
        %v4925 = vunpack.c.l.b16 %v1299
        %v4926 = vunpack.c.h.b16 %v1299
        %v4927 = vunpack.c.l.b16 %v1300
        %v4928 = vunpack.c.h.b16 %v1300
        %v4929 = vunpack.c.l.b16 %v1301
        %v4930 = vunpack.c.h.b16 %v1301
        %v4931 = vunpack.c.l.b16 %v1302
        %v4932 = vunpack.c.h.b16 %v1302
        %v4933 = vunpack.c.l.b16 %v1303
        %v4934 = vunpack.c.h.b16 %v1303
        %v4935 = vunpack.c.l.b16 %v1304
        %v4936 = vunpack.c.h.b16 %v1304
        %v4937 = vunpack.c.l.b16 %v1305
        %v4938 = vunpack.c.h.b16 %v1305
        %v4939 = vunpack.c.l.b16 %v1306
        %v4940 = vunpack.c.h.b16 %v1306
        %v4941 = vunpack.c.l.b16 %v1307
        %v4942 = vunpack.c.h.b16 %v1307
        %v4943 = vunpack.c.l.b16 %v1308
        %v4944 = vunpack.c.h.b16 %v1308
        %v4945 = vunpack.c.l.b16 %v1309
        %v4946 = vunpack.c.h.b16 %v1309
        %v4947 = vunpack.c.l.b16 %v1310
        %v4948 = vunpack.c.h.b16 %v1310
        %v4949 = vunpack.c.l.b16 %v1311
        %v4950 = vunpack.c.h.b16 %v1311
        %v4951 = vunpack.c.l.b16 %v1312
        %v4952 = vunpack.c.h.b16 %v1312
        %v4953 = vunpack.c.l.b16 %v1313
        %v4954 = vunpack.c.h.b16 %v1313
        %v4955 = vunpack.c.l.b16 %v1314
        %v4956 = vunpack.c.h.b16 %v1314
        %v4957 = vunpack.c.l.b16 %v1315
        %v4958 = vunpack.c.h.b16 %v1315
        %v4959 = vunpack.c.l.b16 %v1316
        %v4960 = vunpack.c.h.b16 %v1316
        %v4961 = vunpack.c.l.b16 %v1317
        %v4962 = vunpack.c.h.b16 %v1317
        %v4963 = vunpack.c.l.b16 %v1318
        %v4964 = vunpack.c.h.b16 %v1318
        %v4965 = vunpack.c.l.b16 %v1319
        %v4966 = vunpack.c.h.b16 %v1319
        %v4967 = vunpack.c.l.b16 %v1320
        %v4968 = vunpack.c.h.b16 %v1320
        %v4969 = vunpack.c.l.b16 %v1321
        %v4970 = vunpack.c.h.b16 %v1321
        %v4971 = vunpack.c.l.b16 %v1322
        %v4972 = vunpack.c.h.b16 %v1322
        %v4973 = vunpack.c.l.b16 %v1323
        %v4974 = vunpack.c.h.b16 %v1323
        %v4975 = vunpack.c.l.b16 %v1324
        %v4976 = vunpack.c.h.b16 %v1324
        %v4977 = vunpack.c.l.b16 %v1325
        %v4978 = vunpack.c.h.b16 %v1325
        %v4979 = vunpack.c.l.b16 %v1326
        %v4980 = vunpack.c.h.b16 %v1326
        %v4981 = vunpack.c.l.b16 %v1327
        %v4982 = vunpack.c.h.b16 %v1327
        %v4983 = vunpack.c.l.b16 %v1328
        %v4984 = vunpack.c.h.b16 %v1328
        %v4985 = vunpack.c.l.b16 %v1329
        %v4986 = vunpack.c.h.b16 %v1329
        %v4987 = vunpack.c.l.b16 %v1330
        %v4988 = vunpack.c.h.b16 %v1330
        %v4989 = vunpack.c.l.b16 %v1331
        %v4990 = vunpack.c.h.b16 %v1331
        %v4991 = vunpack.c.l.b16 %v1332
        %v4992 = vunpack.c.h.b16 %v1332
        %v4993 = vunpack.c.l.b16 %v1333
        %v4994 = vunpack.c.h.b16 %v1333
        %v4995 = vunpack.c.l.b16 %v1334
        %v4996 = vunpack.c.h.b16 %v1334
        %v4997 = vunpack.c.l.b16 %v1335
        %v4998 = vunpack.c.h.b16 %v1335
        %v4999 = vunpack.c.l.b16 %v1336
        %v5000 = vunpack.c.h.b16 %v1336
        %v5001 = vunpack.c.l.b16 %v1337
        %v5002 = vunpack.c.h.b16 %v1337
        %v5003 = vunpack.c.l.b16 %v1338
        %v5004 = vunpack.c.h.b16 %v1338
        %v5005 = vunpack.c.l.b16 %v1339
        %v5006 = vunpack.c.h.b16 %v1339
        %v5007 = vunpack.c.l.b16 %v1340
        %v5008 = vunpack.c.h.b16 %v1340
        %v5009 = vunpack.c.l.b16 %v1341
        %v5010 = vunpack.c.h.b16 %v1341
        %v5011 = vunpack.c.l.b16 %v1342
        %v5012 = vunpack.c.h.b16 %v1342
        %v5013 = vunpack.c.l.b16 %v1343
        %v5014 = vunpack.c.h.b16 %v1343
        %v5015 = vunpack.c.l.b16 %v1344
        %v5016 = vunpack.c.h.b16 %v1344
        %v5017 = vunpack.c.l.b16 %v1345
        %v5018 = vunpack.c.h.b16 %v1345
        %v5019 = vunpack.c.l.b16 %v1346
        %v5020 = vunpack.c.h.b16 %v1346
        %v5021 = vunpack.c.l.b16 %v1347
        %v5022 = vunpack.c.h.b16 %v1347
        %v5023 = vunpack.c.l.b16 %v1348
        %v5024 = vunpack.c.h.b16 %v1348
        %v5025 = vunpack.c.l.b16 %v1349
        %v5026 = vunpack.c.h.b16 %v1349
        %v5027 = vunpack.c.l.b16 %v1350
        %v5028 = vunpack.c.h.b16 %v1350
        %v5029 = vunpack.c.l.b16 %v1351
        %v5030 = vunpack.c.h.b16 %v1351
        %v5031 = vunpack.c.l.b16 %v1352
        %v5032 = vunpack.c.h.b16 %v1352
        %v5033 = vunpack.c.l.b16 %v1353
        %v5034 = vunpack.c.h.b16 %v1353
        %v5035 = vunpack.c.l.b16 %v1354
        %v5036 = vunpack.c.h.b16 %v1354
        %v5037 = vunpack.c.l.b16 %v1355
        %v5038 = vunpack.c.h.b16 %v1355
        %v5039 = vunpack.c.l.b16 %v1356
        %v5040 = vunpack.c.h.b16 %v1356
        %v5041 = vunpack.c.l.b16 %v1357
        %v5042 = vunpack.c.h.b16 %v1357
        %v5043 = vunpack.c.l.b16 %v1358
        %v5044 = vunpack.c.h.b16 %v1358
        %v5045 = vunpack.c.l.b16 %v1359
        %v5046 = vunpack.c.h.b16 %v1359
        %v5047 = vunpack.c.l.b16 %v1360
        %v5048 = vunpack.c.h.b16 %v1360
        %v5049 = vunpack.c.l.b16 %v1361
        %v5050 = vunpack.c.h.b16 %v1361
        %v5051 = vunpack.c.l.b16 %v1362
        %v5052 = vunpack.c.h.b16 %v1362
        %v5053 = vunpack.c.l.b16 %v1363
        %v5054 = vunpack.c.h.b16 %v1363
        %v5055 = vunpack.c.l.b16 %v1364
        %v5056 = vunpack.c.h.b16 %v1364
        %v5057 = vunpack.c.l.b16 %v1365
        %v5058 = vunpack.c.h.b16 %v1365
        %v5059 = vunpack.c.l.b16 %v1366
        %v5060 = vunpack.c.h.b16 %v1366
        %v5061 = vunpack.c.l.b16 %v1367
        %v5062 = vunpack.c.h.b16 %v1367
        %v5063 = vunpack.c.l.b16 %v1368
        %v5064 = vunpack.c.h.b16 %v1368
        %v5065 = vunpack.c.l.b16 %v1369
        %v5066 = vunpack.c.h.b16 %v1369
        %v5067 = vunpack.c.l.b16 %v1370
        %v5068 = vunpack.c.h.b16 %v1370
        %v5069 = vunpack.c.l.b16 %v1371
        %v5070 = vunpack.c.h.b16 %v1371
        %v5071 = vunpack.c.l.b16 %v1372
        %v5072 = vunpack.c.h.b16 %v1372
        %v5073 = vunpack.c.l.b16 %v1373
        %v5074 = vunpack.c.h.b16 %v1373
        %v5075 = vunpack.c.l.b16 %v1374
        %v5076 = vunpack.c.h.b16 %v1374
        %v5077 = vunpack.c.l.b16 %v1375
        %v5078 = vunpack.c.h.b16 %v1375
        %v5079 = vunpack.c.l.b16 %v1376
        %v5080 = vunpack.c.h.b16 %v1376
        %v5081 = vunpack.c.l.b16 %v1377
        %v5082 = vunpack.c.h.b16 %v1377
        %v5083 = vunpack.c.l.b16 %v1378
        %v5084 = vunpack.c.h.b16 %v1378
        %v5085 = vunpack.c.l.b16 %v1379
        %v5086 = vunpack.c.h.b16 %v1379
        %v5087 = vunpack.c.l.b16 %v1380
        %v5088 = vunpack.c.h.b16 %v1380
        %v5089 = vunpack.c.l.b16 %v1381
        %v5090 = vunpack.c.h.b16 %v1381
        %v5091 = vunpack.c.l.b16 %v1382
        %v5092 = vunpack.c.h.b16 %v1382
        %v5093 = vunpack.c.l.b16 %v1383
        %v5094 = vunpack.c.h.b16 %v1383
        %v5095 = vunpack.c.l.b16 %v1384
        %v5096 = vunpack.c.h.b16 %v1384
        %v5097 = vunpack.c.l.b16 %v1385
        %v5098 = vunpack.c.h.b16 %v1385
        %v5099 = vunpack.c.l.b16 %v1386
        %v5100 = vunpack.c.h.b16 %v1386
        %v5101 = vunpack.c.l.b16 %v1387
        %v5102 = vunpack.c.h.b16 %v1387
        %v5103 = vunpack.c.l.b16 %v1388
        %v5104 = vunpack.c.h.b16 %v1388
        %v5105 = vunpack.c.l.b16 %v1389
        %v5106 = vunpack.c.h.b16 %v1389
        %v5107 = vunpack.c.l.b16 %v1390
        %v5108 = vunpack.c.h.b16 %v1390
        %v5109 = vunpack.c.l.b16 %v1391
        %v5110 = vunpack.c.h.b16 %v1391
        %v5111 = vunpack.c.l.b16 %v1392
        %v5112 = vunpack.c.h.b16 %v1392
        %v5113 = vunpack.c.l.b16 %v1393
        %v5114 = vunpack.c.h.b16 %v1393
        %v5115 = vunpack.c.l.b16 %v1394
        %v5116 = vunpack.c.h.b16 %v1394
        %v5117 = vunpack.c.l.b16 %v1395
        %v5118 = vunpack.c.h.b16 %v1395
        %v5119 = vunpack.c.l.b16 %v1396
        %v5120 = vunpack.c.h.b16 %v1396
        %v5121 = vunpack.c.l.b16 %v1397
        %v5122 = vunpack.c.h.b16 %v1397
        %v5123 = vunpack.c.l.b16 %v1398
        %v5124 = vunpack.c.h.b16 %v1398
        %v5125 = vunpack.c.l.b16 %v1399
        %v5126 = vunpack.c.h.b16 %v1399
        %v5127 = vunpack.c.l.b16 %v1400
        %v5128 = vunpack.c.h.b16 %v1400
        %v5129 = vunpack.c.l.b16 %v1401
        %v5130 = vunpack.c.h.b16 %v1401
        %v5131 = vunpack.c.l.b16 %v1402
        %v5132 = vunpack.c.h.b16 %v1402
        %v5133 = vunpack.c.l.b16 %v1403
        %v5134 = vunpack.c.h.b16 %v1403
        %v5135 = vunpack.c.l.b16 %v1404
        %v5136 = vunpack.c.h.b16 %v1404
        %v5137 = vunpack.c.l.b16 %v1405
        %v5138 = vunpack.c.h.b16 %v1405
        %v5139 = vunpack.c.l.b16 %v1406
        %v5140 = vunpack.c.h.b16 %v1406
        %v5141 = vunpack.c.l.b16 %v1407
        %v5142 = vunpack.c.h.b16 %v1407
        %v5143 = vunpack.c.l.b16 %v1408
        %v5144 = vunpack.c.h.b16 %v1408
        %v5145 = vunpack.c.l.b16 %v1409
        %v5146 = vunpack.c.h.b16 %v1409
        %v5147 = vunpack.c.l.b16 %v1410
        %v5148 = vunpack.c.h.b16 %v1410
        %v5149 = vunpack.c.l.b16 %v1411
        %v5150 = vunpack.c.h.b16 %v1411
        %v5151 = vunpack.c.l.b16 %v1412
        %v5152 = vunpack.c.h.b16 %v1412
        %v5153 = vunpack.c.l.b16 %v1413
        %v5154 = vunpack.c.h.b16 %v1413
        %v5155 = vunpack.c.l.b16 %v1414
        %v5156 = vunpack.c.h.b16 %v1414
        %v5157 = vunpack.c.l.b16 %v1415
        %v5158 = vunpack.c.h.b16 %v1415
        %v5159 = vunpack.c.l.b16 %v1416
        %v5160 = vunpack.c.h.b16 %v1416
        %v5161 = vunpack.c.l.b16 %v1417
        %v5162 = vunpack.c.h.b16 %v1417
        %v5163 = vunpack.c.l.b16 %v1418
        %v5164 = vunpack.c.h.b16 %v1418
        %v5165 = vunpack.c.l.b16 %v1419
        %v5166 = vunpack.c.h.b16 %v1419
        %v5167 = vunpack.c.l.b16 %v1420
        %v5168 = vunpack.c.h.b16 %v1420
        %v5169 = vunpack.c.l.b16 %v1421
        %v5170 = vunpack.c.h.b16 %v1421
        %v5171 = vunpack.c.l.b16 %v1422
        %v5172 = vunpack.c.h.b16 %v1422
        %v5173 = vunpack.c.l.b16 %v1423
        %v5174 = vunpack.c.h.b16 %v1423
        %v5175 = vunpack.c.l.b16 %v1424
        %v5176 = vunpack.c.h.b16 %v1424
        %v5177 = vunpack.c.l.b16 %v1425
        %v5178 = vunpack.c.h.b16 %v1425
        %v5179 = vunpack.c.l.b16 %v1426
        %v5180 = vunpack.c.h.b16 %v1426
        %v5181 = vunpack.c.l.b16 %v1427
        %v5182 = vunpack.c.h.b16 %v1427
        %v5183 = vunpack.c.l.b16 %v1428
        %v5184 = vunpack.c.h.b16 %v1428
        %v5185 = vunpack.c.l.b16 %v1429
        %v5186 = vunpack.c.h.b16 %v1429
        %v5187 = vunpack.c.l.b16 %v1430
        %v5188 = vunpack.c.h.b16 %v1430
        %v5189 = vunpack.c.l.b16 %v1431
        %v5190 = vunpack.c.h.b16 %v1431
        %v5191 = vunpack.c.l.b16 %v1432
        %v5192 = vunpack.c.h.b16 %v1432
        %v5193 = vunpack.c.l.b16 %v1433
        %v5194 = vunpack.c.h.b16 %v1433
        %v5195 = vunpack.c.l.b16 %v1434
        %v5196 = vunpack.c.h.b16 %v1434
        %v5197 = vunpack.c.l.b16 %v1435
        %v5198 = vunpack.c.h.b16 %v1435
        %v5199 = vunpack.c.l.b16 %v1436
        %v5200 = vunpack.c.h.b16 %v1436
        %v5201 = vunpack.c.l.b16 %v1437
        %v5202 = vunpack.c.h.b16 %v1437
        %v5203 = vunpack.c.l.b16 %v1438
        %v5204 = vunpack.c.h.b16 %v1438
        %v5205 = vunpack.c.l.b16 %v1439
        %v5206 = vunpack.c.h.b16 %v1439
        %v5207 = vunpack.c.l.b16 %v1440
        %v5208 = vunpack.c.h.b16 %v1440
        %v5209 = vunpack.c.l.b16 %v1441
        %v5210 = vunpack.c.h.b16 %v1441
        %v5211 = vunpack.c.l.b16 %v1442
        %v5212 = vunpack.c.h.b16 %v1442
        %v5213 = vunpack.c.l.b16 %v1443
        %v5214 = vunpack.c.h.b16 %v1443
        %v5215 = vunpack.c.l.b16 %v1444
        %v5216 = vunpack.c.h.b16 %v1444
        %v5217 = vunpack.c.l.b16 %v1445
        %v5218 = vunpack.c.h.b16 %v1445
        %v5219 = vunpack.c.l.b16 %v1446
        %v5220 = vunpack.c.h.b16 %v1446
        %v5221 = vunpack.c.l.b16 %v1447
        %v5222 = vunpack.c.h.b16 %v1447
        %v5223 = vunpack.c.l.b16 %v1448
        %v5224 = vunpack.c.h.b16 %v1448
        %v5225 = vunpack.c.l.b16 %v1449
        %v5226 = vunpack.c.h.b16 %v1449
        %v5227 = vunpack.c.l.b16 %v1450
        %v5228 = vunpack.c.h.b16 %v1450
        %v5229 = vunpack.c.l.b16 %v1451
        %v5230 = vunpack.c.h.b16 %v1451
        %v5231 = vunpack.c.l.b16 %v1452
        %v5232 = vunpack.c.h.b16 %v1452
        %v5233 = vunpack.c.l.b16 %v1453
        %v5234 = vunpack.c.h.b16 %v1453
        %v5235 = vunpack.c.l.b16 %v1454
        %v5236 = vunpack.c.h.b16 %v1454
        %v5237 = vunpack.c.l.b16 %v1455
        %v5238 = vunpack.c.h.b16 %v1455
        %v5239 = vunpack.c.l.b16 %v1456
        %v5240 = vunpack.c.h.b16 %v1456
        %v5241 = vunpack.c.l.b16 %v1457
        %v5242 = vunpack.c.h.b16 %v1457
        %v5243 = vunpack.c.l.b16 %v1458
        %v5244 = vunpack.c.h.b16 %v1458
        %v5245 = vunpack.c.l.b16 %v1459
        %v5246 = vunpack.c.h.b16 %v1459
        %v5247 = vunpack.c.l.b16 %v1460
        %v5248 = vunpack.c.h.b16 %v1460
        %v5249 = vunpack.c.l.b16 %v1461
        %v5250 = vunpack.c.h.b16 %v1461
        %v5251 = vunpack.c.l.b16 %v1462
        %v5252 = vunpack.c.h.b16 %v1462
        %v5253 = vunpack.c.l.b16 %v1463
        %v5254 = vunpack.c.h.b16 %v1463
        %v5255 = vunpack.c.l.b16 %v1464
        %v5256 = vunpack.c.h.b16 %v1464
        %v5257 = vunpack.c.l.b16 %v1465
        %v5258 = vunpack.c.h.b16 %v1465
        %v5259 = vunpack.c.l.b16 %v1466
        %v5260 = vunpack.c.h.b16 %v1466
        %v5261 = vunpack.c.l.b16 %v1467
        %v5262 = vunpack.c.h.b16 %v1467
        %v5263 = vunpack.c.l.b16 %v1468
        %v5264 = vunpack.c.h.b16 %v1468
        %v5265 = vunpack.c.l.b16 %v1469
        %v5266 = vunpack.c.h.b16 %v1469
        %v5267 = vunpack.c.l.b16 %v1470
        %v5268 = vunpack.c.h.b16 %v1470
        %v5269 = vunpack.c.l.b16 %v1471
        %v5270 = vunpack.c.h.b16 %v1471
        %v5271 = vunpack.c.l.b16 %v1472
        %v5272 = vunpack.c.h.b16 %v1472
        %v5273 = vunpack.c.l.b16 %v1473
        %v5274 = vunpack.c.h.b16 %v1473
        %v5275 = vunpack.c.l.b16 %v1474
        %v5276 = vunpack.c.h.b16 %v1474
        %v5277 = vunpack.c.l.b16 %v1475
        %v5278 = vunpack.c.h.b16 %v1475
        %v5279 = vunpack.c.l.b16 %v1476
        %v5280 = vunpack.c.h.b16 %v1476
        %v5281 = vunpack.c.l.b16 %v1477
        %v5282 = vunpack.c.h.b16 %v1477
        %v5283 = vunpack.c.l.b16 %v1478
        %v5284 = vunpack.c.h.b16 %v1478
        %v5285 = vunpack.c.l.b16 %v1479
        %v5286 = vunpack.c.h.b16 %v1479
        %v5287 = vunpack.c.l.b16 %v1480
        %v5288 = vunpack.c.h.b16 %v1480
        %v5289 = vunpack.c.l.b16 %v1481
        %v5290 = vunpack.c.h.b16 %v1481
        %v5291 = vunpack.c.l.b16 %v1482
        %v5292 = vunpack.c.h.b16 %v1482
        %v5293 = vunpack.c.l.b16 %v1483
        %v5294 = vunpack.c.h.b16 %v1483
        %v5295 = vunpack.c.l.b16 %v1484
        %v5296 = vunpack.c.h.b16 %v1484
        %v5297 = vunpack.c.l.b16 %v1485
        %v5298 = vunpack.c.h.b16 %v1485
        %v5299 = vunpack.c.l.b16 %v1486
        %v5300 = vunpack.c.h.b16 %v1486
        %v5301 = vunpack.c.l.b16 %v1487
        %v5302 = vunpack.c.h.b16 %v1487
        %v5303 = vunpack.c.l.b16 %v1488
        %v5304 = vunpack.c.h.b16 %v1488
        %v5305 = vunpack.c.l.b16 %v1489
        %v5306 = vunpack.c.h.b16 %v1489
        %v5307 = vunpack.c.l.b16 %v1490
        %v5308 = vunpack.c.h.b16 %v1490
        %v5309 = vunpack.c.l.b16 %v1491
        %v5310 = vunpack.c.h.b16 %v1491
        %v5311 = vunpack.c.l.b16 %v1492
        %v5312 = vunpack.c.h.b16 %v1492
        %v5313 = vunpack.c.l.b16 %v1493
        %v5314 = vunpack.c.h.b16 %v1493
        %v5315 = vunpack.c.l.b16 %v1494
        %v5316 = vunpack.c.h.b16 %v1494
        %v5317 = vunpack.c.l.b16 %v1495
        %v5318 = vunpack.c.h.b16 %v1495
        %v5319 = vunpack.c.l.b16 %v1496
        %v5320 = vunpack.c.h.b16 %v1496
        %v5321 = vunpack.c.l.b16 %v1497
        %v5322 = vunpack.c.h.b16 %v1497
        %v5323 = vunpack.c.l.b16 %v1498
        %v5324 = vunpack.c.h.b16 %v1498
        %v5325 = vunpack.c.l.b16 %v1499
        %v5326 = vunpack.c.h.b16 %v1499
        %v5327 = vunpack.c.l.b16 %v1500
        %v5328 = vunpack.c.h.b16 %v1500
        %v5329 = vunpack.c.l.b16 %v1501
        %v5330 = vunpack.c.h.b16 %v1501
        %v5331 = vunpack.c.l.b16 %v1502
        %v5332 = vunpack.c.h.b16 %v1502
        %v5333 = vunpack.c.l.b16 %v1503
        %v5334 = vunpack.c.h.b16 %v1503
        %v5335 = vunpack.c.l.b16 %v1504
        %v5336 = vunpack.c.h.b16 %v1504
        %v5337 = vunpack.c.l.b16 %v1505
        %v5338 = vunpack.c.h.b16 %v1505
        %v5339 = vunpack.c.l.b16 %v1506
        %v5340 = vunpack.c.h.b16 %v1506
        %v5341 = vunpack.c.l.b16 %v1507
        %v5342 = vunpack.c.h.b16 %v1507
        %v5343 = vunpack.c.l.b16 %v1508
        %v5344 = vunpack.c.h.b16 %v1508
        %v5345 = vunpack.c.l.b16 %v1509
        %v5346 = vunpack.c.h.b16 %v1509
        %v5347 = vunpack.c.l.b16 %v1510
        %v5348 = vunpack.c.h.b16 %v1510
        %v5349 = vunpack.c.l.b16 %v1511
        %v5350 = vunpack.c.h.b16 %v1511
        %v5351 = vunpack.c.l.b16 %v1512
        %v5352 = vunpack.c.h.b16 %v1512
        %v5353 = vunpack.c.l.b16 %v1513
        %v5354 = vunpack.c.h.b16 %v1513
        %v5355 = vunpack.c.l.b16 %v1514
        %v5356 = vunpack.c.h.b16 %v1514
        %v5357 = vunpack.c.l.b16 %v1515
        %v5358 = vunpack.c.h.b16 %v1515
        %v5359 = vunpack.c.l.b16 %v1516
        %v5360 = vunpack.c.h.b16 %v1516
        %v5361 = vunpack.c.l.b16 %v1517
        %v5362 = vunpack.c.h.b16 %v1517
        %v5363 = vunpack.c.l.b16 %v1518
        %v5364 = vunpack.c.h.b16 %v1518
        %v5365 = vunpack.c.l.b16 %v1519
        %v5366 = vunpack.c.h.b16 %v1519
        %v5367 = vunpack.c.l.b16 %v1520
        %v5368 = vunpack.c.h.b16 %v1520
        %v5369 = vunpack.c.l.b16 %v1521
        %v5370 = vunpack.c.h.b16 %v1521
        %v5371 = vunpack.c.l.b16 %v1522
        %v5372 = vunpack.c.h.b16 %v1522
        %v5373 = vunpack.c.l.b16 %v1523
        %v5374 = vunpack.c.h.b16 %v1523
        %v5375 = vunpack.c.l.b16 %v1524
        %v5376 = vunpack.c.h.b16 %v1524
        %v5377 = vunpack.c.l.b16 %v1525
        %v5378 = vunpack.c.h.b16 %v1525
        %v5379 = vunpack.c.l.b16 %v1526
        %v5380 = vunpack.c.h.b16 %v1526
        %v5381 = vunpack.c.l.b16 %v1527
        %v5382 = vunpack.c.h.b16 %v1527
        %v5383 = vunpack.c.l.b16 %v1528
        %v5384 = vunpack.c.h.b16 %v1528
        %v5385 = vunpack.c.l.b16 %v1529
        %v5386 = vunpack.c.h.b16 %v1529
        %v5387 = vunpack.c.l.b16 %v1530
        %v5388 = vunpack.c.h.b16 %v1530
        %v5389 = vunpack.c.l.b16 %v1531
        %v5390 = vunpack.c.h.b16 %v1531
        %v5391 = vunpack.c.l.b16 %v1532
        %v5392 = vunpack.c.h.b16 %v1532
        %v5393 = vunpack.c.l.b16 %v1533
        %v5394 = vunpack.c.h.b16 %v1533
        %v5395 = vunpack.c.l.b16 %v1534
        %v5396 = vunpack.c.h.b16 %v1534
        %v5397 = vunpack.c.l.b16 %v1535
        %v5398 = vunpack.c.h.b16 %v1535
        %v5399 = vunpack.c.l.b16 %v1536
        %v5400 = vunpack.c.h.b16 %v1536
        %v5401 = vunpack.c.l.b16 %v1537
        %v5402 = vunpack.c.h.b16 %v1537
        %v5403 = vunpack.c.l.b16 %v1538
        %v5404 = vunpack.c.h.b16 %v1538
        %v5405 = vunpack.c.l.b16 %v1539
        %v5406 = vunpack.c.h.b16 %v1539
        %v5407 = vunpack.c.l.b16 %v1540
        %v5408 = vunpack.c.h.b16 %v1540
        %v5409 = vunpack.c.l.b16 %v1541
        %v5410 = vunpack.c.h.b16 %v1541
        %v5411 = vunpack.c.l.b16 %v1542
        %v5412 = vunpack.c.h.b16 %v1542
        %v5413 = vunpack.c.l.b16 %v1543
        %v5414 = vunpack.c.h.b16 %v1543
        %v5415 = vunpack.c.l.b16 %v1544
        %v5416 = vunpack.c.h.b16 %v1544
        %v5417 = vunpack.c.l.b16 %v1545
        %v5418 = vunpack.c.h.b16 %v1545
        %v5419 = vunpack.c.l.b16 %v1546
        %v5420 = vunpack.c.h.b16 %v1546
        %v5421 = vunpack.c.l.b16 %v1547
        %v5422 = vunpack.c.h.b16 %v1547
        %v5423 = vunpack.c.l.b16 %v1548
        %v5424 = vunpack.c.h.b16 %v1548
        %v5425 = vunpack.c.l.b16 %v1549
        %v5426 = vunpack.c.h.b16 %v1549
        %v5427 = vunpack.c.l.b16 %v1550
        %v5428 = vunpack.c.h.b16 %v1550
        %v5429 = vunpack.c.l.b16 %v1551
        %v5430 = vunpack.c.h.b16 %v1551
        %v5431 = vunpack.c.l.b16 %v1552
        %v5432 = vunpack.c.h.b16 %v1552
        %v5433 = vunpack.c.l.b16 %v1553
        %v5434 = vunpack.c.h.b16 %v1553
        %v5435 = vunpack.c.l.b16 %v1554
        %v5436 = vunpack.c.h.b16 %v1554
        %v5437 = vunpack.c.l.b16 %v1555
        %v5438 = vunpack.c.h.b16 %v1555
        %v5439 = vunpack.c.l.b16 %v1556
        %v5440 = vunpack.c.h.b16 %v1556
        %v5441 = vunpack.c.l.b16 %v1557
        %v5442 = vunpack.c.h.b16 %v1557
        %v5443 = vunpack.c.l.b16 %v1558
        %v5444 = vunpack.c.h.b16 %v1558
        %v5445 = vunpack.c.l.b16 %v1559
        %v5446 = vunpack.c.h.b16 %v1559
        %v5447 = vunpack.c.l.b16 %v1560
        %v5448 = vunpack.c.h.b16 %v1560
        %v5449 = vunpack.c.l.b16 %v1561
        %v5450 = vunpack.c.h.b16 %v1561
        %v5451 = vunpack.c.l.b16 %v1562
        %v5452 = vunpack.c.h.b16 %v1562
        %v5453 = vunpack.c.l.b16 %v1563
        %v5454 = vunpack.c.h.b16 %v1563
        %v5455 = vunpack.c.l.b16 %v1564
        %v5456 = vunpack.c.h.b16 %v1564
        %v5457 = vunpack.c.l.b16 %v1565
        %v5458 = vunpack.c.h.b16 %v1565
        %v5459 = vunpack.c.l.b16 %v1566
        %v5460 = vunpack.c.h.b16 %v1566
        %v5461 = vunpack.c.l.b16 %v1567
        %v5462 = vunpack.c.h.b16 %v1567
        %v5463 = vunpack.c.l.b16 %v1568
        %v5464 = vunpack.c.h.b16 %v1568
        %v5465 = vunpack.c.l.b16 %v1569
        %v5466 = vunpack.c.h.b16 %v1569
        %v5467 = vunpack.c.l.b16 %v1570
        %v5468 = vunpack.c.h.b16 %v1570
        %v5469 = vunpack.c.l.b16 %v1571
        %v5470 = vunpack.c.h.b16 %v1571
        %v5471 = vunpack.c.l.b16 %v1572
        %v5472 = vunpack.c.h.b16 %v1572
        %v5473 = vunpack.c.l.b16 %v1573
        %v5474 = vunpack.c.h.b16 %v1573
        %v5475 = vunpack.c.l.b16 %v1574
        %v5476 = vunpack.c.h.b16 %v1574
        %v5477 = vunpack.c.l.b16 %v1575
        %v5478 = vunpack.c.h.b16 %v1575
        %v5479 = vunpack.c.l.b16 %v1576
        %v5480 = vunpack.c.h.b16 %v1576
        %v5481 = vunpack.c.l.b16 %v1577
        %v5482 = vunpack.c.h.b16 %v1577
        %v5483 = vunpack.c.l.b16 %v1578
        %v5484 = vunpack.c.h.b16 %v1578
        %v5485 = vunpack.c.l.b16 %v1579
        %v5486 = vunpack.c.h.b16 %v1579
        %v5487 = vunpack.c.l.b16 %v1580
        %v5488 = vunpack.c.h.b16 %v1580
        %v5489 = vunpack.c.l.b16 %v1581
        %v5490 = vunpack.c.h.b16 %v1581
        %v5491 = vunpack.c.l.b16 %v1582
        %v5492 = vunpack.c.h.b16 %v1582
        %v5493 = vunpack.c.l.b16 %v1583
        %v5494 = vunpack.c.h.b16 %v1583
        %v5495 = vunpack.c.l.b16 %v1584
        %v5496 = vunpack.c.h.b16 %v1584
        %v5497 = vunpack.c.l.b16 %v1585
        %v5498 = vunpack.c.h.b16 %v1585
        %v5499 = vunpack.c.l.b16 %v1586
        %v5500 = vunpack.c.h.b16 %v1586
        %v5501 = vunpack.c.l.b16 %v1587
        %v5502 = vunpack.c.h.b16 %v1587
        %v5503 = vunpack.c.l.b16 %v1588
        %v5504 = vunpack.c.h.b16 %v1588
        %v5505 = vunpack.c.l.b16 %v1589
        %v5506 = vunpack.c.h.b16 %v1589
        %v5507 = vunpack.c.l.b16 %v1590
        %v5508 = vunpack.c.h.b16 %v1590
        %v5509 = vunpack.c.l.b16 %v1591
        %v5510 = vunpack.c.h.b16 %v1591
        %v5511 = vunpack.c.l.b16 %v1592
        %v5512 = vunpack.c.h.b16 %v1592
        %v5513 = vunpack.c.l.b16 %v1593
        %v5514 = vunpack.c.h.b16 %v1593
        %v5515 = vunpack.c.l.b16 %v1594
        %v5516 = vunpack.c.h.b16 %v1594
        %v5517 = vunpack.c.l.b16 %v1595
        %v5518 = vunpack.c.h.b16 %v1595
        %v5519 = vunpack.c.l.b16 %v1596
        %v5520 = vunpack.c.h.b16 %v1596
        %v5521 = vunpack.c.l.b16 %v1597
        %v5522 = vunpack.c.h.b16 %v1597
        %v5523 = vunpack.c.l.b16 %v1598
        %v5524 = vunpack.c.h.b16 %v1598
        %v5525 = vunpack.c.l.b16 %v1599
        %v5526 = vunpack.c.h.b16 %v1599
        %v5527 = vunpack.c.l.b16 %v1600
        %v5528 = vunpack.c.h.b16 %v1600
        %v5529 = vunpack.c.l.b16 %v1601
        %v5530 = vunpack.c.h.b16 %v1601
        %v5531 = vunpack.c.l.b16 %v1602
        %v5532 = vunpack.c.h.b16 %v1602
        %v5533 = vunpack.c.l.b16 %v1603
        %v5534 = vunpack.c.h.b16 %v1603
        %v5535 = vunpack.c.l.b16 %v1604
        %v5536 = vunpack.c.h.b16 %v1604
        %v5537 = vunpack.c.l.b16 %v1605
        %v5538 = vunpack.c.h.b16 %v1605
        %v5539 = vunpack.c.l.b16 %v1606
        %v5540 = vunpack.c.h.b16 %v1606
        %v5541 = vunpack.c.l.b16 %v1607
        %v5542 = vunpack.c.h.b16 %v1607
        %v5543 = vunpack.c.l.b16 %v1608
        %v5544 = vunpack.c.h.b16 %v1608
        %v5545 = vunpack.c.l.b16 %v1609
        %v5546 = vunpack.c.h.b16 %v1609
        %v5547 = vunpack.c.l.b16 %v1610
        %v5548 = vunpack.c.h.b16 %v1610
        %v5549 = vunpack.c.l.b16 %v1611
        %v5550 = vunpack.c.h.b16 %v1611
        %v5551 = vunpack.c.l.b16 %v1612
        %v5552 = vunpack.c.h.b16 %v1612
        %v5553 = vpack.c.b16 %v3001, %v2993
        %v5554 = vpack.c.b16 %v3002, %v2994
        %v5555 = vpack.c.b16 %v3003, %v2995
        %v5556 = vpack.c.b16 %v3004, %v2996
        %v5557 = vpack.c.b16 %v3005, %v2997
        %v5558 = vpack.c.b16 %v3006, %v2998
        %v5559 = vpack.c.b16 %v3007, %v2999
        %v5560 = vpack.c.b16 %v3008, %v3000
        %v5561 = vpack.c.b16 %v3017, %v3009
        %v5562 = vpack.c.b16 %v3018, %v3010
        %v5563 = vpack.c.b16 %v3019, %v3011
        %v5564 = vpack.c.b16 %v3020, %v3012
        %v5565 = vpack.c.b16 %v3021, %v3013
        %v5566 = vpack.c.b16 %v3022, %v3014
        %v5567 = vpack.c.b16 %v3023, %v3015
        %v5568 = vpack.c.b16 %v3024, %v3016
        %v5569 = vpack.c.b16 %v3033, %v3025
        %v5570 = vpack.c.b16 %v3034, %v3026
        %v5571 = vpack.c.b16 %v3035, %v3027
        %v5572 = vpack.c.b16 %v3036, %v3028
        %v5573 = vpack.c.b16 %v3037, %v3029
        %v5574 = vpack.c.b16 %v3038, %v3030
        %v5575 = vpack.c.b16 %v3039, %v3031
        %v5576 = vpack.c.b16 %v3040, %v3032
        %v5577 = vpack.c.b16 %v3049, %v3041
        %v5578 = vpack.c.b16 %v3050, %v3042
        %v5579 = vpack.c.b16 %v3051, %v3043
        %v5580 = vpack.c.b16 %v3052, %v3044
        %v5581 = vpack.c.b16 %v3053, %v3045
        %v5582 = vpack.c.b16 %v3054, %v3046
        %v5583 = vpack.c.b16 %v3055, %v3047
        %v5584 = vpack.c.b16 %v3056, %v3048
        %v5585 = vpack.c.b16 %v3065, %v3057
        %v5586 = vpack.c.b16 %v3066, %v3058
        %v5587 = vpack.c.b16 %v3067, %v3059
        %v5588 = vpack.c.b16 %v3068, %v3060
        %v5589 = vpack.c.b16 %v3069, %v3061
        %v5590 = vpack.c.b16 %v3070, %v3062
        %v5591 = vpack.c.b16 %v3071, %v3063
        %v5592 = vpack.c.b16 %v3072, %v3064
        %v5593 = vpack.c.b16 %v3081, %v3073
        %v5594 = vpack.c.b16 %v3082, %v3074
        %v5595 = vpack.c.b16 %v3083, %v3075
        %v5596 = vpack.c.b16 %v3084, %v3076
        %v5597 = vpack.c.b16 %v3085, %v3077
        %v5598 = vpack.c.b16 %v3086, %v3078
        %v5599 = vpack.c.b16 %v3087, %v3079
        %v5600 = vpack.c.b16 %v3088, %v3080
        %v5601 = vpack.c.b16 %v3097, %v3089
        %v5602 = vpack.c.b16 %v3098, %v3090
        %v5603 = vpack.c.b16 %v3099, %v3091
        %v5604 = vpack.c.b16 %v3100, %v3092
        %v5605 = vpack.c.b16 %v3101, %v3093
        %v5606 = vpack.c.b16 %v3102, %v3094
        %v5607 = vpack.c.b16 %v3103, %v3095
        %v5608 = vpack.c.b16 %v3104, %v3096
        %v5609 = vpack.c.b16 %v3113, %v3105
        %v5610 = vpack.c.b16 %v3114, %v3106
        %v5611 = vpack.c.b16 %v3115, %v3107
        %v5612 = vpack.c.b16 %v3116, %v3108
        %v5613 = vpack.c.b16 %v3117, %v3109
        %v5614 = vpack.c.b16 %v3118, %v3110
        %v5615 = vpack.c.b16 %v3119, %v3111
        %v5616 = vpack.c.b16 %v3120, %v3112
        %v5617 = vpack.c.b16 %v3129, %v3121
        %v5618 = vpack.c.b16 %v3130, %v3122
        %v5619 = vpack.c.b16 %v3131, %v3123
        %v5620 = vpack.c.b16 %v3132, %v3124
        %v5621 = vpack.c.b16 %v3133, %v3125
        %v5622 = vpack.c.b16 %v3134, %v3126
        %v5623 = vpack.c.b16 %v3135, %v3127
        %v5624 = vpack.c.b16 %v3136, %v3128
        %v5625 = vpack.c.b16 %v3145, %v3137
        %v5626 = vpack.c.b16 %v3146, %v3138
        %v5627 = vpack.c.b16 %v3147, %v3139
        %v5628 = vpack.c.b16 %v3148, %v3140
        %v5629 = vpack.c.b16 %v3149, %v3141
        %v5630 = vpack.c.b16 %v3150, %v3142
        %v5631 = vpack.c.b16 %v3151, %v3143
        %v5632 = vpack.c.b16 %v3152, %v3144
        %v5633 = vpack.c.b16 %v3161, %v3153
        %v5634 = vpack.c.b16 %v3162, %v3154
        %v5635 = vpack.c.b16 %v3163, %v3155
        %v5636 = vpack.c.b16 %v3164, %v3156
        %v5637 = vpack.c.b16 %v3165, %v3157
        %v5638 = vpack.c.b16 %v3166, %v3158
        %v5639 = vpack.c.b16 %v3167, %v3159
        %v5640 = vpack.c.b16 %v3168, %v3160
        %v5641 = vpack.c.b16 %v3177, %v3169
        %v5642 = vpack.c.b16 %v3178, %v3170
        %v5643 = vpack.c.b16 %v3179, %v3171
        %v5644 = vpack.c.b16 %v3180, %v3172
        %v5645 = vpack.c.b16 %v3181, %v3173
        %v5646 = vpack.c.b16 %v3182, %v3174
        %v5647 = vpack.c.b16 %v3183, %v3175
        %v5648 = vpack.c.b16 %v3184, %v3176
        %v5649 = vpack.c.b16 %v3193, %v3185
        %v5650 = vpack.c.b16 %v3194, %v3186
        %v5651 = vpack.c.b16 %v3195, %v3187
        %v5652 = vpack.c.b16 %v3196, %v3188
        %v5653 = vpack.c.b16 %v3197, %v3189
        %v5654 = vpack.c.b16 %v3198, %v3190
        %v5655 = vpack.c.b16 %v3199, %v3191
        %v5656 = vpack.c.b16 %v3200, %v3192
        %v5657 = vpack.c.b16 %v3209, %v3201
        %v5658 = vpack.c.b16 %v3210, %v3202
        %v5659 = vpack.c.b16 %v3211, %v3203
        %v5660 = vpack.c.b16 %v3212, %v3204
        %v5661 = vpack.c.b16 %v3213, %v3205
        %v5662 = vpack.c.b16 %v3214, %v3206
        %v5663 = vpack.c.b16 %v3215, %v3207
        %v5664 = vpack.c.b16 %v3216, %v3208
        %v5665 = vpack.c.b16 %v3225, %v3217
        %v5666 = vpack.c.b16 %v3226, %v3218
        %v5667 = vpack.c.b16 %v3227, %v3219
        %v5668 = vpack.c.b16 %v3228, %v3220
        %v5669 = vpack.c.b16 %v3229, %v3221
        %v5670 = vpack.c.b16 %v3230, %v3222
        %v5671 = vpack.c.b16 %v3231, %v3223
        %v5672 = vpack.c.b16 %v3232, %v3224
        %v5673 = vpack.c.b16 %v3241, %v3233
        %v5674 = vpack.c.b16 %v3242, %v3234
        %v5675 = vpack.c.b16 %v3243, %v3235
        %v5676 = vpack.c.b16 %v3244, %v3236
        %v5677 = vpack.c.b16 %v3245, %v3237
        %v5678 = vpack.c.b16 %v3246, %v3238
        %v5679 = vpack.c.b16 %v3247, %v3239
        %v5680 = vpack.c.b16 %v3248, %v3240
        %v5681 = vpack.c.b16 %v3257, %v3249
        %v5682 = vpack.c.b16 %v3258, %v3250
        %v5683 = vpack.c.b16 %v3259, %v3251
        %v5684 = vpack.c.b16 %v3260, %v3252
        %v5685 = vpack.c.b16 %v3261, %v3253
        %v5686 = vpack.c.b16 %v3262, %v3254
        %v5687 = vpack.c.b16 %v3263, %v3255
        %v5688 = vpack.c.b16 %v3264, %v3256
        %v5689 = vpack.c.b16 %v3273, %v3265
        %v5690 = vpack.c.b16 %v3274, %v3266
        %v5691 = vpack.c.b16 %v3275, %v3267
        %v5692 = vpack.c.b16 %v3276, %v3268
        %v5693 = vpack.c.b16 %v3277, %v3269
        %v5694 = vpack.c.b16 %v3278, %v3270
        %v5695 = vpack.c.b16 %v3279, %v3271
        %v5696 = vpack.c.b16 %v3280, %v3272
        %v5697 = vpack.c.b16 %v3289, %v3281
        %v5698 = vpack.c.b16 %v3290, %v3282
        %v5699 = vpack.c.b16 %v3291, %v3283
        %v5700 = vpack.c.b16 %v3292, %v3284
        %v5701 = vpack.c.b16 %v3293, %v3285
        %v5702 = vpack.c.b16 %v3294, %v3286
        %v5703 = vpack.c.b16 %v3295, %v3287
        %v5704 = vpack.c.b16 %v3296, %v3288
        %v5705 = vpack.c.b16 %v3305, %v3297
        %v5706 = vpack.c.b16 %v3306, %v3298
        %v5707 = vpack.c.b16 %v3307, %v3299
        %v5708 = vpack.c.b16 %v3308, %v3300
        %v5709 = vpack.c.b16 %v3309, %v3301
        %v5710 = vpack.c.b16 %v3310, %v3302
        %v5711 = vpack.c.b16 %v3311, %v3303
        %v5712 = vpack.c.b16 %v3312, %v3304
        %v5713 = vpack.c.b16 %v3321, %v3313
        %v5714 = vpack.c.b16 %v3322, %v3314
        %v5715 = vpack.c.b16 %v3323, %v3315
        %v5716 = vpack.c.b16 %v3324, %v3316
        %v5717 = vpack.c.b16 %v3325, %v3317
        %v5718 = vpack.c.b16 %v3326, %v3318
        %v5719 = vpack.c.b16 %v3327, %v3319
        %v5720 = vpack.c.b16 %v3328, %v3320
        %v5721 = vpack.c.b16 %v3337, %v3329
        %v5722 = vpack.c.b16 %v3338, %v3330
        %v5723 = vpack.c.b16 %v3339, %v3331
        %v5724 = vpack.c.b16 %v3340, %v3332
        %v5725 = vpack.c.b16 %v3341, %v3333
        %v5726 = vpack.c.b16 %v3342, %v3334
        %v5727 = vpack.c.b16 %v3343, %v3335
        %v5728 = vpack.c.b16 %v3344, %v3336
        %v5729 = vpack.c.b16 %v3353, %v3345
        %v5730 = vpack.c.b16 %v3354, %v3346
        %v5731 = vpack.c.b16 %v3355, %v3347
        %v5732 = vpack.c.b16 %v3356, %v3348
        %v5733 = vpack.c.b16 %v3357, %v3349
        %v5734 = vpack.c.b16 %v3358, %v3350
        %v5735 = vpack.c.b16 %v3359, %v3351
        %v5736 = vpack.c.b16 %v3360, %v3352
        %v5737 = vpack.c.b16 %v3369, %v3361
        %v5738 = vpack.c.b16 %v3370, %v3362
        %v5739 = vpack.c.b16 %v3371, %v3363
        %v5740 = vpack.c.b16 %v3372, %v3364
        %v5741 = vpack.c.b16 %v3373, %v3365
        %v5742 = vpack.c.b16 %v3374, %v3366
        %v5743 = vpack.c.b16 %v3375, %v3367
        %v5744 = vpack.c.b16 %v3376, %v3368
        %v5745 = vpack.c.b16 %v3385, %v3377
        %v5746 = vpack.c.b16 %v3386, %v3378
        %v5747 = vpack.c.b16 %v3387, %v3379
        %v5748 = vpack.c.b16 %v3388, %v3380
        %v5749 = vpack.c.b16 %v3389, %v3381
        %v5750 = vpack.c.b16 %v3390, %v3382
        %v5751 = vpack.c.b16 %v3391, %v3383
        %v5752 = vpack.c.b16 %v3392, %v3384
        %v5753 = vpack.c.b16 %v3401, %v3393
        %v5754 = vpack.c.b16 %v3402, %v3394
        %v5755 = vpack.c.b16 %v3403, %v3395
        %v5756 = vpack.c.b16 %v3404, %v3396
        %v5757 = vpack.c.b16 %v3405, %v3397
        %v5758 = vpack.c.b16 %v3406, %v3398
        %v5759 = vpack.c.b16 %v3407, %v3399
        %v5760 = vpack.c.b16 %v3408, %v3400
        %v5761 = vpack.c.b16 %v3417, %v3409
        %v5762 = vpack.c.b16 %v3418, %v3410
        %v5763 = vpack.c.b16 %v3419, %v3411
        %v5764 = vpack.c.b16 %v3420, %v3412
        %v5765 = vpack.c.b16 %v3421, %v3413
        %v5766 = vpack.c.b16 %v3422, %v3414
        %v5767 = vpack.c.b16 %v3423, %v3415
        %v5768 = vpack.c.b16 %v3424, %v3416
        %v5769 = vpack.c.b16 %v3433, %v3425
        %v5770 = vpack.c.b16 %v3434, %v3426
        %v5771 = vpack.c.b16 %v3435, %v3427
        %v5772 = vpack.c.b16 %v3436, %v3428
        %v5773 = vpack.c.b16 %v3437, %v3429
        %v5774 = vpack.c.b16 %v3438, %v3430
        %v5775 = vpack.c.b16 %v3439, %v3431
        %v5776 = vpack.c.b16 %v3440, %v3432
        %v5777 = vpack.c.b16 %v3449, %v3441
        %v5778 = vpack.c.b16 %v3450, %v3442
        %v5779 = vpack.c.b16 %v3451, %v3443
        %v5780 = vpack.c.b16 %v3452, %v3444
        %v5781 = vpack.c.b16 %v3453, %v3445
        %v5782 = vpack.c.b16 %v3454, %v3446
        %v5783 = vpack.c.b16 %v3455, %v3447
        %v5784 = vpack.c.b16 %v3456, %v3448
        %v5785 = vpack.c.b16 %v3465, %v3457
        %v5786 = vpack.c.b16 %v3466, %v3458
        %v5787 = vpack.c.b16 %v3467, %v3459
        %v5788 = vpack.c.b16 %v3468, %v3460
        %v5789 = vpack.c.b16 %v3469, %v3461
        %v5790 = vpack.c.b16 %v3470, %v3462
        %v5791 = vpack.c.b16 %v3471, %v3463
        %v5792 = vpack.c.b16 %v3472, %v3464
        %v5793 = vpack.c.b16 %v3481, %v3473
        %v5794 = vpack.c.b16 %v3482, %v3474
        %v5795 = vpack.c.b16 %v3483, %v3475
        %v5796 = vpack.c.b16 %v3484, %v3476
        %v5797 = vpack.c.b16 %v3485, %v3477
        %v5798 = vpack.c.b16 %v3486, %v3478
        %v5799 = vpack.c.b16 %v3487, %v3479
        %v5800 = vpack.c.b16 %v3488, %v3480
        %v5801 = vpack.c.b16 %v3497, %v3489
        %v5802 = vpack.c.b16 %v3498, %v3490
        %v5803 = vpack.c.b16 %v3499, %v3491
        %v5804 = vpack.c.b16 %v3500, %v3492
        %v5805 = vpack.c.b16 %v3501, %v3493
        %v5806 = vpack.c.b16 %v3502, %v3494
        %v5807 = vpack.c.b16 %v3503, %v3495
        %v5808 = vpack.c.b16 %v3504, %v3496
        %v5809 = vpack.c.b16 %v3513, %v3505
        %v5810 = vpack.c.b16 %v3514, %v3506
        %v5811 = vpack.c.b16 %v3515, %v3507
        %v5812 = vpack.c.b16 %v3516, %v3508
        %v5813 = vpack.c.b16 %v3517, %v3509
        %v5814 = vpack.c.b16 %v3518, %v3510
        %v5815 = vpack.c.b16 %v3519, %v3511
        %v5816 = vpack.c.b16 %v3520, %v3512
        %v5817 = vpack.c.b16 %v3529, %v3521
        %v5818 = vpack.c.b16 %v3530, %v3522
        %v5819 = vpack.c.b16 %v3531, %v3523
        %v5820 = vpack.c.b16 %v3532, %v3524
        %v5821 = vpack.c.b16 %v3533, %v3525
        %v5822 = vpack.c.b16 %v3534, %v3526
        %v5823 = vpack.c.b16 %v3535, %v3527
        %v5824 = vpack.c.b16 %v3536, %v3528
        %v5825 = vpack.c.b16 %v3545, %v3537
        %v5826 = vpack.c.b16 %v3546, %v3538
        %v5827 = vpack.c.b16 %v3547, %v3539
        %v5828 = vpack.c.b16 %v3548, %v3540
        %v5829 = vpack.c.b16 %v3549, %v3541
        %v5830 = vpack.c.b16 %v3550, %v3542
        %v5831 = vpack.c.b16 %v3551, %v3543
        %v5832 = vpack.c.b16 %v3552, %v3544
        %v5833 = vpack.c.b16 %v3561, %v3553
        %v5834 = vpack.c.b16 %v3562, %v3554
        %v5835 = vpack.c.b16 %v3563, %v3555
        %v5836 = vpack.c.b16 %v3564, %v3556
        %v5837 = vpack.c.b16 %v3565, %v3557
        %v5838 = vpack.c.b16 %v3566, %v3558
        %v5839 = vpack.c.b16 %v3567, %v3559
        %v5840 = vpack.c.b16 %v3568, %v3560
        %v5841 = vpack.c.b16 %v3577, %v3569
        %v5842 = vpack.c.b16 %v3578, %v3570
        %v5843 = vpack.c.b16 %v3579, %v3571
        %v5844 = vpack.c.b16 %v3580, %v3572
        %v5845 = vpack.c.b16 %v3581, %v3573
        %v5846 = vpack.c.b16 %v3582, %v3574
        %v5847 = vpack.c.b16 %v3583, %v3575
        %v5848 = vpack.c.b16 %v3584, %v3576
        %v5849 = vpack.c.b16 %v3593, %v3585
        %v5850 = vpack.c.b16 %v3594, %v3586
        %v5851 = vpack.c.b16 %v3595, %v3587
        %v5852 = vpack.c.b16 %v3596, %v3588
        %v5853 = vpack.c.b16 %v3597, %v3589
        %v5854 = vpack.c.b16 %v3598, %v3590
        %v5855 = vpack.c.b16 %v3599, %v3591
        %v5856 = vpack.c.b16 %v3600, %v3592
        %v5857 = vpack.c.b16 %v3609, %v3601
        %v5858 = vpack.c.b16 %v3610, %v3602
        %v5859 = vpack.c.b16 %v3611, %v3603
        %v5860 = vpack.c.b16 %v3612, %v3604
        %v5861 = vpack.c.b16 %v3613, %v3605
        %v5862 = vpack.c.b16 %v3614, %v3606
        %v5863 = vpack.c.b16 %v3615, %v3607
        %v5864 = vpack.c.b16 %v3616, %v3608
        %v5865 = vpack.c.b16 %v3625, %v3617
        %v5866 = vpack.c.b16 %v3626, %v3618
        %v5867 = vpack.c.b16 %v3627, %v3619
        %v5868 = vpack.c.b16 %v3628, %v3620
        %v5869 = vpack.c.b16 %v3629, %v3621
        %v5870 = vpack.c.b16 %v3630, %v3622
        %v5871 = vpack.c.b16 %v3631, %v3623
        %v5872 = vpack.c.b16 %v3632, %v3624
        %v5873 = vpack.c.b16 %v3641, %v3633
        %v5874 = vpack.c.b16 %v3642, %v3634
        %v5875 = vpack.c.b16 %v3643, %v3635
        %v5876 = vpack.c.b16 %v3644, %v3636
        %v5877 = vpack.c.b16 %v3645, %v3637
        %v5878 = vpack.c.b16 %v3646, %v3638
        %v5879 = vpack.c.b16 %v3647, %v3639
        %v5880 = vpack.c.b16 %v3648, %v3640
        %v5881 = vpack.c.b16 %v3657, %v3649
        %v5882 = vpack.c.b16 %v3658, %v3650
        %v5883 = vpack.c.b16 %v3659, %v3651
        %v5884 = vpack.c.b16 %v3660, %v3652
        %v5885 = vpack.c.b16 %v3661, %v3653
        %v5886 = vpack.c.b16 %v3662, %v3654
        %v5887 = vpack.c.b16 %v3663, %v3655
        %v5888 = vpack.c.b16 %v3664, %v3656
        %v5889 = vpack.c.b16 %v3673, %v3665
        %v5890 = vpack.c.b16 %v3674, %v3666
        %v5891 = vpack.c.b16 %v3675, %v3667
        %v5892 = vpack.c.b16 %v3676, %v3668
        %v5893 = vpack.c.b16 %v3677, %v3669
        %v5894 = vpack.c.b16 %v3678, %v3670
        %v5895 = vpack.c.b16 %v3679, %v3671
        %v5896 = vpack.c.b16 %v3680, %v3672
        %v5897 = vpack.c.b16 %v3689, %v3681
        %v5898 = vpack.c.b16 %v3690, %v3682
        %v5899 = vpack.c.b16 %v3691, %v3683
        %v5900 = vpack.c.b16 %v3692, %v3684
        %v5901 = vpack.c.b16 %v3693, %v3685
        %v5902 = vpack.c.b16 %v3694, %v3686
        %v5903 = vpack.c.b16 %v3695, %v3687
        %v5904 = vpack.c.b16 %v3696, %v3688
        %v5905 = vpack.c.b16 %v3705, %v3697
        %v5906 = vpack.c.b16 %v3706, %v3698
        %v5907 = vpack.c.b16 %v3707, %v3699
        %v5908 = vpack.c.b16 %v3708, %v3700
        %v5909 = vpack.c.b16 %v3709, %v3701
        %v5910 = vpack.c.b16 %v3710, %v3702
        %v5911 = vpack.c.b16 %v3711, %v3703
        %v5912 = vpack.c.b16 %v3712, %v3704
        %v5913 = vpack.c.b16 %v3721, %v3713
        %v5914 = vpack.c.b16 %v3722, %v3714
        %v5915 = vpack.c.b16 %v3723, %v3715
        %v5916 = vpack.c.b16 %v3724, %v3716
        %v5917 = vpack.c.b16 %v3725, %v3717
        %v5918 = vpack.c.b16 %v3726, %v3718
        %v5919 = vpack.c.b16 %v3727, %v3719
        %v5920 = vpack.c.b16 %v3728, %v3720
        %v5921 = vpack.c.b16 %v3737, %v3729
        %v5922 = vpack.c.b16 %v3738, %v3730
        %v5923 = vpack.c.b16 %v3739, %v3731
        %v5924 = vpack.c.b16 %v3740, %v3732
        %v5925 = vpack.c.b16 %v3741, %v3733
        %v5926 = vpack.c.b16 %v3742, %v3734
        %v5927 = vpack.c.b16 %v3743, %v3735
        %v5928 = vpack.c.b16 %v3744, %v3736
        %v5929 = vpack.c.b16 %v3753, %v3745
        %v5930 = vpack.c.b16 %v3754, %v3746
        %v5931 = vpack.c.b16 %v3755, %v3747
        %v5932 = vpack.c.b16 %v3756, %v3748
        %v5933 = vpack.c.b16 %v3757, %v3749
        %v5934 = vpack.c.b16 %v3758, %v3750
        %v5935 = vpack.c.b16 %v3759, %v3751
        %v5936 = vpack.c.b16 %v3760, %v3752
        %v5937 = vpack.c.b16 %v3769, %v3761
        %v5938 = vpack.c.b16 %v3770, %v3762
        %v5939 = vpack.c.b16 %v3771, %v3763
        %v5940 = vpack.c.b16 %v3772, %v3764
        %v5941 = vpack.c.b16 %v3773, %v3765
        %v5942 = vpack.c.b16 %v3774, %v3766
        %v5943 = vpack.c.b16 %v3775, %v3767
        %v5944 = vpack.c.b16 %v3776, %v3768
        %v5945 = vpack.c.b16 %v3785, %v3777
        %v5946 = vpack.c.b16 %v3786, %v3778
        %v5947 = vpack.c.b16 %v3787, %v3779
        %v5948 = vpack.c.b16 %v3788, %v3780
        %v5949 = vpack.c.b16 %v3789, %v3781
        %v5950 = vpack.c.b16 %v3790, %v3782
        %v5951 = vpack.c.b16 %v3791, %v3783
        %v5952 = vpack.c.b16 %v3792, %v3784
        %v5953 = vpack.c.b16 %v3801, %v3793
        %v5954 = vpack.c.b16 %v3802, %v3794
        %v5955 = vpack.c.b16 %v3803, %v3795
        %v5956 = vpack.c.b16 %v3804, %v3796
        %v5957 = vpack.c.b16 %v3805, %v3797
        %v5958 = vpack.c.b16 %v3806, %v3798
        %v5959 = vpack.c.b16 %v3807, %v3799
        %v5960 = vpack.c.b16 %v3808, %v3800
        %v5961 = vpack.c.b16 %v3817, %v3809
        %v5962 = vpack.c.b16 %v3818, %v3810
        %v5963 = vpack.c.b16 %v3819, %v3811
        %v5964 = vpack.c.b16 %v3820, %v3812
        %v5965 = vpack.c.b16 %v3821, %v3813
        %v5966 = vpack.c.b16 %v3822, %v3814
        %v5967 = vpack.c.b16 %v3823, %v3815
        %v5968 = vpack.c.b16 %v3824, %v3816
        %v5969 = vpack.c.b16 %v3833, %v3825
        %v5970 = vpack.c.b16 %v3834, %v3826
        %v5971 = vpack.c.b16 %v3835, %v3827
        %v5972 = vpack.c.b16 %v3836, %v3828
        %v5973 = vpack.c.b16 %v3837, %v3829
        %v5974 = vpack.c.b16 %v3838, %v3830
        %v5975 = vpack.c.b16 %v3839, %v3831
        %v5976 = vpack.c.b16 %v3840, %v3832
        %v5977 = vpack.c.b16 %v3849, %v3841
        %v5978 = vpack.c.b16 %v3850, %v3842
        %v5979 = vpack.c.b16 %v3851, %v3843
        %v5980 = vpack.c.b16 %v3852, %v3844
        %v5981 = vpack.c.b16 %v3853, %v3845
        %v5982 = vpack.c.b16 %v3854, %v3846
        %v5983 = vpack.c.b16 %v3855, %v3847
        %v5984 = vpack.c.b16 %v3856, %v3848
        %v5985 = vpack.c.b16 %v3865, %v3857
        %v5986 = vpack.c.b16 %v3866, %v3858
        %v5987 = vpack.c.b16 %v3867, %v3859
        %v5988 = vpack.c.b16 %v3868, %v3860
        %v5989 = vpack.c.b16 %v3869, %v3861
        %v5990 = vpack.c.b16 %v3870, %v3862
        %v5991 = vpack.c.b16 %v3871, %v3863
        %v5992 = vpack.c.b16 %v3872, %v3864
        %v5993 = vpack.c.b16 %v3881, %v3873
        %v5994 = vpack.c.b16 %v3882, %v3874
        %v5995 = vpack.c.b16 %v3883, %v3875
        %v5996 = vpack.c.b16 %v3884, %v3876
        %v5997 = vpack.c.b16 %v3885, %v3877
        %v5998 = vpack.c.b16 %v3886, %v3878
        %v5999 = vpack.c.b16 %v3887, %v3879
        %v6000 = vpack.c.b16 %v3888, %v3880
        %v6001 = vpack.c.b16 %v3897, %v3889
        %v6002 = vpack.c.b16 %v3898, %v3890
        %v6003 = vpack.c.b16 %v3899, %v3891
        %v6004 = vpack.c.b16 %v3900, %v3892
        %v6005 = vpack.c.b16 %v3901, %v3893
        %v6006 = vpack.c.b16 %v3902, %v3894
        %v6007 = vpack.c.b16 %v3903, %v3895
        %v6008 = vpack.c.b16 %v3904, %v3896
        %v6009 = vpack.c.b16 %v3913, %v3905
        %v6010 = vpack.c.b16 %v3914, %v3906
        %v6011 = vpack.c.b16 %v3915, %v3907
        %v6012 = vpack.c.b16 %v3916, %v3908
        %v6013 = vpack.c.b16 %v3917, %v3909
        %v6014 = vpack.c.b16 %v3918, %v3910
        %v6015 = vpack.c.b16 %v3919, %v3911
        %v6016 = vpack.c.b16 %v3920, %v3912
        %v6017 = vpack.c.b16 %v3929, %v3921
        %v6018 = vpack.c.b16 %v3930, %v3922
        %v6019 = vpack.c.b16 %v3931, %v3923
        %v6020 = vpack.c.b16 %v3932, %v3924
        %v6021 = vpack.c.b16 %v3933, %v3925
        %v6022 = vpack.c.b16 %v3934, %v3926
        %v6023 = vpack.c.b16 %v3935, %v3927
        %v6024 = vpack.c.b16 %v3936, %v3928
        %v6025 = vpack.c.b16 %v3945, %v3937
        %v6026 = vpack.c.b16 %v3946, %v3938
        %v6027 = vpack.c.b16 %v3947, %v3939
        %v6028 = vpack.c.b16 %v3948, %v3940
        %v6029 = vpack.c.b16 %v3949, %v3941
        %v6030 = vpack.c.b16 %v3950, %v3942
        %v6031 = vpack.c.b16 %v3951, %v3943
        %v6032 = vpack.c.b16 %v3952, %v3944
        %v6033 = vpack.c.b16 %v3961, %v3953
        %v6034 = vpack.c.b16 %v3962, %v3954
        %v6035 = vpack.c.b16 %v3963, %v3955
        %v6036 = vpack.c.b16 %v3964, %v3956
        %v6037 = vpack.c.b16 %v3965, %v3957
        %v6038 = vpack.c.b16 %v3966, %v3958
        %v6039 = vpack.c.b16 %v3967, %v3959
        %v6040 = vpack.c.b16 %v3968, %v3960
        %v6041 = vpack.c.b16 %v3977, %v3969
        %v6042 = vpack.c.b16 %v3978, %v3970
        %v6043 = vpack.c.b16 %v3979, %v3971
        %v6044 = vpack.c.b16 %v3980, %v3972
        %v6045 = vpack.c.b16 %v3981, %v3973
        %v6046 = vpack.c.b16 %v3982, %v3974
        %v6047 = vpack.c.b16 %v3983, %v3975
        %v6048 = vpack.c.b16 %v3984, %v3976
        %v6049 = vpack.c.b16 %v3993, %v3985
        %v6050 = vpack.c.b16 %v3994, %v3986
        %v6051 = vpack.c.b16 %v3995, %v3987
        %v6052 = vpack.c.b16 %v3996, %v3988
        %v6053 = vpack.c.b16 %v3997, %v3989
        %v6054 = vpack.c.b16 %v3998, %v3990
        %v6055 = vpack.c.b16 %v3999, %v3991
        %v6056 = vpack.c.b16 %v4000, %v3992
        %v6057 = vpack.c.b16 %v4009, %v4001
        %v6058 = vpack.c.b16 %v4010, %v4002
        %v6059 = vpack.c.b16 %v4011, %v4003
        %v6060 = vpack.c.b16 %v4012, %v4004
        %v6061 = vpack.c.b16 %v4013, %v4005
        %v6062 = vpack.c.b16 %v4014, %v4006
        %v6063 = vpack.c.b16 %v4015, %v4007
        %v6064 = vpack.c.b16 %v4016, %v4008
        %v6065 = vpack.c.b16 %v4025, %v4017
        %v6066 = vpack.c.b16 %v4026, %v4018
        %v6067 = vpack.c.b16 %v4027, %v4019
        %v6068 = vpack.c.b16 %v4028, %v4020
        %v6069 = vpack.c.b16 %v4029, %v4021
        %v6070 = vpack.c.b16 %v4030, %v4022
        %v6071 = vpack.c.b16 %v4031, %v4023
        %v6072 = vpack.c.b16 %v4032, %v4024
        %v6073 = vpack.c.b16 %v4041, %v4033
        %v6074 = vpack.c.b16 %v4042, %v4034
        %v6075 = vpack.c.b16 %v4043, %v4035
        %v6076 = vpack.c.b16 %v4044, %v4036
        %v6077 = vpack.c.b16 %v4045, %v4037
        %v6078 = vpack.c.b16 %v4046, %v4038
        %v6079 = vpack.c.b16 %v4047, %v4039
        %v6080 = vpack.c.b16 %v4048, %v4040
        %v6081 = vpack.c.b16 %v4057, %v4049
        %v6082 = vpack.c.b16 %v4058, %v4050
        %v6083 = vpack.c.b16 %v4059, %v4051
        %v6084 = vpack.c.b16 %v4060, %v4052
        %v6085 = vpack.c.b16 %v4061, %v4053
        %v6086 = vpack.c.b16 %v4062, %v4054
        %v6087 = vpack.c.b16 %v4063, %v4055
        %v6088 = vpack.c.b16 %v4064, %v4056
        %v6089 = vpack.c.b16 %v4073, %v4065
        %v6090 = vpack.c.b16 %v4074, %v4066
        %v6091 = vpack.c.b16 %v4075, %v4067
        %v6092 = vpack.c.b16 %v4076, %v4068
        %v6093 = vpack.c.b16 %v4077, %v4069
        %v6094 = vpack.c.b16 %v4078, %v4070
        %v6095 = vpack.c.b16 %v4079, %v4071
        %v6096 = vpack.c.b16 %v4080, %v4072
        %v6097 = vpack.c.b16 %v4089, %v4081
        %v6098 = vpack.c.b16 %v4090, %v4082
        %v6099 = vpack.c.b16 %v4091, %v4083
        %v6100 = vpack.c.b16 %v4092, %v4084
        %v6101 = vpack.c.b16 %v4093, %v4085
        %v6102 = vpack.c.b16 %v4094, %v4086
        %v6103 = vpack.c.b16 %v4095, %v4087
        %v6104 = vpack.c.b16 %v4096, %v4088
        %v6105 = vpack.c.b16 %v4105, %v4097
        %v6106 = vpack.c.b16 %v4106, %v4098
        %v6107 = vpack.c.b16 %v4107, %v4099
        %v6108 = vpack.c.b16 %v4108, %v4100
        %v6109 = vpack.c.b16 %v4109, %v4101
        %v6110 = vpack.c.b16 %v4110, %v4102
        %v6111 = vpack.c.b16 %v4111, %v4103
        %v6112 = vpack.c.b16 %v4112, %v4104
        %v6113 = vpack.c.b16 %v4121, %v4113
        %v6114 = vpack.c.b16 %v4122, %v4114
        %v6115 = vpack.c.b16 %v4123, %v4115
        %v6116 = vpack.c.b16 %v4124, %v4116
        %v6117 = vpack.c.b16 %v4125, %v4117
        %v6118 = vpack.c.b16 %v4126, %v4118
        %v6119 = vpack.c.b16 %v4127, %v4119
        %v6120 = vpack.c.b16 %v4128, %v4120
        %v6121 = vpack.c.b16 %v4137, %v4129
        %v6122 = vpack.c.b16 %v4138, %v4130
        %v6123 = vpack.c.b16 %v4139, %v4131
        %v6124 = vpack.c.b16 %v4140, %v4132
        %v6125 = vpack.c.b16 %v4141, %v4133
        %v6126 = vpack.c.b16 %v4142, %v4134
        %v6127 = vpack.c.b16 %v4143, %v4135
        %v6128 = vpack.c.b16 %v4144, %v4136
        %v6129 = vpack.c.b16 %v4153, %v4145
        %v6130 = vpack.c.b16 %v4154, %v4146
        %v6131 = vpack.c.b16 %v4155, %v4147
        %v6132 = vpack.c.b16 %v4156, %v4148
        %v6133 = vpack.c.b16 %v4157, %v4149
        %v6134 = vpack.c.b16 %v4158, %v4150
        %v6135 = vpack.c.b16 %v4159, %v4151
        %v6136 = vpack.c.b16 %v4160, %v4152
        %v6137 = vpack.c.b16 %v4169, %v4161
        %v6138 = vpack.c.b16 %v4170, %v4162
        %v6139 = vpack.c.b16 %v4171, %v4163
        %v6140 = vpack.c.b16 %v4172, %v4164
        %v6141 = vpack.c.b16 %v4173, %v4165
        %v6142 = vpack.c.b16 %v4174, %v4166
        %v6143 = vpack.c.b16 %v4175, %v4167
        %v6144 = vpack.c.b16 %v4176, %v4168
        %v6145 = vpack.c.b16 %v4185, %v4177
        %v6146 = vpack.c.b16 %v4186, %v4178
        %v6147 = vpack.c.b16 %v4187, %v4179
        %v6148 = vpack.c.b16 %v4188, %v4180
        %v6149 = vpack.c.b16 %v4189, %v4181
        %v6150 = vpack.c.b16 %v4190, %v4182
        %v6151 = vpack.c.b16 %v4191, %v4183
        %v6152 = vpack.c.b16 %v4192, %v4184
        %v6153 = vpack.c.b16 %v4201, %v4193
        %v6154 = vpack.c.b16 %v4202, %v4194
        %v6155 = vpack.c.b16 %v4203, %v4195
        %v6156 = vpack.c.b16 %v4204, %v4196
        %v6157 = vpack.c.b16 %v4205, %v4197
        %v6158 = vpack.c.b16 %v4206, %v4198
        %v6159 = vpack.c.b16 %v4207, %v4199
        %v6160 = vpack.c.b16 %v4208, %v4200
        %v6161 = vpack.c.b16 %v4217, %v4209
        %v6162 = vpack.c.b16 %v4218, %v4210
        %v6163 = vpack.c.b16 %v4219, %v4211
        %v6164 = vpack.c.b16 %v4220, %v4212
        %v6165 = vpack.c.b16 %v4221, %v4213
        %v6166 = vpack.c.b16 %v4222, %v4214
        %v6167 = vpack.c.b16 %v4223, %v4215
        %v6168 = vpack.c.b16 %v4224, %v4216
        %v6169 = vpack.c.b16 %v4233, %v4225
        %v6170 = vpack.c.b16 %v4234, %v4226
        %v6171 = vpack.c.b16 %v4235, %v4227
        %v6172 = vpack.c.b16 %v4236, %v4228
        %v6173 = vpack.c.b16 %v4237, %v4229
        %v6174 = vpack.c.b16 %v4238, %v4230
        %v6175 = vpack.c.b16 %v4239, %v4231
        %v6176 = vpack.c.b16 %v4240, %v4232
        %v6177 = vpack.c.b16 %v4249, %v4241
        %v6178 = vpack.c.b16 %v4250, %v4242
        %v6179 = vpack.c.b16 %v4251, %v4243
        %v6180 = vpack.c.b16 %v4252, %v4244
        %v6181 = vpack.c.b16 %v4253, %v4245
        %v6182 = vpack.c.b16 %v4254, %v4246
        %v6183 = vpack.c.b16 %v4255, %v4247
        %v6184 = vpack.c.b16 %v4256, %v4248
        %v6185 = vpack.c.b16 %v4265, %v4257
        %v6186 = vpack.c.b16 %v4266, %v4258
        %v6187 = vpack.c.b16 %v4267, %v4259
        %v6188 = vpack.c.b16 %v4268, %v4260
        %v6189 = vpack.c.b16 %v4269, %v4261
        %v6190 = vpack.c.b16 %v4270, %v4262
        %v6191 = vpack.c.b16 %v4271, %v4263
        %v6192 = vpack.c.b16 %v4272, %v4264
        %v6193 = vpack.c.b16 %v4281, %v4273
        %v6194 = vpack.c.b16 %v4282, %v4274
        %v6195 = vpack.c.b16 %v4283, %v4275
        %v6196 = vpack.c.b16 %v4284, %v4276
        %v6197 = vpack.c.b16 %v4285, %v4277
        %v6198 = vpack.c.b16 %v4286, %v4278
        %v6199 = vpack.c.b16 %v4287, %v4279
        %v6200 = vpack.c.b16 %v4288, %v4280
        %v6201 = vpack.c.b16 %v4297, %v4289
        %v6202 = vpack.c.b16 %v4298, %v4290
        %v6203 = vpack.c.b16 %v4299, %v4291
        %v6204 = vpack.c.b16 %v4300, %v4292
        %v6205 = vpack.c.b16 %v4301, %v4293
        %v6206 = vpack.c.b16 %v4302, %v4294
        %v6207 = vpack.c.b16 %v4303, %v4295
        %v6208 = vpack.c.b16 %v4304, %v4296
        %v6209 = vpack.c.b16 %v4313, %v4305
        %v6210 = vpack.c.b16 %v4314, %v4306
        %v6211 = vpack.c.b16 %v4315, %v4307
        %v6212 = vpack.c.b16 %v4316, %v4308
        %v6213 = vpack.c.b16 %v4317, %v4309
        %v6214 = vpack.c.b16 %v4318, %v4310
        %v6215 = vpack.c.b16 %v4319, %v4311
        %v6216 = vpack.c.b16 %v4320, %v4312
        %v6217 = vpack.c.b16 %v4329, %v4321
        %v6218 = vpack.c.b16 %v4330, %v4322
        %v6219 = vpack.c.b16 %v4331, %v4323
        %v6220 = vpack.c.b16 %v4332, %v4324
        %v6221 = vpack.c.b16 %v4333, %v4325
        %v6222 = vpack.c.b16 %v4334, %v4326
        %v6223 = vpack.c.b16 %v4335, %v4327
        %v6224 = vpack.c.b16 %v4336, %v4328
        %v6225 = vpack.c.b16 %v4345, %v4337
        %v6226 = vpack.c.b16 %v4346, %v4338
        %v6227 = vpack.c.b16 %v4347, %v4339
        %v6228 = vpack.c.b16 %v4348, %v4340
        %v6229 = vpack.c.b16 %v4349, %v4341
        %v6230 = vpack.c.b16 %v4350, %v4342
        %v6231 = vpack.c.b16 %v4351, %v4343
        %v6232 = vpack.c.b16 %v4352, %v4344
        %v6233 = vpack.c.b16 %v4361, %v4353
        %v6234 = vpack.c.b16 %v4362, %v4354
        %v6235 = vpack.c.b16 %v4363, %v4355
        %v6236 = vpack.c.b16 %v4364, %v4356
        %v6237 = vpack.c.b16 %v4365, %v4357
        %v6238 = vpack.c.b16 %v4366, %v4358
        %v6239 = vpack.c.b16 %v4367, %v4359
        %v6240 = vpack.c.b16 %v4368, %v4360
        %v6241 = vpack.c.b16 %v4377, %v4369
        %v6242 = vpack.c.b16 %v4378, %v4370
        %v6243 = vpack.c.b16 %v4379, %v4371
        %v6244 = vpack.c.b16 %v4380, %v4372
        %v6245 = vpack.c.b16 %v4381, %v4373
        %v6246 = vpack.c.b16 %v4382, %v4374
        %v6247 = vpack.c.b16 %v4383, %v4375
        %v6248 = vpack.c.b16 %v4384, %v4376
        %v6249 = vpack.c.b16 %v4393, %v4385
        %v6250 = vpack.c.b16 %v4394, %v4386
        %v6251 = vpack.c.b16 %v4395, %v4387
        %v6252 = vpack.c.b16 %v4396, %v4388
        %v6253 = vpack.c.b16 %v4397, %v4389
        %v6254 = vpack.c.b16 %v4398, %v4390
        %v6255 = vpack.c.b16 %v4399, %v4391
        %v6256 = vpack.c.b16 %v4400, %v4392
        %v6257 = vpack.c.b16 %v4409, %v4401
        %v6258 = vpack.c.b16 %v4410, %v4402
        %v6259 = vpack.c.b16 %v4411, %v4403
        %v6260 = vpack.c.b16 %v4412, %v4404
        %v6261 = vpack.c.b16 %v4413, %v4405
        %v6262 = vpack.c.b16 %v4414, %v4406
        %v6263 = vpack.c.b16 %v4415, %v4407
        %v6264 = vpack.c.b16 %v4416, %v4408
        %v6265 = vpack.c.b16 %v4425, %v4417
        %v6266 = vpack.c.b16 %v4426, %v4418
        %v6267 = vpack.c.b16 %v4427, %v4419
        %v6268 = vpack.c.b16 %v4428, %v4420
        %v6269 = vpack.c.b16 %v4429, %v4421
        %v6270 = vpack.c.b16 %v4430, %v4422
        %v6271 = vpack.c.b16 %v4431, %v4423
        %v6272 = vpack.c.b16 %v4432, %v4424
        %v6273 = vpack.c.b16 %v4441, %v4433
        %v6274 = vpack.c.b16 %v4442, %v4434
        %v6275 = vpack.c.b16 %v4443, %v4435
        %v6276 = vpack.c.b16 %v4444, %v4436
        %v6277 = vpack.c.b16 %v4445, %v4437
        %v6278 = vpack.c.b16 %v4446, %v4438
        %v6279 = vpack.c.b16 %v4447, %v4439
        %v6280 = vpack.c.b16 %v4448, %v4440
        %v6281 = vpack.c.b16 %v4457, %v4449
        %v6282 = vpack.c.b16 %v4458, %v4450
        %v6283 = vpack.c.b16 %v4459, %v4451
        %v6284 = vpack.c.b16 %v4460, %v4452
        %v6285 = vpack.c.b16 %v4461, %v4453
        %v6286 = vpack.c.b16 %v4462, %v4454
        %v6287 = vpack.c.b16 %v4463, %v4455
        %v6288 = vpack.c.b16 %v4464, %v4456
        %v6289 = vpack.c.b16 %v4473, %v4465
        %v6290 = vpack.c.b16 %v4474, %v4466
        %v6291 = vpack.c.b16 %v4475, %v4467
        %v6292 = vpack.c.b16 %v4476, %v4468
        %v6293 = vpack.c.b16 %v4477, %v4469
        %v6294 = vpack.c.b16 %v4478, %v4470
        %v6295 = vpack.c.b16 %v4479, %v4471
        %v6296 = vpack.c.b16 %v4480, %v4472
        %v6297 = vpack.c.b16 %v4489, %v4481
        %v6298 = vpack.c.b16 %v4490, %v4482
        %v6299 = vpack.c.b16 %v4491, %v4483
        %v6300 = vpack.c.b16 %v4492, %v4484
        %v6301 = vpack.c.b16 %v4493, %v4485
        %v6302 = vpack.c.b16 %v4494, %v4486
        %v6303 = vpack.c.b16 %v4495, %v4487
        %v6304 = vpack.c.b16 %v4496, %v4488
        %v6305 = vpack.c.b16 %v4505, %v4497
        %v6306 = vpack.c.b16 %v4506, %v4498
        %v6307 = vpack.c.b16 %v4507, %v4499
        %v6308 = vpack.c.b16 %v4508, %v4500
        %v6309 = vpack.c.b16 %v4509, %v4501
        %v6310 = vpack.c.b16 %v4510, %v4502
        %v6311 = vpack.c.b16 %v4511, %v4503
        %v6312 = vpack.c.b16 %v4512, %v4504
        %v6313 = vpack.c.b16 %v4521, %v4513
        %v6314 = vpack.c.b16 %v4522, %v4514
        %v6315 = vpack.c.b16 %v4523, %v4515
        %v6316 = vpack.c.b16 %v4524, %v4516
        %v6317 = vpack.c.b16 %v4525, %v4517
        %v6318 = vpack.c.b16 %v4526, %v4518
        %v6319 = vpack.c.b16 %v4527, %v4519
        %v6320 = vpack.c.b16 %v4528, %v4520
        %v6321 = vpack.c.b16 %v4537, %v4529
        %v6322 = vpack.c.b16 %v4538, %v4530
        %v6323 = vpack.c.b16 %v4539, %v4531
        %v6324 = vpack.c.b16 %v4540, %v4532
        %v6325 = vpack.c.b16 %v4541, %v4533
        %v6326 = vpack.c.b16 %v4542, %v4534
        %v6327 = vpack.c.b16 %v4543, %v4535
        %v6328 = vpack.c.b16 %v4544, %v4536
        %v6329 = vpack.c.b16 %v4553, %v4545
        %v6330 = vpack.c.b16 %v4554, %v4546
        %v6331 = vpack.c.b16 %v4555, %v4547
        %v6332 = vpack.c.b16 %v4556, %v4548
        %v6333 = vpack.c.b16 %v4557, %v4549
        %v6334 = vpack.c.b16 %v4558, %v4550
        %v6335 = vpack.c.b16 %v4559, %v4551
        %v6336 = vpack.c.b16 %v4560, %v4552
        %v6337 = vpack.c.b16 %v4569, %v4561
        %v6338 = vpack.c.b16 %v4570, %v4562
        %v6339 = vpack.c.b16 %v4571, %v4563
        %v6340 = vpack.c.b16 %v4572, %v4564
        %v6341 = vpack.c.b16 %v4573, %v4565
        %v6342 = vpack.c.b16 %v4574, %v4566
        %v6343 = vpack.c.b16 %v4575, %v4567
        %v6344 = vpack.c.b16 %v4576, %v4568
        %v6345 = vpack.c.b16 %v4585, %v4577
        %v6346 = vpack.c.b16 %v4586, %v4578
        %v6347 = vpack.c.b16 %v4587, %v4579
        %v6348 = vpack.c.b16 %v4588, %v4580
        %v6349 = vpack.c.b16 %v4589, %v4581
        %v6350 = vpack.c.b16 %v4590, %v4582
        %v6351 = vpack.c.b16 %v4591, %v4583
        %v6352 = vpack.c.b16 %v4592, %v4584
        %v6353 = vpack.c.b16 %v4601, %v4593
        %v6354 = vpack.c.b16 %v4602, %v4594
        %v6355 = vpack.c.b16 %v4603, %v4595
        %v6356 = vpack.c.b16 %v4604, %v4596
        %v6357 = vpack.c.b16 %v4605, %v4597
        %v6358 = vpack.c.b16 %v4606, %v4598
        %v6359 = vpack.c.b16 %v4607, %v4599
        %v6360 = vpack.c.b16 %v4608, %v4600
        %v6361 = vpack.c.b16 %v4617, %v4609
        %v6362 = vpack.c.b16 %v4618, %v4610
        %v6363 = vpack.c.b16 %v4619, %v4611
        %v6364 = vpack.c.b16 %v4620, %v4612
        %v6365 = vpack.c.b16 %v4621, %v4613
        %v6366 = vpack.c.b16 %v4622, %v4614
        %v6367 = vpack.c.b16 %v4623, %v4615
        %v6368 = vpack.c.b16 %v4624, %v4616
        %v6369 = vpack.c.b16 %v4633, %v4625
        %v6370 = vpack.c.b16 %v4634, %v4626
        %v6371 = vpack.c.b16 %v4635, %v4627
        %v6372 = vpack.c.b16 %v4636, %v4628
        %v6373 = vpack.c.b16 %v4637, %v4629
        %v6374 = vpack.c.b16 %v4638, %v4630
        %v6375 = vpack.c.b16 %v4639, %v4631
        %v6376 = vpack.c.b16 %v4640, %v4632
        %v6377 = vpack.c.b16 %v4649, %v4641
        %v6378 = vpack.c.b16 %v4650, %v4642
        %v6379 = vpack.c.b16 %v4651, %v4643
        %v6380 = vpack.c.b16 %v4652, %v4644
        %v6381 = vpack.c.b16 %v4653, %v4645
        %v6382 = vpack.c.b16 %v4654, %v4646
        %v6383 = vpack.c.b16 %v4655, %v4647
        %v6384 = vpack.c.b16 %v4656, %v4648
        %v6385 = vpack.c.b16 %v4665, %v4657
        %v6386 = vpack.c.b16 %v4666, %v4658
        %v6387 = vpack.c.b16 %v4667, %v4659
        %v6388 = vpack.c.b16 %v4668, %v4660
        %v6389 = vpack.c.b16 %v4669, %v4661
        %v6390 = vpack.c.b16 %v4670, %v4662
        %v6391 = vpack.c.b16 %v4671, %v4663
        %v6392 = vpack.c.b16 %v4672, %v4664
        %v6393 = vpack.c.b16 %v4681, %v4673
        %v6394 = vpack.c.b16 %v4682, %v4674
        %v6395 = vpack.c.b16 %v4683, %v4675
        %v6396 = vpack.c.b16 %v4684, %v4676
        %v6397 = vpack.c.b16 %v4685, %v4677
        %v6398 = vpack.c.b16 %v4686, %v4678
        %v6399 = vpack.c.b16 %v4687, %v4679
        %v6400 = vpack.c.b16 %v4688, %v4680
        %v6401 = vpack.c.b16 %v4697, %v4689
        %v6402 = vpack.c.b16 %v4698, %v4690
        %v6403 = vpack.c.b16 %v4699, %v4691
        %v6404 = vpack.c.b16 %v4700, %v4692
        %v6405 = vpack.c.b16 %v4701, %v4693
        %v6406 = vpack.c.b16 %v4702, %v4694
        %v6407 = vpack.c.b16 %v4703, %v4695
        %v6408 = vpack.c.b16 %v4704, %v4696
        %v6409 = vpack.c.b16 %v4713, %v4705
        %v6410 = vpack.c.b16 %v4714, %v4706
        %v6411 = vpack.c.b16 %v4715, %v4707
        %v6412 = vpack.c.b16 %v4716, %v4708
        %v6413 = vpack.c.b16 %v4717, %v4709
        %v6414 = vpack.c.b16 %v4718, %v4710
        %v6415 = vpack.c.b16 %v4719, %v4711
        %v6416 = vpack.c.b16 %v4720, %v4712
        %v6417 = vpack.c.b16 %v4729, %v4721
        %v6418 = vpack.c.b16 %v4730, %v4722
        %v6419 = vpack.c.b16 %v4731, %v4723
        %v6420 = vpack.c.b16 %v4732, %v4724
        %v6421 = vpack.c.b16 %v4733, %v4725
        %v6422 = vpack.c.b16 %v4734, %v4726
        %v6423 = vpack.c.b16 %v4735, %v4727
        %v6424 = vpack.c.b16 %v4736, %v4728
        %v6425 = vpack.c.b16 %v4745, %v4737
        %v6426 = vpack.c.b16 %v4746, %v4738
        %v6427 = vpack.c.b16 %v4747, %v4739
        %v6428 = vpack.c.b16 %v4748, %v4740
        %v6429 = vpack.c.b16 %v4749, %v4741
        %v6430 = vpack.c.b16 %v4750, %v4742
        %v6431 = vpack.c.b16 %v4751, %v4743
        %v6432 = vpack.c.b16 %v4752, %v4744
        %v6433 = vpack.c.b16 %v4761, %v4753
        %v6434 = vpack.c.b16 %v4762, %v4754
        %v6435 = vpack.c.b16 %v4763, %v4755
        %v6436 = vpack.c.b16 %v4764, %v4756
        %v6437 = vpack.c.b16 %v4765, %v4757
        %v6438 = vpack.c.b16 %v4766, %v4758
        %v6439 = vpack.c.b16 %v4767, %v4759
        %v6440 = vpack.c.b16 %v4768, %v4760
        %v6441 = vpack.c.b16 %v4777, %v4769
        %v6442 = vpack.c.b16 %v4778, %v4770
        %v6443 = vpack.c.b16 %v4779, %v4771
        %v6444 = vpack.c.b16 %v4780, %v4772
        %v6445 = vpack.c.b16 %v4781, %v4773
        %v6446 = vpack.c.b16 %v4782, %v4774
        %v6447 = vpack.c.b16 %v4783, %v4775
        %v6448 = vpack.c.b16 %v4784, %v4776
        %v6449 = vpack.c.b16 %v4793, %v4785
        %v6450 = vpack.c.b16 %v4794, %v4786
        %v6451 = vpack.c.b16 %v4795, %v4787
        %v6452 = vpack.c.b16 %v4796, %v4788
        %v6453 = vpack.c.b16 %v4797, %v4789
        %v6454 = vpack.c.b16 %v4798, %v4790
        %v6455 = vpack.c.b16 %v4799, %v4791
        %v6456 = vpack.c.b16 %v4800, %v4792
        %v6457 = vpack.c.b16 %v4809, %v4801
        %v6458 = vpack.c.b16 %v4810, %v4802
        %v6459 = vpack.c.b16 %v4811, %v4803
        %v6460 = vpack.c.b16 %v4812, %v4804
        %v6461 = vpack.c.b16 %v4813, %v4805
        %v6462 = vpack.c.b16 %v4814, %v4806
        %v6463 = vpack.c.b16 %v4815, %v4807
        %v6464 = vpack.c.b16 %v4816, %v4808
        %v6465 = vpack.c.b16 %v4825, %v4817
        %v6466 = vpack.c.b16 %v4826, %v4818
        %v6467 = vpack.c.b16 %v4827, %v4819
        %v6468 = vpack.c.b16 %v4828, %v4820
        %v6469 = vpack.c.b16 %v4829, %v4821
        %v6470 = vpack.c.b16 %v4830, %v4822
        %v6471 = vpack.c.b16 %v4831, %v4823
        %v6472 = vpack.c.b16 %v4832, %v4824
        %v6473 = vpack.c.b16 %v4841, %v4833
        %v6474 = vpack.c.b16 %v4842, %v4834
        %v6475 = vpack.c.b16 %v4843, %v4835
        %v6476 = vpack.c.b16 %v4844, %v4836
        %v6477 = vpack.c.b16 %v4845, %v4837
        %v6478 = vpack.c.b16 %v4846, %v4838
        %v6479 = vpack.c.b16 %v4847, %v4839
        %v6480 = vpack.c.b16 %v4848, %v4840
        %v6481 = vpack.c.b16 %v4857, %v4849
        %v6482 = vpack.c.b16 %v4858, %v4850
        %v6483 = vpack.c.b16 %v4859, %v4851
        %v6484 = vpack.c.b16 %v4860, %v4852
        %v6485 = vpack.c.b16 %v4861, %v4853
        %v6486 = vpack.c.b16 %v4862, %v4854
        %v6487 = vpack.c.b16 %v4863, %v4855
        %v6488 = vpack.c.b16 %v4864, %v4856
        %v6489 = vpack.c.b16 %v4873, %v4865
        %v6490 = vpack.c.b16 %v4874, %v4866
        %v6491 = vpack.c.b16 %v4875, %v4867
        %v6492 = vpack.c.b16 %v4876, %v4868
        %v6493 = vpack.c.b16 %v4877, %v4869
        %v6494 = vpack.c.b16 %v4878, %v4870
        %v6495 = vpack.c.b16 %v4879, %v4871
        %v6496 = vpack.c.b16 %v4880, %v4872
        %v6497 = vpack.c.b16 %v4889, %v4881
        %v6498 = vpack.c.b16 %v4890, %v4882
        %v6499 = vpack.c.b16 %v4891, %v4883
        %v6500 = vpack.c.b16 %v4892, %v4884
        %v6501 = vpack.c.b16 %v4893, %v4885
        %v6502 = vpack.c.b16 %v4894, %v4886
        %v6503 = vpack.c.b16 %v4895, %v4887
        %v6504 = vpack.c.b16 %v4896, %v4888
        %v6505 = vpack.c.b16 %v4905, %v4897
        %v6506 = vpack.c.b16 %v4906, %v4898
        %v6507 = vpack.c.b16 %v4907, %v4899
        %v6508 = vpack.c.b16 %v4908, %v4900
        %v6509 = vpack.c.b16 %v4909, %v4901
        %v6510 = vpack.c.b16 %v4910, %v4902
        %v6511 = vpack.c.b16 %v4911, %v4903
        %v6512 = vpack.c.b16 %v4912, %v4904
        %v6513 = vpack.c.b16 %v4921, %v4913
        %v6514 = vpack.c.b16 %v4922, %v4914
        %v6515 = vpack.c.b16 %v4923, %v4915
        %v6516 = vpack.c.b16 %v4924, %v4916
        %v6517 = vpack.c.b16 %v4925, %v4917
        %v6518 = vpack.c.b16 %v4926, %v4918
        %v6519 = vpack.c.b16 %v4927, %v4919
        %v6520 = vpack.c.b16 %v4928, %v4920
        %v6521 = vpack.c.b16 %v4937, %v4929
        %v6522 = vpack.c.b16 %v4938, %v4930
        %v6523 = vpack.c.b16 %v4939, %v4931
        %v6524 = vpack.c.b16 %v4940, %v4932
        %v6525 = vpack.c.b16 %v4941, %v4933
        %v6526 = vpack.c.b16 %v4942, %v4934
        %v6527 = vpack.c.b16 %v4943, %v4935
        %v6528 = vpack.c.b16 %v4944, %v4936
        %v6529 = vpack.c.b16 %v4953, %v4945
        %v6530 = vpack.c.b16 %v4954, %v4946
        %v6531 = vpack.c.b16 %v4955, %v4947
        %v6532 = vpack.c.b16 %v4956, %v4948
        %v6533 = vpack.c.b16 %v4957, %v4949
        %v6534 = vpack.c.b16 %v4958, %v4950
        %v6535 = vpack.c.b16 %v4959, %v4951
        %v6536 = vpack.c.b16 %v4960, %v4952
        %v6537 = vpack.c.b16 %v4969, %v4961
        %v6538 = vpack.c.b16 %v4970, %v4962
        %v6539 = vpack.c.b16 %v4971, %v4963
        %v6540 = vpack.c.b16 %v4972, %v4964
        %v6541 = vpack.c.b16 %v4973, %v4965
        %v6542 = vpack.c.b16 %v4974, %v4966
        %v6543 = vpack.c.b16 %v4975, %v4967
        %v6544 = vpack.c.b16 %v4976, %v4968
        %v6545 = vpack.c.b16 %v4985, %v4977
        %v6546 = vpack.c.b16 %v4986, %v4978
        %v6547 = vpack.c.b16 %v4987, %v4979
        %v6548 = vpack.c.b16 %v4988, %v4980
        %v6549 = vpack.c.b16 %v4989, %v4981
        %v6550 = vpack.c.b16 %v4990, %v4982
        %v6551 = vpack.c.b16 %v4991, %v4983
        %v6552 = vpack.c.b16 %v4992, %v4984
        %v6553 = vpack.c.b16 %v5001, %v4993
        %v6554 = vpack.c.b16 %v5002, %v4994
        %v6555 = vpack.c.b16 %v5003, %v4995
        %v6556 = vpack.c.b16 %v5004, %v4996
        %v6557 = vpack.c.b16 %v5005, %v4997
        %v6558 = vpack.c.b16 %v5006, %v4998
        %v6559 = vpack.c.b16 %v5007, %v4999
        %v6560 = vpack.c.b16 %v5008, %v5000
        %v6561 = vpack.c.b16 %v5017, %v5009
        %v6562 = vpack.c.b16 %v5018, %v5010
        %v6563 = vpack.c.b16 %v5019, %v5011
        %v6564 = vpack.c.b16 %v5020, %v5012
        %v6565 = vpack.c.b16 %v5021, %v5013
        %v6566 = vpack.c.b16 %v5022, %v5014
        %v6567 = vpack.c.b16 %v5023, %v5015
        %v6568 = vpack.c.b16 %v5024, %v5016
        %v6569 = vpack.c.b16 %v5033, %v5025
        %v6570 = vpack.c.b16 %v5034, %v5026
        %v6571 = vpack.c.b16 %v5035, %v5027
        %v6572 = vpack.c.b16 %v5036, %v5028
        %v6573 = vpack.c.b16 %v5037, %v5029
        %v6574 = vpack.c.b16 %v5038, %v5030
        %v6575 = vpack.c.b16 %v5039, %v5031
        %v6576 = vpack.c.b16 %v5040, %v5032
        %v6577 = vpack.c.b16 %v5049, %v5041
        %v6578 = vpack.c.b16 %v5050, %v5042
        %v6579 = vpack.c.b16 %v5051, %v5043
        %v6580 = vpack.c.b16 %v5052, %v5044
        %v6581 = vpack.c.b16 %v5053, %v5045
        %v6582 = vpack.c.b16 %v5054, %v5046
        %v6583 = vpack.c.b16 %v5055, %v5047
        %v6584 = vpack.c.b16 %v5056, %v5048
        %v6585 = vpack.c.b16 %v5065, %v5057
        %v6586 = vpack.c.b16 %v5066, %v5058
        %v6587 = vpack.c.b16 %v5067, %v5059
        %v6588 = vpack.c.b16 %v5068, %v5060
        %v6589 = vpack.c.b16 %v5069, %v5061
        %v6590 = vpack.c.b16 %v5070, %v5062
        %v6591 = vpack.c.b16 %v5071, %v5063
        %v6592 = vpack.c.b16 %v5072, %v5064
        %v6593 = vpack.c.b16 %v5081, %v5073
        %v6594 = vpack.c.b16 %v5082, %v5074
        %v6595 = vpack.c.b16 %v5083, %v5075
        %v6596 = vpack.c.b16 %v5084, %v5076
        %v6597 = vpack.c.b16 %v5085, %v5077
        %v6598 = vpack.c.b16 %v5086, %v5078
        %v6599 = vpack.c.b16 %v5087, %v5079
        %v6600 = vpack.c.b16 %v5088, %v5080
        %v6601 = vpack.c.b16 %v5097, %v5089
        %v6602 = vpack.c.b16 %v5098, %v5090
        %v6603 = vpack.c.b16 %v5099, %v5091
        %v6604 = vpack.c.b16 %v5100, %v5092
        %v6605 = vpack.c.b16 %v5101, %v5093
        %v6606 = vpack.c.b16 %v5102, %v5094
        %v6607 = vpack.c.b16 %v5103, %v5095
        %v6608 = vpack.c.b16 %v5104, %v5096
        %v6609 = vpack.c.b16 %v5113, %v5105
        %v6610 = vpack.c.b16 %v5114, %v5106
        %v6611 = vpack.c.b16 %v5115, %v5107
        %v6612 = vpack.c.b16 %v5116, %v5108
        %v6613 = vpack.c.b16 %v5117, %v5109
        %v6614 = vpack.c.b16 %v5118, %v5110
        %v6615 = vpack.c.b16 %v5119, %v5111
        %v6616 = vpack.c.b16 %v5120, %v5112
        %v6617 = vpack.c.b16 %v5129, %v5121
        %v6618 = vpack.c.b16 %v5130, %v5122
        %v6619 = vpack.c.b16 %v5131, %v5123
        %v6620 = vpack.c.b16 %v5132, %v5124
        %v6621 = vpack.c.b16 %v5133, %v5125
        %v6622 = vpack.c.b16 %v5134, %v5126
        %v6623 = vpack.c.b16 %v5135, %v5127
        %v6624 = vpack.c.b16 %v5136, %v5128
        %v6625 = vpack.c.b16 %v5145, %v5137
        %v6626 = vpack.c.b16 %v5146, %v5138
        %v6627 = vpack.c.b16 %v5147, %v5139
        %v6628 = vpack.c.b16 %v5148, %v5140
        %v6629 = vpack.c.b16 %v5149, %v5141
        %v6630 = vpack.c.b16 %v5150, %v5142
        %v6631 = vpack.c.b16 %v5151, %v5143
        %v6632 = vpack.c.b16 %v5152, %v5144
        %v6633 = vpack.c.b16 %v5161, %v5153
        %v6634 = vpack.c.b16 %v5162, %v5154
        %v6635 = vpack.c.b16 %v5163, %v5155
        %v6636 = vpack.c.b16 %v5164, %v5156
        %v6637 = vpack.c.b16 %v5165, %v5157
        %v6638 = vpack.c.b16 %v5166, %v5158
        %v6639 = vpack.c.b16 %v5167, %v5159
        %v6640 = vpack.c.b16 %v5168, %v5160
        %v6641 = vpack.c.b16 %v5177, %v5169
        %v6642 = vpack.c.b16 %v5178, %v5170
        %v6643 = vpack.c.b16 %v5179, %v5171
        %v6644 = vpack.c.b16 %v5180, %v5172
        %v6645 = vpack.c.b16 %v5181, %v5173
        %v6646 = vpack.c.b16 %v5182, %v5174
        %v6647 = vpack.c.b16 %v5183, %v5175
        %v6648 = vpack.c.b16 %v5184, %v5176
        %v6649 = vpack.c.b16 %v5193, %v5185
        %v6650 = vpack.c.b16 %v5194, %v5186
        %v6651 = vpack.c.b16 %v5195, %v5187
        %v6652 = vpack.c.b16 %v5196, %v5188
        %v6653 = vpack.c.b16 %v5197, %v5189
        %v6654 = vpack.c.b16 %v5198, %v5190
        %v6655 = vpack.c.b16 %v5199, %v5191
        %v6656 = vpack.c.b16 %v5200, %v5192
        %v6657 = vpack.c.b16 %v5209, %v5201
        %v6658 = vpack.c.b16 %v5210, %v5202
        %v6659 = vpack.c.b16 %v5211, %v5203
        %v6660 = vpack.c.b16 %v5212, %v5204
        %v6661 = vpack.c.b16 %v5213, %v5205
        %v6662 = vpack.c.b16 %v5214, %v5206
        %v6663 = vpack.c.b16 %v5215, %v5207
        %v6664 = vpack.c.b16 %v5216, %v5208
        %v6665 = vpack.c.b16 %v5225, %v5217
        %v6666 = vpack.c.b16 %v5226, %v5218
        %v6667 = vpack.c.b16 %v5227, %v5219
        %v6668 = vpack.c.b16 %v5228, %v5220
        %v6669 = vpack.c.b16 %v5229, %v5221
        %v6670 = vpack.c.b16 %v5230, %v5222
        %v6671 = vpack.c.b16 %v5231, %v5223
        %v6672 = vpack.c.b16 %v5232, %v5224
        %v6673 = vpack.c.b16 %v5241, %v5233
        %v6674 = vpack.c.b16 %v5242, %v5234
        %v6675 = vpack.c.b16 %v5243, %v5235
        %v6676 = vpack.c.b16 %v5244, %v5236
        %v6677 = vpack.c.b16 %v5245, %v5237
        %v6678 = vpack.c.b16 %v5246, %v5238
        %v6679 = vpack.c.b16 %v5247, %v5239
        %v6680 = vpack.c.b16 %v5248, %v5240
        %v6681 = vpack.c.b16 %v5257, %v5249
        %v6682 = vpack.c.b16 %v5258, %v5250
        %v6683 = vpack.c.b16 %v5259, %v5251
        %v6684 = vpack.c.b16 %v5260, %v5252
        %v6685 = vpack.c.b16 %v5261, %v5253
        %v6686 = vpack.c.b16 %v5262, %v5254
        %v6687 = vpack.c.b16 %v5263, %v5255
        %v6688 = vpack.c.b16 %v5264, %v5256
        %v6689 = vpack.c.b16 %v5273, %v5265
        %v6690 = vpack.c.b16 %v5274, %v5266
        %v6691 = vpack.c.b16 %v5275, %v5267
        %v6692 = vpack.c.b16 %v5276, %v5268
        %v6693 = vpack.c.b16 %v5277, %v5269
        %v6694 = vpack.c.b16 %v5278, %v5270
        %v6695 = vpack.c.b16 %v5279, %v5271
        %v6696 = vpack.c.b16 %v5280, %v5272
        %v6697 = vpack.c.b16 %v5289, %v5281
        %v6698 = vpack.c.b16 %v5290, %v5282
        %v6699 = vpack.c.b16 %v5291, %v5283
        %v6700 = vpack.c.b16 %v5292, %v5284
        %v6701 = vpack.c.b16 %v5293, %v5285
        %v6702 = vpack.c.b16 %v5294, %v5286
        %v6703 = vpack.c.b16 %v5295, %v5287
        %v6704 = vpack.c.b16 %v5296, %v5288
        %v6705 = vpack.c.b16 %v5305, %v5297
        %v6706 = vpack.c.b16 %v5306, %v5298
        %v6707 = vpack.c.b16 %v5307, %v5299
        %v6708 = vpack.c.b16 %v5308, %v5300
        %v6709 = vpack.c.b16 %v5309, %v5301
        %v6710 = vpack.c.b16 %v5310, %v5302
        %v6711 = vpack.c.b16 %v5311, %v5303
        %v6712 = vpack.c.b16 %v5312, %v5304
        %v6713 = vpack.c.b16 %v5321, %v5313
        %v6714 = vpack.c.b16 %v5322, %v5314
        %v6715 = vpack.c.b16 %v5323, %v5315
        %v6716 = vpack.c.b16 %v5324, %v5316
        %v6717 = vpack.c.b16 %v5325, %v5317
        %v6718 = vpack.c.b16 %v5326, %v5318
        %v6719 = vpack.c.b16 %v5327, %v5319
        %v6720 = vpack.c.b16 %v5328, %v5320
        %v6721 = vpack.c.b16 %v5337, %v5329
        %v6722 = vpack.c.b16 %v5338, %v5330
        %v6723 = vpack.c.b16 %v5339, %v5331
        %v6724 = vpack.c.b16 %v5340, %v5332
        %v6725 = vpack.c.b16 %v5341, %v5333
        %v6726 = vpack.c.b16 %v5342, %v5334
        %v6727 = vpack.c.b16 %v5343, %v5335
        %v6728 = vpack.c.b16 %v5344, %v5336
        %v6729 = vpack.c.b16 %v5353, %v5345
        %v6730 = vpack.c.b16 %v5354, %v5346
        %v6731 = vpack.c.b16 %v5355, %v5347
        %v6732 = vpack.c.b16 %v5356, %v5348
        %v6733 = vpack.c.b16 %v5357, %v5349
        %v6734 = vpack.c.b16 %v5358, %v5350
        %v6735 = vpack.c.b16 %v5359, %v5351
        %v6736 = vpack.c.b16 %v5360, %v5352
        %v6737 = vpack.c.b16 %v5369, %v5361
        %v6738 = vpack.c.b16 %v5370, %v5362
        %v6739 = vpack.c.b16 %v5371, %v5363
        %v6740 = vpack.c.b16 %v5372, %v5364
        %v6741 = vpack.c.b16 %v5373, %v5365
        %v6742 = vpack.c.b16 %v5374, %v5366
        %v6743 = vpack.c.b16 %v5375, %v5367
        %v6744 = vpack.c.b16 %v5376, %v5368
        %v6745 = vpack.c.b16 %v5385, %v5377
        %v6746 = vpack.c.b16 %v5386, %v5378
        %v6747 = vpack.c.b16 %v5387, %v5379
        %v6748 = vpack.c.b16 %v5388, %v5380
        %v6749 = vpack.c.b16 %v5389, %v5381
        %v6750 = vpack.c.b16 %v5390, %v5382
        %v6751 = vpack.c.b16 %v5391, %v5383
        %v6752 = vpack.c.b16 %v5392, %v5384
        %v6753 = vpack.c.b16 %v5401, %v5393
        %v6754 = vpack.c.b16 %v5402, %v5394
        %v6755 = vpack.c.b16 %v5403, %v5395
        %v6756 = vpack.c.b16 %v5404, %v5396
        %v6757 = vpack.c.b16 %v5405, %v5397
        %v6758 = vpack.c.b16 %v5406, %v5398
        %v6759 = vpack.c.b16 %v5407, %v5399
        %v6760 = vpack.c.b16 %v5408, %v5400
        %v6761 = vpack.c.b16 %v5417, %v5409
        %v6762 = vpack.c.b16 %v5418, %v5410
        %v6763 = vpack.c.b16 %v5419, %v5411
        %v6764 = vpack.c.b16 %v5420, %v5412
        %v6765 = vpack.c.b16 %v5421, %v5413
        %v6766 = vpack.c.b16 %v5422, %v5414
        %v6767 = vpack.c.b16 %v5423, %v5415
        %v6768 = vpack.c.b16 %v5424, %v5416
        %v6769 = vpack.c.b16 %v5433, %v5425
        %v6770 = vpack.c.b16 %v5434, %v5426
        %v6771 = vpack.c.b16 %v5435, %v5427
        %v6772 = vpack.c.b16 %v5436, %v5428
        %v6773 = vpack.c.b16 %v5437, %v5429
        %v6774 = vpack.c.b16 %v5438, %v5430
        %v6775 = vpack.c.b16 %v5439, %v5431
        %v6776 = vpack.c.b16 %v5440, %v5432
        %v6777 = vpack.c.b16 %v5449, %v5441
        %v6778 = vpack.c.b16 %v5450, %v5442
        %v6779 = vpack.c.b16 %v5451, %v5443
        %v6780 = vpack.c.b16 %v5452, %v5444
        %v6781 = vpack.c.b16 %v5453, %v5445
        %v6782 = vpack.c.b16 %v5454, %v5446
        %v6783 = vpack.c.b16 %v5455, %v5447
        %v6784 = vpack.c.b16 %v5456, %v5448
        %v6785 = vpack.c.b16 %v5465, %v5457
        %v6786 = vpack.c.b16 %v5466, %v5458
        %v6787 = vpack.c.b16 %v5467, %v5459
        %v6788 = vpack.c.b16 %v5468, %v5460
        %v6789 = vpack.c.b16 %v5469, %v5461
        %v6790 = vpack.c.b16 %v5470, %v5462
        %v6791 = vpack.c.b16 %v5471, %v5463
        %v6792 = vpack.c.b16 %v5472, %v5464
        %v6793 = vpack.c.b16 %v5481, %v5473
        %v6794 = vpack.c.b16 %v5482, %v5474
        %v6795 = vpack.c.b16 %v5483, %v5475
        %v6796 = vpack.c.b16 %v5484, %v5476
        %v6797 = vpack.c.b16 %v5485, %v5477
        %v6798 = vpack.c.b16 %v5486, %v5478
        %v6799 = vpack.c.b16 %v5487, %v5479
        %v6800 = vpack.c.b16 %v5488, %v5480
        %v6801 = vpack.c.b16 %v5497, %v5489
        %v6802 = vpack.c.b16 %v5498, %v5490
        %v6803 = vpack.c.b16 %v5499, %v5491
        %v6804 = vpack.c.b16 %v5500, %v5492
        %v6805 = vpack.c.b16 %v5501, %v5493
        %v6806 = vpack.c.b16 %v5502, %v5494
        %v6807 = vpack.c.b16 %v5503, %v5495
        %v6808 = vpack.c.b16 %v5504, %v5496
        %v6809 = vpack.c.b16 %v5513, %v5505
        %v6810 = vpack.c.b16 %v5514, %v5506
        %v6811 = vpack.c.b16 %v5515, %v5507
        %v6812 = vpack.c.b16 %v5516, %v5508
        %v6813 = vpack.c.b16 %v5517, %v5509
        %v6814 = vpack.c.b16 %v5518, %v5510
        %v6815 = vpack.c.b16 %v5519, %v5511
        %v6816 = vpack.c.b16 %v5520, %v5512
        %v6817 = vpack.c.b16 %v5529, %v5521
        %v6818 = vpack.c.b16 %v5530, %v5522
        %v6819 = vpack.c.b16 %v5531, %v5523
        %v6820 = vpack.c.b16 %v5532, %v5524
        %v6821 = vpack.c.b16 %v5533, %v5525
        %v6822 = vpack.c.b16 %v5534, %v5526
        %v6823 = vpack.c.b16 %v5535, %v5527
        %v6824 = vpack.c.b16 %v5536, %v5528
        %v6825 = vpack.c.b16 %v5545, %v5537
        %v6826 = vpack.c.b16 %v5546, %v5538
        %v6827 = vpack.c.b16 %v5547, %v5539
        %v6828 = vpack.c.b16 %v5548, %v5540
        %v6829 = vpack.c.b16 %v5549, %v5541
        %v6830 = vpack.c.b16 %v5550, %v5542
        %v6831 = vpack.c.b16 %v5551, %v5543
        %v6832 = vpack.c.b16 %v5552, %v5544
        %8113 = vmatprep.subr.bf16.mxu0 %v5554
        %8114 = vmatpush1.bf16.msra.mxu0 %v5553
        %8115 = vmatprep.subr.bf16.mxu0 %v5562
        %8116 = vmatpush1.bf16.msra.mxu0 %v5561
        %8117 = vmatprep.subr.bf16.mxu0 %v5570
        %8118 = vmatpush1.bf16.msra.mxu0 %v5569
        %8119 = vmatprep.subr.bf16.mxu0 %v5578
        %8120 = vmatpush1.bf16.msra.mxu0 %v5577
        %8121 = vmatprep.subr.bf16.mxu0 %v5586
        %8122 = vmatpush1.bf16.msra.mxu0 %v5585
        %8123 = vmatprep.subr.bf16.mxu0 %v5594
        %8124 = vmatpush1.bf16.msra.mxu0 %v5593
        %8125 = vmatprep.subr.bf16.mxu0 %v5602
        %8126 = vmatpush1.bf16.msra.mxu0 %v5601
        %8127 = vmatprep.subr.bf16.mxu0 %v5610
        %8128 = vmatpush1.bf16.msra.mxu0 %v5609
        %8129 = vmatprep.subr.bf16.mxu0 %v5618
        %8130 = vmatpush1.bf16.msra.mxu0 %v5617
        %8131 = vmatprep.subr.bf16.mxu0 %v5626
        %8132 = vmatpush1.bf16.msra.mxu0 %v5625
        %8133 = vmatprep.subr.bf16.mxu0 %v5634
        %8134 = vmatpush1.bf16.msra.mxu0 %v5633
        %8135 = vmatprep.subr.bf16.mxu0 %v5642
        %8136 = vmatpush1.bf16.msra.mxu0 %v5641
        %8137 = vmatprep.subr.bf16.mxu0 %v5650
        %8138 = vmatpush1.bf16.msra.mxu0 %v5649
        %8139 = vmatprep.subr.bf16.mxu0 %v5658
        %8140 = vmatpush1.bf16.msra.mxu0 %v5657
        %8141 = vmatprep.subr.bf16.mxu0 %v5666
        %8142 = vmatpush1.bf16.msra.mxu0 %v5665
        %8143 = vmatprep.subr.bf16.mxu0 %v5674
        %8144 = vmatpush1.bf16.msra.mxu0 %v5673
        %8145 = vmatprep.mubr.bf16.mxu0 %v1674
        %8146 = vmatmul.mubr.bf16.gmra.mrb[0].mxu0 %v1673
        %v8147 = vpop.f32.mrb[0].mxu0
        %v8148 = vadd.f32 0.0, %v8147
        %v8149 = vpop.f32.mrb[0].mxu0
        %v8150 = vadd.f32 0.0, %v8149
        %v8151 = vpop.f32.mrb[0].mxu0
        %v8152 = vadd.f32 0.0, %v8151
        %v8153 = vpop.f32.mrb[0].mxu0
        %v8154 = vadd.f32 0.0, %v8153
        %8155 = vdwg.mxu0
        %8156 = vmatprep.subr.bf16.mxu0 %v5682
        %8157 = vmatpush1.bf16.msra.mxu0 %v5681
        %8158 = vmatprep.subr.bf16.mxu0 %v5690
        %8159 = vmatpush1.bf16.msra.mxu0 %v5689
        %8160 = vmatprep.subr.bf16.mxu0 %v5698
        %8161 = vmatpush1.bf16.msra.mxu0 %v5697
        %8162 = vmatprep.subr.bf16.mxu0 %v5706
        %8163 = vmatpush1.bf16.msra.mxu0 %v5705
        %8164 = vmatprep.subr.bf16.mxu0 %v5714
        %8165 = vmatpush1.bf16.msra.mxu0 %v5713
        %8166 = vmatprep.subr.bf16.mxu0 %v5722
        %8167 = vmatpush1.bf16.msra.mxu0 %v5721
        %8168 = vmatprep.subr.bf16.mxu0 %v5730
        %8169 = vmatpush1.bf16.msra.mxu0 %v5729
        %8170 = vmatprep.subr.bf16.mxu0 %v5738
        %8171 = vmatpush1.bf16.msra.mxu0 %v5737
        %8172 = vmatprep.subr.bf16.mxu0 %v5746
        %8173 = vmatpush1.bf16.msra.mxu0 %v5745
        %8174 = vmatprep.subr.bf16.mxu0 %v5754
        %8175 = vmatpush1.bf16.msra.mxu0 %v5753
        %8176 = vmatprep.subr.bf16.mxu0 %v5762
        %8177 = vmatpush1.bf16.msra.mxu0 %v5761
        %8178 = vmatprep.subr.bf16.mxu0 %v5770
        %8179 = vmatpush1.bf16.msra.mxu0 %v5769
        %8180 = vmatprep.subr.bf16.mxu0 %v5778
        %8181 = vmatpush1.bf16.msra.mxu0 %v5777
        %8182 = vmatprep.subr.bf16.mxu0 %v5786
        %8183 = vmatpush1.bf16.msra.mxu0 %v5785
        %8184 = vmatprep.subr.bf16.mxu0 %v5794
        %8185 = vmatpush1.bf16.msra.mxu0 %v5793
        %8186 = vmatprep.subr.bf16.mxu0 %v5802
        %8187 = vmatpush1.bf16.msra.mxu0 %v5801
        %8188 = vmatprep.mubr.bf16.mxu0 %v1676
        %8189 = vmatmul.mubr.bf16.gmra.mrb[0].mxu0 %v1675
        %v8190 = vpop.f32.mrb[0].mxu0
        %v8191 = vadd.f32 %v8148, %v8190
        %v8192 = vpop.f32.mrb[0].mxu0
        %v8193 = vadd.f32 %v8150, %v8192
        %v8194 = vpop.f32.mrb[0].mxu0
        %v8195 = vadd.f32 %v8152, %v8194
        %v8196 = vpop.f32.mrb[0].mxu0
        %v8197 = vadd.f32 %v8154, %v8196
        %8198 = vdwg.mxu0
        %8199 = vmatprep.subr.bf16.mxu0 %v5810
        %8200 = vmatpush1.bf16.msra.mxu0 %v5809
        %8201 = vmatprep.subr.bf16.mxu0 %v5818
        %8202 = vmatpush1.bf16.msra.mxu0 %v5817
        %8203 = vmatprep.subr.bf16.mxu0 %v5826
        %8204 = vmatpush1.bf16.msra.mxu0 %v5825
        %8205 = vmatprep.subr.bf16.mxu0 %v5834
        %8206 = vmatpush1.bf16.msra.mxu0 %v5833
        %8207 = vmatprep.subr.bf16.mxu0 %v5842
        %8208 = vmatpush1.bf16.msra.mxu0 %v5841
        %8209 = vmatprep.subr.bf16.mxu0 %v5850
        %8210 = vmatpush1.bf16.msra.mxu0 %v5849
        %8211 = vmatprep.subr.bf16.mxu0 %v5858
        %8212 = vmatpush1.bf16.msra.mxu0 %v5857
        %8213 = vmatprep.subr.bf16.mxu0 %v5866
        %8214 = vmatpush1.bf16.msra.mxu0 %v5865
        %8215 = vmatprep.subr.bf16.mxu0 %v5874
        %8216 = vmatpush1.bf16.msra.mxu0 %v5873
        %8217 = vmatprep.subr.bf16.mxu0 %v5882
        %8218 = vmatpush1.bf16.msra.mxu0 %v5881
        %8219 = vmatprep.subr.bf16.mxu0 %v5890
        %8220 = vmatpush1.bf16.msra.mxu0 %v5889
        %8221 = vmatprep.subr.bf16.mxu0 %v5898
        %8222 = vmatpush1.bf16.msra.mxu0 %v5897
        %8223 = vmatprep.subr.bf16.mxu0 %v5906
        %8224 = vmatpush1.bf16.msra.mxu0 %v5905
        %8225 = vmatprep.subr.bf16.mxu0 %v5914
        %8226 = vmatpush1.bf16.msra.mxu0 %v5913
        %8227 = vmatprep.subr.bf16.mxu0 %v5922
        %8228 = vmatpush1.bf16.msra.mxu0 %v5921
        %8229 = vmatprep.subr.bf16.mxu0 %v5930
        %8230 = vmatpush1.bf16.msra.mxu0 %v5929
        %8231 = vmatprep.mubr.bf16.mxu0 %v1678
        %8232 = vmatmul.mubr.bf16.gmra.mrb[0].mxu0 %v1677
        %v8233 = vpop.f32.mrb[0].mxu0
        %v8234 = vadd.f32 %v8191, %v8233
        %v8235 = vpop.f32.mrb[0].mxu0
        %v8236 = vadd.f32 %v8193, %v8235
        %v8237 = vpop.f32.mrb[0].mxu0
        %v8238 = vadd.f32 %v8195, %v8237
        %v8239 = vpop.f32.mrb[0].mxu0
        %v8240 = vadd.f32 %v8197, %v8239
        %8241 = vdwg.mxu0
        %8242 = vmatprep.subr.bf16.mxu0 %v5938
        %8243 = vmatpush1.bf16.msra.mxu0 %v5937
        %8244 = vmatprep.subr.bf16.mxu0 %v5946
        %8245 = vmatpush1.bf16.msra.mxu0 %v5945
        %8246 = vmatprep.subr.bf16.mxu0 %v5954
        %8247 = vmatpush1.bf16.msra.mxu0 %v5953
        %8248 = vmatprep.subr.bf16.mxu0 %v5962
        %8249 = vmatpush1.bf16.msra.mxu0 %v5961
        %8250 = vmatprep.subr.bf16.mxu0 %v5970
        %8251 = vmatpush1.bf16.msra.mxu0 %v5969
        %8252 = vmatprep.subr.bf16.mxu0 %v5978
        %8253 = vmatpush1.bf16.msra.mxu0 %v5977
        %8254 = vmatprep.subr.bf16.mxu0 %v5986
        %8255 = vmatpush1.bf16.msra.mxu0 %v5985
        %8256 = vmatprep.subr.bf16.mxu0 %v5994
        %8257 = vmatpush1.bf16.msra.mxu0 %v5993
        %8258 = vmatprep.subr.bf16.mxu0 %v6002
        %8259 = vmatpush1.bf16.msra.mxu0 %v6001
        %8260 = vmatprep.subr.bf16.mxu0 %v6010
        %8261 = vmatpush1.bf16.msra.mxu0 %v6009
        %8262 = vmatprep.subr.bf16.mxu0 %v6018
        %8263 = vmatpush1.bf16.msra.mxu0 %v6017
        %8264 = vmatprep.subr.bf16.mxu0 %v6026
        %8265 = vmatpush1.bf16.msra.mxu0 %v6025
        %8266 = vmatprep.subr.bf16.mxu0 %v6034
        %8267 = vmatpush1.bf16.msra.mxu0 %v6033
        %8268 = vmatprep.subr.bf16.mxu0 %v6042
        %8269 = vmatpush1.bf16.msra.mxu0 %v6041
        %8270 = vmatprep.subr.bf16.mxu0 %v6050
        %8271 = vmatpush1.bf16.msra.mxu0 %v6049
        %8272 = vmatprep.subr.bf16.mxu0 %v6058
        %8273 = vmatpush1.bf16.msra.mxu0 %v6057
        %8274 = vmatprep.mubr.bf16.mxu0 %v1680
        %8275 = vmatmul.mubr.bf16.gmra.mrb[0].mxu0 %v1679
        %v8276 = vpop.f32.mrb[0].mxu0
        %v8277 = vadd.f32 %v8234, %v8276
        %v8278 = vpop.f32.mrb[0].mxu0
        %v8279 = vadd.f32 %v8236, %v8278
        %v8280 = vpop.f32.mrb[0].mxu0
        %v8281 = vadd.f32 %v8238, %v8280
        %v8282 = vpop.f32.mrb[0].mxu0
        %v8283 = vadd.f32 %v8240, %v8282
        %8284 = vdwg.mxu0
        %8285 = vmatprep.subr.bf16.mxu0 %v6066
        %8286 = vmatpush1.bf16.msra.mxu0 %v6065
        %8287 = vmatprep.subr.bf16.mxu0 %v6074
        %8288 = vmatpush1.bf16.msra.mxu0 %v6073
        %8289 = vmatprep.subr.bf16.mxu0 %v6082
        %8290 = vmatpush1.bf16.msra.mxu0 %v6081
        %8291 = vmatprep.subr.bf16.mxu0 %v6090
        %8292 = vmatpush1.bf16.msra.mxu0 %v6089
        %8293 = vmatprep.subr.bf16.mxu0 %v6098
        %8294 = vmatpush1.bf16.msra.mxu0 %v6097
        %8295 = vmatprep.subr.bf16.mxu0 %v6106
        %8296 = vmatpush1.bf16.msra.mxu0 %v6105
        %8297 = vmatprep.subr.bf16.mxu0 %v6114
        %8298 = vmatpush1.bf16.msra.mxu0 %v6113
        %8299 = vmatprep.subr.bf16.mxu0 %v6122
        %8300 = vmatpush1.bf16.msra.mxu0 %v6121
        %8301 = vmatprep.subr.bf16.mxu0 %v6130
        %8302 = vmatpush1.bf16.msra.mxu0 %v6129
        %8303 = vmatprep.subr.bf16.mxu0 %v6138
        %8304 = vmatpush1.bf16.msra.mxu0 %v6137
        %8305 = vmatprep.subr.bf16.mxu0 %v6146
        %8306 = vmatpush1.bf16.msra.mxu0 %v6145
        %8307 = vmatprep.subr.bf16.mxu0 %v6154
        %8308 = vmatpush1.bf16.msra.mxu0 %v6153
        %8309 = vmatprep.subr.bf16.mxu0 %v6162
        %8310 = vmatpush1.bf16.msra.mxu0 %v6161
        %8311 = vmatprep.subr.bf16.mxu0 %v6170
        %8312 = vmatpush1.bf16.msra.mxu0 %v6169
        %8313 = vmatprep.subr.bf16.mxu0 %v6178
        %8314 = vmatpush1.bf16.msra.mxu0 %v6177
        %8315 = vmatprep.subr.bf16.mxu0 %v6186
        %8316 = vmatpush1.bf16.msra.mxu0 %v6185
        %8317 = vmatprep.mubr.bf16.mxu0 %v1682
        %8318 = vmatmul.mubr.bf16.gmra.mrb[0].mxu0 %v1681
        %v8319 = vpop.f32.mrb[0].mxu0
        %v8320 = vadd.f32 %v8277, %v8319
        %v8321 = vpop.f32.mrb[0].mxu0
        %v8322 = vadd.f32 %v8279, %v8321
        %v8323 = vpop.f32.mrb[0].mxu0
        %v8324 = vadd.f32 %v8281, %v8323
        %v8325 = vpop.f32.mrb[0].mxu0
        %v8326 = vadd.f32 %v8283, %v8325
        %8327 = vdwg.mxu0
        %8328 = vmatprep.subr.bf16.mxu0 %v6194
        %8329 = vmatpush1.bf16.msra.mxu0 %v6193
        %8330 = vmatprep.subr.bf16.mxu0 %v6202
        %8331 = vmatpush1.bf16.msra.mxu0 %v6201
        %8332 = vmatprep.subr.bf16.mxu0 %v6210
        %8333 = vmatpush1.bf16.msra.mxu0 %v6209
        %8334 = vmatprep.subr.bf16.mxu0 %v6218
        %8335 = vmatpush1.bf16.msra.mxu0 %v6217
        %8336 = vmatprep.subr.bf16.mxu0 %v6226
        %8337 = vmatpush1.bf16.msra.mxu0 %v6225
        %8338 = vmatprep.subr.bf16.mxu0 %v6234
        %8339 = vmatpush1.bf16.msra.mxu0 %v6233
        %8340 = vmatprep.subr.bf16.mxu0 %v6242
        %8341 = vmatpush1.bf16.msra.mxu0 %v6241
        %8342 = vmatprep.subr.bf16.mxu0 %v6250
        %8343 = vmatpush1.bf16.msra.mxu0 %v6249
        %8344 = vmatprep.subr.bf16.mxu0 %v6258
        %8345 = vmatpush1.bf16.msra.mxu0 %v6257
        %8346 = vmatprep.subr.bf16.mxu0 %v6266
        %8347 = vmatpush1.bf16.msra.mxu0 %v6265
        %8348 = vmatprep.subr.bf16.mxu0 %v6274
        %8349 = vmatpush1.bf16.msra.mxu0 %v6273
        %8350 = vmatprep.subr.bf16.mxu0 %v6282
        %8351 = vmatpush1.bf16.msra.mxu0 %v6281
        %8352 = vmatprep.subr.bf16.mxu0 %v6290
        %8353 = vmatpush1.bf16.msra.mxu0 %v6289
        %8354 = vmatprep.subr.bf16.mxu0 %v6298
        %8355 = vmatpush1.bf16.msra.mxu0 %v6297
        %8356 = vmatprep.subr.bf16.mxu0 %v6306
        %8357 = vmatpush1.bf16.msra.mxu0 %v6305
        %8358 = vmatprep.subr.bf16.mxu0 %v6314
        %8359 = vmatpush1.bf16.msra.mxu0 %v6313
        %8360 = vmatprep.mubr.bf16.mxu0 %v1684
        %8361 = vmatmul.mubr.bf16.gmra.mrb[0].mxu0 %v1683
        %v8362 = vpop.f32.mrb[0].mxu0
        %v8363 = vadd.f32 %v8320, %v8362
        %v8364 = vpop.f32.mrb[0].mxu0
        %v8365 = vadd.f32 %v8322, %v8364
        %v8366 = vpop.f32.mrb[0].mxu0
        %v8367 = vadd.f32 %v8324, %v8366
        %v8368 = vpop.f32.mrb[0].mxu0
        %v8369 = vadd.f32 %v8326, %v8368
        %8370 = vdwg.mxu0
        %8371 = vmatprep.subr.bf16.mxu0 %v6322
        %8372 = vmatpush1.bf16.msra.mxu0 %v6321
        %8373 = vmatprep.subr.bf16.mxu0 %v6330
        %8374 = vmatpush1.bf16.msra.mxu0 %v6329
        %8375 = vmatprep.subr.bf16.mxu0 %v6338
        %8376 = vmatpush1.bf16.msra.mxu0 %v6337
        %8377 = vmatprep.subr.bf16.mxu0 %v6346
        %8378 = vmatpush1.bf16.msra.mxu0 %v6345
        %8379 = vmatprep.subr.bf16.mxu0 %v6354
        %8380 = vmatpush1.bf16.msra.mxu0 %v6353
        %8381 = vmatprep.subr.bf16.mxu0 %v6362
        %8382 = vmatpush1.bf16.msra.mxu0 %v6361
        %8383 = vmatprep.subr.bf16.mxu0 %v6370
        %8384 = vmatpush1.bf16.msra.mxu0 %v6369
        %8385 = vmatprep.subr.bf16.mxu0 %v6378
        %8386 = vmatpush1.bf16.msra.mxu0 %v6377
        %8387 = vmatprep.subr.bf16.mxu0 %v6386
        %8388 = vmatpush1.bf16.msra.mxu0 %v6385
        %8389 = vmatprep.subr.bf16.mxu0 %v6394
        %8390 = vmatpush1.bf16.msra.mxu0 %v6393
        %8391 = vmatprep.subr.bf16.mxu0 %v6402
        %8392 = vmatpush1.bf16.msra.mxu0 %v6401
        %8393 = vmatprep.subr.bf16.mxu0 %v6410
        %8394 = vmatpush1.bf16.msra.mxu0 %v6409
        %8395 = vmatprep.subr.bf16.mxu0 %v6418
        %8396 = vmatpush1.bf16.msra.mxu0 %v6417
        %8397 = vmatprep.subr.bf16.mxu0 %v6426
        %8398 = vmatpush1.bf16.msra.mxu0 %v6425
        %8399 = vmatprep.subr.bf16.mxu0 %v6434
        %8400 = vmatpush1.bf16.msra.mxu0 %v6433
        %8401 = vmatprep.subr.bf16.mxu0 %v6442
        %8402 = vmatpush1.bf16.msra.mxu0 %v6441
        %8403 = vmatprep.mubr.bf16.mxu0 %v1686
        %8404 = vmatmul.mubr.bf16.gmra.mrb[0].mxu0 %v1685
        %v8405 = vpop.f32.mrb[0].mxu0
        %v8406 = vadd.f32 %v8363, %v8405
        %v8407 = vpop.f32.mrb[0].mxu0
        %v8408 = vadd.f32 %v8365, %v8407
        %v8409 = vpop.f32.mrb[0].mxu0
        %v8410 = vadd.f32 %v8367, %v8409
        %v8411 = vpop.f32.mrb[0].mxu0
        %v8412 = vadd.f32 %v8369, %v8411
        %8413 = vdwg.mxu0
        %8414 = vmatprep.subr.bf16.mxu0 %v6450
        %8415 = vmatpush1.bf16.msra.mxu0 %v6449
        %8416 = vmatprep.subr.bf16.mxu0 %v6458
        %8417 = vmatpush1.bf16.msra.mxu0 %v6457
        %8418 = vmatprep.subr.bf16.mxu0 %v6466
        %8419 = vmatpush1.bf16.msra.mxu0 %v6465
        %8420 = vmatprep.subr.bf16.mxu0 %v6474
        %8421 = vmatpush1.bf16.msra.mxu0 %v6473
        %8422 = vmatprep.subr.bf16.mxu0 %v6482
        %8423 = vmatpush1.bf16.msra.mxu0 %v6481
        %8424 = vmatprep.subr.bf16.mxu0 %v6490
        %8425 = vmatpush1.bf16.msra.mxu0 %v6489
        %8426 = vmatprep.subr.bf16.mxu0 %v6498
        %8427 = vmatpush1.bf16.msra.mxu0 %v6497
        %8428 = vmatprep.subr.bf16.mxu0 %v6506
        %8429 = vmatpush1.bf16.msra.mxu0 %v6505
        %8430 = vmatprep.subr.bf16.mxu0 %v6514
        %8431 = vmatpush1.bf16.msra.mxu0 %v6513
        %8432 = vmatprep.subr.bf16.mxu0 %v6522
        %8433 = vmatpush1.bf16.msra.mxu0 %v6521
        %8434 = vmatprep.subr.bf16.mxu0 %v6530
        %8435 = vmatpush1.bf16.msra.mxu0 %v6529
        %8436 = vmatprep.subr.bf16.mxu0 %v6538
        %8437 = vmatpush1.bf16.msra.mxu0 %v6537
        %8438 = vmatprep.subr.bf16.mxu0 %v6546
        %8439 = vmatpush1.bf16.msra.mxu0 %v6545
        %8440 = vmatprep.subr.bf16.mxu0 %v6554
        %8441 = vmatpush1.bf16.msra.mxu0 %v6553
        %8442 = vmatprep.subr.bf16.mxu0 %v6562
        %8443 = vmatpush1.bf16.msra.mxu0 %v6561
        %8444 = vmatprep.subr.bf16.mxu0 %v6570
        %8445 = vmatpush1.bf16.msra.mxu0 %v6569
        %8446 = vmatprep.mubr.bf16.mxu0 %v1688
        %8447 = vmatmul.mubr.bf16.gmra.mrb[0].mxu0 %v1687
        %v8448 = vpop.f32.mrb[0].mxu0
        %v8449 = vadd.f32 %v8406, %v8448
        %v8450 = vpop.f32.mrb[0].mxu0
        %v8451 = vadd.f32 %v8408, %v8450
        %v8452 = vpop.f32.mrb[0].mxu0
        %v8453 = vadd.f32 %v8410, %v8452
        %v8454 = vpop.f32.mrb[0].mxu0
        %v8455 = vadd.f32 %v8412, %v8454
        %8456 = vdwg.mxu0
        %8457 = vmatprep.subr.bf16.mxu0 %v6578
        %8458 = vmatpush1.bf16.msra.mxu0 %v6577
        %8459 = vmatprep.subr.bf16.mxu0 %v6586
        %8460 = vmatpush1.bf16.msra.mxu0 %v6585
        %8461 = vmatprep.subr.bf16.mxu0 %v6594
        %8462 = vmatpush1.bf16.msra.mxu0 %v6593
        %8463 = vmatprep.subr.bf16.mxu0 %v6602
        %8464 = vmatpush1.bf16.msra.mxu0 %v6601
        %8465 = vmatprep.subr.bf16.mxu0 %v6610
        %8466 = vmatpush1.bf16.msra.mxu0 %v6609
        %8467 = vmatprep.subr.bf16.mxu0 %v6618
        %8468 = vmatpush1.bf16.msra.mxu0 %v6617
        %8469 = vmatprep.subr.bf16.mxu0 %v6626
        %8470 = vmatpush1.bf16.msra.mxu0 %v6625
        %8471 = vmatprep.subr.bf16.mxu0 %v6634
        %8472 = vmatpush1.bf16.msra.mxu0 %v6633
        %8473 = vmatprep.subr.bf16.mxu0 %v6642
        %8474 = vmatpush1.bf16.msra.mxu0 %v6641
        %8475 = vmatprep.subr.bf16.mxu0 %v6650
        %8476 = vmatpush1.bf16.msra.mxu0 %v6649
        %8477 = vmatprep.subr.bf16.mxu0 %v6658
        %8478 = vmatpush1.bf16.msra.mxu0 %v6657
        %8479 = vmatprep.subr.bf16.mxu0 %v6666
        %8480 = vmatpush1.bf16.msra.mxu0 %v6665
        %8481 = vmatprep.subr.bf16.mxu0 %v6674
        %8482 = vmatpush1.bf16.msra.mxu0 %v6673
        %8483 = vmatprep.subr.bf16.mxu0 %v6682
        %8484 = vmatpush1.bf16.msra.mxu0 %v6681
        %8485 = vmatprep.subr.bf16.mxu0 %v6690
        %8486 = vmatpush1.bf16.msra.mxu0 %v6689
        %8487 = vmatprep.subr.bf16.mxu0 %v6698
        %8488 = vmatpush1.bf16.msra.mxu0 %v6697
        %8489 = vmatprep.mubr.bf16.mxu0 %v1690
        %8490 = vmatmul.mubr.bf16.gmra.mrb[0].mxu0 %v1689
        %v8491 = vpop.f32.mrb[0].mxu0
        %v8492 = vadd.f32 %v8449, %v8491
        %v8493 = vpop.f32.mrb[0].mxu0
        %v8494 = vadd.f32 %v8451, %v8493
        %v8495 = vpop.f32.mrb[0].mxu0
        %v8496 = vadd.f32 %v8453, %v8495
        %v8497 = vpop.f32.mrb[0].mxu0
        %v8498 = vadd.f32 %v8455, %v8497
        %8499 = vdwg.mxu0
        %8500 = vmatprep.subr.bf16.mxu0 %v6706
        %8501 = vmatpush1.bf16.msra.mxu0 %v6705
        %8502 = vmatprep.subr.bf16.mxu0 %v6714
        %8503 = vmatpush1.bf16.msra.mxu0 %v6713
        %8504 = vmatprep.subr.bf16.mxu0 %v6722
        %8505 = vmatpush1.bf16.msra.mxu0 %v6721
        %8506 = vmatprep.subr.bf16.mxu0 %v6730
        %8507 = vmatpush1.bf16.msra.mxu0 %v6729
        %8508 = vmatprep.subr.bf16.mxu0 %v6738
        %8509 = vmatpush1.bf16.msra.mxu0 %v6737
        %8510 = vmatprep.subr.bf16.mxu0 %v6746
        %8511 = vmatpush1.bf16.msra.mxu0 %v6745
        %8512 = vmatprep.subr.bf16.mxu0 %v6754
        %8513 = vmatpush1.bf16.msra.mxu0 %v6753
        %8514 = vmatprep.subr.bf16.mxu0 %v6762
        %8515 = vmatpush1.bf16.msra.mxu0 %v6761
        %8516 = vmatprep.subr.bf16.mxu0 %v6770
        %8517 = vmatpush1.bf16.msra.mxu0 %v6769
        %8518 = vmatprep.subr.bf16.mxu0 %v6778
        %8519 = vmatpush1.bf16.msra.mxu0 %v6777
        %8520 = vmatprep.subr.bf16.mxu0 %v6786
        %8521 = vmatpush1.bf16.msra.mxu0 %v6785
        %8522 = vmatprep.subr.bf16.mxu0 %v6794
        %8523 = vmatpush1.bf16.msra.mxu0 %v6793
        %8524 = vmatprep.subr.bf16.mxu0 %v6802
        %8525 = vmatpush1.bf16.msra.mxu0 %v6801
        %8526 = vmatprep.subr.bf16.mxu0 %v6810
        %8527 = vmatpush1.bf16.msra.mxu0 %v6809
        %8528 = vmatprep.subr.bf16.mxu0 %v6818
        %8529 = vmatpush1.bf16.msra.mxu0 %v6817
        %8530 = vmatprep.subr.bf16.mxu0 %v6826
        %8531 = vmatpush1.bf16.msra.mxu0 %v6825
        %8532 = vmatprep.mubr.bf16.mxu0 %v1692
        %8533 = vmatmul.mubr.bf16.gmra.mrb[0].mxu0 %v1691
        %v8534 = vpop.f32.mrb[0].mxu0
        %v8535 = vadd.f32 %v8492, %v8534
        %v8536 = vpop.f32.mrb[0].mxu0
        %v8537 = vadd.f32 %v8494, %v8536
        %v8538 = vpop.f32.mrb[0].mxu0
        %v8539 = vadd.f32 %v8496, %v8538
        %v8540 = vpop.f32.mrb[0].mxu0
        %v8541 = vadd.f32 %v8498, %v8540
        %8542 = vdwg.mxu0
        %8543 = vmatprep.subr.bf16.mxu0 %v5556
        %8544 = vmatpush1.bf16.msra.mxu0 %v5555
        %8545 = vmatprep.subr.bf16.mxu0 %v5564
        %8546 = vmatpush1.bf16.msra.mxu0 %v5563
        %8547 = vmatprep.subr.bf16.mxu0 %v5572
        %8548 = vmatpush1.bf16.msra.mxu0 %v5571
        %8549 = vmatprep.subr.bf16.mxu0 %v5580
        %8550 = vmatpush1.bf16.msra.mxu0 %v5579
        %8551 = vmatprep.subr.bf16.mxu0 %v5588
        %8552 = vmatpush1.bf16.msra.mxu0 %v5587
        %8553 = vmatprep.subr.bf16.mxu0 %v5596
        %8554 = vmatpush1.bf16.msra.mxu0 %v5595
        %8555 = vmatprep.subr.bf16.mxu0 %v5604
        %8556 = vmatpush1.bf16.msra.mxu0 %v5603
        %8557 = vmatprep.subr.bf16.mxu0 %v5612
        %8558 = vmatpush1.bf16.msra.mxu0 %v5611
        %8559 = vmatprep.subr.bf16.mxu0 %v5620
        %8560 = vmatpush1.bf16.msra.mxu0 %v5619
        %8561 = vmatprep.subr.bf16.mxu0 %v5628
        %8562 = vmatpush1.bf16.msra.mxu0 %v5627
        %8563 = vmatprep.subr.bf16.mxu0 %v5636
        %8564 = vmatpush1.bf16.msra.mxu0 %v5635
        %8565 = vmatprep.subr.bf16.mxu0 %v5644
        %8566 = vmatpush1.bf16.msra.mxu0 %v5643
        %8567 = vmatprep.subr.bf16.mxu0 %v5652
        %8568 = vmatpush1.bf16.msra.mxu0 %v5651
        %8569 = vmatprep.subr.bf16.mxu0 %v5660
        %8570 = vmatpush1.bf16.msra.mxu0 %v5659
        %8571 = vmatprep.subr.bf16.mxu0 %v5668
        %8572 = vmatpush1.bf16.msra.mxu0 %v5667
        %8573 = vmatprep.subr.bf16.mxu0 %v5676
        %8574 = vmatpush1.bf16.msra.mxu0 %v5675
        %8575 = vmatprep.mubr.bf16.mxu0 %v1674
        %8576 = vmatmul.mubr.bf16.gmra.mrb[0].mxu0 %v1673
        %v8577 = vpop.f32.mrb[0].mxu0
        %v8578 = vadd.f32 0.0, %v8577
        %v8579 = vpop.f32.mrb[0].mxu0
        %v8580 = vadd.f32 0.0, %v8579
        %v8581 = vpop.f32.mrb[0].mxu0
        %v8582 = vadd.f32 0.0, %v8581
        %v8583 = vpop.f32.mrb[0].mxu0
        %v8584 = vadd.f32 0.0, %v8583
        %8585 = vdwg.mxu0
        %8586 = vmatprep.subr.bf16.mxu0 %v5684
        %8587 = vmatpush1.bf16.msra.mxu0 %v5683
        %8588 = vmatprep.subr.bf16.mxu0 %v5692
        %8589 = vmatpush1.bf16.msra.mxu0 %v5691
        %8590 = vmatprep.subr.bf16.mxu0 %v5700
        %8591 = vmatpush1.bf16.msra.mxu0 %v5699
        %8592 = vmatprep.subr.bf16.mxu0 %v5708
        %8593 = vmatpush1.bf16.msra.mxu0 %v5707
        %8594 = vmatprep.subr.bf16.mxu0 %v5716
        %8595 = vmatpush1.bf16.msra.mxu0 %v5715
        %8596 = vmatprep.subr.bf16.mxu0 %v5724
        %8597 = vmatpush1.bf16.msra.mxu0 %v5723
        %8598 = vmatprep.subr.bf16.mxu0 %v5732
        %8599 = vmatpush1.bf16.msra.mxu0 %v5731
        %8600 = vmatprep.subr.bf16.mxu0 %v5740
        %8601 = vmatpush1.bf16.msra.mxu0 %v5739
        %8602 = vmatprep.subr.bf16.mxu0 %v5748
        %8603 = vmatpush1.bf16.msra.mxu0 %v5747
        %8604 = vmatprep.subr.bf16.mxu0 %v5756
        %8605 = vmatpush1.bf16.msra.mxu0 %v5755
        %8606 = vmatprep.subr.bf16.mxu0 %v5764
        %8607 = vmatpush1.bf16.msra.mxu0 %v5763
        %8608 = vmatprep.subr.bf16.mxu0 %v5772
        %8609 = vmatpush1.bf16.msra.mxu0 %v5771
        %8610 = vmatprep.subr.bf16.mxu0 %v5780
        %8611 = vmatpush1.bf16.msra.mxu0 %v5779
        %8612 = vmatprep.subr.bf16.mxu0 %v5788
        %8613 = vmatpush1.bf16.msra.mxu0 %v5787
        %8614 = vmatprep.subr.bf16.mxu0 %v5796
        %8615 = vmatpush1.bf16.msra.mxu0 %v5795
        %8616 = vmatprep.subr.bf16.mxu0 %v5804
        %8617 = vmatpush1.bf16.msra.mxu0 %v5803
        %8618 = vmatprep.mubr.bf16.mxu0 %v1676
        %8619 = vmatmul.mubr.bf16.gmra.mrb[0].mxu0 %v1675
        %v8620 = vpop.f32.mrb[0].mxu0
        %v8621 = vadd.f32 %v8578, %v8620
        %v8622 = vpop.f32.mrb[0].mxu0
        %v8623 = vadd.f32 %v8580, %v8622
        %v8624 = vpop.f32.mrb[0].mxu0
        %v8625 = vadd.f32 %v8582, %v8624
        %v8626 = vpop.f32.mrb[0].mxu0
        %v8627 = vadd.f32 %v8584, %v8626
        %8628 = vdwg.mxu0
        %8629 = vmatprep.subr.bf16.mxu0 %v5812
        %8630 = vmatpush1.bf16.msra.mxu0 %v5811
        %8631 = vmatprep.subr.bf16.mxu0 %v5820
        %8632 = vmatpush1.bf16.msra.mxu0 %v5819
        %8633 = vmatprep.subr.bf16.mxu0 %v5828
        %8634 = vmatpush1.bf16.msra.mxu0 %v5827
        %8635 = vmatprep.subr.bf16.mxu0 %v5836
        %8636 = vmatpush1.bf16.msra.mxu0 %v5835
        %8637 = vmatprep.subr.bf16.mxu0 %v5844
        %8638 = vmatpush1.bf16.msra.mxu0 %v5843
        %8639 = vmatprep.subr.bf16.mxu0 %v5852
        %8640 = vmatpush1.bf16.msra.mxu0 %v5851
        %8641 = vmatprep.subr.bf16.mxu0 %v5860
        %8642 = vmatpush1.bf16.msra.mxu0 %v5859
        %8643 = vmatprep.subr.bf16.mxu0 %v5868
        %8644 = vmatpush1.bf16.msra.mxu0 %v5867
        %8645 = vmatprep.subr.bf16.mxu0 %v5876
        %8646 = vmatpush1.bf16.msra.mxu0 %v5875
        %8647 = vmatprep.subr.bf16.mxu0 %v5884
        %8648 = vmatpush1.bf16.msra.mxu0 %v5883
        %8649 = vmatprep.subr.bf16.mxu0 %v5892
        %8650 = vmatpush1.bf16.msra.mxu0 %v5891
        %8651 = vmatprep.subr.bf16.mxu0 %v5900
        %8652 = vmatpush1.bf16.msra.mxu0 %v5899
        %8653 = vmatprep.subr.bf16.mxu0 %v5908
        %8654 = vmatpush1.bf16.msra.mxu0 %v5907
        %8655 = vmatprep.subr.bf16.mxu0 %v5916
        %8656 = vmatpush1.bf16.msra.mxu0 %v5915
        %8657 = vmatprep.subr.bf16.mxu0 %v5924
        %8658 = vmatpush1.bf16.msra.mxu0 %v5923
        %8659 = vmatprep.subr.bf16.mxu0 %v5932
        %8660 = vmatpush1.bf16.msra.mxu0 %v5931
        %8661 = vmatprep.mubr.bf16.mxu0 %v1678
        %8662 = vmatmul.mubr.bf16.gmra.mrb[0].mxu0 %v1677
        %v8663 = vpop.f32.mrb[0].mxu0
        %v8664 = vadd.f32 %v8621, %v8663
        %v8665 = vpop.f32.mrb[0].mxu0
        %v8666 = vadd.f32 %v8623, %v8665
        %v8667 = vpop.f32.mrb[0].mxu0
        %v8668 = vadd.f32 %v8625, %v8667
        %v8669 = vpop.f32.mrb[0].mxu0
        %v8670 = vadd.f32 %v8627, %v8669
        %8671 = vdwg.mxu0
        %8672 = vmatprep.subr.bf16.mxu0 %v5940
        %8673 = vmatpush1.bf16.msra.mxu0 %v5939
        %8674 = vmatprep.subr.bf16.mxu0 %v5948
        %8675 = vmatpush1.bf16.msra.mxu0 %v5947
        %8676 = vmatprep.subr.bf16.mxu0 %v5956
        %8677 = vmatpush1.bf16.msra.mxu0 %v5955
        %8678 = vmatprep.subr.bf16.mxu0 %v5964
        %8679 = vmatpush1.bf16.msra.mxu0 %v5963
        %8680 = vmatprep.subr.bf16.mxu0 %v5972
        %8681 = vmatpush1.bf16.msra.mxu0 %v5971
        %8682 = vmatprep.subr.bf16.mxu0 %v5980
        %8683 = vmatpush1.bf16.msra.mxu0 %v5979
        %8684 = vmatprep.subr.bf16.mxu0 %v5988
        %8685 = vmatpush1.bf16.msra.mxu0 %v5987
        %8686 = vmatprep.subr.bf16.mxu0 %v5996
        %8687 = vmatpush1.bf16.msra.mxu0 %v5995
        %8688 = vmatprep.subr.bf16.mxu0 %v6004
        %8689 = vmatpush1.bf16.msra.mxu0 %v6003
        %8690 = vmatprep.subr.bf16.mxu0 %v6012
        %8691 = vmatpush1.bf16.msra.mxu0 %v6011
        %8692 = vmatprep.subr.bf16.mxu0 %v6020
        %8693 = vmatpush1.bf16.msra.mxu0 %v6019
        %8694 = vmatprep.subr.bf16.mxu0 %v6028
        %8695 = vmatpush1.bf16.msra.mxu0 %v6027
        %8696 = vmatprep.subr.bf16.mxu0 %v6036
        %8697 = vmatpush1.bf16.msra.mxu0 %v6035
        %8698 = vmatprep.subr.bf16.mxu0 %v6044
        %8699 = vmatpush1.bf16.msra.mxu0 %v6043
        %8700 = vmatprep.subr.bf16.mxu0 %v6052
        %8701 = vmatpush1.bf16.msra.mxu0 %v6051
        %8702 = vmatprep.subr.bf16.mxu0 %v6060
        %8703 = vmatpush1.bf16.msra.mxu0 %v6059
        %8704 = vmatprep.mubr.bf16.mxu0 %v1680
        %8705 = vmatmul.mubr.bf16.gmra.mrb[0].mxu0 %v1679
        %v8706 = vpop.f32.mrb[0].mxu0
        %v8707 = vadd.f32 %v8664, %v8706
        %v8708 = vpop.f32.mrb[0].mxu0
        %v8709 = vadd.f32 %v8666, %v8708
        %v8710 = vpop.f32.mrb[0].mxu0
        %v8711 = vadd.f32 %v8668, %v8710
        %v8712 = vpop.f32.mrb[0].mxu0
        %v8713 = vadd.f32 %v8670, %v8712
        %8714 = vdwg.mxu0
        %8715 = vmatprep.subr.bf16.mxu0 %v6068
        %8716 = vmatpush1.bf16.msra.mxu0 %v6067
        %8717 = vmatprep.subr.bf16.mxu0 %v6076
        %8718 = vmatpush1.bf16.msra.mxu0 %v6075
        %8719 = vmatprep.subr.bf16.mxu0 %v6084
        %8720 = vmatpush1.bf16.msra.mxu0 %v6083
        %8721 = vmatprep.subr.bf16.mxu0 %v6092
        %8722 = vmatpush1.bf16.msra.mxu0 %v6091
        %8723 = vmatprep.subr.bf16.mxu0 %v6100
        %8724 = vmatpush1.bf16.msra.mxu0 %v6099
        %8725 = vmatprep.subr.bf16.mxu0 %v6108
        %8726 = vmatpush1.bf16.msra.mxu0 %v6107
        %8727 = vmatprep.subr.bf16.mxu0 %v6116
        %8728 = vmatpush1.bf16.msra.mxu0 %v6115
        %8729 = vmatprep.subr.bf16.mxu0 %v6124
        %8730 = vmatpush1.bf16.msra.mxu0 %v6123
        %8731 = vmatprep.subr.bf16.mxu0 %v6132
        %8732 = vmatpush1.bf16.msra.mxu0 %v6131
        %8733 = vmatprep.subr.bf16.mxu0 %v6140
        %8734 = vmatpush1.bf16.msra.mxu0 %v6139
        %8735 = vmatprep.subr.bf16.mxu0 %v6148
        %8736 = vmatpush1.bf16.msra.mxu0 %v6147
        %8737 = vmatprep.subr.bf16.mxu0 %v6156
        %8738 = vmatpush1.bf16.msra.mxu0 %v6155
        %8739 = vmatprep.subr.bf16.mxu0 %v6164
        %8740 = vmatpush1.bf16.msra.mxu0 %v6163
        %8741 = vmatprep.subr.bf16.mxu0 %v6172
        %8742 = vmatpush1.bf16.msra.mxu0 %v6171
        %8743 = vmatprep.subr.bf16.mxu0 %v6180
        %8744 = vmatpush1.bf16.msra.mxu0 %v6179
        %8745 = vmatprep.subr.bf16.mxu0 %v6188
        %8746 = vmatpush1.bf16.msra.mxu0 %v6187
        %8747 = vmatprep.mubr.bf16.mxu0 %v1682
        %8748 = vmatmul.mubr.bf16.gmra.mrb[0].mxu0 %v1681
        %v8749 = vpop.f32.mrb[0].mxu0
        %v8750 = vadd.f32 %v8707, %v8749
        %v8751 = vpop.f32.mrb[0].mxu0
        %v8752 = vadd.f32 %v8709, %v8751
        %v8753 = vpop.f32.mrb[0].mxu0
        %v8754 = vadd.f32 %v8711, %v8753
        %v8755 = vpop.f32.mrb[0].mxu0
        %v8756 = vadd.f32 %v8713, %v8755
        %8757 = vdwg.mxu0
        %8758 = vmatprep.subr.bf16.mxu0 %v6196
        %8759 = vmatpush1.bf16.msra.mxu0 %v6195
        %8760 = vmatprep.subr.bf16.mxu0 %v6204
        %8761 = vmatpush1.bf16.msra.mxu0 %v6203
        %8762 = vmatprep.subr.bf16.mxu0 %v6212
        %8763 = vmatpush1.bf16.msra.mxu0 %v6211
        %8764 = vmatprep.subr.bf16.mxu0 %v6220
        %8765 = vmatpush1.bf16.msra.mxu0 %v6219
        %8766 = vmatprep.subr.bf16.mxu0 %v6228
        %8767 = vmatpush1.bf16.msra.mxu0 %v6227
        %8768 = vmatprep.subr.bf16.mxu0 %v6236
        %8769 = vmatpush1.bf16.msra.mxu0 %v6235
        %8770 = vmatprep.subr.bf16.mxu0 %v6244
        %8771 = vmatpush1.bf16.msra.mxu0 %v6243
        %8772 = vmatprep.subr.bf16.mxu0 %v6252
        %8773 = vmatpush1.bf16.msra.mxu0 %v6251
        %8774 = vmatprep.subr.bf16.mxu0 %v6260
        %8775 = vmatpush1.bf16.msra.mxu0 %v6259
        %8776 = vmatprep.subr.bf16.mxu0 %v6268
        %8777 = vmatpush1.bf16.msra.mxu0 %v6267
        %8778 = vmatprep.subr.bf16.mxu0 %v6276
        %8779 = vmatpush1.bf16.msra.mxu0 %v6275
        %8780 = vmatprep.subr.bf16.mxu0 %v6284
        %8781 = vmatpush1.bf16.msra.mxu0 %v6283
        %8782 = vmatprep.subr.bf16.mxu0 %v6292
        %8783 = vmatpush1.bf16.msra.mxu0 %v6291
        %8784 = vmatprep.subr.bf16.mxu0 %v6300
        %8785 = vmatpush1.bf16.msra.mxu0 %v6299
        %8786 = vmatprep.subr.bf16.mxu0 %v6308
        %8787 = vmatpush1.bf16.msra.mxu0 %v6307
        %8788 = vmatprep.subr.bf16.mxu0 %v6316
        %8789 = vmatpush1.bf16.msra.mxu0 %v6315
        %8790 = vmatprep.mubr.bf16.mxu0 %v1684
        %8791 = vmatmul.mubr.bf16.gmra.mrb[0].mxu0 %v1683
        %v8792 = vpop.f32.mrb[0].mxu0
        %v8793 = vadd.f32 %v8750, %v8792
        %v8794 = vpop.f32.mrb[0].mxu0
        %v8795 = vadd.f32 %v8752, %v8794
        %v8796 = vpop.f32.mrb[0].mxu0
        %v8797 = vadd.f32 %v8754, %v8796
        %v8798 = vpop.f32.mrb[0].mxu0
        %v8799 = vadd.f32 %v8756, %v8798
        %8800 = vdwg.mxu0
        %8801 = vmatprep.subr.bf16.mxu0 %v6324
        %8802 = vmatpush1.bf16.msra.mxu0 %v6323
        %8803 = vmatprep.subr.bf16.mxu0 %v6332
        %8804 = vmatpush1.bf16.msra.mxu0 %v6331
        %8805 = vmatprep.subr.bf16.mxu0 %v6340
        %8806 = vmatpush1.bf16.msra.mxu0 %v6339
        %8807 = vmatprep.subr.bf16.mxu0 %v6348
        %8808 = vmatpush1.bf16.msra.mxu0 %v6347
        %8809 = vmatprep.subr.bf16.mxu0 %v6356
        %8810 = vmatpush1.bf16.msra.mxu0 %v6355
        %8811 = vmatprep.subr.bf16.mxu0 %v6364
        %8812 = vmatpush1.bf16.msra.mxu0 %v6363
        %8813 = vmatprep.subr.bf16.mxu0 %v6372
        %8814 = vmatpush1.bf16.msra.mxu0 %v6371
        %8815 = vmatprep.subr.bf16.mxu0 %v6380
        %8816 = vmatpush1.bf16.msra.mxu0 %v6379
        %8817 = vmatprep.subr.bf16.mxu0 %v6388
        %8818 = vmatpush1.bf16.msra.mxu0 %v6387
        %8819 = vmatprep.subr.bf16.mxu0 %v6396
        %8820 = vmatpush1.bf16.msra.mxu0 %v6395
        %8821 = vmatprep.subr.bf16.mxu0 %v6404
        %8822 = vmatpush1.bf16.msra.mxu0 %v6403
        %8823 = vmatprep.subr.bf16.mxu0 %v6412
        %8824 = vmatpush1.bf16.msra.mxu0 %v6411
        %8825 = vmatprep.subr.bf16.mxu0 %v6420
        %8826 = vmatpush1.bf16.msra.mxu0 %v6419
        %8827 = vmatprep.subr.bf16.mxu0 %v6428
        %8828 = vmatpush1.bf16.msra.mxu0 %v6427
        %8829 = vmatprep.subr.bf16.mxu0 %v6436
        %8830 = vmatpush1.bf16.msra.mxu0 %v6435
        %8831 = vmatprep.subr.bf16.mxu0 %v6444
        %8832 = vmatpush1.bf16.msra.mxu0 %v6443
        %8833 = vmatprep.mubr.bf16.mxu0 %v1686
        %8834 = vmatmul.mubr.bf16.gmra.mrb[0].mxu0 %v1685
        %v8835 = vpop.f32.mrb[0].mxu0
        %v8836 = vadd.f32 %v8793, %v8835
        %v8837 = vpop.f32.mrb[0].mxu0
        %v8838 = vadd.f32 %v8795, %v8837
        %v8839 = vpop.f32.mrb[0].mxu0
        %v8840 = vadd.f32 %v8797, %v8839
        %v8841 = vpop.f32.mrb[0].mxu0
        %v8842 = vadd.f32 %v8799, %v8841
        %8843 = vdwg.mxu0
        %8844 = vmatprep.subr.bf16.mxu0 %v6452
        %8845 = vmatpush1.bf16.msra.mxu0 %v6451
        %8846 = vmatprep.subr.bf16.mxu0 %v6460
        %8847 = vmatpush1.bf16.msra.mxu0 %v6459
        %8848 = vmatprep.subr.bf16.mxu0 %v6468
        %8849 = vmatpush1.bf16.msra.mxu0 %v6467
        %8850 = vmatprep.subr.bf16.mxu0 %v6476
        %8851 = vmatpush1.bf16.msra.mxu0 %v6475
        %8852 = vmatprep.subr.bf16.mxu0 %v6484
        %8853 = vmatpush1.bf16.msra.mxu0 %v6483
        %8854 = vmatprep.subr.bf16.mxu0 %v6492
        %8855 = vmatpush1.bf16.msra.mxu0 %v6491
        %8856 = vmatprep.subr.bf16.mxu0 %v6500
        %8857 = vmatpush1.bf16.msra.mxu0 %v6499
        %8858 = vmatprep.subr.bf16.mxu0 %v6508
        %8859 = vmatpush1.bf16.msra.mxu0 %v6507
        %8860 = vmatprep.subr.bf16.mxu0 %v6516
        %8861 = vmatpush1.bf16.msra.mxu0 %v6515
        %8862 = vmatprep.subr.bf16.mxu0 %v6524
        %8863 = vmatpush1.bf16.msra.mxu0 %v6523
        %8864 = vmatprep.subr.bf16.mxu0 %v6532
        %8865 = vmatpush1.bf16.msra.mxu0 %v6531
        %8866 = vmatprep.subr.bf16.mxu0 %v6540
        %8867 = vmatpush1.bf16.msra.mxu0 %v6539
        %8868 = vmatprep.subr.bf16.mxu0 %v6548
        %8869 = vmatpush1.bf16.msra.mxu0 %v6547
        %8870 = vmatprep.subr.bf16.mxu0 %v6556
        %8871 = vmatpush1.bf16.msra.mxu0 %v6555
        %8872 = vmatprep.subr.bf16.mxu0 %v6564
        %8873 = vmatpush1.bf16.msra.mxu0 %v6563
        %8874 = vmatprep.subr.bf16.mxu0 %v6572
        %8875 = vmatpush1.bf16.msra.mxu0 %v6571
        %8876 = vmatprep.mubr.bf16.mxu0 %v1688
        %8877 = vmatmul.mubr.bf16.gmra.mrb[0].mxu0 %v1687
        %v8878 = vpop.f32.mrb[0].mxu0
        %v8879 = vadd.f32 %v8836, %v8878
        %v8880 = vpop.f32.mrb[0].mxu0
        %v8881 = vadd.f32 %v8838, %v8880
        %v8882 = vpop.f32.mrb[0].mxu0
        %v8883 = vadd.f32 %v8840, %v8882
        %v8884 = vpop.f32.mrb[0].mxu0
        %v8885 = vadd.f32 %v8842, %v8884
        %8886 = vdwg.mxu0
        %8887 = vmatprep.subr.bf16.mxu0 %v6580
        %8888 = vmatpush1.bf16.msra.mxu0 %v6579
        %8889 = vmatprep.subr.bf16.mxu0 %v6588
        %8890 = vmatpush1.bf16.msra.mxu0 %v6587
        %8891 = vmatprep.subr.bf16.mxu0 %v6596
        %8892 = vmatpush1.bf16.msra.mxu0 %v6595
        %8893 = vmatprep.subr.bf16.mxu0 %v6604
        %8894 = vmatpush1.bf16.msra.mxu0 %v6603
        %8895 = vmatprep.subr.bf16.mxu0 %v6612
        %8896 = vmatpush1.bf16.msra.mxu0 %v6611
        %8897 = vmatprep.subr.bf16.mxu0 %v6620
        %8898 = vmatpush1.bf16.msra.mxu0 %v6619
        %8899 = vmatprep.subr.bf16.mxu0 %v6628
        %8900 = vmatpush1.bf16.msra.mxu0 %v6627
        %8901 = vmatprep.subr.bf16.mxu0 %v6636
        %8902 = vmatpush1.bf16.msra.mxu0 %v6635
        %8903 = vmatprep.subr.bf16.mxu0 %v6644
        %8904 = vmatpush1.bf16.msra.mxu0 %v6643
        %8905 = vmatprep.subr.bf16.mxu0 %v6652
        %8906 = vmatpush1.bf16.msra.mxu0 %v6651
        %8907 = vmatprep.subr.bf16.mxu0 %v6660
        %8908 = vmatpush1.bf16.msra.mxu0 %v6659
        %8909 = vmatprep.subr.bf16.mxu0 %v6668
        %8910 = vmatpush1.bf16.msra.mxu0 %v6667
        %8911 = vmatprep.subr.bf16.mxu0 %v6676
        %8912 = vmatpush1.bf16.msra.mxu0 %v6675
        %8913 = vmatprep.subr.bf16.mxu0 %v6684
        %8914 = vmatpush1.bf16.msra.mxu0 %v6683
        %8915 = vmatprep.subr.bf16.mxu0 %v6692
        %8916 = vmatpush1.bf16.msra.mxu0 %v6691
        %8917 = vmatprep.subr.bf16.mxu0 %v6700
        %8918 = vmatpush1.bf16.msra.mxu0 %v6699
        %8919 = vmatprep.mubr.bf16.mxu0 %v1690
        %8920 = vmatmul.mubr.bf16.gmra.mrb[0].mxu0 %v1689
        %v8921 = vpop.f32.mrb[0].mxu0
        %v8922 = vadd.f32 %v8879, %v8921
        %v8923 = vpop.f32.mrb[0].mxu0
        %v8924 = vadd.f32 %v8881, %v8923
        %v8925 = vpop.f32.mrb[0].mxu0
        %v8926 = vadd.f32 %v8883, %v8925
        %v8927 = vpop.f32.mrb[0].mxu0
        %v8928 = vadd.f32 %v8885, %v8927
        %8929 = vdwg.mxu0
        %8930 = vmatprep.subr.bf16.mxu0 %v6708
        %8931 = vmatpush1.bf16.msra.mxu0 %v6707
        %8932 = vmatprep.subr.bf16.mxu0 %v6716
        %8933 = vmatpush1.bf16.msra.mxu0 %v6715
        %8934 = vmatprep.subr.bf16.mxu0 %v6724
        %8935 = vmatpush1.bf16.msra.mxu0 %v6723
        %8936 = vmatprep.subr.bf16.mxu0 %v6732
        %8937 = vmatpush1.bf16.msra.mxu0 %v6731
        %8938 = vmatprep.subr.bf16.mxu0 %v6740
        %8939 = vmatpush1.bf16.msra.mxu0 %v6739
        %8940 = vmatprep.subr.bf16.mxu0 %v6748
        %8941 = vmatpush1.bf16.msra.mxu0 %v6747
        %8942 = vmatprep.subr.bf16.mxu0 %v6756
        %8943 = vmatpush1.bf16.msra.mxu0 %v6755
        %8944 = vmatprep.subr.bf16.mxu0 %v6764
        %8945 = vmatpush1.bf16.msra.mxu0 %v6763
        %8946 = vmatprep.subr.bf16.mxu0 %v6772
        %8947 = vmatpush1.bf16.msra.mxu0 %v6771
        %8948 = vmatprep.subr.bf16.mxu0 %v6780
        %8949 = vmatpush1.bf16.msra.mxu0 %v6779
        %8950 = vmatprep.subr.bf16.mxu0 %v6788
        %8951 = vmatpush1.bf16.msra.mxu0 %v6787
        %8952 = vmatprep.subr.bf16.mxu0 %v6796
        %8953 = vmatpush1.bf16.msra.mxu0 %v6795
        %8954 = vmatprep.subr.bf16.mxu0 %v6804
        %8955 = vmatpush1.bf16.msra.mxu0 %v6803
        %8956 = vmatprep.subr.bf16.mxu0 %v6812
        %8957 = vmatpush1.bf16.msra.mxu0 %v6811
        %8958 = vmatprep.subr.bf16.mxu0 %v6820
        %8959 = vmatpush1.bf16.msra.mxu0 %v6819
        %8960 = vmatprep.subr.bf16.mxu0 %v6828
        %8961 = vmatpush1.bf16.msra.mxu0 %v6827
        %8962 = vmatprep.mubr.bf16.mxu0 %v1692
        %8963 = vmatmul.mubr.bf16.gmra.mrb[0].mxu0 %v1691
        %v8964 = vpop.f32.mrb[0].mxu0
        %v8965 = vadd.f32 %v8922, %v8964
        %v8966 = vpop.f32.mrb[0].mxu0
        %v8967 = vadd.f32 %v8924, %v8966
        %v8968 = vpop.f32.mrb[0].mxu0
        %v8969 = vadd.f32 %v8926, %v8968
        %v8970 = vpop.f32.mrb[0].mxu0
        %v8971 = vadd.f32 %v8928, %v8970
        %8972 = vdwg.mxu0
        %8973 = vmatprep.subr.bf16.mxu0 %v5558
        %8974 = vmatpush1.bf16.msra.mxu0 %v5557
        %8975 = vmatprep.subr.bf16.mxu0 %v5566
        %8976 = vmatpush1.bf16.msra.mxu0 %v5565
        %8977 = vmatprep.subr.bf16.mxu0 %v5574
        %8978 = vmatpush1.bf16.msra.mxu0 %v5573
        %8979 = vmatprep.subr.bf16.mxu0 %v5582
        %8980 = vmatpush1.bf16.msra.mxu0 %v5581
        %8981 = vmatprep.subr.bf16.mxu0 %v5590
        %8982 = vmatpush1.bf16.msra.mxu0 %v5589
        %8983 = vmatprep.subr.bf16.mxu0 %v5598
        %8984 = vmatpush1.bf16.msra.mxu0 %v5597
        %8985 = vmatprep.subr.bf16.mxu0 %v5606
        %8986 = vmatpush1.bf16.msra.mxu0 %v5605
        %8987 = vmatprep.subr.bf16.mxu0 %v5614
        %8988 = vmatpush1.bf16.msra.mxu0 %v5613
        %8989 = vmatprep.subr.bf16.mxu0 %v5622
        %8990 = vmatpush1.bf16.msra.mxu0 %v5621
        %8991 = vmatprep.subr.bf16.mxu0 %v5630
        %8992 = vmatpush1.bf16.msra.mxu0 %v5629
        %8993 = vmatprep.subr.bf16.mxu0 %v5638
        %8994 = vmatpush1.bf16.msra.mxu0 %v5637
        %8995 = vmatprep.subr.bf16.mxu0 %v5646
        %8996 = vmatpush1.bf16.msra.mxu0 %v5645
        %8997 = vmatprep.subr.bf16.mxu0 %v5654
        %8998 = vmatpush1.bf16.msra.mxu0 %v5653
        %8999 = vmatprep.subr.bf16.mxu0 %v5662
        %9000 = vmatpush1.bf16.msra.mxu0 %v5661
        %9001 = vmatprep.subr.bf16.mxu0 %v5670
        %9002 = vmatpush1.bf16.msra.mxu0 %v5669
        %9003 = vmatprep.subr.bf16.mxu0 %v5678
        %9004 = vmatpush1.bf16.msra.mxu0 %v5677
        %9005 = vmatprep.mubr.bf16.mxu0 %v1674
        %9006 = vmatmul.mubr.bf16.gmra.mrb[0].mxu0 %v1673
        %v9007 = vpop.f32.mrb[0].mxu0
        %v9008 = vadd.f32 0.0, %v9007
        %v9009 = vpop.f32.mrb[0].mxu0
        %v9010 = vadd.f32 0.0, %v9009
        %v9011 = vpop.f32.mrb[0].mxu0
        %v9012 = vadd.f32 0.0, %v9011
        %v9013 = vpop.f32.mrb[0].mxu0
        %v9014 = vadd.f32 0.0, %v9013
        %9015 = vdwg.mxu0
        %9016 = vmatprep.subr.bf16.mxu0 %v5686
        %9017 = vmatpush1.bf16.msra.mxu0 %v5685
        %9018 = vmatprep.subr.bf16.mxu0 %v5694
        %9019 = vmatpush1.bf16.msra.mxu0 %v5693
        %9020 = vmatprep.subr.bf16.mxu0 %v5702
        %9021 = vmatpush1.bf16.msra.mxu0 %v5701
        %9022 = vmatprep.subr.bf16.mxu0 %v5710
        %9023 = vmatpush1.bf16.msra.mxu0 %v5709
        %9024 = vmatprep.subr.bf16.mxu0 %v5718
        %9025 = vmatpush1.bf16.msra.mxu0 %v5717
        %9026 = vmatprep.subr.bf16.mxu0 %v5726
        %9027 = vmatpush1.bf16.msra.mxu0 %v5725
        %9028 = vmatprep.subr.bf16.mxu0 %v5734
        %9029 = vmatpush1.bf16.msra.mxu0 %v5733
        %9030 = vmatprep.subr.bf16.mxu0 %v5742
        %9031 = vmatpush1.bf16.msra.mxu0 %v5741
        %9032 = vmatprep.subr.bf16.mxu0 %v5750
        %9033 = vmatpush1.bf16.msra.mxu0 %v5749
        %9034 = vmatprep.subr.bf16.mxu0 %v5758
        %9035 = vmatpush1.bf16.msra.mxu0 %v5757
        %9036 = vmatprep.subr.bf16.mxu0 %v5766
        %9037 = vmatpush1.bf16.msra.mxu0 %v5765
        %9038 = vmatprep.subr.bf16.mxu0 %v5774
        %9039 = vmatpush1.bf16.msra.mxu0 %v5773
        %9040 = vmatprep.subr.bf16.mxu0 %v5782
        %9041 = vmatpush1.bf16.msra.mxu0 %v5781
        %9042 = vmatprep.subr.bf16.mxu0 %v5790
        %9043 = vmatpush1.bf16.msra.mxu0 %v5789
        %9044 = vmatprep.subr.bf16.mxu0 %v5798
        %9045 = vmatpush1.bf16.msra.mxu0 %v5797
        %9046 = vmatprep.subr.bf16.mxu0 %v5806
        %9047 = vmatpush1.bf16.msra.mxu0 %v5805
        %9048 = vmatprep.mubr.bf16.mxu0 %v1676
        %9049 = vmatmul.mubr.bf16.gmra.mrb[0].mxu0 %v1675
        %v9050 = vpop.f32.mrb[0].mxu0
        %v9051 = vadd.f32 %v9008, %v9050
        %v9052 = vpop.f32.mrb[0].mxu0
        %v9053 = vadd.f32 %v9010, %v9052
        %v9054 = vpop.f32.mrb[0].mxu0
        %v9055 = vadd.f32 %v9012, %v9054
        %v9056 = vpop.f32.mrb[0].mxu0
        %v9057 = vadd.f32 %v9014, %v9056
        %9058 = vdwg.mxu0
        %9059 = vmatprep.subr.bf16.mxu0 %v5814
        %9060 = vmatpush1.bf16.msra.mxu0 %v5813
        %9061 = vmatprep.subr.bf16.mxu0 %v5822
        %9062 = vmatpush1.bf16.msra.mxu0 %v5821
        %9063 = vmatprep.subr.bf16.mxu0 %v5830
        %9064 = vmatpush1.bf16.msra.mxu0 %v5829
        %9065 = vmatprep.subr.bf16.mxu0 %v5838
        %9066 = vmatpush1.bf16.msra.mxu0 %v5837
        %9067 = vmatprep.subr.bf16.mxu0 %v5846
        %9068 = vmatpush1.bf16.msra.mxu0 %v5845
        %9069 = vmatprep.subr.bf16.mxu0 %v5854
        %9070 = vmatpush1.bf16.msra.mxu0 %v5853
        %9071 = vmatprep.subr.bf16.mxu0 %v5862
        %9072 = vmatpush1.bf16.msra.mxu0 %v5861
        %9073 = vmatprep.subr.bf16.mxu0 %v5870
        %9074 = vmatpush1.bf16.msra.mxu0 %v5869
        %9075 = vmatprep.subr.bf16.mxu0 %v5878
        %9076 = vmatpush1.bf16.msra.mxu0 %v5877
        %9077 = vmatprep.subr.bf16.mxu0 %v5886
        %9078 = vmatpush1.bf16.msra.mxu0 %v5885
        %9079 = vmatprep.subr.bf16.mxu0 %v5894
        %9080 = vmatpush1.bf16.msra.mxu0 %v5893
        %9081 = vmatprep.subr.bf16.mxu0 %v5902
        %9082 = vmatpush1.bf16.msra.mxu0 %v5901
        %9083 = vmatprep.subr.bf16.mxu0 %v5910
        %9084 = vmatpush1.bf16.msra.mxu0 %v5909
        %9085 = vmatprep.subr.bf16.mxu0 %v5918
        %9086 = vmatpush1.bf16.msra.mxu0 %v5917
        %9087 = vmatprep.subr.bf16.mxu0 %v5926
        %9088 = vmatpush1.bf16.msra.mxu0 %v5925
        %9089 = vmatprep.subr.bf16.mxu0 %v5934
        %9090 = vmatpush1.bf16.msra.mxu0 %v5933
        %9091 = vmatprep.mubr.bf16.mxu0 %v1678
        %9092 = vmatmul.mubr.bf16.gmra.mrb[0].mxu0 %v1677
        %v9093 = vpop.f32.mrb[0].mxu0
        %v9094 = vadd.f32 %v9051, %v9093
        %v9095 = vpop.f32.mrb[0].mxu0
        %v9096 = vadd.f32 %v9053, %v9095
        %v9097 = vpop.f32.mrb[0].mxu0
        %v9098 = vadd.f32 %v9055, %v9097
        %v9099 = vpop.f32.mrb[0].mxu0
        %v9100 = vadd.f32 %v9057, %v9099
        %9101 = vdwg.mxu0
        %9102 = vmatprep.subr.bf16.mxu0 %v5942
        %9103 = vmatpush1.bf16.msra.mxu0 %v5941
        %9104 = vmatprep.subr.bf16.mxu0 %v5950
        %9105 = vmatpush1.bf16.msra.mxu0 %v5949
        %9106 = vmatprep.subr.bf16.mxu0 %v5958
        %9107 = vmatpush1.bf16.msra.mxu0 %v5957
        %9108 = vmatprep.subr.bf16.mxu0 %v5966
        %9109 = vmatpush1.bf16.msra.mxu0 %v5965
        %9110 = vmatprep.subr.bf16.mxu0 %v5974
        %9111 = vmatpush1.bf16.msra.mxu0 %v5973
        %9112 = vmatprep.subr.bf16.mxu0 %v5982
        %9113 = vmatpush1.bf16.msra.mxu0 %v5981
        %9114 = vmatprep.subr.bf16.mxu0 %v5990
        %9115 = vmatpush1.bf16.msra.mxu0 %v5989
        %9116 = vmatprep.subr.bf16.mxu0 %v5998
        %9117 = vmatpush1.bf16.msra.mxu0 %v5997
        %9118 = vmatprep.subr.bf16.mxu0 %v6006
        %9119 = vmatpush1.bf16.msra.mxu0 %v6005
        %9120 = vmatprep.subr.bf16.mxu0 %v6014
        %9121 = vmatpush1.bf16.msra.mxu0 %v6013
        %9122 = vmatprep.subr.bf16.mxu0 %v6022
        %9123 = vmatpush1.bf16.msra.mxu0 %v6021
        %9124 = vmatprep.subr.bf16.mxu0 %v6030
        %9125 = vmatpush1.bf16.msra.mxu0 %v6029
        %9126 = vmatprep.subr.bf16.mxu0 %v6038
        %9127 = vmatpush1.bf16.msra.mxu0 %v6037
        %9128 = vmatprep.subr.bf16.mxu0 %v6046
        %9129 = vmatpush1.bf16.msra.mxu0 %v6045
        %9130 = vmatprep.subr.bf16.mxu0 %v6054
        %9131 = vmatpush1.bf16.msra.mxu0 %v6053
        %9132 = vmatprep.subr.bf16.mxu0 %v6062
        %9133 = vmatpush1.bf16.msra.mxu0 %v6061
        %9134 = vmatprep.mubr.bf16.mxu0 %v1680
        %9135 = vmatmul.mubr.bf16.gmra.mrb[0].mxu0 %v1679
        %v9136 = vpop.f32.mrb[0].mxu0
        %v9137 = vadd.f32 %v9094, %v9136
        %v9138 = vpop.f32.mrb[0].mxu0
        %v9139 = vadd.f32 %v9096, %v9138
        %v9140 = vpop.f32.mrb[0].mxu0
        %v9141 = vadd.f32 %v9098, %v9140
        %v9142 = vpop.f32.mrb[0].mxu0
        %v9143 = vadd.f32 %v9100, %v9142
        %9144 = vdwg.mxu0
        %9145 = vmatprep.subr.bf16.mxu0 %v6070
        %9146 = vmatpush1.bf16.msra.mxu0 %v6069
        %9147 = vmatprep.subr.bf16.mxu0 %v6078
        %9148 = vmatpush1.bf16.msra.mxu0 %v6077
        %9149 = vmatprep.subr.bf16.mxu0 %v6086
        %9150 = vmatpush1.bf16.msra.mxu0 %v6085
        %9151 = vmatprep.subr.bf16.mxu0 %v6094
        %9152 = vmatpush1.bf16.msra.mxu0 %v6093
        %9153 = vmatprep.subr.bf16.mxu0 %v6102
        %9154 = vmatpush1.bf16.msra.mxu0 %v6101
        %9155 = vmatprep.subr.bf16.mxu0 %v6110
        %9156 = vmatpush1.bf16.msra.mxu0 %v6109
        %9157 = vmatprep.subr.bf16.mxu0 %v6118
        %9158 = vmatpush1.bf16.msra.mxu0 %v6117
        %9159 = vmatprep.subr.bf16.mxu0 %v6126
        %9160 = vmatpush1.bf16.msra.mxu0 %v6125
        %9161 = vmatprep.subr.bf16.mxu0 %v6134
        %9162 = vmatpush1.bf16.msra.mxu0 %v6133
        %9163 = vmatprep.subr.bf16.mxu0 %v6142
        %9164 = vmatpush1.bf16.msra.mxu0 %v6141
        %9165 = vmatprep.subr.bf16.mxu0 %v6150
        %9166 = vmatpush1.bf16.msra.mxu0 %v6149
        %9167 = vmatprep.subr.bf16.mxu0 %v6158
        %9168 = vmatpush1.bf16.msra.mxu0 %v6157
        %9169 = vmatprep.subr.bf16.mxu0 %v6166
        %9170 = vmatpush1.bf16.msra.mxu0 %v6165
        %9171 = vmatprep.subr.bf16.mxu0 %v6174
        %9172 = vmatpush1.bf16.msra.mxu0 %v6173
        %9173 = vmatprep.subr.bf16.mxu0 %v6182
        %9174 = vmatpush1.bf16.msra.mxu0 %v6181
        %9175 = vmatprep.subr.bf16.mxu0 %v6190
        %9176 = vmatpush1.bf16.msra.mxu0 %v6189
        %9177 = vmatprep.mubr.bf16.mxu0 %v1682
        %9178 = vmatmul.mubr.bf16.gmra.mrb[0].mxu0 %v1681
        %v9179 = vpop.f32.mrb[0].mxu0
        %v9180 = vadd.f32 %v9137, %v9179
        %v9181 = vpop.f32.mrb[0].mxu0
        %v9182 = vadd.f32 %v9139, %v9181
        %v9183 = vpop.f32.mrb[0].mxu0
        %v9184 = vadd.f32 %v9141, %v9183
        %v9185 = vpop.f32.mrb[0].mxu0
        %v9186 = vadd.f32 %v9143, %v9185
        %9187 = vdwg.mxu0
        %9188 = vmatprep.subr.bf16.mxu0 %v6198
        %9189 = vmatpush1.bf16.msra.mxu0 %v6197
        %9190 = vmatprep.subr.bf16.mxu0 %v6206
        %9191 = vmatpush1.bf16.msra.mxu0 %v6205
        %9192 = vmatprep.subr.bf16.mxu0 %v6214
        %9193 = vmatpush1.bf16.msra.mxu0 %v6213
        %9194 = vmatprep.subr.bf16.mxu0 %v6222
        %9195 = vmatpush1.bf16.msra.mxu0 %v6221
        %9196 = vmatprep.subr.bf16.mxu0 %v6230
        %9197 = vmatpush1.bf16.msra.mxu0 %v6229
        %9198 = vmatprep.subr.bf16.mxu0 %v6238
        %9199 = vmatpush1.bf16.msra.mxu0 %v6237
        %9200 = vmatprep.subr.bf16.mxu0 %v6246
        %9201 = vmatpush1.bf16.msra.mxu0 %v6245
        %9202 = vmatprep.subr.bf16.mxu0 %v6254
        %9203 = vmatpush1.bf16.msra.mxu0 %v6253
        %9204 = vmatprep.subr.bf16.mxu0 %v6262
        %9205 = vmatpush1.bf16.msra.mxu0 %v6261
        %9206 = vmatprep.subr.bf16.mxu0 %v6270
        %9207 = vmatpush1.bf16.msra.mxu0 %v6269
        %9208 = vmatprep.subr.bf16.mxu0 %v6278
        %9209 = vmatpush1.bf16.msra.mxu0 %v6277
        %9210 = vmatprep.subr.bf16.mxu0 %v6286
        %9211 = vmatpush1.bf16.msra.mxu0 %v6285
        %9212 = vmatprep.subr.bf16.mxu0 %v6294
        %9213 = vmatpush1.bf16.msra.mxu0 %v6293
        %9214 = vmatprep.subr.bf16.mxu0 %v6302
        %9215 = vmatpush1.bf16.msra.mxu0 %v6301
        %9216 = vmatprep.subr.bf16.mxu0 %v6310
        %9217 = vmatpush1.bf16.msra.mxu0 %v6309
        %9218 = vmatprep.subr.bf16.mxu0 %v6318
        %9219 = vmatpush1.bf16.msra.mxu0 %v6317
        %9220 = vmatprep.mubr.bf16.mxu0 %v1684
        %9221 = vmatmul.mubr.bf16.gmra.mrb[0].mxu0 %v1683
        %v9222 = vpop.f32.mrb[0].mxu0
        %v9223 = vadd.f32 %v9180, %v9222
        %v9224 = vpop.f32.mrb[0].mxu0
        %v9225 = vadd.f32 %v9182, %v9224
        %v9226 = vpop.f32.mrb[0].mxu0
        %v9227 = vadd.f32 %v9184, %v9226
        %v9228 = vpop.f32.mrb[0].mxu0
        %v9229 = vadd.f32 %v9186, %v9228
        %9230 = vdwg.mxu0
        %9231 = vmatprep.subr.bf16.mxu0 %v6326
        %9232 = vmatpush1.bf16.msra.mxu0 %v6325
        %9233 = vmatprep.subr.bf16.mxu0 %v6334
        %9234 = vmatpush1.bf16.msra.mxu0 %v6333
        %9235 = vmatprep.subr.bf16.mxu0 %v6342
        %9236 = vmatpush1.bf16.msra.mxu0 %v6341
        %9237 = vmatprep.subr.bf16.mxu0 %v6350
        %9238 = vmatpush1.bf16.msra.mxu0 %v6349
        %9239 = vmatprep.subr.bf16.mxu0 %v6358
        %9240 = vmatpush1.bf16.msra.mxu0 %v6357
        %9241 = vmatprep.subr.bf16.mxu0 %v6366
        %9242 = vmatpush1.bf16.msra.mxu0 %v6365
        %9243 = vmatprep.subr.bf16.mxu0 %v6374
        %9244 = vmatpush1.bf16.msra.mxu0 %v6373
        %9245 = vmatprep.subr.bf16.mxu0 %v6382
        %9246 = vmatpush1.bf16.msra.mxu0 %v6381
        %9247 = vmatprep.subr.bf16.mxu0 %v6390
        %9248 = vmatpush1.bf16.msra.mxu0 %v6389
        %9249 = vmatprep.subr.bf16.mxu0 %v6398
        %9250 = vmatpush1.bf16.msra.mxu0 %v6397
        %9251 = vmatprep.subr.bf16.mxu0 %v6406
        %9252 = vmatpush1.bf16.msra.mxu0 %v6405
        %9253 = vmatprep.subr.bf16.mxu0 %v6414
        %9254 = vmatpush1.bf16.msra.mxu0 %v6413
        %9255 = vmatprep.subr.bf16.mxu0 %v6422
        %9256 = vmatpush1.bf16.msra.mxu0 %v6421
        %9257 = vmatprep.subr.bf16.mxu0 %v6430
        %9258 = vmatpush1.bf16.msra.mxu0 %v6429
        %9259 = vmatprep.subr.bf16.mxu0 %v6438
        %9260 = vmatpush1.bf16.msra.mxu0 %v6437
        %9261 = vmatprep.subr.bf16.mxu0 %v6446
        %9262 = vmatpush1.bf16.msra.mxu0 %v6445
        %9263 = vmatprep.mubr.bf16.mxu0 %v1686
        %9264 = vmatmul.mubr.bf16.gmra.mrb[0].mxu0 %v1685
        %v9265 = vpop.f32.mrb[0].mxu0
        %v9266 = vadd.f32 %v9223, %v9265
        %v9267 = vpop.f32.mrb[0].mxu0
        %v9268 = vadd.f32 %v9225, %v9267
        %v9269 = vpop.f32.mrb[0].mxu0
        %v9270 = vadd.f32 %v9227, %v9269
        %v9271 = vpop.f32.mrb[0].mxu0
        %v9272 = vadd.f32 %v9229, %v9271
        %9273 = vdwg.mxu0
        %9274 = vmatprep.subr.bf16.mxu0 %v6454
        %9275 = vmatpush1.bf16.msra.mxu0 %v6453
        %9276 = vmatprep.subr.bf16.mxu0 %v6462
        %9277 = vmatpush1.bf16.msra.mxu0 %v6461
        %9278 = vmatprep.subr.bf16.mxu0 %v6470
        %9279 = vmatpush1.bf16.msra.mxu0 %v6469
        %9280 = vmatprep.subr.bf16.mxu0 %v6478
        %9281 = vmatpush1.bf16.msra.mxu0 %v6477
        %9282 = vmatprep.subr.bf16.mxu0 %v6486
        %9283 = vmatpush1.bf16.msra.mxu0 %v6485
        %9284 = vmatprep.subr.bf16.mxu0 %v6494
        %9285 = vmatpush1.bf16.msra.mxu0 %v6493
        %9286 = vmatprep.subr.bf16.mxu0 %v6502
        %9287 = vmatpush1.bf16.msra.mxu0 %v6501
        %9288 = vmatprep.subr.bf16.mxu0 %v6510
        %9289 = vmatpush1.bf16.msra.mxu0 %v6509
        %9290 = vmatprep.subr.bf16.mxu0 %v6518
        %9291 = vmatpush1.bf16.msra.mxu0 %v6517
        %9292 = vmatprep.subr.bf16.mxu0 %v6526
        %9293 = vmatpush1.bf16.msra.mxu0 %v6525
        %9294 = vmatprep.subr.bf16.mxu0 %v6534
        %9295 = vmatpush1.bf16.msra.mxu0 %v6533
        %9296 = vmatprep.subr.bf16.mxu0 %v6542
        %9297 = vmatpush1.bf16.msra.mxu0 %v6541
        %9298 = vmatprep.subr.bf16.mxu0 %v6550
        %9299 = vmatpush1.bf16.msra.mxu0 %v6549
        %9300 = vmatprep.subr.bf16.mxu0 %v6558
        %9301 = vmatpush1.bf16.msra.mxu0 %v6557
        %9302 = vmatprep.subr.bf16.mxu0 %v6566
        %9303 = vmatpush1.bf16.msra.mxu0 %v6565
        %9304 = vmatprep.subr.bf16.mxu0 %v6574
        %9305 = vmatpush1.bf16.msra.mxu0 %v6573
        %9306 = vmatprep.mubr.bf16.mxu0 %v1688
        %9307 = vmatmul.mubr.bf16.gmra.mrb[0].mxu0 %v1687
        %v9308 = vpop.f32.mrb[0].mxu0
        %v9309 = vadd.f32 %v9266, %v9308
        %v9310 = vpop.f32.mrb[0].mxu0
        %v9311 = vadd.f32 %v9268, %v9310
        %v9312 = vpop.f32.mrb[0].mxu0
        %v9313 = vadd.f32 %v9270, %v9312
        %v9314 = vpop.f32.mrb[0].mxu0
        %v9315 = vadd.f32 %v9272, %v9314
        %9316 = vdwg.mxu0
        %9317 = vmatprep.subr.bf16.mxu0 %v6582
        %9318 = vmatpush1.bf16.msra.mxu0 %v6581
        %9319 = vmatprep.subr.bf16.mxu0 %v6590
        %9320 = vmatpush1.bf16.msra.mxu0 %v6589
        %9321 = vmatprep.subr.bf16.mxu0 %v6598
        %9322 = vmatpush1.bf16.msra.mxu0 %v6597
        %9323 = vmatprep.subr.bf16.mxu0 %v6606
        %9324 = vmatpush1.bf16.msra.mxu0 %v6605
        %9325 = vmatprep.subr.bf16.mxu0 %v6614
        %9326 = vmatpush1.bf16.msra.mxu0 %v6613
        %9327 = vmatprep.subr.bf16.mxu0 %v6622
        %9328 = vmatpush1.bf16.msra.mxu0 %v6621
        %9329 = vmatprep.subr.bf16.mxu0 %v6630
        %9330 = vmatpush1.bf16.msra.mxu0 %v6629
        %9331 = vmatprep.subr.bf16.mxu0 %v6638
        %9332 = vmatpush1.bf16.msra.mxu0 %v6637
        %9333 = vmatprep.subr.bf16.mxu0 %v6646
        %9334 = vmatpush1.bf16.msra.mxu0 %v6645
        %9335 = vmatprep.subr.bf16.mxu0 %v6654
        %9336 = vmatpush1.bf16.msra.mxu0 %v6653
        %9337 = vmatprep.subr.bf16.mxu0 %v6662
        %9338 = vmatpush1.bf16.msra.mxu0 %v6661
        %9339 = vmatprep.subr.bf16.mxu0 %v6670
        %9340 = vmatpush1.bf16.msra.mxu0 %v6669
        %9341 = vmatprep.subr.bf16.mxu0 %v6678
        %9342 = vmatpush1.bf16.msra.mxu0 %v6677
        %9343 = vmatprep.subr.bf16.mxu0 %v6686
        %9344 = vmatpush1.bf16.msra.mxu0 %v6685
        %9345 = vmatprep.subr.bf16.mxu0 %v6694
        %9346 = vmatpush1.bf16.msra.mxu0 %v6693
        %9347 = vmatprep.subr.bf16.mxu0 %v6702
        %9348 = vmatpush1.bf16.msra.mxu0 %v6701
        %9349 = vmatprep.mubr.bf16.mxu0 %v1690
        %9350 = vmatmul.mubr.bf16.gmra.mrb[0].mxu0 %v1689
        %v9351 = vpop.f32.mrb[0].mxu0
        %v9352 = vadd.f32 %v9309, %v9351
        %v9353 = vpop.f32.mrb[0].mxu0
        %v9354 = vadd.f32 %v9311, %v9353
        %v9355 = vpop.f32.mrb[0].mxu0
        %v9356 = vadd.f32 %v9313, %v9355
        %v9357 = vpop.f32.mrb[0].mxu0
        %v9358 = vadd.f32 %v9315, %v9357
        %9359 = vdwg.mxu0
        %9360 = vmatprep.subr.bf16.mxu0 %v6710
        %9361 = vmatpush1.bf16.msra.mxu0 %v6709
        %9362 = vmatprep.subr.bf16.mxu0 %v6718
        %9363 = vmatpush1.bf16.msra.mxu0 %v6717
        %9364 = vmatprep.subr.bf16.mxu0 %v6726
        %9365 = vmatpush1.bf16.msra.mxu0 %v6725
        %9366 = vmatprep.subr.bf16.mxu0 %v6734
        %9367 = vmatpush1.bf16.msra.mxu0 %v6733
        %9368 = vmatprep.subr.bf16.mxu0 %v6742
        %9369 = vmatpush1.bf16.msra.mxu0 %v6741
        %9370 = vmatprep.subr.bf16.mxu0 %v6750
        %9371 = vmatpush1.bf16.msra.mxu0 %v6749
        %9372 = vmatprep.subr.bf16.mxu0 %v6758
        %9373 = vmatpush1.bf16.msra.mxu0 %v6757
        %9374 = vmatprep.subr.bf16.mxu0 %v6766
        %9375 = vmatpush1.bf16.msra.mxu0 %v6765
        %9376 = vmatprep.subr.bf16.mxu0 %v6774
        %9377 = vmatpush1.bf16.msra.mxu0 %v6773
        %9378 = vmatprep.subr.bf16.mxu0 %v6782
        %9379 = vmatpush1.bf16.msra.mxu0 %v6781
        %9380 = vmatprep.subr.bf16.mxu0 %v6790
        %9381 = vmatpush1.bf16.msra.mxu0 %v6789
        %9382 = vmatprep.subr.bf16.mxu0 %v6798
        %9383 = vmatpush1.bf16.msra.mxu0 %v6797
        %9384 = vmatprep.subr.bf16.mxu0 %v6806
        %9385 = vmatpush1.bf16.msra.mxu0 %v6805
        %9386 = vmatprep.subr.bf16.mxu0 %v6814
        %9387 = vmatpush1.bf16.msra.mxu0 %v6813
        %9388 = vmatprep.subr.bf16.mxu0 %v6822
        %9389 = vmatpush1.bf16.msra.mxu0 %v6821
        %9390 = vmatprep.subr.bf16.mxu0 %v6830
        %9391 = vmatpush1.bf16.msra.mxu0 %v6829
        %9392 = vmatprep.mubr.bf16.mxu0 %v1692
        %9393 = vmatmul.mubr.bf16.gmra.mrb[0].mxu0 %v1691
        %v9394 = vpop.f32.mrb[0].mxu0
        %v9395 = vadd.f32 %v9352, %v9394
        %v9396 = vpop.f32.mrb[0].mxu0
        %v9397 = vadd.f32 %v9354, %v9396
        %v9398 = vpop.f32.mrb[0].mxu0
        %v9399 = vadd.f32 %v9356, %v9398
        %v9400 = vpop.f32.mrb[0].mxu0
        %v9401 = vadd.f32 %v9358, %v9400
        %9402 = vdwg.mxu0
        %9403 = vmatprep.subr.bf16.mxu0 %v5560
        %9404 = vmatpush1.bf16.msra.mxu0 %v5559
        %9405 = vmatprep.subr.bf16.mxu0 %v5568
        %9406 = vmatpush1.bf16.msra.mxu0 %v5567
        %9407 = vmatprep.subr.bf16.mxu0 %v5576
        %9408 = vmatpush1.bf16.msra.mxu0 %v5575
        %9409 = vmatprep.subr.bf16.mxu0 %v5584
        %9410 = vmatpush1.bf16.msra.mxu0 %v5583
        %9411 = vmatprep.subr.bf16.mxu0 %v5592
        %9412 = vmatpush1.bf16.msra.mxu0 %v5591
        %9413 = vmatprep.subr.bf16.mxu0 %v5600
        %9414 = vmatpush1.bf16.msra.mxu0 %v5599
        %9415 = vmatprep.subr.bf16.mxu0 %v5608
        %9416 = vmatpush1.bf16.msra.mxu0 %v5607
        %9417 = vmatprep.subr.bf16.mxu0 %v5616
        %9418 = vmatpush1.bf16.msra.mxu0 %v5615
        %9419 = vmatprep.subr.bf16.mxu0 %v5624
        %9420 = vmatpush1.bf16.msra.mxu0 %v5623
        %9421 = vmatprep.subr.bf16.mxu0 %v5632
        %9422 = vmatpush1.bf16.msra.mxu0 %v5631
        %9423 = vmatprep.subr.bf16.mxu0 %v5640
        %9424 = vmatpush1.bf16.msra.mxu0 %v5639
        %9425 = vmatprep.subr.bf16.mxu0 %v5648
        %9426 = vmatpush1.bf16.msra.mxu0 %v5647
        %9427 = vmatprep.subr.bf16.mxu0 %v5656
        %9428 = vmatpush1.bf16.msra.mxu0 %v5655
        %9429 = vmatprep.subr.bf16.mxu0 %v5664
        %9430 = vmatpush1.bf16.msra.mxu0 %v5663
        %9431 = vmatprep.subr.bf16.mxu0 %v5672
        %9432 = vmatpush1.bf16.msra.mxu0 %v5671
        %9433 = vmatprep.subr.bf16.mxu0 %v5680
        %9434 = vmatpush1.bf16.msra.mxu0 %v5679
        %9435 = vmatprep.mubr.bf16.mxu0 %v1674
        %9436 = vmatmul.mubr.bf16.gmra.mrb[0].mxu0 %v1673
        %v9437 = vpop.f32.mrb[0].mxu0
        %v9438 = vadd.f32 0.0, %v9437
        %v9439 = vpop.f32.mrb[0].mxu0
        %v9440 = vadd.f32 0.0, %v9439
        %v9441 = vpop.f32.mrb[0].mxu0
        %v9442 = vadd.f32 0.0, %v9441
        %v9443 = vpop.f32.mrb[0].mxu0
        %v9444 = vadd.f32 0.0, %v9443
        %9445 = vdwg.mxu0
        %9446 = vmatprep.subr.bf16.mxu0 %v5688
        %9447 = vmatpush1.bf16.msra.mxu0 %v5687
        %9448 = vmatprep.subr.bf16.mxu0 %v5696
        %9449 = vmatpush1.bf16.msra.mxu0 %v5695
        %9450 = vmatprep.subr.bf16.mxu0 %v5704
        %9451 = vmatpush1.bf16.msra.mxu0 %v5703
        %9452 = vmatprep.subr.bf16.mxu0 %v5712
        %9453 = vmatpush1.bf16.msra.mxu0 %v5711
        %9454 = vmatprep.subr.bf16.mxu0 %v5720
        %9455 = vmatpush1.bf16.msra.mxu0 %v5719
        %9456 = vmatprep.subr.bf16.mxu0 %v5728
        %9457 = vmatpush1.bf16.msra.mxu0 %v5727
        %9458 = vmatprep.subr.bf16.mxu0 %v5736
        %9459 = vmatpush1.bf16.msra.mxu0 %v5735
        %9460 = vmatprep.subr.bf16.mxu0 %v5744
        %9461 = vmatpush1.bf16.msra.mxu0 %v5743
        %9462 = vmatprep.subr.bf16.mxu0 %v5752
        %9463 = vmatpush1.bf16.msra.mxu0 %v5751
        %9464 = vmatprep.subr.bf16.mxu0 %v5760
        %9465 = vmatpush1.bf16.msra.mxu0 %v5759
        %9466 = vmatprep.subr.bf16.mxu0 %v5768
        %9467 = vmatpush1.bf16.msra.mxu0 %v5767
        %9468 = vmatprep.subr.bf16.mxu0 %v5776
        %9469 = vmatpush1.bf16.msra.mxu0 %v5775
        %9470 = vmatprep.subr.bf16.mxu0 %v5784
        %9471 = vmatpush1.bf16.msra.mxu0 %v5783
        %9472 = vmatprep.subr.bf16.mxu0 %v5792
        %9473 = vmatpush1.bf16.msra.mxu0 %v5791
        %9474 = vmatprep.subr.bf16.mxu0 %v5800
        %9475 = vmatpush1.bf16.msra.mxu0 %v5799
        %9476 = vmatprep.subr.bf16.mxu0 %v5808
        %9477 = vmatpush1.bf16.msra.mxu0 %v5807
        %9478 = vmatprep.mubr.bf16.mxu0 %v1676
        %9479 = vmatmul.mubr.bf16.gmra.mrb[0].mxu0 %v1675
        %v9480 = vpop.f32.mrb[0].mxu0
        %v9481 = vadd.f32 %v9438, %v9480
        %v9482 = vpop.f32.mrb[0].mxu0
        %v9483 = vadd.f32 %v9440, %v9482
        %v9484 = vpop.f32.mrb[0].mxu0
        %v9485 = vadd.f32 %v9442, %v9484
        %v9486 = vpop.f32.mrb[0].mxu0
        %v9487 = vadd.f32 %v9444, %v9486
        %9488 = vdwg.mxu0
        %9489 = vmatprep.subr.bf16.mxu0 %v5816
        %9490 = vmatpush1.bf16.msra.mxu0 %v5815
        %9491 = vmatprep.subr.bf16.mxu0 %v5824
        %9492 = vmatpush1.bf16.msra.mxu0 %v5823
        %9493 = vmatprep.subr.bf16.mxu0 %v5832
        %9494 = vmatpush1.bf16.msra.mxu0 %v5831
        %9495 = vmatprep.subr.bf16.mxu0 %v5840
        %9496 = vmatpush1.bf16.msra.mxu0 %v5839
        %9497 = vmatprep.subr.bf16.mxu0 %v5848
        %9498 = vmatpush1.bf16.msra.mxu0 %v5847
        %9499 = vmatprep.subr.bf16.mxu0 %v5856
        %9500 = vmatpush1.bf16.msra.mxu0 %v5855
        %9501 = vmatprep.subr.bf16.mxu0 %v5864
        %9502 = vmatpush1.bf16.msra.mxu0 %v5863
        %9503 = vmatprep.subr.bf16.mxu0 %v5872
        %9504 = vmatpush1.bf16.msra.mxu0 %v5871
        %9505 = vmatprep.subr.bf16.mxu0 %v5880
        %9506 = vmatpush1.bf16.msra.mxu0 %v5879
        %9507 = vmatprep.subr.bf16.mxu0 %v5888
        %9508 = vmatpush1.bf16.msra.mxu0 %v5887
        %9509 = vmatprep.subr.bf16.mxu0 %v5896
        %9510 = vmatpush1.bf16.msra.mxu0 %v5895
        %9511 = vmatprep.subr.bf16.mxu0 %v5904
        %9512 = vmatpush1.bf16.msra.mxu0 %v5903
        %9513 = vmatprep.subr.bf16.mxu0 %v5912
        %9514 = vmatpush1.bf16.msra.mxu0 %v5911
        %9515 = vmatprep.subr.bf16.mxu0 %v5920
        %9516 = vmatpush1.bf16.msra.mxu0 %v5919
        %9517 = vmatprep.subr.bf16.mxu0 %v5928
        %9518 = vmatpush1.bf16.msra.mxu0 %v5927
        %9519 = vmatprep.subr.bf16.mxu0 %v5936
        %9520 = vmatpush1.bf16.msra.mxu0 %v5935
        %9521 = vmatprep.mubr.bf16.mxu0 %v1678
        %9522 = vmatmul.mubr.bf16.gmra.mrb[0].mxu0 %v1677
        %v9523 = vpop.f32.mrb[0].mxu0
        %v9524 = vadd.f32 %v9481, %v9523
        %v9525 = vpop.f32.mrb[0].mxu0
        %v9526 = vadd.f32 %v9483, %v9525
        %v9527 = vpop.f32.mrb[0].mxu0
        %v9528 = vadd.f32 %v9485, %v9527
        %v9529 = vpop.f32.mrb[0].mxu0
        %v9530 = vadd.f32 %v9487, %v9529
        %9531 = vdwg.mxu0
        %9532 = vmatprep.subr.bf16.mxu0 %v5944
        %9533 = vmatpush1.bf16.msra.mxu0 %v5943
        %9534 = vmatprep.subr.bf16.mxu0 %v5952
        %9535 = vmatpush1.bf16.msra.mxu0 %v5951
        %9536 = vmatprep.subr.bf16.mxu0 %v5960
        %9537 = vmatpush1.bf16.msra.mxu0 %v5959
        %9538 = vmatprep.subr.bf16.mxu0 %v5968
        %9539 = vmatpush1.bf16.msra.mxu0 %v5967
        %9540 = vmatprep.subr.bf16.mxu0 %v5976
        %9541 = vmatpush1.bf16.msra.mxu0 %v5975
        %9542 = vmatprep.subr.bf16.mxu0 %v5984
        %9543 = vmatpush1.bf16.msra.mxu0 %v5983
        %9544 = vmatprep.subr.bf16.mxu0 %v5992
        %9545 = vmatpush1.bf16.msra.mxu0 %v5991
        %9546 = vmatprep.subr.bf16.mxu0 %v6000
        %9547 = vmatpush1.bf16.msra.mxu0 %v5999
        %9548 = vmatprep.subr.bf16.mxu0 %v6008
        %9549 = vmatpush1.bf16.msra.mxu0 %v6007
        %9550 = vmatprep.subr.bf16.mxu0 %v6016
        %9551 = vmatpush1.bf16.msra.mxu0 %v6015
        %9552 = vmatprep.subr.bf16.mxu0 %v6024
        %9553 = vmatpush1.bf16.msra.mxu0 %v6023
        %9554 = vmatprep.subr.bf16.mxu0 %v6032
        %9555 = vmatpush1.bf16.msra.mxu0 %v6031
        %9556 = vmatprep.subr.bf16.mxu0 %v6040
        %9557 = vmatpush1.bf16.msra.mxu0 %v6039
        %9558 = vmatprep.subr.bf16.mxu0 %v6048
        %9559 = vmatpush1.bf16.msra.mxu0 %v6047
        %9560 = vmatprep.subr.bf16.mxu0 %v6056
        %9561 = vmatpush1.bf16.msra.mxu0 %v6055
        %9562 = vmatprep.subr.bf16.mxu0 %v6064
        %9563 = vmatpush1.bf16.msra.mxu0 %v6063
        %9564 = vmatprep.mubr.bf16.mxu0 %v1680
        %9565 = vmatmul.mubr.bf16.gmra.mrb[0].mxu0 %v1679
        %v9566 = vpop.f32.mrb[0].mxu0
        %v9567 = vadd.f32 %v9524, %v9566
        %v9568 = vpop.f32.mrb[0].mxu0
        %v9569 = vadd.f32 %v9526, %v9568
        %v9570 = vpop.f32.mrb[0].mxu0
        %v9571 = vadd.f32 %v9528, %v9570
        %v9572 = vpop.f32.mrb[0].mxu0
        %v9573 = vadd.f32 %v9530, %v9572
        %9574 = vdwg.mxu0
        %9575 = vmatprep.subr.bf16.mxu0 %v6072
        %9576 = vmatpush1.bf16.msra.mxu0 %v6071
        %9577 = vmatprep.subr.bf16.mxu0 %v6080
        %9578 = vmatpush1.bf16.msra.mxu0 %v6079
        %9579 = vmatprep.subr.bf16.mxu0 %v6088
        %9580 = vmatpush1.bf16.msra.mxu0 %v6087
        %9581 = vmatprep.subr.bf16.mxu0 %v6096
        %9582 = vmatpush1.bf16.msra.mxu0 %v6095
        %9583 = vmatprep.subr.bf16.mxu0 %v6104
        %9584 = vmatpush1.bf16.msra.mxu0 %v6103
        %9585 = vmatprep.subr.bf16.mxu0 %v6112
        %9586 = vmatpush1.bf16.msra.mxu0 %v6111
        %9587 = vmatprep.subr.bf16.mxu0 %v6120
        %9588 = vmatpush1.bf16.msra.mxu0 %v6119
        %9589 = vmatprep.subr.bf16.mxu0 %v6128
        %9590 = vmatpush1.bf16.msra.mxu0 %v6127
        %9591 = vmatprep.subr.bf16.mxu0 %v6136
        %9592 = vmatpush1.bf16.msra.mxu0 %v6135
        %9593 = vmatprep.subr.bf16.mxu0 %v6144
        %9594 = vmatpush1.bf16.msra.mxu0 %v6143
        %9595 = vmatprep.subr.bf16.mxu0 %v6152
        %9596 = vmatpush1.bf16.msra.mxu0 %v6151
        %9597 = vmatprep.subr.bf16.mxu0 %v6160
        %9598 = vmatpush1.bf16.msra.mxu0 %v6159
        %9599 = vmatprep.subr.bf16.mxu0 %v6168
        %9600 = vmatpush1.bf16.msra.mxu0 %v6167
        %9601 = vmatprep.subr.bf16.mxu0 %v6176
        %9602 = vmatpush1.bf16.msra.mxu0 %v6175
        %9603 = vmatprep.subr.bf16.mxu0 %v6184
        %9604 = vmatpush1.bf16.msra.mxu0 %v6183
        %9605 = vmatprep.subr.bf16.mxu0 %v6192
        %9606 = vmatpush1.bf16.msra.mxu0 %v6191
        %9607 = vmatprep.mubr.bf16.mxu0 %v1682
        %9608 = vmatmul.mubr.bf16.gmra.mrb[0].mxu0 %v1681
        %v9609 = vpop.f32.mrb[0].mxu0
        %v9610 = vadd.f32 %v9567, %v9609
        %v9611 = vpop.f32.mrb[0].mxu0
        %v9612 = vadd.f32 %v9569, %v9611
        %v9613 = vpop.f32.mrb[0].mxu0
        %v9614 = vadd.f32 %v9571, %v9613
        %v9615 = vpop.f32.mrb[0].mxu0
        %v9616 = vadd.f32 %v9573, %v9615
        %9617 = vdwg.mxu0
        %9618 = vmatprep.subr.bf16.mxu0 %v6200
        %9619 = vmatpush1.bf16.msra.mxu0 %v6199
        %9620 = vmatprep.subr.bf16.mxu0 %v6208
        %9621 = vmatpush1.bf16.msra.mxu0 %v6207
        %9622 = vmatprep.subr.bf16.mxu0 %v6216
        %9623 = vmatpush1.bf16.msra.mxu0 %v6215
        %9624 = vmatprep.subr.bf16.mxu0 %v6224
        %9625 = vmatpush1.bf16.msra.mxu0 %v6223
        %9626 = vmatprep.subr.bf16.mxu0 %v6232
        %9627 = vmatpush1.bf16.msra.mxu0 %v6231
        %9628 = vmatprep.subr.bf16.mxu0 %v6240
        %9629 = vmatpush1.bf16.msra.mxu0 %v6239
        %9630 = vmatprep.subr.bf16.mxu0 %v6248
        %9631 = vmatpush1.bf16.msra.mxu0 %v6247
        %9632 = vmatprep.subr.bf16.mxu0 %v6256
        %9633 = vmatpush1.bf16.msra.mxu0 %v6255
        %9634 = vmatprep.subr.bf16.mxu0 %v6264
        %9635 = vmatpush1.bf16.msra.mxu0 %v6263
        %9636 = vmatprep.subr.bf16.mxu0 %v6272
        %9637 = vmatpush1.bf16.msra.mxu0 %v6271
        %9638 = vmatprep.subr.bf16.mxu0 %v6280
        %9639 = vmatpush1.bf16.msra.mxu0 %v6279
        %9640 = vmatprep.subr.bf16.mxu0 %v6288
        %9641 = vmatpush1.bf16.msra.mxu0 %v6287
        %9642 = vmatprep.subr.bf16.mxu0 %v6296
        %9643 = vmatpush1.bf16.msra.mxu0 %v6295
        %9644 = vmatprep.subr.bf16.mxu0 %v6304
        %9645 = vmatpush1.bf16.msra.mxu0 %v6303
        %9646 = vmatprep.subr.bf16.mxu0 %v6312
        %9647 = vmatpush1.bf16.msra.mxu0 %v6311
        %9648 = vmatprep.subr.bf16.mxu0 %v6320
        %9649 = vmatpush1.bf16.msra.mxu0 %v6319
        %9650 = vmatprep.mubr.bf16.mxu0 %v1684
        %9651 = vmatmul.mubr.bf16.gmra.mrb[0].mxu0 %v1683
        %v9652 = vpop.f32.mrb[0].mxu0
        %v9653 = vadd.f32 %v9610, %v9652
        %v9654 = vpop.f32.mrb[0].mxu0
        %v9655 = vadd.f32 %v9612, %v9654
        %v9656 = vpop.f32.mrb[0].mxu0
        %v9657 = vadd.f32 %v9614, %v9656
        %v9658 = vpop.f32.mrb[0].mxu0
        %v9659 = vadd.f32 %v9616, %v9658
        %9660 = vdwg.mxu0
        %9661 = vmatprep.subr.bf16.mxu0 %v6328
        %9662 = vmatpush1.bf16.msra.mxu0 %v6327
        %9663 = vmatprep.subr.bf16.mxu0 %v6336
        %9664 = vmatpush1.bf16.msra.mxu0 %v6335
        %9665 = vmatprep.subr.bf16.mxu0 %v6344
        %9666 = vmatpush1.bf16.msra.mxu0 %v6343
        %9667 = vmatprep.subr.bf16.mxu0 %v6352
        %9668 = vmatpush1.bf16.msra.mxu0 %v6351
        %9669 = vmatprep.subr.bf16.mxu0 %v6360
        %9670 = vmatpush1.bf16.msra.mxu0 %v6359
        %9671 = vmatprep.subr.bf16.mxu0 %v6368
        %9672 = vmatpush1.bf16.msra.mxu0 %v6367
        %9673 = vmatprep.subr.bf16.mxu0 %v6376
        %9674 = vmatpush1.bf16.msra.mxu0 %v6375
        %9675 = vmatprep.subr.bf16.mxu0 %v6384
        %9676 = vmatpush1.bf16.msra.mxu0 %v6383
        %9677 = vmatprep.subr.bf16.mxu0 %v6392
        %9678 = vmatpush1.bf16.msra.mxu0 %v6391
        %9679 = vmatprep.subr.bf16.mxu0 %v6400
        %9680 = vmatpush1.bf16.msra.mxu0 %v6399
        %9681 = vmatprep.subr.bf16.mxu0 %v6408
        %9682 = vmatpush1.bf16.msra.mxu0 %v6407
        %9683 = vmatprep.subr.bf16.mxu0 %v6416
        %9684 = vmatpush1.bf16.msra.mxu0 %v6415
        %9685 = vmatprep.subr.bf16.mxu0 %v6424
        %9686 = vmatpush1.bf16.msra.mxu0 %v6423
        %9687 = vmatprep.subr.bf16.mxu0 %v6432
        %9688 = vmatpush1.bf16.msra.mxu0 %v6431
        %9689 = vmatprep.subr.bf16.mxu0 %v6440
        %9690 = vmatpush1.bf16.msra.mxu0 %v6439
        %9691 = vmatprep.subr.bf16.mxu0 %v6448
        %9692 = vmatpush1.bf16.msra.mxu0 %v6447
        %9693 = vmatprep.mubr.bf16.mxu0 %v1686
        %9694 = vmatmul.mubr.bf16.gmra.mrb[0].mxu0 %v1685
        %v9695 = vpop.f32.mrb[0].mxu0
        %v9696 = vadd.f32 %v9653, %v9695
        %v9697 = vpop.f32.mrb[0].mxu0
        %v9698 = vadd.f32 %v9655, %v9697
        %v9699 = vpop.f32.mrb[0].mxu0
        %v9700 = vadd.f32 %v9657, %v9699
        %v9701 = vpop.f32.mrb[0].mxu0
        %v9702 = vadd.f32 %v9659, %v9701
        %9703 = vdwg.mxu0
        %9704 = vmatprep.subr.bf16.mxu0 %v6456
        %9705 = vmatpush1.bf16.msra.mxu0 %v6455
        %9706 = vmatprep.subr.bf16.mxu0 %v6464
        %9707 = vmatpush1.bf16.msra.mxu0 %v6463
        %9708 = vmatprep.subr.bf16.mxu0 %v6472
        %9709 = vmatpush1.bf16.msra.mxu0 %v6471
        %9710 = vmatprep.subr.bf16.mxu0 %v6480
        %9711 = vmatpush1.bf16.msra.mxu0 %v6479
        %9712 = vmatprep.subr.bf16.mxu0 %v6488
        %9713 = vmatpush1.bf16.msra.mxu0 %v6487
        %9714 = vmatprep.subr.bf16.mxu0 %v6496
        %9715 = vmatpush1.bf16.msra.mxu0 %v6495
        %9716 = vmatprep.subr.bf16.mxu0 %v6504
        %9717 = vmatpush1.bf16.msra.mxu0 %v6503
        %9718 = vmatprep.subr.bf16.mxu0 %v6512
        %9719 = vmatpush1.bf16.msra.mxu0 %v6511
        %9720 = vmatprep.subr.bf16.mxu0 %v6520
        %9721 = vmatpush1.bf16.msra.mxu0 %v6519
        %9722 = vmatprep.subr.bf16.mxu0 %v6528
        %9723 = vmatpush1.bf16.msra.mxu0 %v6527
        %9724 = vmatprep.subr.bf16.mxu0 %v6536
        %9725 = vmatpush1.bf16.msra.mxu0 %v6535
        %9726 = vmatprep.subr.bf16.mxu0 %v6544
        %9727 = vmatpush1.bf16.msra.mxu0 %v6543
        %9728 = vmatprep.subr.bf16.mxu0 %v6552
        %9729 = vmatpush1.bf16.msra.mxu0 %v6551
        %9730 = vmatprep.subr.bf16.mxu0 %v6560
        %9731 = vmatpush1.bf16.msra.mxu0 %v6559
        %9732 = vmatprep.subr.bf16.mxu0 %v6568
        %9733 = vmatpush1.bf16.msra.mxu0 %v6567
        %9734 = vmatprep.subr.bf16.mxu0 %v6576
        %9735 = vmatpush1.bf16.msra.mxu0 %v6575
        %9736 = vmatprep.mubr.bf16.mxu0 %v1688
        %9737 = vmatmul.mubr.bf16.gmra.mrb[0].mxu0 %v1687
        %v9738 = vpop.f32.mrb[0].mxu0
        %v9739 = vadd.f32 %v9696, %v9738
        %v9740 = vpop.f32.mrb[0].mxu0
        %v9741 = vadd.f32 %v9698, %v9740
        %v9742 = vpop.f32.mrb[0].mxu0
        %v9743 = vadd.f32 %v9700, %v9742
        %v9744 = vpop.f32.mrb[0].mxu0
        %v9745 = vadd.f32 %v9702, %v9744
        %9746 = vdwg.mxu0
        %9747 = vmatprep.subr.bf16.mxu0 %v6584
        %9748 = vmatpush1.bf16.msra.mxu0 %v6583
        %9749 = vmatprep.subr.bf16.mxu0 %v6592
        %9750 = vmatpush1.bf16.msra.mxu0 %v6591
        %9751 = vmatprep.subr.bf16.mxu0 %v6600
        %9752 = vmatpush1.bf16.msra.mxu0 %v6599
        %9753 = vmatprep.subr.bf16.mxu0 %v6608
        %9754 = vmatpush1.bf16.msra.mxu0 %v6607
        %9755 = vmatprep.subr.bf16.mxu0 %v6616
        %9756 = vmatpush1.bf16.msra.mxu0 %v6615
        %9757 = vmatprep.subr.bf16.mxu0 %v6624
        %9758 = vmatpush1.bf16.msra.mxu0 %v6623
        %9759 = vmatprep.subr.bf16.mxu0 %v6632
        %9760 = vmatpush1.bf16.msra.mxu0 %v6631
        %9761 = vmatprep.subr.bf16.mxu0 %v6640
        %9762 = vmatpush1.bf16.msra.mxu0 %v6639
        %9763 = vmatprep.subr.bf16.mxu0 %v6648
        %9764 = vmatpush1.bf16.msra.mxu0 %v6647
        %9765 = vmatprep.subr.bf16.mxu0 %v6656
        %9766 = vmatpush1.bf16.msra.mxu0 %v6655
        %9767 = vmatprep.subr.bf16.mxu0 %v6664
        %9768 = vmatpush1.bf16.msra.mxu0 %v6663
        %9769 = vmatprep.subr.bf16.mxu0 %v6672
        %9770 = vmatpush1.bf16.msra.mxu0 %v6671
        %9771 = vmatprep.subr.bf16.mxu0 %v6680
        %9772 = vmatpush1.bf16.msra.mxu0 %v6679
        %9773 = vmatprep.subr.bf16.mxu0 %v6688
        %9774 = vmatpush1.bf16.msra.mxu0 %v6687
        %9775 = vmatprep.subr.bf16.mxu0 %v6696
        %9776 = vmatpush1.bf16.msra.mxu0 %v6695
        %9777 = vmatprep.subr.bf16.mxu0 %v6704
        %9778 = vmatpush1.bf16.msra.mxu0 %v6703
        %9779 = vmatprep.mubr.bf16.mxu0 %v1690
        %9780 = vmatmul.mubr.bf16.gmra.mrb[0].mxu0 %v1689
        %v9781 = vpop.f32.mrb[0].mxu0
        %v9782 = vadd.f32 %v9739, %v9781
        %v9783 = vpop.f32.mrb[0].mxu0
        %v9784 = vadd.f32 %v9741, %v9783
        %v9785 = vpop.f32.mrb[0].mxu0
        %v9786 = vadd.f32 %v9743, %v9785
        %v9787 = vpop.f32.mrb[0].mxu0
        %v9788 = vadd.f32 %v9745, %v9787
        %9789 = vdwg.mxu0
        %9790 = vmatprep.subr.bf16.mxu0 %v6712
        %9791 = vmatpush1.bf16.msra.mxu0 %v6711
        %9792 = vmatprep.subr.bf16.mxu0 %v6720
        %9793 = vmatpush1.bf16.msra.mxu0 %v6719
        %9794 = vmatprep.subr.bf16.mxu0 %v6728
        %9795 = vmatpush1.bf16.msra.mxu0 %v6727
        %9796 = vmatprep.subr.bf16.mxu0 %v6736
        %9797 = vmatpush1.bf16.msra.mxu0 %v6735
        %9798 = vmatprep.subr.bf16.mxu0 %v6744
        %9799 = vmatpush1.bf16.msra.mxu0 %v6743
        %9800 = vmatprep.subr.bf16.mxu0 %v6752
        %9801 = vmatpush1.bf16.msra.mxu0 %v6751
        %9802 = vmatprep.subr.bf16.mxu0 %v6760
        %9803 = vmatpush1.bf16.msra.mxu0 %v6759
        %9804 = vmatprep.subr.bf16.mxu0 %v6768
        %9805 = vmatpush1.bf16.msra.mxu0 %v6767
        %9806 = vmatprep.subr.bf16.mxu0 %v6776
        %9807 = vmatpush1.bf16.msra.mxu0 %v6775
        %9808 = vmatprep.subr.bf16.mxu0 %v6784
        %9809 = vmatpush1.bf16.msra.mxu0 %v6783
        %9810 = vmatprep.subr.bf16.mxu0 %v6792
        %9811 = vmatpush1.bf16.msra.mxu0 %v6791
        %9812 = vmatprep.subr.bf16.mxu0 %v6800
        %9813 = vmatpush1.bf16.msra.mxu0 %v6799
        %9814 = vmatprep.subr.bf16.mxu0 %v6808
        %9815 = vmatpush1.bf16.msra.mxu0 %v6807
        %9816 = vmatprep.subr.bf16.mxu0 %v6816
        %9817 = vmatpush1.bf16.msra.mxu0 %v6815
        %9818 = vmatprep.subr.bf16.mxu0 %v6824
        %9819 = vmatpush1.bf16.msra.mxu0 %v6823
        %9820 = vmatprep.subr.bf16.mxu0 %v6832
        %9821 = vmatpush1.bf16.msra.mxu0 %v6831
        %9822 = vmatprep.mubr.bf16.mxu0 %v1692
        %9823 = vmatmul.mubr.bf16.gmra.mrb[0].mxu0 %v1691
        %v9824 = vpop.f32.mrb[0].mxu0
        %v9825 = vadd.f32 %v9782, %v9824
        %v9826 = vpop.f32.mrb[0].mxu0
        %v9827 = vadd.f32 %v9784, %v9826
        %v9828 = vpop.f32.mrb[0].mxu0
        %v9829 = vadd.f32 %v9786, %v9828
        %v9830 = vpop.f32.mrb[0].mxu0
        %v9831 = vadd.f32 %v9788, %v9830
        %9832 = vdwg.mxu0
        %v9853 = vunpack.c.l.b16 %v313
        %v9854 = vunpack.c.h.b16 %v313
        %v9855 = vunpack.c.l.b16 %v314
        %v9856 = vunpack.c.h.b16 %v314
        %v9857 = vunpack.c.l.b16 %v315
        %v9858 = vunpack.c.h.b16 %v315
        %v9859 = vunpack.c.l.b16 %v316
        %v9860 = vunpack.c.h.b16 %v316
        %v9861 = vunpack.c.l.b16 %v317
        %v9862 = vunpack.c.h.b16 %v317
        %v9863 = vunpack.c.l.b16 %v318
        %v9864 = vunpack.c.h.b16 %v318
        %v9865 = vunpack.c.l.b16 %v319
        %v9866 = vunpack.c.h.b16 %v319
        %v9867 = vunpack.c.l.b16 %v320
        %v9868 = vunpack.c.h.b16 %v320
        %v9869 = vunpack.c.l.b16 %v321
        %v9870 = vunpack.c.h.b16 %v321
        %v9871 = vunpack.c.l.b16 %v322
        %v9872 = vunpack.c.h.b16 %v322
        %v9873 = vunpack.c.l.b16 %v323
        %v9874 = vunpack.c.h.b16 %v323
        %v9875 = vunpack.c.l.b16 %v324
        %v9876 = vunpack.c.h.b16 %v324
        %v9877 = vunpack.c.l.b16 %v325
        %v9878 = vunpack.c.h.b16 %v325
        %v9879 = vunpack.c.l.b16 %v326
        %v9880 = vunpack.c.h.b16 %v326
        %v9881 = vunpack.c.l.b16 %v327
        %v9882 = vunpack.c.h.b16 %v327
        %v9883 = vunpack.c.l.b16 %v328
        %v9884 = vunpack.c.h.b16 %v328
        %v9885 = vunpack.c.l.b16 %v329
        %v9886 = vunpack.c.h.b16 %v329
        %v9887 = vunpack.c.l.b16 %v330
        %v9888 = vunpack.c.h.b16 %v330
        %v9889 = vunpack.c.l.b16 %v331
        %v9890 = vunpack.c.h.b16 %v331
        %v9891 = vunpack.c.l.b16 %v332
        %v9892 = vunpack.c.h.b16 %v332
        %v9893 = vpack.c.b16 %v9873, %v9853
        %v9894 = vpack.c.b16 %v9874, %v9854
        %v9895 = vpack.c.b16 %v9875, %v9855
        %v9896 = vpack.c.b16 %v9876, %v9856
        %v9897 = vpack.c.b16 %v9877, %v9857
        %v9898 = vpack.c.b16 %v9878, %v9858
        %v9899 = vpack.c.b16 %v9879, %v9859
        %v9900 = vpack.c.b16 %v9880, %v9860
        %v9901 = vpack.c.b16 %v9881, %v9861
        %v9902 = vpack.c.b16 %v9882, %v9862
        %v9903 = vpack.c.b16 %v9883, %v9863
        %v9904 = vpack.c.b16 %v9884, %v9864
        %v9905 = vpack.c.b16 %v9885, %v9865
        %v9906 = vpack.c.b16 %v9886, %v9866
        %v9907 = vpack.c.b16 %v9887, %v9867
        %v9908 = vpack.c.b16 %v9888, %v9868
        %v9909 = vpack.c.b16 %v9889, %v9869
        %v9910 = vpack.c.b16 %v9890, %v9870
        %v9911 = vpack.c.b16 %v9891, %v9871
        %v9912 = vpack.c.b16 %v9892, %v9872
        %9933 = vmatprep.subr.bf16.mxu0 %v5554
        %9934 = vmatpush1.bf16.msra.mxu0 %v5553
        %9935 = vmatprep.subr.bf16.mxu0 %v5562
        %9936 = vmatpush1.bf16.msra.mxu0 %v5561
        %9937 = vmatprep.subr.bf16.mxu0 %v5570
        %9938 = vmatpush1.bf16.msra.mxu0 %v5569
        %9939 = vmatprep.subr.bf16.mxu0 %v5578
        %9940 = vmatpush1.bf16.msra.mxu0 %v5577
        %9941 = vmatprep.subr.bf16.mxu0 %v5586
        %9942 = vmatpush1.bf16.msra.mxu0 %v5585
        %9943 = vmatprep.subr.bf16.mxu0 %v5594
        %9944 = vmatpush1.bf16.msra.mxu0 %v5593
        %9945 = vmatprep.subr.bf16.mxu0 %v5602
        %9946 = vmatpush1.bf16.msra.mxu0 %v5601
        %9947 = vmatprep.subr.bf16.mxu0 %v5610
        %9948 = vmatpush1.bf16.msra.mxu0 %v5609
        %9949 = vmatprep.subr.bf16.mxu0 %v5618
        %9950 = vmatpush1.bf16.msra.mxu0 %v5617
        %9951 = vmatprep.subr.bf16.mxu0 %v5626
        %9952 = vmatpush1.bf16.msra.mxu0 %v5625
        %9953 = vmatprep.subr.bf16.mxu0 %v5634
        %9954 = vmatpush1.bf16.msra.mxu0 %v5633
        %9955 = vmatprep.subr.bf16.mxu0 %v5642
        %9956 = vmatpush1.bf16.msra.mxu0 %v5641
        %9957 = vmatprep.subr.bf16.mxu0 %v5650
        %9958 = vmatpush1.bf16.msra.mxu0 %v5649
        %9959 = vmatprep.subr.bf16.mxu0 %v5658
        %9960 = vmatpush1.bf16.msra.mxu0 %v5657
        %9961 = vmatprep.subr.bf16.mxu0 %v5666
        %9962 = vmatpush1.bf16.msra.mxu0 %v5665
        %9963 = vmatprep.subr.bf16.mxu0 %v5674
        %9964 = vmatpush1.bf16.msra.mxu0 %v5673
        %9965 = vmatprep.mubr.bf16.mxu0 %v9894
        %9966 = vmatmul.mubr.bf16.gmra.mrb[0].mxu0 %v9893
        %v9967 = vpop.f32.mrb[0].mxu0
        %v9968 = vadd.f32 0.0, %v9967
        %v9969 = vpop.f32.mrb[0].mxu0
        %v9970 = vadd.f32 0.0, %v9969
        %v9971 = vpop.f32.mrb[0].mxu0
        %v9972 = vadd.f32 0.0, %v9971
        %v9973 = vpop.f32.mrb[0].mxu0
        %v9974 = vadd.f32 0.0, %v9973
        %9975 = vdwg.mxu0
        %9976 = vmatprep.subr.bf16.mxu0 %v5682
        %9977 = vmatpush1.bf16.msra.mxu0 %v5681
        %9978 = vmatprep.subr.bf16.mxu0 %v5690
        %9979 = vmatpush1.bf16.msra.mxu0 %v5689
        %9980 = vmatprep.subr.bf16.mxu0 %v5698
        %9981 = vmatpush1.bf16.msra.mxu0 %v5697
        %9982 = vmatprep.subr.bf16.mxu0 %v5706
        %9983 = vmatpush1.bf16.msra.mxu0 %v5705
        %9984 = vmatprep.subr.bf16.mxu0 %v5714
        %9985 = vmatpush1.bf16.msra.mxu0 %v5713
        %9986 = vmatprep.subr.bf16.mxu0 %v5722
        %9987 = vmatpush1.bf16.msra.mxu0 %v5721
        %9988 = vmatprep.subr.bf16.mxu0 %v5730
        %9989 = vmatpush1.bf16.msra.mxu0 %v5729
        %9990 = vmatprep.subr.bf16.mxu0 %v5738
        %9991 = vmatpush1.bf16.msra.mxu0 %v5737
        %9992 = vmatprep.subr.bf16.mxu0 %v5746
        %9993 = vmatpush1.bf16.msra.mxu0 %v5745
        %9994 = vmatprep.subr.bf16.mxu0 %v5754
        %9995 = vmatpush1.bf16.msra.mxu0 %v5753
        %9996 = vmatprep.subr.bf16.mxu0 %v5762
        %9997 = vmatpush1.bf16.msra.mxu0 %v5761
        %9998 = vmatprep.subr.bf16.mxu0 %v5770
        %9999 = vmatpush1.bf16.msra.mxu0 %v5769
        %10000 = vmatprep.subr.bf16.mxu0 %v5778
        %10001 = vmatpush1.bf16.msra.mxu0 %v5777
        %10002 = vmatprep.subr.bf16.mxu0 %v5786
        %10003 = vmatpush1.bf16.msra.mxu0 %v5785
        %10004 = vmatprep.subr.bf16.mxu0 %v5794
        %10005 = vmatpush1.bf16.msra.mxu0 %v5793
        %10006 = vmatprep.subr.bf16.mxu0 %v5802
        %10007 = vmatpush1.bf16.msra.mxu0 %v5801
        %10008 = vmatprep.mubr.bf16.mxu0 %v9896
        %10009 = vmatmul.mubr.bf16.gmra.mrb[0].mxu0 %v9895
        %v10010 = vpop.f32.mrb[0].mxu0
        %v10011 = vadd.f32 %v9968, %v10010
        %v10012 = vpop.f32.mrb[0].mxu0
        %v10013 = vadd.f32 %v9970, %v10012
        %v10014 = vpop.f32.mrb[0].mxu0
        %v10015 = vadd.f32 %v9972, %v10014
        %v10016 = vpop.f32.mrb[0].mxu0
        %v10017 = vadd.f32 %v9974, %v10016
        %10018 = vdwg.mxu0
        %10019 = vmatprep.subr.bf16.mxu0 %v5810
        %10020 = vmatpush1.bf16.msra.mxu0 %v5809
        %10021 = vmatprep.subr.bf16.mxu0 %v5818
        %10022 = vmatpush1.bf16.msra.mxu0 %v5817
        %10023 = vmatprep.subr.bf16.mxu0 %v5826
        %10024 = vmatpush1.bf16.msra.mxu0 %v5825
        %10025 = vmatprep.subr.bf16.mxu0 %v5834
        %10026 = vmatpush1.bf16.msra.mxu0 %v5833
        %10027 = vmatprep.subr.bf16.mxu0 %v5842
        %10028 = vmatpush1.bf16.msra.mxu0 %v5841
        %10029 = vmatprep.subr.bf16.mxu0 %v5850
        %10030 = vmatpush1.bf16.msra.mxu0 %v5849
        %10031 = vmatprep.subr.bf16.mxu0 %v5858
        %10032 = vmatpush1.bf16.msra.mxu0 %v5857
        %10033 = vmatprep.subr.bf16.mxu0 %v5866
        %10034 = vmatpush1.bf16.msra.mxu0 %v5865
        %10035 = vmatprep.subr.bf16.mxu0 %v5874
        %10036 = vmatpush1.bf16.msra.mxu0 %v5873
        %10037 = vmatprep.subr.bf16.mxu0 %v5882
        %10038 = vmatpush1.bf16.msra.mxu0 %v5881
        %10039 = vmatprep.subr.bf16.mxu0 %v5890
        %10040 = vmatpush1.bf16.msra.mxu0 %v5889
        %10041 = vmatprep.subr.bf16.mxu0 %v5898
        %10042 = vmatpush1.bf16.msra.mxu0 %v5897
        %10043 = vmatprep.subr.bf16.mxu0 %v5906
        %10044 = vmatpush1.bf16.msra.mxu0 %v5905
        %10045 = vmatprep.subr.bf16.mxu0 %v5914
        %10046 = vmatpush1.bf16.msra.mxu0 %v5913
        %10047 = vmatprep.subr.bf16.mxu0 %v5922
        %10048 = vmatpush1.bf16.msra.mxu0 %v5921
        %10049 = vmatprep.subr.bf16.mxu0 %v5930
        %10050 = vmatpush1.bf16.msra.mxu0 %v5929
        %10051 = vmatprep.mubr.bf16.mxu0 %v9898
        %10052 = vmatmul.mubr.bf16.gmra.mrb[0].mxu0 %v9897
        %v10053 = vpop.f32.mrb[0].mxu0
        %v10054 = vadd.f32 %v10011, %v10053
        %v10055 = vpop.f32.mrb[0].mxu0
        %v10056 = vadd.f32 %v10013, %v10055
        %v10057 = vpop.f32.mrb[0].mxu0
        %v10058 = vadd.f32 %v10015, %v10057
        %v10059 = vpop.f32.mrb[0].mxu0
        %v10060 = vadd.f32 %v10017, %v10059
        %10061 = vdwg.mxu0
        %10062 = vmatprep.subr.bf16.mxu0 %v5938
        %10063 = vmatpush1.bf16.msra.mxu0 %v5937
        %10064 = vmatprep.subr.bf16.mxu0 %v5946
        %10065 = vmatpush1.bf16.msra.mxu0 %v5945
        %10066 = vmatprep.subr.bf16.mxu0 %v5954
        %10067 = vmatpush1.bf16.msra.mxu0 %v5953
        %10068 = vmatprep.subr.bf16.mxu0 %v5962
        %10069 = vmatpush1.bf16.msra.mxu0 %v5961
        %10070 = vmatprep.subr.bf16.mxu0 %v5970
        %10071 = vmatpush1.bf16.msra.mxu0 %v5969
        %10072 = vmatprep.subr.bf16.mxu0 %v5978
        %10073 = vmatpush1.bf16.msra.mxu0 %v5977
        %10074 = vmatprep.subr.bf16.mxu0 %v5986
        %10075 = vmatpush1.bf16.msra.mxu0 %v5985
        %10076 = vmatprep.subr.bf16.mxu0 %v5994
        %10077 = vmatpush1.bf16.msra.mxu0 %v5993
        %10078 = vmatprep.subr.bf16.mxu0 %v6002
        %10079 = vmatpush1.bf16.msra.mxu0 %v6001
        %10080 = vmatprep.subr.bf16.mxu0 %v6010
        %10081 = vmatpush1.bf16.msra.mxu0 %v6009
        %10082 = vmatprep.subr.bf16.mxu0 %v6018
        %10083 = vmatpush1.bf16.msra.mxu0 %v6017
        %10084 = vmatprep.subr.bf16.mxu0 %v6026
        %10085 = vmatpush1.bf16.msra.mxu0 %v6025
        %10086 = vmatprep.subr.bf16.mxu0 %v6034
        %10087 = vmatpush1.bf16.msra.mxu0 %v6033
        %10088 = vmatprep.subr.bf16.mxu0 %v6042
        %10089 = vmatpush1.bf16.msra.mxu0 %v6041
        %10090 = vmatprep.subr.bf16.mxu0 %v6050
        %10091 = vmatpush1.bf16.msra.mxu0 %v6049
        %10092 = vmatprep.subr.bf16.mxu0 %v6058
        %10093 = vmatpush1.bf16.msra.mxu0 %v6057
        %10094 = vmatprep.mubr.bf16.mxu0 %v9900
        %10095 = vmatmul.mubr.bf16.gmra.mrb[0].mxu0 %v9899
        %v10096 = vpop.f32.mrb[0].mxu0
        %v10097 = vadd.f32 %v10054, %v10096
        %v10098 = vpop.f32.mrb[0].mxu0
        %v10099 = vadd.f32 %v10056, %v10098
        %v10100 = vpop.f32.mrb[0].mxu0
        %v10101 = vadd.f32 %v10058, %v10100
        %v10102 = vpop.f32.mrb[0].mxu0
        %v10103 = vadd.f32 %v10060, %v10102
        %10104 = vdwg.mxu0
        %10105 = vmatprep.subr.bf16.mxu0 %v6066
        %10106 = vmatpush1.bf16.msra.mxu0 %v6065
        %10107 = vmatprep.subr.bf16.mxu0 %v6074
        %10108 = vmatpush1.bf16.msra.mxu0 %v6073
        %10109 = vmatprep.subr.bf16.mxu0 %v6082
        %10110 = vmatpush1.bf16.msra.mxu0 %v6081
        %10111 = vmatprep.subr.bf16.mxu0 %v6090
        %10112 = vmatpush1.bf16.msra.mxu0 %v6089
        %10113 = vmatprep.subr.bf16.mxu0 %v6098
        %10114 = vmatpush1.bf16.msra.mxu0 %v6097
        %10115 = vmatprep.subr.bf16.mxu0 %v6106
        %10116 = vmatpush1.bf16.msra.mxu0 %v6105
        %10117 = vmatprep.subr.bf16.mxu0 %v6114
        %10118 = vmatpush1.bf16.msra.mxu0 %v6113
        %10119 = vmatprep.subr.bf16.mxu0 %v6122
        %10120 = vmatpush1.bf16.msra.mxu0 %v6121
        %10121 = vmatprep.subr.bf16.mxu0 %v6130
        %10122 = vmatpush1.bf16.msra.mxu0 %v6129
        %10123 = vmatprep.subr.bf16.mxu0 %v6138
        %10124 = vmatpush1.bf16.msra.mxu0 %v6137
        %10125 = vmatprep.subr.bf16.mxu0 %v6146
        %10126 = vmatpush1.bf16.msra.mxu0 %v6145
        %10127 = vmatprep.subr.bf16.mxu0 %v6154
        %10128 = vmatpush1.bf16.msra.mxu0 %v6153
        %10129 = vmatprep.subr.bf16.mxu0 %v6162
        %10130 = vmatpush1.bf16.msra.mxu0 %v6161
        %10131 = vmatprep.subr.bf16.mxu0 %v6170
        %10132 = vmatpush1.bf16.msra.mxu0 %v6169
        %10133 = vmatprep.subr.bf16.mxu0 %v6178
        %10134 = vmatpush1.bf16.msra.mxu0 %v6177
        %10135 = vmatprep.subr.bf16.mxu0 %v6186
        %10136 = vmatpush1.bf16.msra.mxu0 %v6185
        %10137 = vmatprep.mubr.bf16.mxu0 %v9902
        %10138 = vmatmul.mubr.bf16.gmra.mrb[0].mxu0 %v9901
        %v10139 = vpop.f32.mrb[0].mxu0
        %v10140 = vadd.f32 %v10097, %v10139
        %v10141 = vpop.f32.mrb[0].mxu0
        %v10142 = vadd.f32 %v10099, %v10141
        %v10143 = vpop.f32.mrb[0].mxu0
        %v10144 = vadd.f32 %v10101, %v10143
        %v10145 = vpop.f32.mrb[0].mxu0
        %v10146 = vadd.f32 %v10103, %v10145
        %10147 = vdwg.mxu0
        %10148 = vmatprep.subr.bf16.mxu0 %v6194
        %10149 = vmatpush1.bf16.msra.mxu0 %v6193
        %10150 = vmatprep.subr.bf16.mxu0 %v6202
        %10151 = vmatpush1.bf16.msra.mxu0 %v6201
        %10152 = vmatprep.subr.bf16.mxu0 %v6210
        %10153 = vmatpush1.bf16.msra.mxu0 %v6209
        %10154 = vmatprep.subr.bf16.mxu0 %v6218
        %10155 = vmatpush1.bf16.msra.mxu0 %v6217
        %10156 = vmatprep.subr.bf16.mxu0 %v6226
        %10157 = vmatpush1.bf16.msra.mxu0 %v6225
        %10158 = vmatprep.subr.bf16.mxu0 %v6234
        %10159 = vmatpush1.bf16.msra.mxu0 %v6233
        %10160 = vmatprep.subr.bf16.mxu0 %v6242
        %10161 = vmatpush1.bf16.msra.mxu0 %v6241
        %10162 = vmatprep.subr.bf16.mxu0 %v6250
        %10163 = vmatpush1.bf16.msra.mxu0 %v6249
        %10164 = vmatprep.subr.bf16.mxu0 %v6258
        %10165 = vmatpush1.bf16.msra.mxu0 %v6257
        %10166 = vmatprep.subr.bf16.mxu0 %v6266
        %10167 = vmatpush1.bf16.msra.mxu0 %v6265
        %10168 = vmatprep.subr.bf16.mxu0 %v6274
        %10169 = vmatpush1.bf16.msra.mxu0 %v6273
        %10170 = vmatprep.subr.bf16.mxu0 %v6282
        %10171 = vmatpush1.bf16.msra.mxu0 %v6281
        %10172 = vmatprep.subr.bf16.mxu0 %v6290
        %10173 = vmatpush1.bf16.msra.mxu0 %v6289
        %10174 = vmatprep.subr.bf16.mxu0 %v6298
        %10175 = vmatpush1.bf16.msra.mxu0 %v6297
        %10176 = vmatprep.subr.bf16.mxu0 %v6306
        %10177 = vmatpush1.bf16.msra.mxu0 %v6305
        %10178 = vmatprep.subr.bf16.mxu0 %v6314
        %10179 = vmatpush1.bf16.msra.mxu0 %v6313
        %10180 = vmatprep.mubr.bf16.mxu0 %v9904
        %10181 = vmatmul.mubr.bf16.gmra.mrb[0].mxu0 %v9903
        %v10182 = vpop.f32.mrb[0].mxu0
        %v10183 = vadd.f32 %v10140, %v10182
        %v10184 = vpop.f32.mrb[0].mxu0
        %v10185 = vadd.f32 %v10142, %v10184
        %v10186 = vpop.f32.mrb[0].mxu0
        %v10187 = vadd.f32 %v10144, %v10186
        %v10188 = vpop.f32.mrb[0].mxu0
        %v10189 = vadd.f32 %v10146, %v10188
        %10190 = vdwg.mxu0
        %10191 = vmatprep.subr.bf16.mxu0 %v6322
        %10192 = vmatpush1.bf16.msra.mxu0 %v6321
        %10193 = vmatprep.subr.bf16.mxu0 %v6330
        %10194 = vmatpush1.bf16.msra.mxu0 %v6329
        %10195 = vmatprep.subr.bf16.mxu0 %v6338
        %10196 = vmatpush1.bf16.msra.mxu0 %v6337
        %10197 = vmatprep.subr.bf16.mxu0 %v6346
        %10198 = vmatpush1.bf16.msra.mxu0 %v6345
        %10199 = vmatprep.subr.bf16.mxu0 %v6354
        %10200 = vmatpush1.bf16.msra.mxu0 %v6353
        %10201 = vmatprep.subr.bf16.mxu0 %v6362
        %10202 = vmatpush1.bf16.msra.mxu0 %v6361
        %10203 = vmatprep.subr.bf16.mxu0 %v6370
        %10204 = vmatpush1.bf16.msra.mxu0 %v6369
        %10205 = vmatprep.subr.bf16.mxu0 %v6378
        %10206 = vmatpush1.bf16.msra.mxu0 %v6377
        %10207 = vmatprep.subr.bf16.mxu0 %v6386
        %10208 = vmatpush1.bf16.msra.mxu0 %v6385
        %10209 = vmatprep.subr.bf16.mxu0 %v6394
        %10210 = vmatpush1.bf16.msra.mxu0 %v6393
        %10211 = vmatprep.subr.bf16.mxu0 %v6402
        %10212 = vmatpush1.bf16.msra.mxu0 %v6401
        %10213 = vmatprep.subr.bf16.mxu0 %v6410
        %10214 = vmatpush1.bf16.msra.mxu0 %v6409
        %10215 = vmatprep.subr.bf16.mxu0 %v6418
        %10216 = vmatpush1.bf16.msra.mxu0 %v6417
        %10217 = vmatprep.subr.bf16.mxu0 %v6426
        %10218 = vmatpush1.bf16.msra.mxu0 %v6425
        %10219 = vmatprep.subr.bf16.mxu0 %v6434
        %10220 = vmatpush1.bf16.msra.mxu0 %v6433
        %10221 = vmatprep.subr.bf16.mxu0 %v6442
        %10222 = vmatpush1.bf16.msra.mxu0 %v6441
        %10223 = vmatprep.mubr.bf16.mxu0 %v9906
        %10224 = vmatmul.mubr.bf16.gmra.mrb[0].mxu0 %v9905
        %v10225 = vpop.f32.mrb[0].mxu0
        %v10226 = vadd.f32 %v10183, %v10225
        %v10227 = vpop.f32.mrb[0].mxu0
        %v10228 = vadd.f32 %v10185, %v10227
        %v10229 = vpop.f32.mrb[0].mxu0
        %v10230 = vadd.f32 %v10187, %v10229
        %v10231 = vpop.f32.mrb[0].mxu0
        %v10232 = vadd.f32 %v10189, %v10231
        %10233 = vdwg.mxu0
        %10234 = vmatprep.subr.bf16.mxu0 %v6450
        %10235 = vmatpush1.bf16.msra.mxu0 %v6449
        %10236 = vmatprep.subr.bf16.mxu0 %v6458
        %10237 = vmatpush1.bf16.msra.mxu0 %v6457
        %10238 = vmatprep.subr.bf16.mxu0 %v6466
        %10239 = vmatpush1.bf16.msra.mxu0 %v6465
        %10240 = vmatprep.subr.bf16.mxu0 %v6474
        %10241 = vmatpush1.bf16.msra.mxu0 %v6473
        %10242 = vmatprep.subr.bf16.mxu0 %v6482
        %10243 = vmatpush1.bf16.msra.mxu0 %v6481
        %10244 = vmatprep.subr.bf16.mxu0 %v6490
        %10245 = vmatpush1.bf16.msra.mxu0 %v6489
        %10246 = vmatprep.subr.bf16.mxu0 %v6498
        %10247 = vmatpush1.bf16.msra.mxu0 %v6497
        %10248 = vmatprep.subr.bf16.mxu0 %v6506
        %10249 = vmatpush1.bf16.msra.mxu0 %v6505
        %10250 = vmatprep.subr.bf16.mxu0 %v6514
        %10251 = vmatpush1.bf16.msra.mxu0 %v6513
        %10252 = vmatprep.subr.bf16.mxu0 %v6522
        %10253 = vmatpush1.bf16.msra.mxu0 %v6521
        %10254 = vmatprep.subr.bf16.mxu0 %v6530
        %10255 = vmatpush1.bf16.msra.mxu0 %v6529
        %10256 = vmatprep.subr.bf16.mxu0 %v6538
        %10257 = vmatpush1.bf16.msra.mxu0 %v6537
        %10258 = vmatprep.subr.bf16.mxu0 %v6546
        %10259 = vmatpush1.bf16.msra.mxu0 %v6545
        %10260 = vmatprep.subr.bf16.mxu0 %v6554
        %10261 = vmatpush1.bf16.msra.mxu0 %v6553
        %10262 = vmatprep.subr.bf16.mxu0 %v6562
        %10263 = vmatpush1.bf16.msra.mxu0 %v6561
        %10264 = vmatprep.subr.bf16.mxu0 %v6570
        %10265 = vmatpush1.bf16.msra.mxu0 %v6569
        %10266 = vmatprep.mubr.bf16.mxu0 %v9908
        %10267 = vmatmul.mubr.bf16.gmra.mrb[0].mxu0 %v9907
        %v10268 = vpop.f32.mrb[0].mxu0
        %v10269 = vadd.f32 %v10226, %v10268
        %v10270 = vpop.f32.mrb[0].mxu0
        %v10271 = vadd.f32 %v10228, %v10270
        %v10272 = vpop.f32.mrb[0].mxu0
        %v10273 = vadd.f32 %v10230, %v10272
        %v10274 = vpop.f32.mrb[0].mxu0
        %v10275 = vadd.f32 %v10232, %v10274
        %10276 = vdwg.mxu0
        %10277 = vmatprep.subr.bf16.mxu0 %v6578
        %10278 = vmatpush1.bf16.msra.mxu0 %v6577
        %10279 = vmatprep.subr.bf16.mxu0 %v6586
        %10280 = vmatpush1.bf16.msra.mxu0 %v6585
        %10281 = vmatprep.subr.bf16.mxu0 %v6594
        %10282 = vmatpush1.bf16.msra.mxu0 %v6593
        %10283 = vmatprep.subr.bf16.mxu0 %v6602
        %10284 = vmatpush1.bf16.msra.mxu0 %v6601
        %10285 = vmatprep.subr.bf16.mxu0 %v6610
        %10286 = vmatpush1.bf16.msra.mxu0 %v6609
        %10287 = vmatprep.subr.bf16.mxu0 %v6618
        %10288 = vmatpush1.bf16.msra.mxu0 %v6617
        %10289 = vmatprep.subr.bf16.mxu0 %v6626
        %10290 = vmatpush1.bf16.msra.mxu0 %v6625
        %10291 = vmatprep.subr.bf16.mxu0 %v6634
        %10292 = vmatpush1.bf16.msra.mxu0 %v6633
        %10293 = vmatprep.subr.bf16.mxu0 %v6642
        %10294 = vmatpush1.bf16.msra.mxu0 %v6641
        %10295 = vmatprep.subr.bf16.mxu0 %v6650
        %10296 = vmatpush1.bf16.msra.mxu0 %v6649
        %10297 = vmatprep.subr.bf16.mxu0 %v6658
        %10298 = vmatpush1.bf16.msra.mxu0 %v6657
        %10299 = vmatprep.subr.bf16.mxu0 %v6666
        %10300 = vmatpush1.bf16.msra.mxu0 %v6665
        %10301 = vmatprep.subr.bf16.mxu0 %v6674
        %10302 = vmatpush1.bf16.msra.mxu0 %v6673
        %10303 = vmatprep.subr.bf16.mxu0 %v6682
        %10304 = vmatpush1.bf16.msra.mxu0 %v6681
        %10305 = vmatprep.subr.bf16.mxu0 %v6690
        %10306 = vmatpush1.bf16.msra.mxu0 %v6689
        %10307 = vmatprep.subr.bf16.mxu0 %v6698
        %10308 = vmatpush1.bf16.msra.mxu0 %v6697
        %10309 = vmatprep.mubr.bf16.mxu0 %v9910
        %10310 = vmatmul.mubr.bf16.gmra.mrb[0].mxu0 %v9909
        %v10311 = vpop.f32.mrb[0].mxu0
        %v10312 = vadd.f32 %v10269, %v10311
        %v10313 = vpop.f32.mrb[0].mxu0
        %v10314 = vadd.f32 %v10271, %v10313
        %v10315 = vpop.f32.mrb[0].mxu0
        %v10316 = vadd.f32 %v10273, %v10315
        %v10317 = vpop.f32.mrb[0].mxu0
        %v10318 = vadd.f32 %v10275, %v10317
        %10319 = vdwg.mxu0
        %10320 = vmatprep.subr.bf16.mxu0 %v6706
        %10321 = vmatpush1.bf16.msra.mxu0 %v6705
        %10322 = vmatprep.subr.bf16.mxu0 %v6714
        %10323 = vmatpush1.bf16.msra.mxu0 %v6713
        %10324 = vmatprep.subr.bf16.mxu0 %v6722
        %10325 = vmatpush1.bf16.msra.mxu0 %v6721
        %10326 = vmatprep.subr.bf16.mxu0 %v6730
        %10327 = vmatpush1.bf16.msra.mxu0 %v6729
        %10328 = vmatprep.subr.bf16.mxu0 %v6738
        %10329 = vmatpush1.bf16.msra.mxu0 %v6737
        %10330 = vmatprep.subr.bf16.mxu0 %v6746
        %10331 = vmatpush1.bf16.msra.mxu0 %v6745
        %10332 = vmatprep.subr.bf16.mxu0 %v6754
        %10333 = vmatpush1.bf16.msra.mxu0 %v6753
        %10334 = vmatprep.subr.bf16.mxu0 %v6762
        %10335 = vmatpush1.bf16.msra.mxu0 %v6761
        %10336 = vmatprep.subr.bf16.mxu0 %v6770
        %10337 = vmatpush1.bf16.msra.mxu0 %v6769
        %10338 = vmatprep.subr.bf16.mxu0 %v6778
        %10339 = vmatpush1.bf16.msra.mxu0 %v6777
        %10340 = vmatprep.subr.bf16.mxu0 %v6786
        %10341 = vmatpush1.bf16.msra.mxu0 %v6785
        %10342 = vmatprep.subr.bf16.mxu0 %v6794
        %10343 = vmatpush1.bf16.msra.mxu0 %v6793
        %10344 = vmatprep.subr.bf16.mxu0 %v6802
        %10345 = vmatpush1.bf16.msra.mxu0 %v6801
        %10346 = vmatprep.subr.bf16.mxu0 %v6810
        %10347 = vmatpush1.bf16.msra.mxu0 %v6809
        %10348 = vmatprep.subr.bf16.mxu0 %v6818
        %10349 = vmatpush1.bf16.msra.mxu0 %v6817
        %10350 = vmatprep.subr.bf16.mxu0 %v6826
        %10351 = vmatpush1.bf16.msra.mxu0 %v6825
        %10352 = vmatprep.mubr.bf16.mxu0 %v9912
        %10353 = vmatmul.mubr.bf16.gmra.mrb[0].mxu0 %v9911
        %v10354 = vpop.f32.mrb[0].mxu0
        %v10355 = vadd.f32 %v10312, %v10354
        %v10356 = vpop.f32.mrb[0].mxu0
        %v10357 = vadd.f32 %v10314, %v10356
        %v10358 = vpop.f32.mrb[0].mxu0
        %v10359 = vadd.f32 %v10316, %v10358
        %v10360 = vpop.f32.mrb[0].mxu0
        %v10361 = vadd.f32 %v10318, %v10360
        %10362 = vdwg.mxu0
        %10363 = vmatprep.subr.bf16.mxu0 %v5556
        %10364 = vmatpush1.bf16.msra.mxu0 %v5555
        %10365 = vmatprep.subr.bf16.mxu0 %v5564
        %10366 = vmatpush1.bf16.msra.mxu0 %v5563
        %10367 = vmatprep.subr.bf16.mxu0 %v5572
        %10368 = vmatpush1.bf16.msra.mxu0 %v5571
        %10369 = vmatprep.subr.bf16.mxu0 %v5580
        %10370 = vmatpush1.bf16.msra.mxu0 %v5579
        %10371 = vmatprep.subr.bf16.mxu0 %v5588
        %10372 = vmatpush1.bf16.msra.mxu0 %v5587
        %10373 = vmatprep.subr.bf16.mxu0 %v5596
        %10374 = vmatpush1.bf16.msra.mxu0 %v5595
        %10375 = vmatprep.subr.bf16.mxu0 %v5604
        %10376 = vmatpush1.bf16.msra.mxu0 %v5603
        %10377 = vmatprep.subr.bf16.mxu0 %v5612
        %10378 = vmatpush1.bf16.msra.mxu0 %v5611
        %10379 = vmatprep.subr.bf16.mxu0 %v5620
        %10380 = vmatpush1.bf16.msra.mxu0 %v5619
        %10381 = vmatprep.subr.bf16.mxu0 %v5628
        %10382 = vmatpush1.bf16.msra.mxu0 %v5627
        %10383 = vmatprep.subr.bf16.mxu0 %v5636
        %10384 = vmatpush1.bf16.msra.mxu0 %v5635
        %10385 = vmatprep.subr.bf16.mxu0 %v5644
        %10386 = vmatpush1.bf16.msra.mxu0 %v5643
        %10387 = vmatprep.subr.bf16.mxu0 %v5652
        %10388 = vmatpush1.bf16.msra.mxu0 %v5651
        %10389 = vmatprep.subr.bf16.mxu0 %v5660
        %10390 = vmatpush1.bf16.msra.mxu0 %v5659
        %10391 = vmatprep.subr.bf16.mxu0 %v5668
        %10392 = vmatpush1.bf16.msra.mxu0 %v5667
        %10393 = vmatprep.subr.bf16.mxu0 %v5676
        %10394 = vmatpush1.bf16.msra.mxu0 %v5675
        %10395 = vmatprep.mubr.bf16.mxu0 %v9894
        %10396 = vmatmul.mubr.bf16.gmra.mrb[0].mxu0 %v9893
        %v10397 = vpop.f32.mrb[0].mxu0
        %v10398 = vadd.f32 0.0, %v10397
        %v10399 = vpop.f32.mrb[0].mxu0
        %v10400 = vadd.f32 0.0, %v10399
        %v10401 = vpop.f32.mrb[0].mxu0
        %v10402 = vadd.f32 0.0, %v10401
        %v10403 = vpop.f32.mrb[0].mxu0
        %v10404 = vadd.f32 0.0, %v10403
        %10405 = vdwg.mxu0
        %10406 = vmatprep.subr.bf16.mxu0 %v5684
        %10407 = vmatpush1.bf16.msra.mxu0 %v5683
        %10408 = vmatprep.subr.bf16.mxu0 %v5692
        %10409 = vmatpush1.bf16.msra.mxu0 %v5691
        %10410 = vmatprep.subr.bf16.mxu0 %v5700
        %10411 = vmatpush1.bf16.msra.mxu0 %v5699
        %10412 = vmatprep.subr.bf16.mxu0 %v5708
        %10413 = vmatpush1.bf16.msra.mxu0 %v5707
        %10414 = vmatprep.subr.bf16.mxu0 %v5716
        %10415 = vmatpush1.bf16.msra.mxu0 %v5715
        %10416 = vmatprep.subr.bf16.mxu0 %v5724
        %10417 = vmatpush1.bf16.msra.mxu0 %v5723
        %10418 = vmatprep.subr.bf16.mxu0 %v5732
        %10419 = vmatpush1.bf16.msra.mxu0 %v5731
        %10420 = vmatprep.subr.bf16.mxu0 %v5740
        %10421 = vmatpush1.bf16.msra.mxu0 %v5739
        %10422 = vmatprep.subr.bf16.mxu0 %v5748
        %10423 = vmatpush1.bf16.msra.mxu0 %v5747
        %10424 = vmatprep.subr.bf16.mxu0 %v5756
        %10425 = vmatpush1.bf16.msra.mxu0 %v5755
        %10426 = vmatprep.subr.bf16.mxu0 %v5764
        %10427 = vmatpush1.bf16.msra.mxu0 %v5763
        %10428 = vmatprep.subr.bf16.mxu0 %v5772
        %10429 = vmatpush1.bf16.msra.mxu0 %v5771
        %10430 = vmatprep.subr.bf16.mxu0 %v5780
        %10431 = vmatpush1.bf16.msra.mxu0 %v5779
        %10432 = vmatprep.subr.bf16.mxu0 %v5788
        %10433 = vmatpush1.bf16.msra.mxu0 %v5787
        %10434 = vmatprep.subr.bf16.mxu0 %v5796
        %10435 = vmatpush1.bf16.msra.mxu0 %v5795
        %10436 = vmatprep.subr.bf16.mxu0 %v5804
        %10437 = vmatpush1.bf16.msra.mxu0 %v5803
        %10438 = vmatprep.mubr.bf16.mxu0 %v9896
        %10439 = vmatmul.mubr.bf16.gmra.mrb[0].mxu0 %v9895
        %v10440 = vpop.f32.mrb[0].mxu0
        %v10441 = vadd.f32 %v10398, %v10440
        %v10442 = vpop.f32.mrb[0].mxu0
        %v10443 = vadd.f32 %v10400, %v10442
        %v10444 = vpop.f32.mrb[0].mxu0
        %v10445 = vadd.f32 %v10402, %v10444
        %v10446 = vpop.f32.mrb[0].mxu0
        %v10447 = vadd.f32 %v10404, %v10446
        %10448 = vdwg.mxu0
        %10449 = vmatprep.subr.bf16.mxu0 %v5812
        %10450 = vmatpush1.bf16.msra.mxu0 %v5811
        %10451 = vmatprep.subr.bf16.mxu0 %v5820
        %10452 = vmatpush1.bf16.msra.mxu0 %v5819
        %10453 = vmatprep.subr.bf16.mxu0 %v5828
        %10454 = vmatpush1.bf16.msra.mxu0 %v5827
        %10455 = vmatprep.subr.bf16.mxu0 %v5836
        %10456 = vmatpush1.bf16.msra.mxu0 %v5835
        %10457 = vmatprep.subr.bf16.mxu0 %v5844
        %10458 = vmatpush1.bf16.msra.mxu0 %v5843
        %10459 = vmatprep.subr.bf16.mxu0 %v5852
        %10460 = vmatpush1.bf16.msra.mxu0 %v5851
        %10461 = vmatprep.subr.bf16.mxu0 %v5860
        %10462 = vmatpush1.bf16.msra.mxu0 %v5859
        %10463 = vmatprep.subr.bf16.mxu0 %v5868
        %10464 = vmatpush1.bf16.msra.mxu0 %v5867
        %10465 = vmatprep.subr.bf16.mxu0 %v5876
        %10466 = vmatpush1.bf16.msra.mxu0 %v5875
        %10467 = vmatprep.subr.bf16.mxu0 %v5884
        %10468 = vmatpush1.bf16.msra.mxu0 %v5883
        %10469 = vmatprep.subr.bf16.mxu0 %v5892
        %10470 = vmatpush1.bf16.msra.mxu0 %v5891
        %10471 = vmatprep.subr.bf16.mxu0 %v5900
        %10472 = vmatpush1.bf16.msra.mxu0 %v5899
        %10473 = vmatprep.subr.bf16.mxu0 %v5908
        %10474 = vmatpush1.bf16.msra.mxu0 %v5907
        %10475 = vmatprep.subr.bf16.mxu0 %v5916
        %10476 = vmatpush1.bf16.msra.mxu0 %v5915
        %10477 = vmatprep.subr.bf16.mxu0 %v5924
        %10478 = vmatpush1.bf16.msra.mxu0 %v5923
        %10479 = vmatprep.subr.bf16.mxu0 %v5932
        %10480 = vmatpush1.bf16.msra.mxu0 %v5931
        %10481 = vmatprep.mubr.bf16.mxu0 %v9898
        %10482 = vmatmul.mubr.bf16.gmra.mrb[0].mxu0 %v9897
        %v10483 = vpop.f32.mrb[0].mxu0
        %v10484 = vadd.f32 %v10441, %v10483
        %v10485 = vpop.f32.mrb[0].mxu0
        %v10486 = vadd.f32 %v10443, %v10485
        %v10487 = vpop.f32.mrb[0].mxu0
        %v10488 = vadd.f32 %v10445, %v10487
        %v10489 = vpop.f32.mrb[0].mxu0
        %v10490 = vadd.f32 %v10447, %v10489
        %10491 = vdwg.mxu0
        %10492 = vmatprep.subr.bf16.mxu0 %v5940
        %10493 = vmatpush1.bf16.msra.mxu0 %v5939
        %10494 = vmatprep.subr.bf16.mxu0 %v5948
        %10495 = vmatpush1.bf16.msra.mxu0 %v5947
        %10496 = vmatprep.subr.bf16.mxu0 %v5956
        %10497 = vmatpush1.bf16.msra.mxu0 %v5955
        %10498 = vmatprep.subr.bf16.mxu0 %v5964
        %10499 = vmatpush1.bf16.msra.mxu0 %v5963
        %10500 = vmatprep.subr.bf16.mxu0 %v5972
        %10501 = vmatpush1.bf16.msra.mxu0 %v5971
        %10502 = vmatprep.subr.bf16.mxu0 %v5980
        %10503 = vmatpush1.bf16.msra.mxu0 %v5979
        %10504 = vmatprep.subr.bf16.mxu0 %v5988
        %10505 = vmatpush1.bf16.msra.mxu0 %v5987
        %10506 = vmatprep.subr.bf16.mxu0 %v5996
        %10507 = vmatpush1.bf16.msra.mxu0 %v5995
        %10508 = vmatprep.subr.bf16.mxu0 %v6004
        %10509 = vmatpush1.bf16.msra.mxu0 %v6003
        %10510 = vmatprep.subr.bf16.mxu0 %v6012
        %10511 = vmatpush1.bf16.msra.mxu0 %v6011
        %10512 = vmatprep.subr.bf16.mxu0 %v6020
        %10513 = vmatpush1.bf16.msra.mxu0 %v6019
        %10514 = vmatprep.subr.bf16.mxu0 %v6028
        %10515 = vmatpush1.bf16.msra.mxu0 %v6027
        %10516 = vmatprep.subr.bf16.mxu0 %v6036
        %10517 = vmatpush1.bf16.msra.mxu0 %v6035
        %10518 = vmatprep.subr.bf16.mxu0 %v6044
        %10519 = vmatpush1.bf16.msra.mxu0 %v6043
        %10520 = vmatprep.subr.bf16.mxu0 %v6052
        %10521 = vmatpush1.bf16.msra.mxu0 %v6051
        %10522 = vmatprep.subr.bf16.mxu0 %v6060
        %10523 = vmatpush1.bf16.msra.mxu0 %v6059
        %10524 = vmatprep.mubr.bf16.mxu0 %v9900
        %10525 = vmatmul.mubr.bf16.gmra.mrb[0].mxu0 %v9899
        %v10526 = vpop.f32.mrb[0].mxu0
        %v10527 = vadd.f32 %v10484, %v10526
        %v10528 = vpop.f32.mrb[0].mxu0
        %v10529 = vadd.f32 %v10486, %v10528
        %v10530 = vpop.f32.mrb[0].mxu0
        %v10531 = vadd.f32 %v10488, %v10530
        %v10532 = vpop.f32.mrb[0].mxu0
        %v10533 = vadd.f32 %v10490, %v10532
        %10534 = vdwg.mxu0
        %10535 = vmatprep.subr.bf16.mxu0 %v6068
        %10536 = vmatpush1.bf16.msra.mxu0 %v6067
        %10537 = vmatprep.subr.bf16.mxu0 %v6076
        %10538 = vmatpush1.bf16.msra.mxu0 %v6075
        %10539 = vmatprep.subr.bf16.mxu0 %v6084
        %10540 = vmatpush1.bf16.msra.mxu0 %v6083
        %10541 = vmatprep.subr.bf16.mxu0 %v6092
        %10542 = vmatpush1.bf16.msra.mxu0 %v6091
        %10543 = vmatprep.subr.bf16.mxu0 %v6100
        %10544 = vmatpush1.bf16.msra.mxu0 %v6099
        %10545 = vmatprep.subr.bf16.mxu0 %v6108
        %10546 = vmatpush1.bf16.msra.mxu0 %v6107
        %10547 = vmatprep.subr.bf16.mxu0 %v6116
        %10548 = vmatpush1.bf16.msra.mxu0 %v6115
        %10549 = vmatprep.subr.bf16.mxu0 %v6124
        %10550 = vmatpush1.bf16.msra.mxu0 %v6123
        %10551 = vmatprep.subr.bf16.mxu0 %v6132
        %10552 = vmatpush1.bf16.msra.mxu0 %v6131
        %10553 = vmatprep.subr.bf16.mxu0 %v6140
        %10554 = vmatpush1.bf16.msra.mxu0 %v6139
        %10555 = vmatprep.subr.bf16.mxu0 %v6148
        %10556 = vmatpush1.bf16.msra.mxu0 %v6147
        %10557 = vmatprep.subr.bf16.mxu0 %v6156
        %10558 = vmatpush1.bf16.msra.mxu0 %v6155
        %10559 = vmatprep.subr.bf16.mxu0 %v6164
        %10560 = vmatpush1.bf16.msra.mxu0 %v6163
        %10561 = vmatprep.subr.bf16.mxu0 %v6172
        %10562 = vmatpush1.bf16.msra.mxu0 %v6171
        %10563 = vmatprep.subr.bf16.mxu0 %v6180
        %10564 = vmatpush1.bf16.msra.mxu0 %v6179
        %10565 = vmatprep.subr.bf16.mxu0 %v6188
        %10566 = vmatpush1.bf16.msra.mxu0 %v6187
        %10567 = vmatprep.mubr.bf16.mxu0 %v9902
        %10568 = vmatmul.mubr.bf16.gmra.mrb[0].mxu0 %v9901
        %v10569 = vpop.f32.mrb[0].mxu0
        %v10570 = vadd.f32 %v10527, %v10569
        %v10571 = vpop.f32.mrb[0].mxu0
        %v10572 = vadd.f32 %v10529, %v10571
        %v10573 = vpop.f32.mrb[0].mxu0
        %v10574 = vadd.f32 %v10531, %v10573
        %v10575 = vpop.f32.mrb[0].mxu0
        %v10576 = vadd.f32 %v10533, %v10575
        %10577 = vdwg.mxu0
        %10578 = vmatprep.subr.bf16.mxu0 %v6196
        %10579 = vmatpush1.bf16.msra.mxu0 %v6195
        %10580 = vmatprep.subr.bf16.mxu0 %v6204
        %10581 = vmatpush1.bf16.msra.mxu0 %v6203
        %10582 = vmatprep.subr.bf16.mxu0 %v6212
        %10583 = vmatpush1.bf16.msra.mxu0 %v6211
        %10584 = vmatprep.subr.bf16.mxu0 %v6220
        %10585 = vmatpush1.bf16.msra.mxu0 %v6219
        %10586 = vmatprep.subr.bf16.mxu0 %v6228
        %10587 = vmatpush1.bf16.msra.mxu0 %v6227
        %10588 = vmatprep.subr.bf16.mxu0 %v6236
        %10589 = vmatpush1.bf16.msra.mxu0 %v6235
        %10590 = vmatprep.subr.bf16.mxu0 %v6244
        %10591 = vmatpush1.bf16.msra.mxu0 %v6243
        %10592 = vmatprep.subr.bf16.mxu0 %v6252
        %10593 = vmatpush1.bf16.msra.mxu0 %v6251
        %10594 = vmatprep.subr.bf16.mxu0 %v6260
        %10595 = vmatpush1.bf16.msra.mxu0 %v6259
        %10596 = vmatprep.subr.bf16.mxu0 %v6268
        %10597 = vmatpush1.bf16.msra.mxu0 %v6267
        %10598 = vmatprep.subr.bf16.mxu0 %v6276
        %10599 = vmatpush1.bf16.msra.mxu0 %v6275
        %10600 = vmatprep.subr.bf16.mxu0 %v6284
        %10601 = vmatpush1.bf16.msra.mxu0 %v6283
        %10602 = vmatprep.subr.bf16.mxu0 %v6292
        %10603 = vmatpush1.bf16.msra.mxu0 %v6291
        %10604 = vmatprep.subr.bf16.mxu0 %v6300
        %10605 = vmatpush1.bf16.msra.mxu0 %v6299
        %10606 = vmatprep.subr.bf16.mxu0 %v6308
        %10607 = vmatpush1.bf16.msra.mxu0 %v6307
        %10608 = vmatprep.subr.bf16.mxu0 %v6316
        %10609 = vmatpush1.bf16.msra.mxu0 %v6315
        %10610 = vmatprep.mubr.bf16.mxu0 %v9904
        %10611 = vmatmul.mubr.bf16.gmra.mrb[0].mxu0 %v9903
        %v10612 = vpop.f32.mrb[0].mxu0
        %v10613 = vadd.f32 %v10570, %v10612
        %v10614 = vpop.f32.mrb[0].mxu0
        %v10615 = vadd.f32 %v10572, %v10614
        %v10616 = vpop.f32.mrb[0].mxu0
        %v10617 = vadd.f32 %v10574, %v10616
        %v10618 = vpop.f32.mrb[0].mxu0
        %v10619 = vadd.f32 %v10576, %v10618
        %10620 = vdwg.mxu0
        %10621 = vmatprep.subr.bf16.mxu0 %v6324
        %10622 = vmatpush1.bf16.msra.mxu0 %v6323
        %10623 = vmatprep.subr.bf16.mxu0 %v6332
        %10624 = vmatpush1.bf16.msra.mxu0 %v6331
        %10625 = vmatprep.subr.bf16.mxu0 %v6340
        %10626 = vmatpush1.bf16.msra.mxu0 %v6339
        %10627 = vmatprep.subr.bf16.mxu0 %v6348
        %10628 = vmatpush1.bf16.msra.mxu0 %v6347
        %10629 = vmatprep.subr.bf16.mxu0 %v6356
        %10630 = vmatpush1.bf16.msra.mxu0 %v6355
        %10631 = vmatprep.subr.bf16.mxu0 %v6364
        %10632 = vmatpush1.bf16.msra.mxu0 %v6363
        %10633 = vmatprep.subr.bf16.mxu0 %v6372
        %10634 = vmatpush1.bf16.msra.mxu0 %v6371
        %10635 = vmatprep.subr.bf16.mxu0 %v6380
        %10636 = vmatpush1.bf16.msra.mxu0 %v6379
        %10637 = vmatprep.subr.bf16.mxu0 %v6388
        %10638 = vmatpush1.bf16.msra.mxu0 %v6387
        %10639 = vmatprep.subr.bf16.mxu0 %v6396
        %10640 = vmatpush1.bf16.msra.mxu0 %v6395
        %10641 = vmatprep.subr.bf16.mxu0 %v6404
        %10642 = vmatpush1.bf16.msra.mxu0 %v6403
        %10643 = vmatprep.subr.bf16.mxu0 %v6412
        %10644 = vmatpush1.bf16.msra.mxu0 %v6411
        %10645 = vmatprep.subr.bf16.mxu0 %v6420
        %10646 = vmatpush1.bf16.msra.mxu0 %v6419
        %10647 = vmatprep.subr.bf16.mxu0 %v6428
        %10648 = vmatpush1.bf16.msra.mxu0 %v6427
        %10649 = vmatprep.subr.bf16.mxu0 %v6436
        %10650 = vmatpush1.bf16.msra.mxu0 %v6435
        %10651 = vmatprep.subr.bf16.mxu0 %v6444
        %10652 = vmatpush1.bf16.msra.mxu0 %v6443
        %10653 = vmatprep.mubr.bf16.mxu0 %v9906
        %10654 = vmatmul.mubr.bf16.gmra.mrb[0].mxu0 %v9905
        %v10655 = vpop.f32.mrb[0].mxu0
        %v10656 = vadd.f32 %v10613, %v10655
        %v10657 = vpop.f32.mrb[0].mxu0
        %v10658 = vadd.f32 %v10615, %v10657
        %v10659 = vpop.f32.mrb[0].mxu0
        %v10660 = vadd.f32 %v10617, %v10659
        %v10661 = vpop.f32.mrb[0].mxu0
        %v10662 = vadd.f32 %v10619, %v10661
        %10663 = vdwg.mxu0
        %10664 = vmatprep.subr.bf16.mxu0 %v6452
        %10665 = vmatpush1.bf16.msra.mxu0 %v6451
        %10666 = vmatprep.subr.bf16.mxu0 %v6460
        %10667 = vmatpush1.bf16.msra.mxu0 %v6459
        %10668 = vmatprep.subr.bf16.mxu0 %v6468
        %10669 = vmatpush1.bf16.msra.mxu0 %v6467
        %10670 = vmatprep.subr.bf16.mxu0 %v6476
        %10671 = vmatpush1.bf16.msra.mxu0 %v6475
        %10672 = vmatprep.subr.bf16.mxu0 %v6484
        %10673 = vmatpush1.bf16.msra.mxu0 %v6483
        %10674 = vmatprep.subr.bf16.mxu0 %v6492
        %10675 = vmatpush1.bf16.msra.mxu0 %v6491
        %10676 = vmatprep.subr.bf16.mxu0 %v6500
        %10677 = vmatpush1.bf16.msra.mxu0 %v6499
        %10678 = vmatprep.subr.bf16.mxu0 %v6508
        %10679 = vmatpush1.bf16.msra.mxu0 %v6507
        %10680 = vmatprep.subr.bf16.mxu0 %v6516
        %10681 = vmatpush1.bf16.msra.mxu0 %v6515
        %10682 = vmatprep.subr.bf16.mxu0 %v6524
        %10683 = vmatpush1.bf16.msra.mxu0 %v6523
        %10684 = vmatprep.subr.bf16.mxu0 %v6532
        %10685 = vmatpush1.bf16.msra.mxu0 %v6531
        %10686 = vmatprep.subr.bf16.mxu0 %v6540
        %10687 = vmatpush1.bf16.msra.mxu0 %v6539
        %10688 = vmatprep.subr.bf16.mxu0 %v6548
        %10689 = vmatpush1.bf16.msra.mxu0 %v6547
        %10690 = vmatprep.subr.bf16.mxu0 %v6556
        %10691 = vmatpush1.bf16.msra.mxu0 %v6555
        %10692 = vmatprep.subr.bf16.mxu0 %v6564
        %10693 = vmatpush1.bf16.msra.mxu0 %v6563
        %10694 = vmatprep.subr.bf16.mxu0 %v6572
        %10695 = vmatpush1.bf16.msra.mxu0 %v6571
        %10696 = vmatprep.mubr.bf16.mxu0 %v9908
        %10697 = vmatmul.mubr.bf16.gmra.mrb[0].mxu0 %v9907
        %v10698 = vpop.f32.mrb[0].mxu0
        %v10699 = vadd.f32 %v10656, %v10698
        %v10700 = vpop.f32.mrb[0].mxu0
        %v10701 = vadd.f32 %v10658, %v10700
        %v10702 = vpop.f32.mrb[0].mxu0
        %v10703 = vadd.f32 %v10660, %v10702
        %v10704 = vpop.f32.mrb[0].mxu0
        %v10705 = vadd.f32 %v10662, %v10704
        %10706 = vdwg.mxu0
        %10707 = vmatprep.subr.bf16.mxu0 %v6580
        %10708 = vmatpush1.bf16.msra.mxu0 %v6579
        %10709 = vmatprep.subr.bf16.mxu0 %v6588
        %10710 = vmatpush1.bf16.msra.mxu0 %v6587
        %10711 = vmatprep.subr.bf16.mxu0 %v6596
        %10712 = vmatpush1.bf16.msra.mxu0 %v6595
        %10713 = vmatprep.subr.bf16.mxu0 %v6604
        %10714 = vmatpush1.bf16.msra.mxu0 %v6603
        %10715 = vmatprep.subr.bf16.mxu0 %v6612
        %10716 = vmatpush1.bf16.msra.mxu0 %v6611
        %10717 = vmatprep.subr.bf16.mxu0 %v6620
        %10718 = vmatpush1.bf16.msra.mxu0 %v6619
        %10719 = vmatprep.subr.bf16.mxu0 %v6628
        %10720 = vmatpush1.bf16.msra.mxu0 %v6627
        %10721 = vmatprep.subr.bf16.mxu0 %v6636
        %10722 = vmatpush1.bf16.msra.mxu0 %v6635
        %10723 = vmatprep.subr.bf16.mxu0 %v6644
        %10724 = vmatpush1.bf16.msra.mxu0 %v6643
        %10725 = vmatprep.subr.bf16.mxu0 %v6652
        %10726 = vmatpush1.bf16.msra.mxu0 %v6651
        %10727 = vmatprep.subr.bf16.mxu0 %v6660
        %10728 = vmatpush1.bf16.msra.mxu0 %v6659
        %10729 = vmatprep.subr.bf16.mxu0 %v6668
        %10730 = vmatpush1.bf16.msra.mxu0 %v6667
        %10731 = vmatprep.subr.bf16.mxu0 %v6676
        %10732 = vmatpush1.bf16.msra.mxu0 %v6675
        %10733 = vmatprep.subr.bf16.mxu0 %v6684
        %10734 = vmatpush1.bf16.msra.mxu0 %v6683
        %10735 = vmatprep.subr.bf16.mxu0 %v6692
        %10736 = vmatpush1.bf16.msra.mxu0 %v6691
        %10737 = vmatprep.subr.bf16.mxu0 %v6700
        %10738 = vmatpush1.bf16.msra.mxu0 %v6699
        %10739 = vmatprep.mubr.bf16.mxu0 %v9910
        %10740 = vmatmul.mubr.bf16.gmra.mrb[0].mxu0 %v9909
        %v10741 = vpop.f32.mrb[0].mxu0
        %v10742 = vadd.f32 %v10699, %v10741
        %v10743 = vpop.f32.mrb[0].mxu0
        %v10744 = vadd.f32 %v10701, %v10743
        %v10745 = vpop.f32.mrb[0].mxu0
        %v10746 = vadd.f32 %v10703, %v10745
        %v10747 = vpop.f32.mrb[0].mxu0
        %v10748 = vadd.f32 %v10705, %v10747
        %10749 = vdwg.mxu0
        %10750 = vmatprep.subr.bf16.mxu0 %v6708
        %10751 = vmatpush1.bf16.msra.mxu0 %v6707
        %10752 = vmatprep.subr.bf16.mxu0 %v6716
        %10753 = vmatpush1.bf16.msra.mxu0 %v6715
        %10754 = vmatprep.subr.bf16.mxu0 %v6724
        %10755 = vmatpush1.bf16.msra.mxu0 %v6723
        %10756 = vmatprep.subr.bf16.mxu0 %v6732
        %10757 = vmatpush1.bf16.msra.mxu0 %v6731
        %10758 = vmatprep.subr.bf16.mxu0 %v6740
        %10759 = vmatpush1.bf16.msra.mxu0 %v6739
        %10760 = vmatprep.subr.bf16.mxu0 %v6748
        %10761 = vmatpush1.bf16.msra.mxu0 %v6747
        %10762 = vmatprep.subr.bf16.mxu0 %v6756
        %10763 = vmatpush1.bf16.msra.mxu0 %v6755
        %10764 = vmatprep.subr.bf16.mxu0 %v6764
        %10765 = vmatpush1.bf16.msra.mxu0 %v6763
        %10766 = vmatprep.subr.bf16.mxu0 %v6772
        %10767 = vmatpush1.bf16.msra.mxu0 %v6771
        %10768 = vmatprep.subr.bf16.mxu0 %v6780
        %10769 = vmatpush1.bf16.msra.mxu0 %v6779
        %10770 = vmatprep.subr.bf16.mxu0 %v6788
        %10771 = vmatpush1.bf16.msra.mxu0 %v6787
        %10772 = vmatprep.subr.bf16.mxu0 %v6796
        %10773 = vmatpush1.bf16.msra.mxu0 %v6795
        %10774 = vmatprep.subr.bf16.mxu0 %v6804
        %10775 = vmatpush1.bf16.msra.mxu0 %v6803
        %10776 = vmatprep.subr.bf16.mxu0 %v6812
        %10777 = vmatpush1.bf16.msra.mxu0 %v6811
        %10778 = vmatprep.subr.bf16.mxu0 %v6820
        %10779 = vmatpush1.bf16.msra.mxu0 %v6819
        %10780 = vmatprep.subr.bf16.mxu0 %v6828
        %10781 = vmatpush1.bf16.msra.mxu0 %v6827
        %10782 = vmatprep.mubr.bf16.mxu0 %v9912
        %10783 = vmatmul.mubr.bf16.gmra.mrb[0].mxu0 %v9911
        %v10784 = vpop.f32.mrb[0].mxu0
        %v10785 = vadd.f32 %v10742, %v10784
        %v10786 = vpop.f32.mrb[0].mxu0
        %v10787 = vadd.f32 %v10744, %v10786
        %v10788 = vpop.f32.mrb[0].mxu0
        %v10789 = vadd.f32 %v10746, %v10788
        %v10790 = vpop.f32.mrb[0].mxu0
        %v10791 = vadd.f32 %v10748, %v10790
        %10792 = vdwg.mxu0
        %10793 = vmatprep.subr.bf16.mxu0 %v5558
        %10794 = vmatpush1.bf16.msra.mxu0 %v5557
        %10795 = vmatprep.subr.bf16.mxu0 %v5566
        %10796 = vmatpush1.bf16.msra.mxu0 %v5565
        %10797 = vmatprep.subr.bf16.mxu0 %v5574
        %10798 = vmatpush1.bf16.msra.mxu0 %v5573
        %10799 = vmatprep.subr.bf16.mxu0 %v5582
        %10800 = vmatpush1.bf16.msra.mxu0 %v5581
        %10801 = vmatprep.subr.bf16.mxu0 %v5590
        %10802 = vmatpush1.bf16.msra.mxu0 %v5589
        %10803 = vmatprep.subr.bf16.mxu0 %v5598
        %10804 = vmatpush1.bf16.msra.mxu0 %v5597
        %10805 = vmatprep.subr.bf16.mxu0 %v5606
        %10806 = vmatpush1.bf16.msra.mxu0 %v5605
        %10807 = vmatprep.subr.bf16.mxu0 %v5614
        %10808 = vmatpush1.bf16.msra.mxu0 %v5613
        %10809 = vmatprep.subr.bf16.mxu0 %v5622
        %10810 = vmatpush1.bf16.msra.mxu0 %v5621
        %10811 = vmatprep.subr.bf16.mxu0 %v5630
        %10812 = vmatpush1.bf16.msra.mxu0 %v5629
        %10813 = vmatprep.subr.bf16.mxu0 %v5638
        %10814 = vmatpush1.bf16.msra.mxu0 %v5637
        %10815 = vmatprep.subr.bf16.mxu0 %v5646
        %10816 = vmatpush1.bf16.msra.mxu0 %v5645
        %10817 = vmatprep.subr.bf16.mxu0 %v5654
        %10818 = vmatpush1.bf16.msra.mxu0 %v5653
        %10819 = vmatprep.subr.bf16.mxu0 %v5662
        %10820 = vmatpush1.bf16.msra.mxu0 %v5661
        %10821 = vmatprep.subr.bf16.mxu0 %v5670
        %10822 = vmatpush1.bf16.msra.mxu0 %v5669
        %10823 = vmatprep.subr.bf16.mxu0 %v5678
        %10824 = vmatpush1.bf16.msra.mxu0 %v5677
        %10825 = vmatprep.mubr.bf16.mxu0 %v9894
        %10826 = vmatmul.mubr.bf16.gmra.mrb[0].mxu0 %v9893
        %v10827 = vpop.f32.mrb[0].mxu0
        %v10828 = vadd.f32 0.0, %v10827
        %v10829 = vpop.f32.mrb[0].mxu0
        %v10830 = vadd.f32 0.0, %v10829
        %v10831 = vpop.f32.mrb[0].mxu0
        %v10832 = vadd.f32 0.0, %v10831
        %v10833 = vpop.f32.mrb[0].mxu0
        %v10834 = vadd.f32 0.0, %v10833
        %10835 = vdwg.mxu0
        %10836 = vmatprep.subr.bf16.mxu0 %v5686
        %10837 = vmatpush1.bf16.msra.mxu0 %v5685
        %10838 = vmatprep.subr.bf16.mxu0 %v5694
        %10839 = vmatpush1.bf16.msra.mxu0 %v5693
        %10840 = vmatprep.subr.bf16.mxu0 %v5702
        %10841 = vmatpush1.bf16.msra.mxu0 %v5701
        %10842 = vmatprep.subr.bf16.mxu0 %v5710
        %10843 = vmatpush1.bf16.msra.mxu0 %v5709
        %10844 = vmatprep.subr.bf16.mxu0 %v5718
        %10845 = vmatpush1.bf16.msra.mxu0 %v5717
        %10846 = vmatprep.subr.bf16.mxu0 %v5726
        %10847 = vmatpush1.bf16.msra.mxu0 %v5725
        %10848 = vmatprep.subr.bf16.mxu0 %v5734
        %10849 = vmatpush1.bf16.msra.mxu0 %v5733
        %10850 = vmatprep.subr.bf16.mxu0 %v5742
        %10851 = vmatpush1.bf16.msra.mxu0 %v5741
        %10852 = vmatprep.subr.bf16.mxu0 %v5750
        %10853 = vmatpush1.bf16.msra.mxu0 %v5749
        %10854 = vmatprep.subr.bf16.mxu0 %v5758
        %10855 = vmatpush1.bf16.msra.mxu0 %v5757
        %10856 = vmatprep.subr.bf16.mxu0 %v5766
        %10857 = vmatpush1.bf16.msra.mxu0 %v5765
        %10858 = vmatprep.subr.bf16.mxu0 %v5774
        %10859 = vmatpush1.bf16.msra.mxu0 %v5773
        %10860 = vmatprep.subr.bf16.mxu0 %v5782
        %10861 = vmatpush1.bf16.msra.mxu0 %v5781
        %10862 = vmatprep.subr.bf16.mxu0 %v5790
        %10863 = vmatpush1.bf16.msra.mxu0 %v5789
        %10864 = vmatprep.subr.bf16.mxu0 %v5798
        %10865 = vmatpush1.bf16.msra.mxu0 %v5797
        %10866 = vmatprep.subr.bf16.mxu0 %v5806
        %10867 = vmatpush1.bf16.msra.mxu0 %v5805
        %10868 = vmatprep.mubr.bf16.mxu0 %v9896
        %10869 = vmatmul.mubr.bf16.gmra.mrb[0].mxu0 %v9895
        %v10870 = vpop.f32.mrb[0].mxu0
        %v10871 = vadd.f32 %v10828, %v10870
        %v10872 = vpop.f32.mrb[0].mxu0
        %v10873 = vadd.f32 %v10830, %v10872
        %v10874 = vpop.f32.mrb[0].mxu0
        %v10875 = vadd.f32 %v10832, %v10874
        %v10876 = vpop.f32.mrb[0].mxu0
        %v10877 = vadd.f32 %v10834, %v10876
        %10878 = vdwg.mxu0
        %10879 = vmatprep.subr.bf16.mxu0 %v5814
        %10880 = vmatpush1.bf16.msra.mxu0 %v5813
        %10881 = vmatprep.subr.bf16.mxu0 %v5822
        %10882 = vmatpush1.bf16.msra.mxu0 %v5821
        %10883 = vmatprep.subr.bf16.mxu0 %v5830
        %10884 = vmatpush1.bf16.msra.mxu0 %v5829
        %10885 = vmatprep.subr.bf16.mxu0 %v5838
        %10886 = vmatpush1.bf16.msra.mxu0 %v5837
        %10887 = vmatprep.subr.bf16.mxu0 %v5846
        %10888 = vmatpush1.bf16.msra.mxu0 %v5845
        %10889 = vmatprep.subr.bf16.mxu0 %v5854
        %10890 = vmatpush1.bf16.msra.mxu0 %v5853
        %10891 = vmatprep.subr.bf16.mxu0 %v5862
        %10892 = vmatpush1.bf16.msra.mxu0 %v5861
        %10893 = vmatprep.subr.bf16.mxu0 %v5870
        %10894 = vmatpush1.bf16.msra.mxu0 %v5869
        %10895 = vmatprep.subr.bf16.mxu0 %v5878
        %10896 = vmatpush1.bf16.msra.mxu0 %v5877
        %10897 = vmatprep.subr.bf16.mxu0 %v5886
        %10898 = vmatpush1.bf16.msra.mxu0 %v5885
        %10899 = vmatprep.subr.bf16.mxu0 %v5894
        %10900 = vmatpush1.bf16.msra.mxu0 %v5893
        %10901 = vmatprep.subr.bf16.mxu0 %v5902
        %10902 = vmatpush1.bf16.msra.mxu0 %v5901
        %10903 = vmatprep.subr.bf16.mxu0 %v5910
        %10904 = vmatpush1.bf16.msra.mxu0 %v5909
        %10905 = vmatprep.subr.bf16.mxu0 %v5918
        %10906 = vmatpush1.bf16.msra.mxu0 %v5917
        %10907 = vmatprep.subr.bf16.mxu0 %v5926
        %10908 = vmatpush1.bf16.msra.mxu0 %v5925
        %10909 = vmatprep.subr.bf16.mxu0 %v5934
        %10910 = vmatpush1.bf16.msra.mxu0 %v5933
        %10911 = vmatprep.mubr.bf16.mxu0 %v9898
        %10912 = vmatmul.mubr.bf16.gmra.mrb[0].mxu0 %v9897
        %v10913 = vpop.f32.mrb[0].mxu0
        %v10914 = vadd.f32 %v10871, %v10913
        %v10915 = vpop.f32.mrb[0].mxu0
        %v10916 = vadd.f32 %v10873, %v10915
        %v10917 = vpop.f32.mrb[0].mxu0
        %v10918 = vadd.f32 %v10875, %v10917
        %v10919 = vpop.f32.mrb[0].mxu0
        %v10920 = vadd.f32 %v10877, %v10919
        %10921 = vdwg.mxu0
        %10922 = vmatprep.subr.bf16.mxu0 %v5942
        %10923 = vmatpush1.bf16.msra.mxu0 %v5941
        %10924 = vmatprep.subr.bf16.mxu0 %v5950
        %10925 = vmatpush1.bf16.msra.mxu0 %v5949
        %10926 = vmatprep.subr.bf16.mxu0 %v5958
        %10927 = vmatpush1.bf16.msra.mxu0 %v5957
        %10928 = vmatprep.subr.bf16.mxu0 %v5966
        %10929 = vmatpush1.bf16.msra.mxu0 %v5965
        %10930 = vmatprep.subr.bf16.mxu0 %v5974
        %10931 = vmatpush1.bf16.msra.mxu0 %v5973
        %10932 = vmatprep.subr.bf16.mxu0 %v5982
        %10933 = vmatpush1.bf16.msra.mxu0 %v5981
        %10934 = vmatprep.subr.bf16.mxu0 %v5990
        %10935 = vmatpush1.bf16.msra.mxu0 %v5989
        %10936 = vmatprep.subr.bf16.mxu0 %v5998
        %10937 = vmatpush1.bf16.msra.mxu0 %v5997
        %10938 = vmatprep.subr.bf16.mxu0 %v6006
        %10939 = vmatpush1.bf16.msra.mxu0 %v6005
        %10940 = vmatprep.subr.bf16.mxu0 %v6014
        %10941 = vmatpush1.bf16.msra.mxu0 %v6013
        %10942 = vmatprep.subr.bf16.mxu0 %v6022
        %10943 = vmatpush1.bf16.msra.mxu0 %v6021
        %10944 = vmatprep.subr.bf16.mxu0 %v6030
        %10945 = vmatpush1.bf16.msra.mxu0 %v6029
        %10946 = vmatprep.subr.bf16.mxu0 %v6038
        %10947 = vmatpush1.bf16.msra.mxu0 %v6037
        %10948 = vmatprep.subr.bf16.mxu0 %v6046
        %10949 = vmatpush1.bf16.msra.mxu0 %v6045
        %10950 = vmatprep.subr.bf16.mxu0 %v6054
        %10951 = vmatpush1.bf16.msra.mxu0 %v6053
        %10952 = vmatprep.subr.bf16.mxu0 %v6062
        %10953 = vmatpush1.bf16.msra.mxu0 %v6061
        %10954 = vmatprep.mubr.bf16.mxu0 %v9900
        %10955 = vmatmul.mubr.bf16.gmra.mrb[0].mxu0 %v9899
        %v10956 = vpop.f32.mrb[0].mxu0
        %v10957 = vadd.f32 %v10914, %v10956
        %v10958 = vpop.f32.mrb[0].mxu0
        %v10959 = vadd.f32 %v10916, %v10958
        %v10960 = vpop.f32.mrb[0].mxu0
        %v10961 = vadd.f32 %v10918, %v10960
        %v10962 = vpop.f32.mrb[0].mxu0
        %v10963 = vadd.f32 %v10920, %v10962
        %10964 = vdwg.mxu0
        %10965 = vmatprep.subr.bf16.mxu0 %v6070
        %10966 = vmatpush1.bf16.msra.mxu0 %v6069
        %10967 = vmatprep.subr.bf16.mxu0 %v6078
        %10968 = vmatpush1.bf16.msra.mxu0 %v6077
        %10969 = vmatprep.subr.bf16.mxu0 %v6086
        %10970 = vmatpush1.bf16.msra.mxu0 %v6085
        %10971 = vmatprep.subr.bf16.mxu0 %v6094
        %10972 = vmatpush1.bf16.msra.mxu0 %v6093
        %10973 = vmatprep.subr.bf16.mxu0 %v6102
        %10974 = vmatpush1.bf16.msra.mxu0 %v6101
        %10975 = vmatprep.subr.bf16.mxu0 %v6110
        %10976 = vmatpush1.bf16.msra.mxu0 %v6109
        %10977 = vmatprep.subr.bf16.mxu0 %v6118
        %10978 = vmatpush1.bf16.msra.mxu0 %v6117
        %10979 = vmatprep.subr.bf16.mxu0 %v6126
        %10980 = vmatpush1.bf16.msra.mxu0 %v6125
        %10981 = vmatprep.subr.bf16.mxu0 %v6134
        %10982 = vmatpush1.bf16.msra.mxu0 %v6133
        %10983 = vmatprep.subr.bf16.mxu0 %v6142
        %10984 = vmatpush1.bf16.msra.mxu0 %v6141
        %10985 = vmatprep.subr.bf16.mxu0 %v6150
        %10986 = vmatpush1.bf16.msra.mxu0 %v6149
        %10987 = vmatprep.subr.bf16.mxu0 %v6158
        %10988 = vmatpush1.bf16.msra.mxu0 %v6157
        %10989 = vmatprep.subr.bf16.mxu0 %v6166
        %10990 = vmatpush1.bf16.msra.mxu0 %v6165
        %10991 = vmatprep.subr.bf16.mxu0 %v6174
        %10992 = vmatpush1.bf16.msra.mxu0 %v6173
        %10993 = vmatprep.subr.bf16.mxu0 %v6182
        %10994 = vmatpush1.bf16.msra.mxu0 %v6181
        %10995 = vmatprep.subr.bf16.mxu0 %v6190
        %10996 = vmatpush1.bf16.msra.mxu0 %v6189
        %10997 = vmatprep.mubr.bf16.mxu0 %v9902
        %10998 = vmatmul.mubr.bf16.gmra.mrb[0].mxu0 %v9901
        %v10999 = vpop.f32.mrb[0].mxu0
        %v11000 = vadd.f32 %v10957, %v10999
        %v11001 = vpop.f32.mrb[0].mxu0
        %v11002 = vadd.f32 %v10959, %v11001
        %v11003 = vpop.f32.mrb[0].mxu0
        %v11004 = vadd.f32 %v10961, %v11003
        %v11005 = vpop.f32.mrb[0].mxu0
        %v11006 = vadd.f32 %v10963, %v11005
        %11007 = vdwg.mxu0
        %11008 = vmatprep.subr.bf16.mxu0 %v6198
        %11009 = vmatpush1.bf16.msra.mxu0 %v6197
        %11010 = vmatprep.subr.bf16.mxu0 %v6206
        %11011 = vmatpush1.bf16.msra.mxu0 %v6205
        %11012 = vmatprep.subr.bf16.mxu0 %v6214
        %11013 = vmatpush1.bf16.msra.mxu0 %v6213
        %11014 = vmatprep.subr.bf16.mxu0 %v6222
        %11015 = vmatpush1.bf16.msra.mxu0 %v6221
        %11016 = vmatprep.subr.bf16.mxu0 %v6230
        %11017 = vmatpush1.bf16.msra.mxu0 %v6229
        %11018 = vmatprep.subr.bf16.mxu0 %v6238
        %11019 = vmatpush1.bf16.msra.mxu0 %v6237
        %11020 = vmatprep.subr.bf16.mxu0 %v6246
        %11021 = vmatpush1.bf16.msra.mxu0 %v6245
        %11022 = vmatprep.subr.bf16.mxu0 %v6254
        %11023 = vmatpush1.bf16.msra.mxu0 %v6253
        %11024 = vmatprep.subr.bf16.mxu0 %v6262
        %11025 = vmatpush1.bf16.msra.mxu0 %v6261
        %11026 = vmatprep.subr.bf16.mxu0 %v6270
        %11027 = vmatpush1.bf16.msra.mxu0 %v6269
        %11028 = vmatprep.subr.bf16.mxu0 %v6278
        %11029 = vmatpush1.bf16.msra.mxu0 %v6277
        %11030 = vmatprep.subr.bf16.mxu0 %v6286
        %11031 = vmatpush1.bf16.msra.mxu0 %v6285
        %11032 = vmatprep.subr.bf16.mxu0 %v6294
        %11033 = vmatpush1.bf16.msra.mxu0 %v6293
        %11034 = vmatprep.subr.bf16.mxu0 %v6302
        %11035 = vmatpush1.bf16.msra.mxu0 %v6301
        %11036 = vmatprep.subr.bf16.mxu0 %v6310
        %11037 = vmatpush1.bf16.msra.mxu0 %v6309
        %11038 = vmatprep.subr.bf16.mxu0 %v6318
        %11039 = vmatpush1.bf16.msra.mxu0 %v6317
        %11040 = vmatprep.mubr.bf16.mxu0 %v9904
        %11041 = vmatmul.mubr.bf16.gmra.mrb[0].mxu0 %v9903
        %v11042 = vpop.f32.mrb[0].mxu0
        %v11043 = vadd.f32 %v11000, %v11042
        %v11044 = vpop.f32.mrb[0].mxu0
        %v11045 = vadd.f32 %v11002, %v11044
        %v11046 = vpop.f32.mrb[0].mxu0
        %v11047 = vadd.f32 %v11004, %v11046
        %v11048 = vpop.f32.mrb[0].mxu0
        %v11049 = vadd.f32 %v11006, %v11048
        %11050 = vdwg.mxu0
        %11051 = vmatprep.subr.bf16.mxu0 %v6326
        %11052 = vmatpush1.bf16.msra.mxu0 %v6325
        %11053 = vmatprep.subr.bf16.mxu0 %v6334
        %11054 = vmatpush1.bf16.msra.mxu0 %v6333
        %11055 = vmatprep.subr.bf16.mxu0 %v6342
        %11056 = vmatpush1.bf16.msra.mxu0 %v6341
        %11057 = vmatprep.subr.bf16.mxu0 %v6350
        %11058 = vmatpush1.bf16.msra.mxu0 %v6349
        %11059 = vmatprep.subr.bf16.mxu0 %v6358
        %11060 = vmatpush1.bf16.msra.mxu0 %v6357
        %11061 = vmatprep.subr.bf16.mxu0 %v6366
        %11062 = vmatpush1.bf16.msra.mxu0 %v6365
        %11063 = vmatprep.subr.bf16.mxu0 %v6374
        %11064 = vmatpush1.bf16.msra.mxu0 %v6373
        %11065 = vmatprep.subr.bf16.mxu0 %v6382
        %11066 = vmatpush1.bf16.msra.mxu0 %v6381
        %11067 = vmatprep.subr.bf16.mxu0 %v6390
        %11068 = vmatpush1.bf16.msra.mxu0 %v6389
        %11069 = vmatprep.subr.bf16.mxu0 %v6398
        %11070 = vmatpush1.bf16.msra.mxu0 %v6397
        %11071 = vmatprep.subr.bf16.mxu0 %v6406
        %11072 = vmatpush1.bf16.msra.mxu0 %v6405
        %11073 = vmatprep.subr.bf16.mxu0 %v6414
        %11074 = vmatpush1.bf16.msra.mxu0 %v6413
        %11075 = vmatprep.subr.bf16.mxu0 %v6422
        %11076 = vmatpush1.bf16.msra.mxu0 %v6421
        %11077 = vmatprep.subr.bf16.mxu0 %v6430
        %11078 = vmatpush1.bf16.msra.mxu0 %v6429
        %11079 = vmatprep.subr.bf16.mxu0 %v6438
        %11080 = vmatpush1.bf16.msra.mxu0 %v6437
        %11081 = vmatprep.subr.bf16.mxu0 %v6446
        %11082 = vmatpush1.bf16.msra.mxu0 %v6445
        %11083 = vmatprep.mubr.bf16.mxu0 %v9906
        %11084 = vmatmul.mubr.bf16.gmra.mrb[0].mxu0 %v9905
        %v11085 = vpop.f32.mrb[0].mxu0
        %v11086 = vadd.f32 %v11043, %v11085
        %v11087 = vpop.f32.mrb[0].mxu0
        %v11088 = vadd.f32 %v11045, %v11087
        %v11089 = vpop.f32.mrb[0].mxu0
        %v11090 = vadd.f32 %v11047, %v11089
        %v11091 = vpop.f32.mrb[0].mxu0
        %v11092 = vadd.f32 %v11049, %v11091
        %11093 = vdwg.mxu0
        %11094 = vmatprep.subr.bf16.mxu0 %v6454
        %11095 = vmatpush1.bf16.msra.mxu0 %v6453
        %11096 = vmatprep.subr.bf16.mxu0 %v6462
        %11097 = vmatpush1.bf16.msra.mxu0 %v6461
        %11098 = vmatprep.subr.bf16.mxu0 %v6470
        %11099 = vmatpush1.bf16.msra.mxu0 %v6469
        %11100 = vmatprep.subr.bf16.mxu0 %v6478
        %11101 = vmatpush1.bf16.msra.mxu0 %v6477
        %11102 = vmatprep.subr.bf16.mxu0 %v6486
        %11103 = vmatpush1.bf16.msra.mxu0 %v6485
        %11104 = vmatprep.subr.bf16.mxu0 %v6494
        %11105 = vmatpush1.bf16.msra.mxu0 %v6493
        %11106 = vmatprep.subr.bf16.mxu0 %v6502
        %11107 = vmatpush1.bf16.msra.mxu0 %v6501
        %11108 = vmatprep.subr.bf16.mxu0 %v6510
        %11109 = vmatpush1.bf16.msra.mxu0 %v6509
        %11110 = vmatprep.subr.bf16.mxu0 %v6518
        %11111 = vmatpush1.bf16.msra.mxu0 %v6517
        %11112 = vmatprep.subr.bf16.mxu0 %v6526
        %11113 = vmatpush1.bf16.msra.mxu0 %v6525
        %11114 = vmatprep.subr.bf16.mxu0 %v6534
        %11115 = vmatpush1.bf16.msra.mxu0 %v6533
        %11116 = vmatprep.subr.bf16.mxu0 %v6542
        %11117 = vmatpush1.bf16.msra.mxu0 %v6541
        %11118 = vmatprep.subr.bf16.mxu0 %v6550
        %11119 = vmatpush1.bf16.msra.mxu0 %v6549
        %11120 = vmatprep.subr.bf16.mxu0 %v6558
        %11121 = vmatpush1.bf16.msra.mxu0 %v6557
        %11122 = vmatprep.subr.bf16.mxu0 %v6566
        %11123 = vmatpush1.bf16.msra.mxu0 %v6565
        %11124 = vmatprep.subr.bf16.mxu0 %v6574
        %11125 = vmatpush1.bf16.msra.mxu0 %v6573
        %11126 = vmatprep.mubr.bf16.mxu0 %v9908
        %11127 = vmatmul.mubr.bf16.gmra.mrb[0].mxu0 %v9907
        %v11128 = vpop.f32.mrb[0].mxu0
        %v11129 = vadd.f32 %v11086, %v11128
        %v11130 = vpop.f32.mrb[0].mxu0
        %v11131 = vadd.f32 %v11088, %v11130
        %v11132 = vpop.f32.mrb[0].mxu0
        %v11133 = vadd.f32 %v11090, %v11132
        %v11134 = vpop.f32.mrb[0].mxu0
        %v11135 = vadd.f32 %v11092, %v11134
        %11136 = vdwg.mxu0
        %11137 = vmatprep.subr.bf16.mxu0 %v6582
        %11138 = vmatpush1.bf16.msra.mxu0 %v6581
        %11139 = vmatprep.subr.bf16.mxu0 %v6590
        %11140 = vmatpush1.bf16.msra.mxu0 %v6589
        %11141 = vmatprep.subr.bf16.mxu0 %v6598
        %11142 = vmatpush1.bf16.msra.mxu0 %v6597
        %11143 = vmatprep.subr.bf16.mxu0 %v6606
        %11144 = vmatpush1.bf16.msra.mxu0 %v6605
        %11145 = vmatprep.subr.bf16.mxu0 %v6614
        %11146 = vmatpush1.bf16.msra.mxu0 %v6613
        %11147 = vmatprep.subr.bf16.mxu0 %v6622
        %11148 = vmatpush1.bf16.msra.mxu0 %v6621
        %11149 = vmatprep.subr.bf16.mxu0 %v6630
        %11150 = vmatpush1.bf16.msra.mxu0 %v6629
        %11151 = vmatprep.subr.bf16.mxu0 %v6638
        %11152 = vmatpush1.bf16.msra.mxu0 %v6637
        %11153 = vmatprep.subr.bf16.mxu0 %v6646
        %11154 = vmatpush1.bf16.msra.mxu0 %v6645
        %11155 = vmatprep.subr.bf16.mxu0 %v6654
        %11156 = vmatpush1.bf16.msra.mxu0 %v6653
        %11157 = vmatprep.subr.bf16.mxu0 %v6662
        %11158 = vmatpush1.bf16.msra.mxu0 %v6661
        %11159 = vmatprep.subr.bf16.mxu0 %v6670
        %11160 = vmatpush1.bf16.msra.mxu0 %v6669
        %11161 = vmatprep.subr.bf16.mxu0 %v6678
        %11162 = vmatpush1.bf16.msra.mxu0 %v6677
        %11163 = vmatprep.subr.bf16.mxu0 %v6686
        %11164 = vmatpush1.bf16.msra.mxu0 %v6685
        %11165 = vmatprep.subr.bf16.mxu0 %v6694
        %11166 = vmatpush1.bf16.msra.mxu0 %v6693
        %11167 = vmatprep.subr.bf16.mxu0 %v6702
        %11168 = vmatpush1.bf16.msra.mxu0 %v6701
        %11169 = vmatprep.mubr.bf16.mxu0 %v9910
        %11170 = vmatmul.mubr.bf16.gmra.mrb[0].mxu0 %v9909
        %v11171 = vpop.f32.mrb[0].mxu0
        %v11172 = vadd.f32 %v11129, %v11171
        %v11173 = vpop.f32.mrb[0].mxu0
        %v11174 = vadd.f32 %v11131, %v11173
        %v11175 = vpop.f32.mrb[0].mxu0
        %v11176 = vadd.f32 %v11133, %v11175
        %v11177 = vpop.f32.mrb[0].mxu0
        %v11178 = vadd.f32 %v11135, %v11177
        %11179 = vdwg.mxu0
        %11180 = vmatprep.subr.bf16.mxu0 %v6710
        %11181 = vmatpush1.bf16.msra.mxu0 %v6709
        %11182 = vmatprep.subr.bf16.mxu0 %v6718
        %11183 = vmatpush1.bf16.msra.mxu0 %v6717
        %11184 = vmatprep.subr.bf16.mxu0 %v6726
        %11185 = vmatpush1.bf16.msra.mxu0 %v6725
        %11186 = vmatprep.subr.bf16.mxu0 %v6734
        %11187 = vmatpush1.bf16.msra.mxu0 %v6733
        %11188 = vmatprep.subr.bf16.mxu0 %v6742
        %11189 = vmatpush1.bf16.msra.mxu0 %v6741
        %11190 = vmatprep.subr.bf16.mxu0 %v6750
        %11191 = vmatpush1.bf16.msra.mxu0 %v6749
        %11192 = vmatprep.subr.bf16.mxu0 %v6758
        %11193 = vmatpush1.bf16.msra.mxu0 %v6757
        %11194 = vmatprep.subr.bf16.mxu0 %v6766
        %11195 = vmatpush1.bf16.msra.mxu0 %v6765
        %11196 = vmatprep.subr.bf16.mxu0 %v6774
        %11197 = vmatpush1.bf16.msra.mxu0 %v6773
        %11198 = vmatprep.subr.bf16.mxu0 %v6782
        %11199 = vmatpush1.bf16.msra.mxu0 %v6781
        %11200 = vmatprep.subr.bf16.mxu0 %v6790
        %11201 = vmatpush1.bf16.msra.mxu0 %v6789
        %11202 = vmatprep.subr.bf16.mxu0 %v6798
        %11203 = vmatpush1.bf16.msra.mxu0 %v6797
        %11204 = vmatprep.subr.bf16.mxu0 %v6806
        %11205 = vmatpush1.bf16.msra.mxu0 %v6805
        %11206 = vmatprep.subr.bf16.mxu0 %v6814
        %11207 = vmatpush1.bf16.msra.mxu0 %v6813
        %11208 = vmatprep.subr.bf16.mxu0 %v6822
        %11209 = vmatpush1.bf16.msra.mxu0 %v6821
        %11210 = vmatprep.subr.bf16.mxu0 %v6830
        %11211 = vmatpush1.bf16.msra.mxu0 %v6829
        %11212 = vmatprep.mubr.bf16.mxu0 %v9912
        %11213 = vmatmul.mubr.bf16.gmra.mrb[0].mxu0 %v9911
        %v11214 = vpop.f32.mrb[0].mxu0
        %v11215 = vadd.f32 %v11172, %v11214
        %v11216 = vpop.f32.mrb[0].mxu0
        %v11217 = vadd.f32 %v11174, %v11216
        %v11218 = vpop.f32.mrb[0].mxu0
        %v11219 = vadd.f32 %v11176, %v11218
        %v11220 = vpop.f32.mrb[0].mxu0
        %v11221 = vadd.f32 %v11178, %v11220
        %11222 = vdwg.mxu0
        %11223 = vmatprep.subr.bf16.mxu0 %v5560
        %11224 = vmatpush1.bf16.msra.mxu0 %v5559
        %11225 = vmatprep.subr.bf16.mxu0 %v5568
        %11226 = vmatpush1.bf16.msra.mxu0 %v5567
        %11227 = vmatprep.subr.bf16.mxu0 %v5576
        %11228 = vmatpush1.bf16.msra.mxu0 %v5575
        %11229 = vmatprep.subr.bf16.mxu0 %v5584
        %11230 = vmatpush1.bf16.msra.mxu0 %v5583
        %11231 = vmatprep.subr.bf16.mxu0 %v5592
        %11232 = vmatpush1.bf16.msra.mxu0 %v5591
        %11233 = vmatprep.subr.bf16.mxu0 %v5600
        %11234 = vmatpush1.bf16.msra.mxu0 %v5599
        %11235 = vmatprep.subr.bf16.mxu0 %v5608
        %11236 = vmatpush1.bf16.msra.mxu0 %v5607
        %11237 = vmatprep.subr.bf16.mxu0 %v5616
        %11238 = vmatpush1.bf16.msra.mxu0 %v5615
        %11239 = vmatprep.subr.bf16.mxu0 %v5624
        %11240 = vmatpush1.bf16.msra.mxu0 %v5623
        %11241 = vmatprep.subr.bf16.mxu0 %v5632
        %11242 = vmatpush1.bf16.msra.mxu0 %v5631
        %11243 = vmatprep.subr.bf16.mxu0 %v5640
        %11244 = vmatpush1.bf16.msra.mxu0 %v5639
        %11245 = vmatprep.subr.bf16.mxu0 %v5648
        %11246 = vmatpush1.bf16.msra.mxu0 %v5647
        %11247 = vmatprep.subr.bf16.mxu0 %v5656
        %11248 = vmatpush1.bf16.msra.mxu0 %v5655
        %11249 = vmatprep.subr.bf16.mxu0 %v5664
        %11250 = vmatpush1.bf16.msra.mxu0 %v5663
        %11251 = vmatprep.subr.bf16.mxu0 %v5672
        %11252 = vmatpush1.bf16.msra.mxu0 %v5671
        %11253 = vmatprep.subr.bf16.mxu0 %v5680
        %11254 = vmatpush1.bf16.msra.mxu0 %v5679
        %11255 = vmatprep.mubr.bf16.mxu0 %v9894
        %11256 = vmatmul.mubr.bf16.gmra.mrb[0].mxu0 %v9893
        %v11257 = vpop.f32.mrb[0].mxu0
        %v11258 = vadd.f32 0.0, %v11257
        %v11259 = vpop.f32.mrb[0].mxu0
        %v11260 = vadd.f32 0.0, %v11259
        %v11261 = vpop.f32.mrb[0].mxu0
        %v11262 = vadd.f32 0.0, %v11261
        %v11263 = vpop.f32.mrb[0].mxu0
        %v11264 = vadd.f32 0.0, %v11263
        %11265 = vdwg.mxu0
        %11266 = vmatprep.subr.bf16.mxu0 %v5688
        %11267 = vmatpush1.bf16.msra.mxu0 %v5687
        %11268 = vmatprep.subr.bf16.mxu0 %v5696
        %11269 = vmatpush1.bf16.msra.mxu0 %v5695
        %11270 = vmatprep.subr.bf16.mxu0 %v5704
        %11271 = vmatpush1.bf16.msra.mxu0 %v5703
        %11272 = vmatprep.subr.bf16.mxu0 %v5712
        %11273 = vmatpush1.bf16.msra.mxu0 %v5711
        %11274 = vmatprep.subr.bf16.mxu0 %v5720
        %11275 = vmatpush1.bf16.msra.mxu0 %v5719
        %11276 = vmatprep.subr.bf16.mxu0 %v5728
        %11277 = vmatpush1.bf16.msra.mxu0 %v5727
        %11278 = vmatprep.subr.bf16.mxu0 %v5736
        %11279 = vmatpush1.bf16.msra.mxu0 %v5735
        %11280 = vmatprep.subr.bf16.mxu0 %v5744
        %11281 = vmatpush1.bf16.msra.mxu0 %v5743
        %11282 = vmatprep.subr.bf16.mxu0 %v5752
        %11283 = vmatpush1.bf16.msra.mxu0 %v5751
        %11284 = vmatprep.subr.bf16.mxu0 %v5760
        %11285 = vmatpush1.bf16.msra.mxu0 %v5759
        %11286 = vmatprep.subr.bf16.mxu0 %v5768
        %11287 = vmatpush1.bf16.msra.mxu0 %v5767
        %11288 = vmatprep.subr.bf16.mxu0 %v5776
        %11289 = vmatpush1.bf16.msra.mxu0 %v5775
        %11290 = vmatprep.subr.bf16.mxu0 %v5784
        %11291 = vmatpush1.bf16.msra.mxu0 %v5783
        %11292 = vmatprep.subr.bf16.mxu0 %v5792
        %11293 = vmatpush1.bf16.msra.mxu0 %v5791
        %11294 = vmatprep.subr.bf16.mxu0 %v5800
        %11295 = vmatpush1.bf16.msra.mxu0 %v5799
        %11296 = vmatprep.subr.bf16.mxu0 %v5808
        %11297 = vmatpush1.bf16.msra.mxu0 %v5807
        %11298 = vmatprep.mubr.bf16.mxu0 %v9896
        %11299 = vmatmul.mubr.bf16.gmra.mrb[0].mxu0 %v9895
        %v11300 = vpop.f32.mrb[0].mxu0
        %v11301 = vadd.f32 %v11258, %v11300
        %v11302 = vpop.f32.mrb[0].mxu0
        %v11303 = vadd.f32 %v11260, %v11302
        %v11304 = vpop.f32.mrb[0].mxu0
        %v11305 = vadd.f32 %v11262, %v11304
        %v11306 = vpop.f32.mrb[0].mxu0
        %v11307 = vadd.f32 %v11264, %v11306
        %11308 = vdwg.mxu0
        %11309 = vmatprep.subr.bf16.mxu0 %v5816
        %11310 = vmatpush1.bf16.msra.mxu0 %v5815
        %11311 = vmatprep.subr.bf16.mxu0 %v5824
        %11312 = vmatpush1.bf16.msra.mxu0 %v5823
        %11313 = vmatprep.subr.bf16.mxu0 %v5832
        %11314 = vmatpush1.bf16.msra.mxu0 %v5831
        %11315 = vmatprep.subr.bf16.mxu0 %v5840
        %11316 = vmatpush1.bf16.msra.mxu0 %v5839
        %11317 = vmatprep.subr.bf16.mxu0 %v5848
        %11318 = vmatpush1.bf16.msra.mxu0 %v5847
        %11319 = vmatprep.subr.bf16.mxu0 %v5856
        %11320 = vmatpush1.bf16.msra.mxu0 %v5855
        %11321 = vmatprep.subr.bf16.mxu0 %v5864
        %11322 = vmatpush1.bf16.msra.mxu0 %v5863
        %11323 = vmatprep.subr.bf16.mxu0 %v5872
        %11324 = vmatpush1.bf16.msra.mxu0 %v5871
        %11325 = vmatprep.subr.bf16.mxu0 %v5880
        %11326 = vmatpush1.bf16.msra.mxu0 %v5879
        %11327 = vmatprep.subr.bf16.mxu0 %v5888
        %11328 = vmatpush1.bf16.msra.mxu0 %v5887
        %11329 = vmatprep.subr.bf16.mxu0 %v5896
        %11330 = vmatpush1.bf16.msra.mxu0 %v5895
        %11331 = vmatprep.subr.bf16.mxu0 %v5904
        %11332 = vmatpush1.bf16.msra.mxu0 %v5903
        %11333 = vmatprep.subr.bf16.mxu0 %v5912
        %11334 = vmatpush1.bf16.msra.mxu0 %v5911
        %11335 = vmatprep.subr.bf16.mxu0 %v5920
        %11336 = vmatpush1.bf16.msra.mxu0 %v5919
        %11337 = vmatprep.subr.bf16.mxu0 %v5928
        %11338 = vmatpush1.bf16.msra.mxu0 %v5927
        %11339 = vmatprep.subr.bf16.mxu0 %v5936
        %11340 = vmatpush1.bf16.msra.mxu0 %v5935
        %11341 = vmatprep.mubr.bf16.mxu0 %v9898
        %11342 = vmatmul.mubr.bf16.gmra.mrb[0].mxu0 %v9897
        %v11343 = vpop.f32.mrb[0].mxu0
        %v11344 = vadd.f32 %v11301, %v11343
        %v11345 = vpop.f32.mrb[0].mxu0
        %v11346 = vadd.f32 %v11303, %v11345
        %v11347 = vpop.f32.mrb[0].mxu0
        %v11348 = vadd.f32 %v11305, %v11347
        %v11349 = vpop.f32.mrb[0].mxu0
        %v11350 = vadd.f32 %v11307, %v11349
        %11351 = vdwg.mxu0
        %11352 = vmatprep.subr.bf16.mxu0 %v5944
        %11353 = vmatpush1.bf16.msra.mxu0 %v5943
        %11354 = vmatprep.subr.bf16.mxu0 %v5952
        %11355 = vmatpush1.bf16.msra.mxu0 %v5951
        %11356 = vmatprep.subr.bf16.mxu0 %v5960
        %11357 = vmatpush1.bf16.msra.mxu0 %v5959
        %11358 = vmatprep.subr.bf16.mxu0 %v5968
        %11359 = vmatpush1.bf16.msra.mxu0 %v5967
        %11360 = vmatprep.subr.bf16.mxu0 %v5976
        %11361 = vmatpush1.bf16.msra.mxu0 %v5975
        %11362 = vmatprep.subr.bf16.mxu0 %v5984
        %11363 = vmatpush1.bf16.msra.mxu0 %v5983
        %11364 = vmatprep.subr.bf16.mxu0 %v5992
        %11365 = vmatpush1.bf16.msra.mxu0 %v5991
        %11366 = vmatprep.subr.bf16.mxu0 %v6000
        %11367 = vmatpush1.bf16.msra.mxu0 %v5999
        %11368 = vmatprep.subr.bf16.mxu0 %v6008
        %11369 = vmatpush1.bf16.msra.mxu0 %v6007
        %11370 = vmatprep.subr.bf16.mxu0 %v6016
        %11371 = vmatpush1.bf16.msra.mxu0 %v6015
        %11372 = vmatprep.subr.bf16.mxu0 %v6024
        %11373 = vmatpush1.bf16.msra.mxu0 %v6023
        %11374 = vmatprep.subr.bf16.mxu0 %v6032
        %11375 = vmatpush1.bf16.msra.mxu0 %v6031
        %11376 = vmatprep.subr.bf16.mxu0 %v6040
        %11377 = vmatpush1.bf16.msra.mxu0 %v6039
        %11378 = vmatprep.subr.bf16.mxu0 %v6048
        %11379 = vmatpush1.bf16.msra.mxu0 %v6047
        %11380 = vmatprep.subr.bf16.mxu0 %v6056
        %11381 = vmatpush1.bf16.msra.mxu0 %v6055
        %11382 = vmatprep.subr.bf16.mxu0 %v6064
        %11383 = vmatpush1.bf16.msra.mxu0 %v6063
        %11384 = vmatprep.mubr.bf16.mxu0 %v9900
        %11385 = vmatmul.mubr.bf16.gmra.mrb[0].mxu0 %v9899
        %v11386 = vpop.f32.mrb[0].mxu0
        %v11387 = vadd.f32 %v11344, %v11386
        %v11388 = vpop.f32.mrb[0].mxu0
        %v11389 = vadd.f32 %v11346, %v11388
        %v11390 = vpop.f32.mrb[0].mxu0
        %v11391 = vadd.f32 %v11348, %v11390
        %v11392 = vpop.f32.mrb[0].mxu0
        %v11393 = vadd.f32 %v11350, %v11392
        %11394 = vdwg.mxu0
        %11395 = vmatprep.subr.bf16.mxu0 %v6072
        %11396 = vmatpush1.bf16.msra.mxu0 %v6071
        %11397 = vmatprep.subr.bf16.mxu0 %v6080
        %11398 = vmatpush1.bf16.msra.mxu0 %v6079
        %11399 = vmatprep.subr.bf16.mxu0 %v6088
        %11400 = vmatpush1.bf16.msra.mxu0 %v6087
        %11401 = vmatprep.subr.bf16.mxu0 %v6096
        %11402 = vmatpush1.bf16.msra.mxu0 %v6095
        %11403 = vmatprep.subr.bf16.mxu0 %v6104
        %11404 = vmatpush1.bf16.msra.mxu0 %v6103
        %11405 = vmatprep.subr.bf16.mxu0 %v6112
        %11406 = vmatpush1.bf16.msra.mxu0 %v6111
        %11407 = vmatprep.subr.bf16.mxu0 %v6120
        %11408 = vmatpush1.bf16.msra.mxu0 %v6119
        %11409 = vmatprep.subr.bf16.mxu0 %v6128
        %11410 = vmatpush1.bf16.msra.mxu0 %v6127
        %11411 = vmatprep.subr.bf16.mxu0 %v6136
        %11412 = vmatpush1.bf16.msra.mxu0 %v6135
        %11413 = vmatprep.subr.bf16.mxu0 %v6144
        %11414 = vmatpush1.bf16.msra.mxu0 %v6143
        %11415 = vmatprep.subr.bf16.mxu0 %v6152
        %11416 = vmatpush1.bf16.msra.mxu0 %v6151
        %11417 = vmatprep.subr.bf16.mxu0 %v6160
        %11418 = vmatpush1.bf16.msra.mxu0 %v6159
        %11419 = vmatprep.subr.bf16.mxu0 %v6168
        %11420 = vmatpush1.bf16.msra.mxu0 %v6167
        %11421 = vmatprep.subr.bf16.mxu0 %v6176
        %11422 = vmatpush1.bf16.msra.mxu0 %v6175
        %11423 = vmatprep.subr.bf16.mxu0 %v6184
        %11424 = vmatpush1.bf16.msra.mxu0 %v6183
        %11425 = vmatprep.subr.bf16.mxu0 %v6192
        %11426 = vmatpush1.bf16.msra.mxu0 %v6191
        %11427 = vmatprep.mubr.bf16.mxu0 %v9902
        %11428 = vmatmul.mubr.bf16.gmra.mrb[0].mxu0 %v9901
        %v11429 = vpop.f32.mrb[0].mxu0
        %v11430 = vadd.f32 %v11387, %v11429
        %v11431 = vpop.f32.mrb[0].mxu0
        %v11432 = vadd.f32 %v11389, %v11431
        %v11433 = vpop.f32.mrb[0].mxu0
        %v11434 = vadd.f32 %v11391, %v11433
        %v11435 = vpop.f32.mrb[0].mxu0
        %v11436 = vadd.f32 %v11393, %v11435
        %11437 = vdwg.mxu0
        %11438 = vmatprep.subr.bf16.mxu0 %v6200
        %11439 = vmatpush1.bf16.msra.mxu0 %v6199
        %11440 = vmatprep.subr.bf16.mxu0 %v6208
        %11441 = vmatpush1.bf16.msra.mxu0 %v6207
        %11442 = vmatprep.subr.bf16.mxu0 %v6216
        %11443 = vmatpush1.bf16.msra.mxu0 %v6215
        %11444 = vmatprep.subr.bf16.mxu0 %v6224
        %11445 = vmatpush1.bf16.msra.mxu0 %v6223
        %11446 = vmatprep.subr.bf16.mxu0 %v6232
        %11447 = vmatpush1.bf16.msra.mxu0 %v6231
        %11448 = vmatprep.subr.bf16.mxu0 %v6240
        %11449 = vmatpush1.bf16.msra.mxu0 %v6239
        %11450 = vmatprep.subr.bf16.mxu0 %v6248
        %11451 = vmatpush1.bf16.msra.mxu0 %v6247
        %11452 = vmatprep.subr.bf16.mxu0 %v6256
        %11453 = vmatpush1.bf16.msra.mxu0 %v6255
        %11454 = vmatprep.subr.bf16.mxu0 %v6264
        %11455 = vmatpush1.bf16.msra.mxu0 %v6263
        %11456 = vmatprep.subr.bf16.mxu0 %v6272
        %11457 = vmatpush1.bf16.msra.mxu0 %v6271
        %11458 = vmatprep.subr.bf16.mxu0 %v6280
        %11459 = vmatpush1.bf16.msra.mxu0 %v6279
        %11460 = vmatprep.subr.bf16.mxu0 %v6288
        %11461 = vmatpush1.bf16.msra.mxu0 %v6287
        %11462 = vmatprep.subr.bf16.mxu0 %v6296
        %11463 = vmatpush1.bf16.msra.mxu0 %v6295
        %11464 = vmatprep.subr.bf16.mxu0 %v6304
        %11465 = vmatpush1.bf16.msra.mxu0 %v6303
        %11466 = vmatprep.subr.bf16.mxu0 %v6312
        %11467 = vmatpush1.bf16.msra.mxu0 %v6311
        %11468 = vmatprep.subr.bf16.mxu0 %v6320
        %11469 = vmatpush1.bf16.msra.mxu0 %v6319
        %11470 = vmatprep.mubr.bf16.mxu0 %v9904
        %11471 = vmatmul.mubr.bf16.gmra.mrb[0].mxu0 %v9903
        %v11472 = vpop.f32.mrb[0].mxu0
        %v11473 = vadd.f32 %v11430, %v11472
        %v11474 = vpop.f32.mrb[0].mxu0
        %v11475 = vadd.f32 %v11432, %v11474
        %v11476 = vpop.f32.mrb[0].mxu0
        %v11477 = vadd.f32 %v11434, %v11476
        %v11478 = vpop.f32.mrb[0].mxu0
        %v11479 = vadd.f32 %v11436, %v11478
        %11480 = vdwg.mxu0
        %11481 = vmatprep.subr.bf16.mxu0 %v6328
        %11482 = vmatpush1.bf16.msra.mxu0 %v6327
        %11483 = vmatprep.subr.bf16.mxu0 %v6336
        %11484 = vmatpush1.bf16.msra.mxu0 %v6335
        %11485 = vmatprep.subr.bf16.mxu0 %v6344
        %11486 = vmatpush1.bf16.msra.mxu0 %v6343
        %11487 = vmatprep.subr.bf16.mxu0 %v6352
        %11488 = vmatpush1.bf16.msra.mxu0 %v6351
        %11489 = vmatprep.subr.bf16.mxu0 %v6360
        %11490 = vmatpush1.bf16.msra.mxu0 %v6359
        %11491 = vmatprep.subr.bf16.mxu0 %v6368
        %11492 = vmatpush1.bf16.msra.mxu0 %v6367
        %11493 = vmatprep.subr.bf16.mxu0 %v6376
        %11494 = vmatpush1.bf16.msra.mxu0 %v6375
        %11495 = vmatprep.subr.bf16.mxu0 %v6384
        %11496 = vmatpush1.bf16.msra.mxu0 %v6383
        %11497 = vmatprep.subr.bf16.mxu0 %v6392
        %11498 = vmatpush1.bf16.msra.mxu0 %v6391
        %11499 = vmatprep.subr.bf16.mxu0 %v6400
        %11500 = vmatpush1.bf16.msra.mxu0 %v6399
        %11501 = vmatprep.subr.bf16.mxu0 %v6408
        %11502 = vmatpush1.bf16.msra.mxu0 %v6407
        %11503 = vmatprep.subr.bf16.mxu0 %v6416
        %11504 = vmatpush1.bf16.msra.mxu0 %v6415
        %11505 = vmatprep.subr.bf16.mxu0 %v6424
        %11506 = vmatpush1.bf16.msra.mxu0 %v6423
        %11507 = vmatprep.subr.bf16.mxu0 %v6432
        %11508 = vmatpush1.bf16.msra.mxu0 %v6431
        %11509 = vmatprep.subr.bf16.mxu0 %v6440
        %11510 = vmatpush1.bf16.msra.mxu0 %v6439
        %11511 = vmatprep.subr.bf16.mxu0 %v6448
        %11512 = vmatpush1.bf16.msra.mxu0 %v6447
        %11513 = vmatprep.mubr.bf16.mxu0 %v9906
        %11514 = vmatmul.mubr.bf16.gmra.mrb[0].mxu0 %v9905
        %v11515 = vpop.f32.mrb[0].mxu0
        %v11516 = vadd.f32 %v11473, %v11515
        %v11517 = vpop.f32.mrb[0].mxu0
        %v11518 = vadd.f32 %v11475, %v11517
        %v11519 = vpop.f32.mrb[0].mxu0
        %v11520 = vadd.f32 %v11477, %v11519
        %v11521 = vpop.f32.mrb[0].mxu0
        %v11522 = vadd.f32 %v11479, %v11521
        %11523 = vdwg.mxu0
        %11524 = vmatprep.subr.bf16.mxu0 %v6456
        %11525 = vmatpush1.bf16.msra.mxu0 %v6455
        %11526 = vmatprep.subr.bf16.mxu0 %v6464
        %11527 = vmatpush1.bf16.msra.mxu0 %v6463
        %11528 = vmatprep.subr.bf16.mxu0 %v6472
        %11529 = vmatpush1.bf16.msra.mxu0 %v6471
        %11530 = vmatprep.subr.bf16.mxu0 %v6480
        %11531 = vmatpush1.bf16.msra.mxu0 %v6479
        %11532 = vmatprep.subr.bf16.mxu0 %v6488
        %11533 = vmatpush1.bf16.msra.mxu0 %v6487
        %11534 = vmatprep.subr.bf16.mxu0 %v6496
        %11535 = vmatpush1.bf16.msra.mxu0 %v6495
        %11536 = vmatprep.subr.bf16.mxu0 %v6504
        %11537 = vmatpush1.bf16.msra.mxu0 %v6503
        %11538 = vmatprep.subr.bf16.mxu0 %v6512
        %11539 = vmatpush1.bf16.msra.mxu0 %v6511
        %11540 = vmatprep.subr.bf16.mxu0 %v6520
        %11541 = vmatpush1.bf16.msra.mxu0 %v6519
        %11542 = vmatprep.subr.bf16.mxu0 %v6528
        %11543 = vmatpush1.bf16.msra.mxu0 %v6527
        %11544 = vmatprep.subr.bf16.mxu0 %v6536
        %11545 = vmatpush1.bf16.msra.mxu0 %v6535
        %11546 = vmatprep.subr.bf16.mxu0 %v6544
        %11547 = vmatpush1.bf16.msra.mxu0 %v6543
        %11548 = vmatprep.subr.bf16.mxu0 %v6552
        %11549 = vmatpush1.bf16.msra.mxu0 %v6551
        %11550 = vmatprep.subr.bf16.mxu0 %v6560
        %11551 = vmatpush1.bf16.msra.mxu0 %v6559
        %11552 = vmatprep.subr.bf16.mxu0 %v6568
        %11553 = vmatpush1.bf16.msra.mxu0 %v6567
        %11554 = vmatprep.subr.bf16.mxu0 %v6576
        %11555 = vmatpush1.bf16.msra.mxu0 %v6575
        %11556 = vmatprep.mubr.bf16.mxu0 %v9908
        %11557 = vmatmul.mubr.bf16.gmra.mrb[0].mxu0 %v9907
        %v11558 = vpop.f32.mrb[0].mxu0
        %v11559 = vadd.f32 %v11516, %v11558
        %v11560 = vpop.f32.mrb[0].mxu0
        %v11561 = vadd.f32 %v11518, %v11560
        %v11562 = vpop.f32.mrb[0].mxu0
        %v11563 = vadd.f32 %v11520, %v11562
        %v11564 = vpop.f32.mrb[0].mxu0
        %v11565 = vadd.f32 %v11522, %v11564
        %11566 = vdwg.mxu0
        %11567 = vmatprep.subr.bf16.mxu0 %v6584
        %11568 = vmatpush1.bf16.msra.mxu0 %v6583
        %11569 = vmatprep.subr.bf16.mxu0 %v6592
        %11570 = vmatpush1.bf16.msra.mxu0 %v6591
        %11571 = vmatprep.subr.bf16.mxu0 %v6600
        %11572 = vmatpush1.bf16.msra.mxu0 %v6599
        %11573 = vmatprep.subr.bf16.mxu0 %v6608
        %11574 = vmatpush1.bf16.msra.mxu0 %v6607
        %11575 = vmatprep.subr.bf16.mxu0 %v6616
        %11576 = vmatpush1.bf16.msra.mxu0 %v6615
        %11577 = vmatprep.subr.bf16.mxu0 %v6624
        %11578 = vmatpush1.bf16.msra.mxu0 %v6623
        %11579 = vmatprep.subr.bf16.mxu0 %v6632
        %11580 = vmatpush1.bf16.msra.mxu0 %v6631
        %11581 = vmatprep.subr.bf16.mxu0 %v6640
        %11582 = vmatpush1.bf16.msra.mxu0 %v6639
        %11583 = vmatprep.subr.bf16.mxu0 %v6648
        %11584 = vmatpush1.bf16.msra.mxu0 %v6647
        %11585 = vmatprep.subr.bf16.mxu0 %v6656
        %11586 = vmatpush1.bf16.msra.mxu0 %v6655
        %11587 = vmatprep.subr.bf16.mxu0 %v6664
        %11588 = vmatpush1.bf16.msra.mxu0 %v6663
        %11589 = vmatprep.subr.bf16.mxu0 %v6672
        %11590 = vmatpush1.bf16.msra.mxu0 %v6671
        %11591 = vmatprep.subr.bf16.mxu0 %v6680
        %11592 = vmatpush1.bf16.msra.mxu0 %v6679
        %11593 = vmatprep.subr.bf16.mxu0 %v6688
        %11594 = vmatpush1.bf16.msra.mxu0 %v6687
        %11595 = vmatprep.subr.bf16.mxu0 %v6696
        %11596 = vmatpush1.bf16.msra.mxu0 %v6695
        %11597 = vmatprep.subr.bf16.mxu0 %v6704
        %11598 = vmatpush1.bf16.msra.mxu0 %v6703
        %11599 = vmatprep.mubr.bf16.mxu0 %v9910
        %11600 = vmatmul.mubr.bf16.gmra.mrb[0].mxu0 %v9909
        %v11601 = vpop.f32.mrb[0].mxu0
        %v11602 = vadd.f32 %v11559, %v11601
        %v11603 = vpop.f32.mrb[0].mxu0
        %v11604 = vadd.f32 %v11561, %v11603
        %v11605 = vpop.f32.mrb[0].mxu0
        %v11606 = vadd.f32 %v11563, %v11605
        %v11607 = vpop.f32.mrb[0].mxu0
        %v11608 = vadd.f32 %v11565, %v11607
        %11609 = vdwg.mxu0
        %11610 = vmatprep.subr.bf16.mxu0 %v6712
        %11611 = vmatpush1.bf16.msra.mxu0 %v6711
        %11612 = vmatprep.subr.bf16.mxu0 %v6720
        %11613 = vmatpush1.bf16.msra.mxu0 %v6719
        %11614 = vmatprep.subr.bf16.mxu0 %v6728
        %11615 = vmatpush1.bf16.msra.mxu0 %v6727
        %11616 = vmatprep.subr.bf16.mxu0 %v6736
        %11617 = vmatpush1.bf16.msra.mxu0 %v6735
        %11618 = vmatprep.subr.bf16.mxu0 %v6744
        %11619 = vmatpush1.bf16.msra.mxu0 %v6743
        %11620 = vmatprep.subr.bf16.mxu0 %v6752
        %11621 = vmatpush1.bf16.msra.mxu0 %v6751
        %11622 = vmatprep.subr.bf16.mxu0 %v6760
        %11623 = vmatpush1.bf16.msra.mxu0 %v6759
        %11624 = vmatprep.subr.bf16.mxu0 %v6768
        %11625 = vmatpush1.bf16.msra.mxu0 %v6767
        %11626 = vmatprep.subr.bf16.mxu0 %v6776
        %11627 = vmatpush1.bf16.msra.mxu0 %v6775
        %11628 = vmatprep.subr.bf16.mxu0 %v6784
        %11629 = vmatpush1.bf16.msra.mxu0 %v6783
        %11630 = vmatprep.subr.bf16.mxu0 %v6792
        %11631 = vmatpush1.bf16.msra.mxu0 %v6791
        %11632 = vmatprep.subr.bf16.mxu0 %v6800
        %11633 = vmatpush1.bf16.msra.mxu0 %v6799
        %11634 = vmatprep.subr.bf16.mxu0 %v6808
        %11635 = vmatpush1.bf16.msra.mxu0 %v6807
        %11636 = vmatprep.subr.bf16.mxu0 %v6816
        %11637 = vmatpush1.bf16.msra.mxu0 %v6815
        %11638 = vmatprep.subr.bf16.mxu0 %v6824
        %11639 = vmatpush1.bf16.msra.mxu0 %v6823
        %11640 = vmatprep.subr.bf16.mxu0 %v6832
        %11641 = vmatpush1.bf16.msra.mxu0 %v6831
        %11642 = vmatprep.mubr.bf16.mxu0 %v9912
        %11643 = vmatmul.mubr.bf16.gmra.mrb[0].mxu0 %v9911
        %v11644 = vpop.f32.mrb[0].mxu0
        %v11645 = vadd.f32 %v11602, %v11644
        %v11646 = vpop.f32.mrb[0].mxu0
        %v11647 = vadd.f32 %v11604, %v11646
        %v11648 = vpop.f32.mrb[0].mxu0
        %v11649 = vadd.f32 %v11606, %v11648
        %v11650 = vpop.f32.mrb[0].mxu0
        %v11651 = vadd.f32 %v11608, %v11650
        %11652 = vdwg.mxu0
        %v11653 = vmul.f32 %v8535, %v8535
        %v11654 = vmul.f32 %v8537, %v8537
        %v11655 = vmul.f32 %v8965, %v8965
        %v11656 = vmul.f32 %v8967, %v8967
        %v11657 = vmul.f32 %v8539, %v8539
        %v11658 = vmul.f32 %v8541, %v8541
        %v11659 = vmul.f32 %v8969, %v8969
        %v11660 = vmul.f32 %v8971, %v8971
        %v11661 = vmul.f32 %v9395, %v9395
        %v11662 = vmul.f32 %v9397, %v9397
        %v11663 = vmul.f32 %v9825, %v9825
        %v11664 = vmul.f32 %v9827, %v9827
        %v11665 = vmul.f32 %v9399, %v9399
        %v11666 = vmul.f32 %v9401, %v9401
        %v11667 = vmul.f32 %v9829, %v9829
        %v11668 = vmul.f32 %v9831, %v9831
        %v11669 = vadd.f32 %v11653, %v11661
        %v11670 = vadd.f32 %v11654, %v11662
        %v11671 = vadd.f32 %v11655, %v11663
        %v11672 = vadd.f32 %v11656, %v11664
        %v11673 = vadd.f32 %v11657, %v11665
        %v11674 = vadd.f32 %v11658, %v11666
        %v11675 = vadd.f32 %v11659, %v11667
        %v11676 = vadd.f32 %v11660, %v11668
        %v11677 = vrsqrt.pop %v11669
        %v11678 = vmul.f32 %v11669, %v11677
        %vm11679 = vcmp.eq.f32.partialorder %v11669, inf
        %v11680 = vsel %vm11679, %v11669, %v11678
        %vm11681 = vcmp.eq.f32.partialorder %v11669, 0.0
        %v11682 = vand.u32 %v11669, 2147483648
        %v11683 = vsel %vm11681, %v11682, %v11680
        %v11684 = vrsqrt.pop %v11670
        %v11685 = vmul.f32 %v11670, %v11684
        %vm11686 = vcmp.eq.f32.partialorder %v11670, inf
        %v11687 = vsel %vm11686, %v11670, %v11685
        %vm11688 = vcmp.eq.f32.partialorder %v11670, 0.0
        %v11689 = vand.u32 %v11670, 2147483648
        %v11690 = vsel %vm11688, %v11689, %v11687
        %v11691 = vrsqrt.pop %v11671
        %v11692 = vmul.f32 %v11671, %v11691
        %vm11693 = vcmp.eq.f32.partialorder %v11671, inf
        %v11694 = vsel %vm11693, %v11671, %v11692
        %vm11695 = vcmp.eq.f32.partialorder %v11671, 0.0
        %v11696 = vand.u32 %v11671, 2147483648
        %v11697 = vsel %vm11695, %v11696, %v11694
        %v11698 = vrsqrt.pop %v11672
        %v11699 = vmul.f32 %v11672, %v11698
        %vm11700 = vcmp.eq.f32.partialorder %v11672, inf
        %v11701 = vsel %vm11700, %v11672, %v11699
        %vm11702 = vcmp.eq.f32.partialorder %v11672, 0.0
        %v11703 = vand.u32 %v11672, 2147483648
        %v11704 = vsel %vm11702, %v11703, %v11701
        %v11705 = vrsqrt.pop %v11673
        %v11706 = vmul.f32 %v11673, %v11705
        %vm11707 = vcmp.eq.f32.partialorder %v11673, inf
        %v11708 = vsel %vm11707, %v11673, %v11706
        %vm11709 = vcmp.eq.f32.partialorder %v11673, 0.0
        %v11710 = vand.u32 %v11673, 2147483648
        %v11711 = vsel %vm11709, %v11710, %v11708
        %v11712 = vrsqrt.pop %v11674
        %v11713 = vmul.f32 %v11674, %v11712
        %vm11714 = vcmp.eq.f32.partialorder %v11674, inf
        %v11715 = vsel %vm11714, %v11674, %v11713
        %vm11716 = vcmp.eq.f32.partialorder %v11674, 0.0
        %v11717 = vand.u32 %v11674, 2147483648
        %v11718 = vsel %vm11716, %v11717, %v11715
        %v11719 = vrsqrt.pop %v11675
        %v11720 = vmul.f32 %v11675, %v11719
        %vm11721 = vcmp.eq.f32.partialorder %v11675, inf
        %v11722 = vsel %vm11721, %v11675, %v11720
        %vm11723 = vcmp.eq.f32.partialorder %v11675, 0.0
        %v11724 = vand.u32 %v11675, 2147483648
        %v11725 = vsel %vm11723, %v11724, %v11722
        %v11726 = vrsqrt.pop %v11676
        %v11727 = vmul.f32 %v11676, %v11726
        %vm11728 = vcmp.eq.f32.partialorder %v11676, inf
        %v11729 = vsel %vm11728, %v11676, %v11727
        %vm11730 = vcmp.eq.f32.partialorder %v11676, 0.0
        %v11731 = vand.u32 %v11676, 2147483648
        %v11732 = vsel %vm11730, %v11731, %v11729
        %v11733 = vmax.f32 %v11683, 1e-07
        %v11734 = vmax.f32 %v11690, 1e-07
        %v11735 = vmax.f32 %v11697, 1e-07
        %v11736 = vmax.f32 %v11704, 1e-07
        %v11737 = vmax.f32 %v11711, 1e-07
        %v11738 = vmax.f32 %v11718, 1e-07
        %v11739 = vmax.f32 %v11725, 1e-07
        %v11740 = vmax.f32 %v11732, 1e-07
        %v11741 = vrsqrt.pop %v11733
        %v11742 = vmul.f32 %v11733, %v11741
        %vm11743 = vcmp.eq.f32.partialorder %v11733, inf
        %v11744 = vsel %vm11743, %v11733, %v11742
        %vm11745 = vcmp.eq.f32.partialorder %v11733, 0.0
        %v11746 = vand.u32 %v11733, 2147483648
        %v11747 = vsel %vm11745, %v11746, %v11744
        %v11748 = vrsqrt.pop %v11734
        %v11749 = vmul.f32 %v11734, %v11748
        %vm11750 = vcmp.eq.f32.partialorder %v11734, inf
        %v11751 = vsel %vm11750, %v11734, %v11749
        %vm11752 = vcmp.eq.f32.partialorder %v11734, 0.0
        %v11753 = vand.u32 %v11734, 2147483648
        %v11754 = vsel %vm11752, %v11753, %v11751
        %v11755 = vrsqrt.pop %v11735
        %v11756 = vmul.f32 %v11735, %v11755
        %vm11757 = vcmp.eq.f32.partialorder %v11735, inf
        %v11758 = vsel %vm11757, %v11735, %v11756
        %vm11759 = vcmp.eq.f32.partialorder %v11735, 0.0
        %v11760 = vand.u32 %v11735, 2147483648
        %v11761 = vsel %vm11759, %v11760, %v11758
        %v11762 = vrsqrt.pop %v11736
        %v11763 = vmul.f32 %v11736, %v11762
        %vm11764 = vcmp.eq.f32.partialorder %v11736, inf
        %v11765 = vsel %vm11764, %v11736, %v11763
        %vm11766 = vcmp.eq.f32.partialorder %v11736, 0.0
        %v11767 = vand.u32 %v11736, 2147483648
        %v11768 = vsel %vm11766, %v11767, %v11765
        %v11769 = vrsqrt.pop %v11737
        %v11770 = vmul.f32 %v11737, %v11769
        %vm11771 = vcmp.eq.f32.partialorder %v11737, inf
        %v11772 = vsel %vm11771, %v11737, %v11770
        %vm11773 = vcmp.eq.f32.partialorder %v11737, 0.0
        %v11774 = vand.u32 %v11737, 2147483648
        %v11775 = vsel %vm11773, %v11774, %v11772
        %v11776 = vrsqrt.pop %v11738
        %v11777 = vmul.f32 %v11738, %v11776
        %vm11778 = vcmp.eq.f32.partialorder %v11738, inf
        %v11779 = vsel %vm11778, %v11738, %v11777
        %vm11780 = vcmp.eq.f32.partialorder %v11738, 0.0
        %v11781 = vand.u32 %v11738, 2147483648
        %v11782 = vsel %vm11780, %v11781, %v11779
        %v11783 = vrsqrt.pop %v11739
        %v11784 = vmul.f32 %v11739, %v11783
        %vm11785 = vcmp.eq.f32.partialorder %v11739, inf
        %v11786 = vsel %vm11785, %v11739, %v11784
        %vm11787 = vcmp.eq.f32.partialorder %v11739, 0.0
        %v11788 = vand.u32 %v11739, 2147483648
        %v11789 = vsel %vm11787, %v11788, %v11786
        %v11790 = vrsqrt.pop %v11740
        %v11791 = vmul.f32 %v11740, %v11790
        %vm11792 = vcmp.eq.f32.partialorder %v11740, inf
        %v11793 = vsel %vm11792, %v11740, %v11791
        %vm11794 = vcmp.eq.f32.partialorder %v11740, 0.0
        %v11795 = vand.u32 %v11740, 2147483648
        %v11796 = vsel %vm11794, %v11795, %v11793
        %v11797 = vmul.f32 %v10355, %v10355
        %v11798 = vmul.f32 %v10357, %v10357
        %v11799 = vmul.f32 %v10785, %v10785
        %v11800 = vmul.f32 %v10787, %v10787
        %v11801 = vmul.f32 %v10359, %v10359
        %v11802 = vmul.f32 %v10361, %v10361
        %v11803 = vmul.f32 %v10789, %v10789
        %v11804 = vmul.f32 %v10791, %v10791
        %v11805 = vmul.f32 %v11215, %v11215
        %v11806 = vmul.f32 %v11217, %v11217
        %v11807 = vmul.f32 %v11645, %v11645
        %v11808 = vmul.f32 %v11647, %v11647
        %v11809 = vmul.f32 %v11219, %v11219
        %v11810 = vmul.f32 %v11221, %v11221
        %v11811 = vmul.f32 %v11649, %v11649
        %v11812 = vmul.f32 %v11651, %v11651
        %v11813 = vadd.f32 %v11797, %v11805
        %v11814 = vadd.f32 %v11798, %v11806
        %v11815 = vadd.f32 %v11799, %v11807
        %v11816 = vadd.f32 %v11800, %v11808
        %v11817 = vadd.f32 %v11801, %v11809
        %v11818 = vadd.f32 %v11802, %v11810
        %v11819 = vadd.f32 %v11803, %v11811
        %v11820 = vadd.f32 %v11804, %v11812
        %v11821 = vrsqrt.pop %v11813
        %v11822 = vmul.f32 %v11813, %v11821
        %vm11823 = vcmp.eq.f32.partialorder %v11813, inf
        %v11824 = vsel %vm11823, %v11813, %v11822
        %vm11825 = vcmp.eq.f32.partialorder %v11813, 0.0
        %v11826 = vand.u32 %v11813, 2147483648
        %v11827 = vsel %vm11825, %v11826, %v11824
        %v11828 = vrsqrt.pop %v11814
        %v11829 = vmul.f32 %v11814, %v11828
        %vm11830 = vcmp.eq.f32.partialorder %v11814, inf
        %v11831 = vsel %vm11830, %v11814, %v11829
        %vm11832 = vcmp.eq.f32.partialorder %v11814, 0.0
        %v11833 = vand.u32 %v11814, 2147483648
        %v11834 = vsel %vm11832, %v11833, %v11831
        %v11835 = vrsqrt.pop %v11815
        %v11836 = vmul.f32 %v11815, %v11835
        %vm11837 = vcmp.eq.f32.partialorder %v11815, inf
        %v11838 = vsel %vm11837, %v11815, %v11836
        %vm11839 = vcmp.eq.f32.partialorder %v11815, 0.0
        %v11840 = vand.u32 %v11815, 2147483648
        %v11841 = vsel %vm11839, %v11840, %v11838
        %v11842 = vrsqrt.pop %v11816
        %v11843 = vmul.f32 %v11816, %v11842
        %vm11844 = vcmp.eq.f32.partialorder %v11816, inf
        %v11845 = vsel %vm11844, %v11816, %v11843
        %vm11846 = vcmp.eq.f32.partialorder %v11816, 0.0
        %v11847 = vand.u32 %v11816, 2147483648
        %v11848 = vsel %vm11846, %v11847, %v11845
        %v11849 = vrsqrt.pop %v11817
        %v11850 = vmul.f32 %v11817, %v11849
        %vm11851 = vcmp.eq.f32.partialorder %v11817, inf
        %v11852 = vsel %vm11851, %v11817, %v11850
        %vm11853 = vcmp.eq.f32.partialorder %v11817, 0.0
        %v11854 = vand.u32 %v11817, 2147483648
        %v11855 = vsel %vm11853, %v11854, %v11852
        %v11856 = vrsqrt.pop %v11818
        %v11857 = vmul.f32 %v11818, %v11856
        %vm11858 = vcmp.eq.f32.partialorder %v11818, inf
        %v11859 = vsel %vm11858, %v11818, %v11857
        %vm11860 = vcmp.eq.f32.partialorder %v11818, 0.0
        %v11861 = vand.u32 %v11818, 2147483648
        %v11862 = vsel %vm11860, %v11861, %v11859
        %v11863 = vrsqrt.pop %v11819
        %v11864 = vmul.f32 %v11819, %v11863
        %vm11865 = vcmp.eq.f32.partialorder %v11819, inf
        %v11866 = vsel %vm11865, %v11819, %v11864
        %vm11867 = vcmp.eq.f32.partialorder %v11819, 0.0
        %v11868 = vand.u32 %v11819, 2147483648
        %v11869 = vsel %vm11867, %v11868, %v11866
        %v11870 = vrsqrt.pop %v11820
        %v11871 = vmul.f32 %v11820, %v11870
        %vm11872 = vcmp.eq.f32.partialorder %v11820, inf
        %v11873 = vsel %vm11872, %v11820, %v11871
        %vm11874 = vcmp.eq.f32.partialorder %v11820, 0.0
        %v11875 = vand.u32 %v11820, 2147483648
        %v11876 = vsel %vm11874, %v11875, %v11873
        %v11877 = vmax.f32 %v11827, 1e-07
        %v11878 = vmax.f32 %v11834, 1e-07
        %v11879 = vmax.f32 %v11841, 1e-07
        %v11880 = vmax.f32 %v11848, 1e-07
        %v11881 = vmax.f32 %v11855, 1e-07
        %v11882 = vmax.f32 %v11862, 1e-07
        %v11883 = vmax.f32 %v11869, 1e-07
        %v11884 = vmax.f32 %v11876, 1e-07
        %v11885 = vrsqrt.pop %v11877
        %v11886 = vmul.f32 %v11877, %v11885
        %vm11887 = vcmp.eq.f32.partialorder %v11877, inf
        %v11888 = vsel %vm11887, %v11877, %v11886
        %vm11889 = vcmp.eq.f32.partialorder %v11877, 0.0
        %v11890 = vand.u32 %v11877, 2147483648
        %v11891 = vsel %vm11889, %v11890, %v11888
        %v11892 = vrsqrt.pop %v11878
        %v11893 = vmul.f32 %v11878, %v11892
        %vm11894 = vcmp.eq.f32.partialorder %v11878, inf
        %v11895 = vsel %vm11894, %v11878, %v11893
        %vm11896 = vcmp.eq.f32.partialorder %v11878, 0.0
        %v11897 = vand.u32 %v11878, 2147483648
        %v11898 = vsel %vm11896, %v11897, %v11895
        %v11899 = vrsqrt.pop %v11879
        %v11900 = vmul.f32 %v11879, %v11899
        %vm11901 = vcmp.eq.f32.partialorder %v11879, inf
        %v11902 = vsel %vm11901, %v11879, %v11900
        %vm11903 = vcmp.eq.f32.partialorder %v11879, 0.0
        %v11904 = vand.u32 %v11879, 2147483648
        %v11905 = vsel %vm11903, %v11904, %v11902
        %v11906 = vrsqrt.pop %v11880
        %v11907 = vmul.f32 %v11880, %v11906
        %vm11908 = vcmp.eq.f32.partialorder %v11880, inf
        %v11909 = vsel %vm11908, %v11880, %v11907
        %vm11910 = vcmp.eq.f32.partialorder %v11880, 0.0
        %v11911 = vand.u32 %v11880, 2147483648
        %v11912 = vsel %vm11910, %v11911, %v11909
        %v11913 = vrsqrt.pop %v11881
        %v11914 = vmul.f32 %v11881, %v11913
        %vm11915 = vcmp.eq.f32.partialorder %v11881, inf
        %v11916 = vsel %vm11915, %v11881, %v11914
        %vm11917 = vcmp.eq.f32.partialorder %v11881, 0.0
        %v11918 = vand.u32 %v11881, 2147483648
        %v11919 = vsel %vm11917, %v11918, %v11916
        %v11920 = vrsqrt.pop %v11882
        %v11921 = vmul.f32 %v11882, %v11920
        %vm11922 = vcmp.eq.f32.partialorder %v11882, inf
        %v11923 = vsel %vm11922, %v11882, %v11921
        %vm11924 = vcmp.eq.f32.partialorder %v11882, 0.0
        %v11925 = vand.u32 %v11882, 2147483648
        %v11926 = vsel %vm11924, %v11925, %v11923
        %v11927 = vrsqrt.pop %v11883
        %v11928 = vmul.f32 %v11883, %v11927
        %vm11929 = vcmp.eq.f32.partialorder %v11883, inf
        %v11930 = vsel %vm11929, %v11883, %v11928
        %vm11931 = vcmp.eq.f32.partialorder %v11883, 0.0
        %v11932 = vand.u32 %v11883, 2147483648
        %v11933 = vsel %vm11931, %v11932, %v11930
        %v11934 = vrsqrt.pop %v11884
        %v11935 = vmul.f32 %v11884, %v11934
        %vm11936 = vcmp.eq.f32.partialorder %v11884, inf
        %v11937 = vsel %vm11936, %v11884, %v11935
        %vm11938 = vcmp.eq.f32.partialorder %v11884, 0.0
        %v11939 = vand.u32 %v11884, 2147483648
        %v11940 = vsel %vm11938, %v11939, %v11937
        %v11941 = vsub.f32 %v11891, %v11747
        %v11942 = vsub.f32 %v11898, %v11754
        %v11943 = vsub.f32 %v11905, %v11761
        %v11944 = vsub.f32 %v11912, %v11768
        %v11945 = vsub.f32 %v11919, %v11775
        %v11946 = vsub.f32 %v11926, %v11782
        %v11947 = vsub.f32 %v11933, %v11789
        %v11948 = vsub.f32 %v11940, %v11796
        %v11949 = vand.u32 2147483647, %v11941
        %v11950 = vand.u32 2147483647, %v11942
        %v11951 = vand.u32 2147483647, %v11943
        %v11952 = vand.u32 2147483647, %v11944
        %v11953 = vand.u32 2147483647, %v11945
        %v11954 = vand.u32 2147483647, %v11946
        %v11955 = vand.u32 2147483647, %v11947
        %v11956 = vand.u32 2147483647, %v11948
        %v11957 = vadd.f32 %v11949, %v11953
        %v11958 = vadd.f32 %v11950, %v11954
        %v11959 = vadd.f32 %v11951, %v11955
        %v11960 = vadd.f32 %v11952, %v11956
        %11961 = vst [vmem:[%s280] sm:$0xff] %v11957
        %11962 = vst [vmem:[%s280 + $0x8] sm:$0xff] %v11958
        %11963 = vst [vmem:[%s280 + $0x10] sm:$0xff] %v11959
        %11964 = vst [vmem:[%s280 + $0x18] sm:$0xff] %v11960
        %v11965 = vadd.f32 %v11891, %v11919
        %v11966 = vadd.f32 %v11898, %v11926
        %v11967 = vadd.f32 %v11905, %v11933
        %v11968 = vadd.f32 %v11912, %v11940
        %11969 = vst [vmem:[%s287] sm:$0xff] %v11965
        %11970 = vst [vmem:[%s287 + $0x8] sm:$0xff] %v11966
        %11971 = vst [vmem:[%s287 + $0x10] sm:$0xff] %v11967
        %11972 = vst [vmem:[%s287 + $0x18] sm:$0xff] %v11968
        %s11973 = sand.u32 %s124, 1
        %s11974 = scalar_lea.sflag [#allocation4], %s11973
        %s11975 = sand.u32 %s124, 1
        %s11976 = smul.addr %s11975, 32
        %s11977 = scalar_lea.vmem [#allocation8], %s11976
        %s11978 = sand.u32 %s152, 1
        %s11979 = scalar_lea.sflag [#allocation10], %s11978
        %s11980 = sand.u32 %s152, 1
        %s11981 = smul.addr %s11980, 32
        %s11982 = scalar_lea.vmem [#allocation9], %s11981
        // Predicated region
        $region45: #{tpu_custom_call.1} parent=31 // pred_check
          %p11983 = pneg %p134
        $region46: #{tpu_custom_call.1} parent=31 // pred_check_branch
          %11985 = sbr.rel (%p11983) target = $region48
        $region47: #{tpu_custom_call.1} parent=31 // pred_region
          %s11986 = smul.u32 4, %s28
          %s11988 = ssub.s32 512, 512
          %11989 = vsyncadd %s11974, %s11988
          %s11990 = smul.addr %s29, 12
          %s11991 = sadd.s32 %s11986, %s11990
          %s11992 = smul.addr %s11991, 128
          %s11993 = scalar_lea.hbm %s3, %s11992
          %s11995 = sshll.u32 %s11977, 4
          %s11996 = int_to_ptr.vmem [resolvable:$true] %s11995
          %11998 = dma.vmem_to_hbm [thread:$0]  %s11996, 512, %s11993, %s11974
        $region48: #{tpu_custom_call.1} parent=31 // pred_fallthru
          _
        // Predicated region
        $region49: #{tpu_custom_call.1} parent=31 // pred_check
          %p11999 = pneg %p162
        $region50: #{tpu_custom_call.1} parent=31 // pred_check_branch
          %12001 = sbr.rel (%p11999) target = $region52
        $region51: #{tpu_custom_call.1} parent=31 // pred_region
          %s12002 = smul.u32 4, %s28
          %s12004 = ssub.s32 512, 512
          %12005 = vsyncadd %s11979, %s12004
          %s12006 = smul.addr %s29, 12
          %s12007 = sadd.s32 %s12002, %s12006
          %s12008 = smul.addr %s12007, 128
          %s12009 = scalar_lea.hbm %s4, %s12008
          %s12011 = sshll.u32 %s11982, 4
          %s12012 = int_to_ptr.vmem [resolvable:$true] %s12011
          %12014 = dma.vmem_to_hbm [thread:$0]  %s12012, 512, %s12009, %s11979
        $region52: #{tpu_custom_call.1} parent=31 // pred_fallthru
          _
      $region32: #{tpu_custom_call.1} parent=5 // pred_fallthru
        _
      %p12015 = scmp.le.s32.totalorder 2, %s19
      // Predicated region
      $region53: #{tpu_custom_call.1} parent=5 // pred_check
        %p12016 = pneg %p12015
      $region54: #{tpu_custom_call.1} parent=5 // pred_check_branch
        %12018 = sbr.rel (%p12016) target = $region56
      $region55: #{tpu_custom_call.1} parent=5 // pred_region
        %s12019 = ssub.s32 %s19, 2
        // Predicated region
        $region57: #{tpu_custom_call.1} parent=55 // pred_check
          %p12020 = pneg %p140
        $region58: #{tpu_custom_call.1} parent=55 // pred_check_branch
          %12022 = sbr.rel (%p12020) target = $region60
        $region59: #{tpu_custom_call.1} parent=55 // pred_region
          %s12023 = sand.u32 %s125, 1
          %s12024 = scalar_lea.sflag [#allocation4], %s12023
          %s12025 = sand.u32 %s125, 1
          %s12026 = smul.addr %s12025, 32
          %s12027 = scalar_lea.vmem [#allocation8], %s12026
          %12028 = dma.done %s12024, 512
        $region60: #{tpu_custom_call.1} parent=55 // pred_fallthru
          _
        // Predicated region
        $region61: #{tpu_custom_call.1} parent=55 // pred_check
          %p12029 = pneg %p168
        $region62: #{tpu_custom_call.1} parent=55 // pred_check_branch
          %12031 = sbr.rel (%p12029) target = $region64
        $region63: #{tpu_custom_call.1} parent=55 // pred_region
          %s12032 = sand.u32 %s153, 1
          %s12033 = scalar_lea.sflag [#allocation10], %s12032
          %s12034 = sand.u32 %s153, 1
          %s12035 = smul.addr %s12034, 32
          %s12036 = scalar_lea.vmem [#allocation9], %s12035
          %12037 = dma.done %s12033, 512
        $region64: #{tpu_custom_call.1} parent=55 // pred_fallthru
          _
      $region56: #{tpu_custom_call.1} parent=5 // pred_fallthru
        _
    $region6: #{tpu_custom_call.1} parent=1 // loop_footer
      %s23 = sadd.s32 1, %s19
    $region7: #{tpu_custom_call.1} parent=1 // loop_footer_branch
      %18 = sbr.rel target = $region3
    $region8: #{tpu_custom_call.1} parent=1 // loop_exit
      _
    %12038 = vsyncpa [#allocation3], 1
    %s12039 = scalar_lea.sflag [#allocation3], 1
    %12040 = vsyncpa %s12039, 1
    %12041 = vsyncpa [#allocation6], 1
    %12042 = vsyncpa [#allocation4], 1
    %s12043 = scalar_lea.sflag [#allocation4], 1
    %12044 = vsyncpa %s12043, 1
    %12045 = vsyncpa [#allocation10], 1
    %s12046 = scalar_lea.sflag [#allocation10], 1
    %12047 = vsyncpa %s12046, 1

</llo_original>
